<compile_context>
chip_gen: v7x
topology: tpu7x:2x2x1
jax: 0.10.0
libtpu: 0.0.40
codegen_flags: <defaults>
</compile_context>

<pallas_src>
import functools

import jax
import jax.numpy as jnp
from jax.experimental import pallas as pl
from jax.experimental.pallas import tpu as pltpu


def _ode_lstm_kernel(
    x_ref,      # (T*bb, F)    bf16, block-major/time-major input
    ts_ref,     # (T, bb, 1)   f32 timespans for this batch block
    wih_ref,    # (F, 4H)      bf16, LSTM input->gates, gate order (i, f, o, g)
    whh_ref,    # (H, 4H)      bf16, LSTM hidden->gates, gate order (i, f, o, g)
    b_ref,      # (1, 4H)      f32, fused b_ih + b_hh, gate order (i, f, o, g)
    w1_ref,     # (H, H)       bf16, f_node layer 1 (pre-transposed)
    b1_ref,     # (1, H)       f32
    w21_ref,    # (H, H)       bf16, w2 @ w1 (folded)
    w2_ref,     # (H, H)       bf16, f_node layer 2 (pre-transposed)
    b2_ref,     # (1, H)       f32
    bw_ref,     # (1, H)       f32, b2 @ w1 (folded)
    wfc_ref,    # (H, 128)     bf16, output projection padded to 128 lanes
    bfc_ref,    # (1, 128)     f32, padded fc bias
    out_ref,    # (T*bb, 128)  f32, lane-dense output slab
    xg_scr,     # VMEM (T*bb, 4H) f32 scratch: hoisted input->gates matmul
    hs_scr,     # VMEM (T*bb, H)  f32 scratch: per-step hidden states
    *,
    hidden_size: int,
    batch_block: int,
    seq_len: int,
):
    H, B, T = hidden_size, batch_block, seq_len
    f32, bf16 = jnp.float32, jnp.bfloat16

    # ---- Prologue (no sequential dependence): one (T*B, F) @ (F, 4H) matmul
    # for all timesteps; result parked in VMEM scratch (bounds live ranges).
    xg_scr[...] = (
        jnp.dot(x_ref[...], wih_ref[...], preferred_element_type=f32)
        + b_ref[...]
    )

    # Weights loaded once, resident across the whole sequence loop.
    w_hh = whh_ref[...]
    w1, b1 = w1_ref[...], b1_ref[...]
    w21 = w21_ref[...]
    w2, b2 = w2_ref[...], b2_ref[...]
    bw = bw_ref[...]
    b2_x3 = 3.0 * b2

    h = jnp.zeros((B, H), f32)
    c = jnp.zeros((B, H), f32)

    # Sequence loop fully unrolled (T is small and static); for large T this
    # should become lax.fori_loop with the same scratch-backed hs/xg stores.
    for t in range(T):
        # ---- nn.LSTMCell; only h @ W_hh is on the serial path.
        gates = xg_scr[t * B:(t + 1) * B, :] + jnp.dot(
            h.astype(bf16), w_hh, preferred_element_type=f32)      # (B, 4H)
        # Gate order (i, f, o, g): one sigmoid over [0:3H], one tanh on [3H:4H].
        sig = jax.nn.sigmoid(gates[:, 0:3 * H])
        g_g = jnp.tanh(gates[:, 3 * H:4 * H])
        i_g = sig[:, 0:H]
        f_g = sig[:, H:2 * H]
        o_g = sig[:, 2 * H:3 * H]
        c = f_g * c + i_g * g_g
        h = o_g * jnp.tanh(c)

        # ---- solve_fixed with rk4: 3 substeps of size delta = ts/3, with the
        # f_node Linear-Tanh-Linear algebraically refactored:
        #   f_node(y) = tanh(y@w1 + b1) @ w2 + b2,  W21 = w2@w1,  bw = b2@w1
        #   carry ub = h@w1 + b1; each stage pre-act = ub + a*(z_prev@W21) + a*bw
        #   apply w2 once per timestep to the accumulated weighted z-sum.
        delta = jnp.broadcast_to(ts_ref[t] * (1.0 / 3.0), (B, H))  # hoisted
        half = delta * 0.5
        d6 = delta * (1.0 / 6.0)
        half_bw = half * bw
        delta_bw = delta * bw

        ub = jnp.dot(h.astype(bf16), w1, preferred_element_type=f32) + b1
        z_acc = jnp.zeros((B, H), f32)
        for s in range(3):
            z1 = jnp.tanh(ub)
            z2 = jnp.tanh(ub + half * jnp.dot(
                z1.astype(bf16), w21, preferred_element_type=f32) + half_bw)
            z3 = jnp.tanh(ub + half * jnp.dot(
                z2.astype(bf16), w21, preferred_element_type=f32) + half_bw)
            z4 = jnp.tanh(ub + delta * jnp.dot(
                z3.astype(bf16), w21, preferred_element_type=f32) + delta_bw)
            z_sum = z1 + 2.0 * z2 + 2.0 * z3 + z4
            z_acc = z_acc + z_sum
            if s < 2:  # ub only needed for the next substep
                ub = ub + d6 * jnp.dot(
                    z_sum.astype(bf16), w21,
                    preferred_element_type=f32) + delta_bw
        # h_3 = h_0 + (delta/6) * (sum_s Zsum_s) @ w2 + 3*delta*b2
        h = (h + d6 * jnp.dot(z_acc.astype(bf16), w2,
                              preferred_element_type=f32)
             + delta * b2_x3)

        hs_scr[t * B:(t + 1) * B, :] = h   # 8-row-aligned scratch store

    # ---- Epilogue: one batched fc projection + a single lane-dense store.
    out = (jnp.dot(hs_scr[...].astype(bf16), wfc_ref[...],
                   preferred_element_type=f32) + bfc_ref[...])
    out_ref[...] = out.astype(out_ref.dtype)


def _reorder_gates(w):
    """Last axis 4H in PyTorch LSTM order (i, f, g, o) -> kernel order (i, f, o, g)."""
    i, f, g, o = jnp.split(w, 4, axis=-1)
    return jnp.concatenate([i, f, o, g], axis=-1)


def ode_lstm_forward(x, timespans, params, *, hidden_size, out_feature,
                     num_batch_splits=1):
    """x: (B, T, F) f32; timespans: (B, T) f32. Returns (B, T, out_feature).

    num_batch_splits: number of independent batch blocks (leading "parallel"
    grid axis).  Set to 2 on v7x to use both TensorCores; keep 1 on
    single-TensorCore v5e/v6e.
    """
    B, T, F = x.shape
    H, O = hidden_size, out_feature
    O_PAD = 128  # lane-dense output width

    bf16, f32 = jnp.bfloat16, jnp.float32

    nb = max(1, int(num_batch_splits))
    bb = 8 * (-(-B // (8 * nb)))     # per-block batch rows, multiple of 8
    Bp = nb * bb

    # Pad batch to Bp (padded rows are independent and discarded at the end).
    x_p = jnp.zeros((Bp, T, F), f32).at[:B].set(x.astype(f32))
    ts_p = jnp.zeros((Bp, T), f32).at[:B].set(timespans.astype(f32))

    # Block-major, time-major layout: (nb, T, bb, F) -> (nb*T*bb, F).
    x_arr = (x_p.reshape(nb, bb, T, F).transpose(0, 2, 1, 3)
             .reshape(nb * T * bb, F).astype(bf16))
    ts_arr = (ts_p.reshape(nb, bb, T).transpose(0, 2, 1)
              .reshape(nb * T, bb)[:, :, None])                    # (nb*T, bb, 1)

    # Gate reorder, fused bias, folded RK4 weights; matmul operands -> bf16
    # (biases / folded bias terms kept f32; accumulation is f32 in-kernel).
    w_ih = _reorder_gates(params["w_ih_t"]).astype(bf16)           # (F, 4H)
    w_hh = _reorder_gates(params["w_hh_t"]).astype(bf16)           # (H, 4H)
    bias = _reorder_gates(params["b_ih"] + params["b_hh"])         # (1, 4H) f32
    w1_f32 = params["w1_t"]
    w2_f32 = params["w2_t"]
    w21 = (w2_f32 @ w1_f32).astype(bf16)                           # (H, H)
    bw = params["b2"] @ w1_f32                                     # (1, H) f32
    wfc_pad = jnp.zeros((H, O_PAD), f32).at[:, :O].set(params["w_fc_t"])
    bfc_pad = jnp.zeros((1, O_PAD), f32).at[:, :O].set(params["b_fc"])

    weight_args = (
        w_ih, w_hh, bias,
        w1_f32.astype(bf16), params["b1"],
        w21,
        w2_f32.astype(bf16), params["b2"], bw,
        wfc_pad.astype(bf16), bfc_pad,
    )

    def const_spec(shape):
        nd = len(shape)
        return pl.BlockSpec(shape, lambda i, _nd=nd: (0,) * _nd)

    grid_spec = pltpu.PrefetchScalarGridSpec(
        num_scalar_prefetch=0,
        grid=(nb,),  # batch blocks; the time loop runs entirely inside the kernel
        in_specs=[
            pl.BlockSpec((T * bb, F), lambda i: (i, 0)),
            pl.BlockSpec((T, bb, 1), lambda i: (i, 0, 0)),
        ] + [const_spec(w.shape) for w in weight_args],
        out_specs=pl.BlockSpec((T * bb, O_PAD), lambda i: (i, 0)),
        scratch_shapes=[
            pltpu.VMEM((T * bb, 4 * H), f32),   # xg (hoisted input->gates)
            pltpu.VMEM((T * bb, H), f32),       # per-step hidden states
        ],
    )

    out_flat = pl.pallas_call(
        functools.partial(_ode_lstm_kernel,
                          hidden_size=H, batch_block=bb, seq_len=T),
        out_shape=jax.ShapeDtypeStruct((nb * T * bb, O_PAD), f32),
        grid_spec=grid_spec,
        compiler_params=pltpu.CompilerParams(
            dimension_semantics=("parallel",),
            vmem_limit_bytes=32 * 1024 * 1024,
        ),
    )(x_arr, ts_arr, *weight_args)

    out = (out_flat.reshape(nb, T, bb, O_PAD).transpose(0, 2, 1, 3)
           .reshape(Bp, T, O_PAD))
    return out[:B, :, :O]


# ------------------------- pure-JAX reference ---------------------------
def _reference_forward(x, timespans, params, *, hidden_size, out_feature):
    B, T, F = x.shape
    H = hidden_size

    def f_node(y):
        z = jnp.tanh(y @ params["w1_t"] + params["b1"])
        return z @ params["w2_t"] + params["b2"]

    def rk4(y, delta):
        k1 = f_node(y)
        k2 = f_node(y + k1 * delta * 0.5)
        k3 = f_node(y + k2 * delta * 0.5)
        k4 = f_node(y + k3 * delta)
        return y + delta * (k1 + 2 * k2 + 2 * k3 + k4) / 6.0

    h = jnp.zeros((B, H), jnp.float32)
    c = jnp.zeros((B, H), jnp.float32)
    outs = []
    for t in range(T):
        x_t = x[:, t]
        ts = timespans[:, t][:, None]
        gates = (x_t @ params["w_ih_t"] + params["b_ih"]
                 + h @ params["w_hh_t"] + params["b_hh"])
        i_g = jax.nn.sigmoid(gates[:, 0:H])
        f_g = jax.nn.sigmoid(gates[:, H:2 * H])
        g_g = jnp.tanh(gates[:, 2 * H:3 * H])
        o_g = jax.nn.sigmoid(gates[:, 3 * H:4 * H])
        c = f_g * c + i_g * g_g
        h = o_g * jnp.tanh(c)
        delta = ts * (1.0 / 3.0)
        for _ in range(3):
            h = rk4(h, delta)
        outs.append(h @ params["w_fc_t"] + params["b_fc"])
    return jnp.stack(outs, axis=1)


# ------------------------------ main -------------------------------------
if __name__ == "__main__":
    # Model sizes (consistent with OdeLstm(in_features, hidden_size, out_feature)).
    B, T = 4, 8
    in_features, hidden_size, out_feature = 16, 32, 8

    key = jax.random.PRNGKey(0)
    keys = jax.random.split(key, 12)

    def init(k, shape, scale=0.1):
        return (scale * jax.random.normal(k, shape)).astype(jnp.float32)

    # Deterministic synthetic parameters (PyTorch gate order i,f,g,o,
    # pre-transposed for right-multiplication inside the kernel).
    params = {
        "w_ih_t": init(keys[0], (in_features, 4 * hidden_size)),
        "w_hh_t": init(keys[1], (hidden_size, 4 * hidden_size)),
        "b_ih":   init(keys[2], (1, 4 * hidden_size)),
        "b_hh":   init(keys[3], (1, 4 * hidden_size)),
        "w1_t":   init(keys[4], (hidden_size, hidden_size)),
        "b1":     init(keys[5], (1, hidden_size)),
        "w2_t":   init(keys[6], (hidden_size, hidden_size)),
        "b2":     init(keys[7], (1, hidden_size)),
        "w_fc_t": init(keys[8], (hidden_size, out_feature)),
        "b_fc":   init(keys[9], (1, out_feature)),
    }

    x = jax.random.normal(keys[10], (B, T, in_features), dtype=jnp.float32)
    # strictly positive "timespans", like irregular sampling intervals
    timespans = 0.1 + jax.random.uniform(keys[11], (B, T), dtype=jnp.float32)

    out = ode_lstm_forward(
        x, timespans, params, hidden_size=hidden_size, out_feature=out_feature
    )
    out = jax.block_until_ready(out)

    ref = _reference_forward(
        x, timespans, params, hidden_size=hidden_size, out_feature=out_feature
    )
    assert out.shape == (B, T, out_feature)
    # Tolerance loosened vs the pure-f32 version: matmul operands are bf16
    # (f32 accumulation / f32 state), and rounding compounds over T*3 RK4
    # substeps of the recurrence.
    assert jnp.allclose(out, ref, atol=3e-2, rtol=3e-2)

    print("KERNEL_OK")
</pallas_src>

<mosaic_0001>
module attributes {stable_mosaic.version = 11 : i64} {
  func.func @_ode_lstm_kernel(%arg0: i32, %arg1: memref<64x16xbf16, #tpu.memory_space<vmem>>, %arg2: memref<8x8x1xf32, #tpu.memory_space<vmem>>, %arg3: memref<16x128xbf16, #tpu.memory_space<vmem>>, %arg4: memref<32x128xbf16, #tpu.memory_space<vmem>>, %arg5: memref<1x128xf32, #tpu.memory_space<vmem>>, %arg6: memref<32x32xbf16, #tpu.memory_space<vmem>>, %arg7: memref<1x32xf32, #tpu.memory_space<vmem>>, %arg8: memref<32x32xbf16, #tpu.memory_space<vmem>>, %arg9: memref<32x32xbf16, #tpu.memory_space<vmem>>, %arg10: memref<1x32xf32, #tpu.memory_space<vmem>>, %arg11: memref<1x32xf32, #tpu.memory_space<vmem>>, %arg12: memref<32x128xbf16, #tpu.memory_space<vmem>>, %arg13: memref<1x128xf32, #tpu.memory_space<vmem>>, %arg14: memref<64x128xf32, #tpu.memory_space<vmem>>, %arg15: memref<64x128xf32, #tpu.memory_space<vmem>>, %arg16: memref<64x32xf32, #tpu.memory_space<vmem>>) attributes {dimension_semantics = [#tpu.dimension_semantics<parallel>], iteration_bounds = array<i64: 1>, scalar_prefetch = 0 : i64, scratch_operands = 2 : i64, tpu.core_type = #tpu.core_type<tc>, window_params = [{transform_indices = @transform_0, window_bounds = array<i64: 64, 16>}, {transform_indices = @transform_1, window_bounds = array<i64: 8, 8, 1>}, {pipeline_mode = #tpu.pipeline_mode<synchronous>, transform_indices = @transform_2, window_bounds = array<i64: 16, 128>}, {pipeline_mode = #tpu.pipeline_mode<synchronous>, transform_indices = @transform_3, window_bounds = array<i64: 32, 128>}, {pipeline_mode = #tpu.pipeline_mode<synchronous>, transform_indices = @transform_4, window_bounds = array<i64: 1, 128>}, {pipeline_mode = #tpu.pipeline_mode<synchronous>, transform_indices = @transform_5, window_bounds = array<i64: 32, 32>}, {pipeline_mode = #tpu.pipeline_mode<synchronous>, transform_indices = @transform_6, window_bounds = array<i64: 1, 32>}, {pipeline_mode = #tpu.pipeline_mode<synchronous>, transform_indices = @transform_7, window_bounds = array<i64: 32, 32>}, {pipeline_mode = #tpu.pipeline_mode<synchronous>, transform_indices = @transform_8, window_bounds = array<i64: 32, 32>}, {pipeline_mode = #tpu.pipeline_mode<synchronous>, transform_indices = @transform_9, window_bounds = array<i64: 1, 32>}, {pipeline_mode = #tpu.pipeline_mode<synchronous>, transform_indices = @transform_10, window_bounds = array<i64: 1, 32>}, {pipeline_mode = #tpu.pipeline_mode<synchronous>, transform_indices = @transform_11, window_bounds = array<i64: 32, 128>}, {pipeline_mode = #tpu.pipeline_mode<synchronous>, transform_indices = @transform_12, window_bounds = array<i64: 1, 128>}, {transform_indices = @transform_13, window_bounds = array<i64: 64, 128>}]} {
    %c0 = arith.constant 0 : index
    %c0_0 = arith.constant 0 : index
    %0 = vector.load %arg1[%c0, %c0_0] : memref<64x16xbf16, #tpu.memory_space<vmem>>, vector<64x16xbf16>
    %c0_1 = arith.constant 0 : index
    %c0_2 = arith.constant 0 : index
    %1 = vector.load %arg3[%c0_1, %c0_2] : memref<16x128xbf16, #tpu.memory_space<vmem>>, vector<16x128xbf16>
    %cst = arith.constant dense<0.000000e+00> : vector<64x128xf32>
    %2 = tpu.matmul %0, %1, %cst {dimension_numbers = #tpu.dot_dimension_numbers<[1], [0], [0], [1], [0, 0, 1, 1], [], []>} : vector<64x16xbf16>, vector<16x128xbf16>, vector<64x128xf32> -> vector<64x128xf32>
    %c0_3 = arith.constant 0 : index
    %c0_4 = arith.constant 0 : index
    %3 = vector.load %arg5[%c0_3, %c0_4] : memref<1x128xf32, #tpu.memory_space<vmem>>, vector<1x128xf32>
    %4 = vector.broadcast %3 : vector<1x128xf32> to vector<64x128xf32>
    %5 = arith.addf %2, %4 : vector<64x128xf32>
    %c0_5 = arith.constant 0 : index
    %c0_6 = arith.constant 0 : index
    %6 = vector.load %arg15[%c0_5, %c0_6] : memref<64x128xf32, #tpu.memory_space<vmem>>, vector<64x128xf32>
    tpu.vector_store %arg15[%c0_5, %c0_6], %5 {strides = array<i32>} : memref<64x128xf32, #tpu.memory_space<vmem>>, vector<64x128xf32>,
    %c0_7 = arith.constant 0 : index
    %c0_8 = arith.constant 0 : index
    %7 = vector.load %arg4[%c0_7, %c0_8] : memref<32x128xbf16, #tpu.memory_space<vmem>>, vector<32x128xbf16>
    %c0_9 = arith.constant 0 : index
    %c0_10 = arith.constant 0 : index
    %8 = vector.load %arg6[%c0_9, %c0_10] : memref<32x32xbf16, #tpu.memory_space<vmem>>, vector<32x32xbf16>
    %c0_11 = arith.constant 0 : index
    %c0_12 = arith.constant 0 : index
    %9 = vector.load %arg7[%c0_11, %c0_12] : memref<1x32xf32, #tpu.memory_space<vmem>>, vector<1x32xf32>
    %c0_13 = arith.constant 0 : index
    %c0_14 = arith.constant 0 : index
    %10 = vector.load %arg8[%c0_13, %c0_14] : memref<32x32xbf16, #tpu.memory_space<vmem>>, vector<32x32xbf16>
    %c0_15 = arith.constant 0 : index
    %c0_16 = arith.constant 0 : index
    %11 = vector.load %arg9[%c0_15, %c0_16] : memref<32x32xbf16, #tpu.memory_space<vmem>>, vector<32x32xbf16>
    %c0_17 = arith.constant 0 : index
    %c0_18 = arith.constant 0 : index
    %12 = vector.load %arg10[%c0_17, %c0_18] : memref<1x32xf32, #tpu.memory_space<vmem>>, vector<1x32xf32>
    %c0_19 = arith.constant 0 : index
    %c0_20 = arith.constant 0 : index
    %13 = vector.load %arg11[%c0_19, %c0_20] : memref<1x32xf32, #tpu.memory_space<vmem>>, vector<1x32xf32>
    %cst_21 = arith.constant 3.000000e+00 : f32
    %14 = vector.broadcast %cst_21 : f32 to vector<1x32xf32>
    %15 = arith.mulf %14, %12 : vector<1x32xf32>
    %cst_22 = arith.constant 0.000000e+00 : f32
    %16 = vector.broadcast %cst_22 : f32 to vector<8x32xf32>
    %cst_23 = arith.constant 0.000000e+00 : f32
    %17 = vector.broadcast %cst_23 : f32 to vector<8x32xf32>
    %c0_24 = arith.constant 0 : index
    %c0_25 = arith.constant 0 : index
    %18 = vector.load %arg15[%c0_24, %c0_25] : memref<64x128xf32, #tpu.memory_space<vmem>>, vector<8x128xf32>
    %19 = arith.truncf %16 : vector<8x32xf32> to vector<8x32xbf16>
    %cst_26 = arith.constant dense<0.000000e+00> : vector<8x128xf32>
    %20 = tpu.matmul %19, %7, %cst_26 {dimension_numbers = #tpu.dot_dimension_numbers<[1], [0], [0], [1], [0, 0, 1, 1], [], []>} : vector<8x32xbf16>, vector<32x128xbf16>, vector<8x128xf32> -> vector<8x128xf32>
    %21 = arith.addf %18, %20 : vector<8x128xf32>
    %22 = vector.extract_strided_slice %21 {offsets = [0, 0], sizes = [8, 96], strides = [1, 1]} : vector<8x128xf32> to vector<8x96xf32>
    %23 = arith.negf %22 : vector<8x96xf32>
    %24 = math.exp %23 : vector<8x96xf32>
    %cst_27 = arith.constant 1.000000e+00 : f32
    %25 = vector.broadcast %cst_27 : f32 to vector<8x96xf32>
    %26 = arith.addf %25, %24 : vector<8x96xf32>
    %27 = arith.divf %25, %26 : vector<8x96xf32>
    %28 = vector.extract_strided_slice %21 {offsets = [0, 96], sizes = [8, 32], strides = [1, 1]} : vector<8x128xf32> to vector<8x32xf32>
    %29 = math.tanh %28 : vector<8x32xf32>
    %30 = vector.extract_strided_slice %27 {offsets = [0, 0], sizes = [8, 32], strides = [1, 1]} : vector<8x96xf32> to vector<8x32xf32>
    %31 = vector.extract_strided_slice %27 {offsets = [0, 32], sizes = [8, 32], strides = [1, 1]} : vector<8x96xf32> to vector<8x32xf32>
    %32 = vector.extract_strided_slice %27 {offsets = [0, 64], sizes = [8, 32], strides = [1, 1]} : vector<8x96xf32> to vector<8x32xf32>
    %33 = arith.mulf %31, %17 : vector<8x32xf32>
    %34 = arith.mulf %30, %29 : vector<8x32xf32>
    %35 = arith.addf %33, %34 : vector<8x32xf32>
    %36 = math.tanh %35 : vector<8x32xf32>
    %37 = arith.mulf %32, %36 : vector<8x32xf32>
    %c0_28 = arith.constant 0 : index
    %c0_29 = arith.constant 0 : index
    %c0_30 = arith.constant 0 : index
    %38 = vector.load %arg2[%c0_28, %c0_29, %c0_30] : memref<8x8x1xf32, #tpu.memory_space<vmem>>, vector<1x8x1xf32>
    %39 = vector.shape_cast %38 : vector<1x8x1xf32> to vector<8x1xf32>
    %cst_31 = arith.constant 0.333333343 : f32
    %40 = vector.broadcast %cst_31 : f32 to vector<8x1xf32>
    %41 = arith.mulf %39, %40 : vector<8x1xf32>
    %42 = vector.shape_cast %41 : vector<8x1xf32> to vector<8x1xf32>
    %43 = vector.broadcast %42 : vector<8x1xf32> to vector<8x32xf32>
    %cst_32 = arith.constant 5.000000e-01 : f32
    %44 = vector.broadcast %cst_32 : f32 to vector<8x32xf32>
    %45 = arith.mulf %43, %44 : vector<8x32xf32>
    %cst_33 = arith.constant 0.166666672 : f32
    %46 = vector.broadcast %cst_33 : f32 to vector<8x32xf32>
    %47 = arith.mulf %43, %46 : vector<8x32xf32>
    %48 = vector.broadcast %13 : vector<1x32xf32> to vector<8x32xf32>
    %49 = arith.mulf %45, %48 : vector<8x32xf32>
    %50 = vector.broadcast %13 : vector<1x32xf32> to vector<8x32xf32>
    %51 = arith.mulf %43, %50 : vector<8x32xf32>
    %52 = arith.truncf %37 : vector<8x32xf32> to vector<8x32xbf16>
    %cst_34 = arith.constant dense<0.000000e+00> : vector<8x32xf32>
    %53 = tpu.matmul %52, %8, %cst_34 {dimension_numbers = #tpu.dot_dimension_numbers<[1], [0], [0], [1], [0, 0, 1, 1], [], []>} : vector<8x32xbf16>, vector<32x32xbf16>, vector<8x32xf32> -> vector<8x32xf32>
    %54 = vector.broadcast %9 : vector<1x32xf32> to vector<8x32xf32>
    %55 = arith.addf %53, %54 : vector<8x32xf32>
    %cst_35 = arith.constant 0.000000e+00 : f32
    %56 = vector.broadcast %cst_35 : f32 to vector<8x32xf32>
    %57 = math.tanh %55 : vector<8x32xf32>
    %58 = arith.truncf %57 : vector<8x32xf32> to vector<8x32xbf16>
    %cst_36 = arith.constant dense<0.000000e+00> : vector<8x32xf32>
    %59 = tpu.matmul %58, %10, %cst_36 {dimension_numbers = #tpu.dot_dimension_numbers<[1], [0], [0], [1], [0, 0, 1, 1], [], []>} : vector<8x32xbf16>, vector<32x32xbf16>, vector<8x32xf32> -> vector<8x32xf32>
    %60 = arith.mulf %45, %59 : vector<8x32xf32>
    %61 = arith.addf %55, %60 : vector<8x32xf32>
    %62 = arith.addf %61, %49 : vector<8x32xf32>
    %63 = math.tanh %62 : vector<8x32xf32>
    %64 = arith.truncf %63 : vector<8x32xf32> to vector<8x32xbf16>
    %cst_37 = arith.constant dense<0.000000e+00> : vector<8x32xf32>
    %65 = tpu.matmul %64, %10, %cst_37 {dimension_numbers = #tpu.dot_dimension_numbers<[1], [0], [0], [1], [0, 0, 1, 1], [], []>} : vector<8x32xbf16>, vector<32x32xbf16>, vector<8x32xf32> -> vector<8x32xf32>
    %66 = arith.mulf %45, %65 : vector<8x32xf32>
    %67 = arith.addf %55, %66 : vector<8x32xf32>
    %68 = arith.addf %67, %49 : vector<8x32xf32>
    %69 = math.tanh %68 : vector<8x32xf32>
    %70 = arith.truncf %69 : vector<8x32xf32> to vector<8x32xbf16>
    %cst_38 = arith.constant dense<0.000000e+00> : vector<8x32xf32>
    %71 = tpu.matmul %70, %10, %cst_38 {dimension_numbers = #tpu.dot_dimension_numbers<[1], [0], [0], [1], [0, 0, 1, 1], [], []>} : vector<8x32xbf16>, vector<32x32xbf16>, vector<8x32xf32> -> vector<8x32xf32>
    %72 = arith.mulf %43, %71 : vector<8x32xf32>
    %73 = arith.addf %55, %72 : vector<8x32xf32>
    %74 = arith.addf %73, %51 : vector<8x32xf32>
    %75 = math.tanh %74 : vector<8x32xf32>
    %cst_39 = arith.constant 2.000000e+00 : f32
    %76 = vector.broadcast %cst_39 : f32 to vector<8x32xf32>
    %77 = arith.mulf %76, %63 : vector<8x32xf32>
    %78 = arith.addf %57, %77 : vector<8x32xf32>
    %cst_40 = arith.constant 2.000000e+00 : f32
    %79 = vector.broadcast %cst_40 : f32 to vector<8x32xf32>
    %80 = arith.mulf %79, %69 : vector<8x32xf32>
    %81 = arith.addf %78, %80 : vector<8x32xf32>
    %82 = arith.addf %81, %75 : vector<8x32xf32>
    %83 = arith.addf %56, %82 : vector<8x32xf32>
    %84 = arith.truncf %82 : vector<8x32xf32> to vector<8x32xbf16>
    %cst_41 = arith.constant dense<0.000000e+00> : vector<8x32xf32>
    %85 = tpu.matmul %84, %10, %cst_41 {dimension_numbers = #tpu.dot_dimension_numbers<[1], [0], [0], [1], [0, 0, 1, 1], [], []>} : vector<8x32xbf16>, vector<32x32xbf16>, vector<8x32xf32> -> vector<8x32xf32>
    %86 = arith.mulf %47, %85 : vector<8x32xf32>
    %87 = arith.addf %55, %86 : vector<8x32xf32>
    %88 = arith.addf %87, %51 : vector<8x32xf32>
    %89 = math.tanh %88 : vector<8x32xf32>
    %90 = arith.truncf %89 : vector<8x32xf32> to vector<8x32xbf16>
    %cst_42 = arith.constant dense<0.000000e+00> : vector<8x32xf32>
    %91 = tpu.matmul %90, %10, %cst_42 {dimension_numbers = #tpu.dot_dimension_numbers<[1], [0], [0], [1], [0, 0, 1, 1], [], []>} : vector<8x32xbf16>, vector<32x32xbf16>, vector<8x32xf32> -> vector<8x32xf32>
    %92 = arith.mulf %45, %91 : vector<8x32xf32>
    %93 = arith.addf %88, %92 : vector<8x32xf32>
    %94 = arith.addf %93, %49 : vector<8x32xf32>
    %95 = math.tanh %94 : vector<8x32xf32>
    %96 = arith.truncf %95 : vector<8x32xf32> to vector<8x32xbf16>
    %cst_43 = arith.constant dense<0.000000e+00> : vector<8x32xf32>
    %97 = tpu.matmul %96, %10, %cst_43 {dimension_numbers = #tpu.dot_dimension_numbers<[1], [0], [0], [1], [0, 0, 1, 1], [], []>} : vector<8x32xbf16>, vector<32x32xbf16>, vector<8x32xf32> -> vector<8x32xf32>
    %98 = arith.mulf %45, %97 : vector<8x32xf32>
    %99 = arith.addf %88, %98 : vector<8x32xf32>
    %100 = arith.addf %99, %49 : vector<8x32xf32>
    %101 = math.tanh %100 : vector<8x32xf32>
    %102 = arith.truncf %101 : vector<8x32xf32> to vector<8x32xbf16>
    %cst_44 = arith.constant dense<0.000000e+00> : vector<8x32xf32>
    %103 = tpu.matmul %102, %10, %cst_44 {dimension_numbers = #tpu.dot_dimension_numbers<[1], [0], [0], [1], [0, 0, 1, 1], [], []>} : vector<8x32xbf16>, vector<32x32xbf16>, vector<8x32xf32> -> vector<8x32xf32>
    %104 = arith.mulf %43, %103 : vector<8x32xf32>
    %105 = arith.addf %88, %104 : vector<8x32xf32>
    %106 = arith.addf %105, %51 : vector<8x32xf32>
    %107 = math.tanh %106 : vector<8x32xf32>
    %cst_45 = arith.constant 2.000000e+00 : f32
    %108 = vector.broadcast %cst_45 : f32 to vector<8x32xf32>
    %109 = arith.mulf %108, %95 : vector<8x32xf32>
    %110 = arith.addf %89, %109 : vector<8x32xf32>
    %cst_46 = arith.constant 2.000000e+00 : f32
    %111 = vector.broadcast %cst_46 : f32 to vector<8x32xf32>
    %112 = arith.mulf %111, %101 : vector<8x32xf32>
    %113 = arith.addf %110, %112 : vector<8x32xf32>
    %114 = arith.addf %113, %107 : vector<8x32xf32>
    %115 = arith.addf %83, %114 : vector<8x32xf32>
    %116 = arith.truncf %114 : vector<8x32xf32> to vector<8x32xbf16>
    %cst_47 = arith.constant dense<0.000000e+00> : vector<8x32xf32>
    %117 = tpu.matmul %116, %10, %cst_47 {dimension_numbers = #tpu.dot_dimension_numbers<[1], [0], [0], [1], [0, 0, 1, 1], [], []>} : vector<8x32xbf16>, vector<32x32xbf16>, vector<8x32xf32> -> vector<8x32xf32>
    %118 = arith.mulf %47, %117 : vector<8x32xf32>
    %119 = arith.addf %88, %118 : vector<8x32xf32>
    %120 = arith.addf %119, %51 : vector<8x32xf32>
    %121 = math.tanh %120 : vector<8x32xf32>
    %122 = arith.truncf %121 : vector<8x32xf32> to vector<8x32xbf16>
    %cst_48 = arith.constant dense<0.000000e+00> : vector<8x32xf32>
    %123 = tpu.matmul %122, %10, %cst_48 {dimension_numbers = #tpu.dot_dimension_numbers<[1], [0], [0], [1], [0, 0, 1, 1], [], []>} : vector<8x32xbf16>, vector<32x32xbf16>, vector<8x32xf32> -> vector<8x32xf32>
    %124 = arith.mulf %45, %123 : vector<8x32xf32>
    %125 = arith.addf %120, %124 : vector<8x32xf32>
    %126 = arith.addf %125, %49 : vector<8x32xf32>
    %127 = math.tanh %126 : vector<8x32xf32>
    %128 = arith.truncf %127 : vector<8x32xf32> to vector<8x32xbf16>
    %cst_49 = arith.constant dense<0.000000e+00> : vector<8x32xf32>
    %129 = tpu.matmul %128, %10, %cst_49 {dimension_numbers = #tpu.dot_dimension_numbers<[1], [0], [0], [1], [0, 0, 1, 1], [], []>} : vector<8x32xbf16>, vector<32x32xbf16>, vector<8x32xf32> -> vector<8x32xf32>
    %130 = arith.mulf %45, %129 : vector<8x32xf32>
    %131 = arith.addf %120, %130 : vector<8x32xf32>
    %132 = arith.addf %131, %49 : vector<8x32xf32>
    %133 = math.tanh %132 : vector<8x32xf32>
    %134 = arith.truncf %133 : vector<8x32xf32> to vector<8x32xbf16>
    %cst_50 = arith.constant dense<0.000000e+00> : vector<8x32xf32>
    %135 = tpu.matmul %134, %10, %cst_50 {dimension_numbers = #tpu.dot_dimension_numbers<[1], [0], [0], [1], [0, 0, 1, 1], [], []>} : vector<8x32xbf16>, vector<32x32xbf16>, vector<8x32xf32> -> vector<8x32xf32>
    %136 = arith.mulf %43, %135 : vector<8x32xf32>
    %137 = arith.addf %120, %136 : vector<8x32xf32>
    %138 = arith.addf %137, %51 : vector<8x32xf32>
    %139 = math.tanh %138 : vector<8x32xf32>
    %cst_51 = arith.constant 2.000000e+00 : f32
    %140 = vector.broadcast %cst_51 : f32 to vector<8x32xf32>
    %141 = arith.mulf %140, %127 : vector<8x32xf32>
    %142 = arith.addf %121, %141 : vector<8x32xf32>
    %cst_52 = arith.constant 2.000000e+00 : f32
    %143 = vector.broadcast %cst_52 : f32 to vector<8x32xf32>
    %144 = arith.mulf %143, %133 : vector<8x32xf32>
    %145 = arith.addf %142, %144 : vector<8x32xf32>
    %146 = arith.addf %145, %139 : vector<8x32xf32>
    %147 = arith.addf %115, %146 : vector<8x32xf32>
    %148 = arith.truncf %147 : vector<8x32xf32> to vector<8x32xbf16>
    %cst_53 = arith.constant dense<0.000000e+00> : vector<8x32xf32>
    %149 = tpu.matmul %148, %11, %cst_53 {dimension_numbers = #tpu.dot_dimension_numbers<[1], [0], [0], [1], [0, 0, 1, 1], [], []>} : vector<8x32xbf16>, vector<32x32xbf16>, vector<8x32xf32> -> vector<8x32xf32>
    %150 = arith.mulf %47, %149 : vector<8x32xf32>
    %151 = arith.addf %37, %150 : vector<8x32xf32>
    %152 = vector.broadcast %15 : vector<1x32xf32> to vector<8x32xf32>
    %153 = arith.mulf %43, %152 : vector<8x32xf32>
    %154 = arith.addf %151, %153 : vector<8x32xf32>
    %c0_54 = arith.constant 0 : index
    %c0_55 = arith.constant 0 : index
    %155 = vector.load %arg16[%c0_54, %c0_55] : memref<64x32xf32, #tpu.memory_space<vmem>>, vector<8x32xf32>
    tpu.vector_store %arg16[%c0_54, %c0_55], %154 {strides = array<i32>} : memref<64x32xf32, #tpu.memory_space<vmem>>, vector<8x32xf32>,
    %c8 = arith.constant 8 : index
    %c0_56 = arith.constant 0 : index
    %156 = vector.load %arg15[%c8, %c0_56] : memref<64x128xf32, #tpu.memory_space<vmem>>, vector<8x128xf32>
    %157 = arith.truncf %154 : vector<8x32xf32> to vector<8x32xbf16>
    %cst_57 = arith.constant dense<0.000000e+00> : vector<8x128xf32>
    %158 = tpu.matmul %157, %7, %cst_57 {dimension_numbers = #tpu.dot_dimension_numbers<[1], [0], [0], [1], [0, 0, 1, 1], [], []>} : vector<8x32xbf16>, vector<32x128xbf16>, vector<8x128xf32> -> vector<8x128xf32>
    %159 = arith.addf %156, %158 : vector<8x128xf32>
    %160 = vector.extract_strided_slice %159 {offsets = [0, 0], sizes = [8, 96], strides = [1, 1]} : vector<8x128xf32> to vector<8x96xf32>
    %161 = arith.negf %160 : vector<8x96xf32>
    %162 = math.exp %161 : vector<8x96xf32>
    %cst_58 = arith.constant 1.000000e+00 : f32
    %163 = vector.broadcast %cst_58 : f32 to vector<8x96xf32>
    %164 = arith.addf %163, %162 : vector<8x96xf32>
    %165 = arith.divf %163, %164 : vector<8x96xf32>
    %166 = vector.extract_strided_slice %159 {offsets = [0, 96], sizes = [8, 32], strides = [1, 1]} : vector<8x128xf32> to vector<8x32xf32>
    %167 = math.tanh %166 : vector<8x32xf32>
    %168 = vector.extract_strided_slice %165 {offsets = [0, 0], sizes = [8, 32], strides = [1, 1]} : vector<8x96xf32> to vector<8x32xf32>
    %169 = vector.extract_strided_slice %165 {offsets = [0, 32], sizes = [8, 32], strides = [1, 1]} : vector<8x96xf32> to vector<8x32xf32>
    %170 = vector.extract_strided_slice %165 {offsets = [0, 64], sizes = [8, 32], strides = [1, 1]} : vector<8x96xf32> to vector<8x32xf32>
    %171 = arith.mulf %169, %35 : vector<8x32xf32>
    %172 = arith.mulf %168, %167 : vector<8x32xf32>
    %173 = arith.addf %171, %172 : vector<8x32xf32>
    %174 = math.tanh %173 : vector<8x32xf32>
    %175 = arith.mulf %170, %174 : vector<8x32xf32>
    %c1 = arith.constant 1 : index
    %c0_59 = arith.constant 0 : index
    %c0_60 = arith.constant 0 : index
    %176 = vector.load %arg2[%c1, %c0_59, %c0_60] : memref<8x8x1xf32, #tpu.memory_space<vmem>>, vector<1x8x1xf32>
    %177 = vector.shape_cast %176 : vector<1x8x1xf32> to vector<8x1xf32>
    %cst_61 = arith.constant 0.333333343 : f32
    %178 = vector.broadcast %cst_61 : f32 to vector<8x1xf32>
    %179 = arith.mulf %177, %178 : vector<8x1xf32>
    %180 = vector.shape_cast %179 : vector<8x1xf32> to vector<8x1xf32>
    %181 = vector.broadcast %180 : vector<8x1xf32> to vector<8x32xf32>
    %cst_62 = arith.constant 5.000000e-01 : f32
    %182 = vector.broadcast %cst_62 : f32 to vector<8x32xf32>
    %183 = arith.mulf %181, %182 : vector<8x32xf32>
    %cst_63 = arith.constant 0.166666672 : f32
    %184 = vector.broadcast %cst_63 : f32 to vector<8x32xf32>
    %185 = arith.mulf %181, %184 : vector<8x32xf32>
    %186 = vector.broadcast %13 : vector<1x32xf32> to vector<8x32xf32>
    %187 = arith.mulf %183, %186 : vector<8x32xf32>
    %188 = vector.broadcast %13 : vector<1x32xf32> to vector<8x32xf32>
    %189 = arith.mulf %181, %188 : vector<8x32xf32>
    %190 = arith.truncf %175 : vector<8x32xf32> to vector<8x32xbf16>
    %cst_64 = arith.constant dense<0.000000e+00> : vector<8x32xf32>
    %191 = tpu.matmul %190, %8, %cst_64 {dimension_numbers = #tpu.dot_dimension_numbers<[1], [0], [0], [1], [0, 0, 1, 1], [], []>} : vector<8x32xbf16>, vector<32x32xbf16>, vector<8x32xf32> -> vector<8x32xf32>
    %192 = vector.broadcast %9 : vector<1x32xf32> to vector<8x32xf32>
    %193 = arith.addf %191, %192 : vector<8x32xf32>
    %cst_65 = arith.constant 0.000000e+00 : f32
    %194 = vector.broadcast %cst_65 : f32 to vector<8x32xf32>
    %195 = math.tanh %193 : vector<8x32xf32>
    %196 = arith.truncf %195 : vector<8x32xf32> to vector<8x32xbf16>
    %cst_66 = arith.constant dense<0.000000e+00> : vector<8x32xf32>
    %197 = tpu.matmul %196, %10, %cst_66 {dimension_numbers = #tpu.dot_dimension_numbers<[1], [0], [0], [1], [0, 0, 1, 1], [], []>} : vector<8x32xbf16>, vector<32x32xbf16>, vector<8x32xf32> -> vector<8x32xf32>
    %198 = arith.mulf %183, %197 : vector<8x32xf32>
    %199 = arith.addf %193, %198 : vector<8x32xf32>
    %200 = arith.addf %199, %187 : vector<8x32xf32>
    %201 = math.tanh %200 : vector<8x32xf32>
    %202 = arith.truncf %201 : vector<8x32xf32> to vector<8x32xbf16>
    %cst_67 = arith.constant dense<0.000000e+00> : vector<8x32xf32>
    %203 = tpu.matmul %202, %10, %cst_67 {dimension_numbers = #tpu.dot_dimension_numbers<[1], [0], [0], [1], [0, 0, 1, 1], [], []>} : vector<8x32xbf16>, vector<32x32xbf16>, vector<8x32xf32> -> vector<8x32xf32>
    %204 = arith.mulf %183, %203 : vector<8x32xf32>
    %205 = arith.addf %193, %204 : vector<8x32xf32>
    %206 = arith.addf %205, %187 : vector<8x32xf32>
    %207 = math.tanh %206 : vector<8x32xf32>
    %208 = arith.truncf %207 : vector<8x32xf32> to vector<8x32xbf16>
    %cst_68 = arith.constant dense<0.000000e+00> : vector<8x32xf32>
    %209 = tpu.matmul %208, %10, %cst_68 {dimension_numbers = #tpu.dot_dimension_numbers<[1], [0], [0], [1], [0, 0, 1, 1], [], []>} : vector<8x32xbf16>, vector<32x32xbf16>, vector<8x32xf32> -> vector<8x32xf32>
    %210 = arith.mulf %181, %209 : vector<8x32xf32>
    %211 = arith.addf %193, %210 : vector<8x32xf32>
    %212 = arith.addf %211, %189 : vector<8x32xf32>
    %213 = math.tanh %212 : vector<8x32xf32>
    %cst_69 = arith.constant 2.000000e+00 : f32
    %214 = vector.broadcast %cst_69 : f32 to vector<8x32xf32>
    %215 = arith.mulf %214, %201 : vector<8x32xf32>
    %216 = arith.addf %195, %215 : vector<8x32xf32>
    %cst_70 = arith.constant 2.000000e+00 : f32
    %217 = vector.broadcast %cst_70 : f32 to vector<8x32xf32>
    %218 = arith.mulf %217, %207 : vector<8x32xf32>
    %219 = arith.addf %216, %218 : vector<8x32xf32>
    %220 = arith.addf %219, %213 : vector<8x32xf32>
    %221 = arith.addf %194, %220 : vector<8x32xf32>
    %222 = arith.truncf %220 : vector<8x32xf32> to vector<8x32xbf16>
    %cst_71 = arith.constant dense<0.000000e+00> : vector<8x32xf32>
    %223 = tpu.matmul %222, %10, %cst_71 {dimension_numbers = #tpu.dot_dimension_numbers<[1], [0], [0], [1], [0, 0, 1, 1], [], []>} : vector<8x32xbf16>, vector<32x32xbf16>, vector<8x32xf32> -> vector<8x32xf32>
    %224 = arith.mulf %185, %223 : vector<8x32xf32>
    %225 = arith.addf %193, %224 : vector<8x32xf32>
    %226 = arith.addf %225, %189 : vector<8x32xf32>
    %227 = math.tanh %226 : vector<8x32xf32>
    %228 = arith.truncf %227 : vector<8x32xf32> to vector<8x32xbf16>
    %cst_72 = arith.constant dense<0.000000e+00> : vector<8x32xf32>
    %229 = tpu.matmul %228, %10, %cst_72 {dimension_numbers = #tpu.dot_dimension_numbers<[1], [0], [0], [1], [0, 0, 1, 1], [], []>} : vector<8x32xbf16>, vector<32x32xbf16>, vector<8x32xf32> -> vector<8x32xf32>
    %230 = arith.mulf %183, %229 : vector<8x32xf32>
    %231 = arith.addf %226, %230 : vector<8x32xf32>
    %232 = arith.addf %231, %187 : vector<8x32xf32>
    %233 = math.tanh %232 : vector<8x32xf32>
    %234 = arith.truncf %233 : vector<8x32xf32> to vector<8x32xbf16>
    %cst_73 = arith.constant dense<0.000000e+00> : vector<8x32xf32>
    %235 = tpu.matmul %234, %10, %cst_73 {dimension_numbers = #tpu.dot_dimension_numbers<[1], [0], [0], [1], [0, 0, 1, 1], [], []>} : vector<8x32xbf16>, vector<32x32xbf16>, vector<8x32xf32> -> vector<8x32xf32>
    %236 = arith.mulf %183, %235 : vector<8x32xf32>
    %237 = arith.addf %226, %236 : vector<8x32xf32>
    %238 = arith.addf %237, %187 : vector<8x32xf32>
    %239 = math.tanh %238 : vector<8x32xf32>
    %240 = arith.truncf %239 : vector<8x32xf32> to vector<8x32xbf16>
    %cst_74 = arith.constant dense<0.000000e+00> : vector<8x32xf32>
    %241 = tpu.matmul %240, %10, %cst_74 {dimension_numbers = #tpu.dot_dimension_numbers<[1], [0], [0], [1], [0, 0, 1, 1], [], []>} : vector<8x32xbf16>, vector<32x32xbf16>, vector<8x32xf32> -> vector<8x32xf32>
    %242 = arith.mulf %181, %241 : vector<8x32xf32>
    %243 = arith.addf %226, %242 : vector<8x32xf32>
    %244 = arith.addf %243, %189 : vector<8x32xf32>
    %245 = math.tanh %244 : vector<8x32xf32>
    %cst_75 = arith.constant 2.000000e+00 : f32
    %246 = vector.broadcast %cst_75 : f32 to vector<8x32xf32>
    %247 = arith.mulf %246, %233 : vector<8x32xf32>
    %248 = arith.addf %227, %247 : vector<8x32xf32>
    %cst_76 = arith.constant 2.000000e+00 : f32
    %249 = vector.broadcast %cst_76 : f32 to vector<8x32xf32>
    %250 = arith.mulf %249, %239 : vector<8x32xf32>
    %251 = arith.addf %248, %250 : vector<8x32xf32>
    %252 = arith.addf %251, %245 : vector<8x32xf32>
    %253 = arith.addf %221, %252 : vector<8x32xf32>
    %254 = arith.truncf %252 : vector<8x32xf32> to vector<8x32xbf16>
    %cst_77 = arith.constant dense<0.000000e+00> : vector<8x32xf32>
    %255 = tpu.matmul %254, %10, %cst_77 {dimension_numbers = #tpu.dot_dimension_numbers<[1], [0], [0], [1], [0, 0, 1, 1], [], []>} : vector<8x32xbf16>, vector<32x32xbf16>, vector<8x32xf32> -> vector<8x32xf32>
    %256 = arith.mulf %185, %255 : vector<8x32xf32>
    %257 = arith.addf %226, %256 : vector<8x32xf32>
    %258 = arith.addf %257, %189 : vector<8x32xf32>
    %259 = math.tanh %258 : vector<8x32xf32>
    %260 = arith.truncf %259 : vector<8x32xf32> to vector<8x32xbf16>
    %cst_78 = arith.constant dense<0.000000e+00> : vector<8x32xf32>
    %261 = tpu.matmul %260, %10, %cst_78 {dimension_numbers = #tpu.dot_dimension_numbers<[1], [0], [0], [1], [0, 0, 1, 1], [], []>} : vector<8x32xbf16>, vector<32x32xbf16>, vector<8x32xf32> -> vector<8x32xf32>
    %262 = arith.mulf %183, %261 : vector<8x32xf32>
    %263 = arith.addf %258, %262 : vector<8x32xf32>
    %264 = arith.addf %263, %187 : vector<8x32xf32>
    %265 = math.tanh %264 : vector<8x32xf32>
    %266 = arith.truncf %265 : vector<8x32xf32> to vector<8x32xbf16>
    %cst_79 = arith.constant dense<0.000000e+00> : vector<8x32xf32>
    %267 = tpu.matmul %266, %10, %cst_79 {dimension_numbers = #tpu.dot_dimension_numbers<[1], [0], [0], [1], [0, 0, 1, 1], [], []>} : vector<8x32xbf16>, vector<32x32xbf16>, vector<8x32xf32> -> vector<8x32xf32>
    %268 = arith.mulf %183, %267 : vector<8x32xf32>
    %269 = arith.addf %258, %268 : vector<8x32xf32>
    %270 = arith.addf %269, %187 : vector<8x32xf32>
    %271 = math.tanh %270 : vector<8x32xf32>
    %272 = arith.truncf %271 : vector<8x32xf32> to vector<8x32xbf16>
    %cst_80 = arith.constant dense<0.000000e+00> : vector<8x32xf32>
    %273 = tpu.matmul %272, %10, %cst_80 {dimension_numbers = #tpu.dot_dimension_numbers<[1], [0], [0], [1], [0, 0, 1, 1], [], []>} : vector<8x32xbf16>, vector<32x32xbf16>, vector<8x32xf32> -> vector<8x32xf32>
    %274 = arith.mulf %181, %273 : vector<8x32xf32>
    %275 = arith.addf %258, %274 : vector<8x32xf32>
    %276 = arith.addf %275, %189 : vector<8x32xf32>
    %277 = math.tanh %276 : vector<8x32xf32>
    %cst_81 = arith.constant 2.000000e+00 : f32
    %278 = vector.broadcast %cst_81 : f32 to vector<8x32xf32>
    %279 = arith.mulf %278, %265 : vector<8x32xf32>
    %280 = arith.addf %259, %279 : vector<8x32xf32>
    %cst_82 = arith.constant 2.000000e+00 : f32
    %281 = vector.broadcast %cst_82 : f32 to vector<8x32xf32>
    %282 = arith.mulf %281, %271 : vector<8x32xf32>
    %283 = arith.addf %280, %282 : vector<8x32xf32>
    %284 = arith.addf %283, %277 : vector<8x32xf32>
    %285 = arith.addf %253, %284 : vector<8x32xf32>
    %286 = arith.truncf %285 : vector<8x32xf32> to vector<8x32xbf16>
    %cst_83 = arith.constant dense<0.000000e+00> : vector<8x32xf32>
    %287 = tpu.matmul %286, %11, %cst_83 {dimension_numbers = #tpu.dot_dimension_numbers<[1], [0], [0], [1], [0, 0, 1, 1], [], []>} : vector<8x32xbf16>, vector<32x32xbf16>, vector<8x32xf32> -> vector<8x32xf32>
    %288 = arith.mulf %185, %287 : vector<8x32xf32>
    %289 = arith.addf %175, %288 : vector<8x32xf32>
    %290 = vector.broadcast %15 : vector<1x32xf32> to vector<8x32xf32>
    %291 = arith.mulf %181, %290 : vector<8x32xf32>
    %292 = arith.addf %289, %291 : vector<8x32xf32>
    %c8_84 = arith.constant 8 : index
    %c0_85 = arith.constant 0 : index
    %293 = vector.load %arg16[%c8_84, %c0_85] : memref<64x32xf32, #tpu.memory_space<vmem>>, vector<8x32xf32>
    tpu.vector_store %arg16[%c8_84, %c0_85], %292 {strides = array<i32>} : memref<64x32xf32, #tpu.memory_space<vmem>>, vector<8x32xf32>,
    %c16 = arith.constant 16 : index
    %c0_86 = arith.constant 0 : index
    %294 = vector.load %arg15[%c16, %c0_86] : memref<64x128xf32, #tpu.memory_space<vmem>>, vector<8x128xf32>
    %295 = arith.truncf %292 : vector<8x32xf32> to vector<8x32xbf16>
    %cst_87 = arith.constant dense<0.000000e+00> : vector<8x128xf32>
    %296 = tpu.matmul %295, %7, %cst_87 {dimension_numbers = #tpu.dot_dimension_numbers<[1], [0], [0], [1], [0, 0, 1, 1], [], []>} : vector<8x32xbf16>, vector<32x128xbf16>, vector<8x128xf32> -> vector<8x128xf32>
    %297 = arith.addf %294, %296 : vector<8x128xf32>
    %298 = vector.extract_strided_slice %297 {offsets = [0, 0], sizes = [8, 96], strides = [1, 1]} : vector<8x128xf32> to vector<8x96xf32>
    %299 = arith.negf %298 : vector<8x96xf32>
    %300 = math.exp %299 : vector<8x96xf32>
    %cst_88 = arith.constant 1.000000e+00 : f32
    %301 = vector.broadcast %cst_88 : f32 to vector<8x96xf32>
    %302 = arith.addf %301, %300 : vector<8x96xf32>
    %303 = arith.divf %301, %302 : vector<8x96xf32>
    %304 = vector.extract_strided_slice %297 {offsets = [0, 96], sizes = [8, 32], strides = [1, 1]} : vector<8x128xf32> to vector<8x32xf32>
    %305 = math.tanh %304 : vector<8x32xf32>
    %306 = vector.extract_strided_slice %303 {offsets = [0, 0], sizes = [8, 32], strides = [1, 1]} : vector<8x96xf32> to vector<8x32xf32>
    %307 = vector.extract_strided_slice %303 {offsets = [0, 32], sizes = [8, 32], strides = [1, 1]} : vector<8x96xf32> to vector<8x32xf32>
    %308 = vector.extract_strided_slice %303 {offsets = [0, 64], sizes = [8, 32], strides = [1, 1]} : vector<8x96xf32> to vector<8x32xf32>
    %309 = arith.mulf %307, %173 : vector<8x32xf32>
    %310 = arith.mulf %306, %305 : vector<8x32xf32>
    %311 = arith.addf %309, %310 : vector<8x32xf32>
    %312 = math.tanh %311 : vector<8x32xf32>
    %313 = arith.mulf %308, %312 : vector<8x32xf32>
    %c2 = arith.constant 2 : index
    %c0_89 = arith.constant 0 : index
    %c0_90 = arith.constant 0 : index
    %314 = vector.load %arg2[%c2, %c0_89, %c0_90] : memref<8x8x1xf32, #tpu.memory_space<vmem>>, vector<1x8x1xf32>
    %315 = vector.shape_cast %314 : vector<1x8x1xf32> to vector<8x1xf32>
    %cst_91 = arith.constant 0.333333343 : f32
    %316 = vector.broadcast %cst_91 : f32 to vector<8x1xf32>
    %317 = arith.mulf %315, %316 : vector<8x1xf32>
    %318 = vector.shape_cast %317 : vector<8x1xf32> to vector<8x1xf32>
    %319 = vector.broadcast %318 : vector<8x1xf32> to vector<8x32xf32>
    %cst_92 = arith.constant 5.000000e-01 : f32
    %320 = vector.broadcast %cst_92 : f32 to vector<8x32xf32>
    %321 = arith.mulf %319, %320 : vector<8x32xf32>
    %cst_93 = arith.constant 0.166666672 : f32
    %322 = vector.broadcast %cst_93 : f32 to vector<8x32xf32>
    %323 = arith.mulf %319, %322 : vector<8x32xf32>
    %324 = vector.broadcast %13 : vector<1x32xf32> to vector<8x32xf32>
    %325 = arith.mulf %321, %324 : vector<8x32xf32>
    %326 = vector.broadcast %13 : vector<1x32xf32> to vector<8x32xf32>
    %327 = arith.mulf %319, %326 : vector<8x32xf32>
    %328 = arith.truncf %313 : vector<8x32xf32> to vector<8x32xbf16>
    %cst_94 = arith.constant dense<0.000000e+00> : vector<8x32xf32>
    %329 = tpu.matmul %328, %8, %cst_94 {dimension_numbers = #tpu.dot_dimension_numbers<[1], [0], [0], [1], [0, 0, 1, 1], [], []>} : vector<8x32xbf16>, vector<32x32xbf16>, vector<8x32xf32> -> vector<8x32xf32>
    %330 = vector.broadcast %9 : vector<1x32xf32> to vector<8x32xf32>
    %331 = arith.addf %329, %330 : vector<8x32xf32>
    %cst_95 = arith.constant 0.000000e+00 : f32
    %332 = vector.broadcast %cst_95 : f32 to vector<8x32xf32>
    %333 = math.tanh %331 : vector<8x32xf32>
    %334 = arith.truncf %333 : vector<8x32xf32> to vector<8x32xbf16>
    %cst_96 = arith.constant dense<0.000000e+00> : vector<8x32xf32>
    %335 = tpu.matmul %334, %10, %cst_96 {dimension_numbers = #tpu.dot_dimension_numbers<[1], [0], [0], [1], [0, 0, 1, 1], [], []>} : vector<8x32xbf16>, vector<32x32xbf16>, vector<8x32xf32> -> vector<8x32xf32>
    %336 = arith.mulf %321, %335 : vector<8x32xf32>
    %337 = arith.addf %331, %336 : vector<8x32xf32>
    %338 = arith.addf %337, %325 : vector<8x32xf32>
    %339 = math.tanh %338 : vector<8x32xf32>
    %340 = arith.truncf %339 : vector<8x32xf32> to vector<8x32xbf16>
    %cst_97 = arith.constant dense<0.000000e+00> : vector<8x32xf32>
    %341 = tpu.matmul %340, %10, %cst_97 {dimension_numbers = #tpu.dot_dimension_numbers<[1], [0], [0], [1], [0, 0, 1, 1], [], []>} : vector<8x32xbf16>, vector<32x32xbf16>, vector<8x32xf32> -> vector<8x32xf32>
    %342 = arith.mulf %321, %341 : vector<8x32xf32>
    %343 = arith.addf %331, %342 : vector<8x32xf32>
    %344 = arith.addf %343, %325 : vector<8x32xf32>
    %345 = math.tanh %344 : vector<8x32xf32>
    %346 = arith.truncf %345 : vector<8x32xf32> to vector<8x32xbf16>
    %cst_98 = arith.constant dense<0.000000e+00> : vector<8x32xf32>
    %347 = tpu.matmul %346, %10, %cst_98 {dimension_numbers = #tpu.dot_dimension_numbers<[1], [0], [0], [1], [0, 0, 1, 1], [], []>} : vector<8x32xbf16>, vector<32x32xbf16>, vector<8x32xf32> -> vector<8x32xf32>
    %348 = arith.mulf %319, %347 : vector<8x32xf32>
    %349 = arith.addf %331, %348 : vector<8x32xf32>
    %350 = arith.addf %349, %327 : vector<8x32xf32>
    %351 = math.tanh %350 : vector<8x32xf32>
    %cst_99 = arith.constant 2.000000e+00 : f32
    %352 = vector.broadcast %cst_99 : f32 to vector<8x32xf32>
    %353 = arith.mulf %352, %339 : vector<8x32xf32>
    %354 = arith.addf %333, %353 : vector<8x32xf32>
    %cst_100 = arith.constant 2.000000e+00 : f32
    %355 = vector.broadcast %cst_100 : f32 to vector<8x32xf32>
    %356 = arith.mulf %355, %345 : vector<8x32xf32>
    %357 = arith.addf %354, %356 : vector<8x32xf32>
    %358 = arith.addf %357, %351 : vector<8x32xf32>
    %359 = arith.addf %332, %358 : vector<8x32xf32>
    %360 = arith.truncf %358 : vector<8x32xf32> to vector<8x32xbf16>
    %cst_101 = arith.constant dense<0.000000e+00> : vector<8x32xf32>
    %361 = tpu.matmul %360, %10, %cst_101 {dimension_numbers = #tpu.dot_dimension_numbers<[1], [0], [0], [1], [0, 0, 1, 1], [], []>} : vector<8x32xbf16>, vector<32x32xbf16>, vector<8x32xf32> -> vector<8x32xf32>
    %362 = arith.mulf %323, %361 : vector<8x32xf32>
    %363 = arith.addf %331, %362 : vector<8x32xf32>
    %364 = arith.addf %363, %327 : vector<8x32xf32>
    %365 = math.tanh %364 : vector<8x32xf32>
    %366 = arith.truncf %365 : vector<8x32xf32> to vector<8x32xbf16>
    %cst_102 = arith.constant dense<0.000000e+00> : vector<8x32xf32>
    %367 = tpu.matmul %366, %10, %cst_102 {dimension_numbers = #tpu.dot_dimension_numbers<[1], [0], [0], [1], [0, 0, 1, 1], [], []>} : vector<8x32xbf16>, vector<32x32xbf16>, vector<8x32xf32> -> vector<8x32xf32>
    %368 = arith.mulf %321, %367 : vector<8x32xf32>
    %369 = arith.addf %364, %368 : vector<8x32xf32>
    %370 = arith.addf %369, %325 : vector<8x32xf32>
    %371 = math.tanh %370 : vector<8x32xf32>
    %372 = arith.truncf %371 : vector<8x32xf32> to vector<8x32xbf16>
    %cst_103 = arith.constant dense<0.000000e+00> : vector<8x32xf32>
    %373 = tpu.matmul %372, %10, %cst_103 {dimension_numbers = #tpu.dot_dimension_numbers<[1], [0], [0], [1], [0, 0, 1, 1], [], []>} : vector<8x32xbf16>, vector<32x32xbf16>, vector<8x32xf32> -> vector<8x32xf32>
    %374 = arith.mulf %321, %373 : vector<8x32xf32>
    %375 = arith.addf %364, %374 : vector<8x32xf32>
    %376 = arith.addf %375, %325 : vector<8x32xf32>
    %377 = math.tanh %376 : vector<8x32xf32>
    %378 = arith.truncf %377 : vector<8x32xf32> to vector<8x32xbf16>
    %cst_104 = arith.constant dense<0.000000e+00> : vector<8x32xf32>
    %379 = tpu.matmul %378, %10, %cst_104 {dimension_numbers = #tpu.dot_dimension_numbers<[1], [0], [0], [1], [0, 0, 1, 1], [], []>} : vector<8x32xbf16>, vector<32x32xbf16>, vector<8x32xf32> -> vector<8x32xf32>
    %380 = arith.mulf %319, %379 : vector<8x32xf32>
    %381 = arith.addf %364, %380 : vector<8x32xf32>
    %382 = arith.addf %381, %327 : vector<8x32xf32>
    %383 = math.tanh %382 : vector<8x32xf32>
    %cst_105 = arith.constant 2.000000e+00 : f32
    %384 = vector.broadcast %cst_105 : f32 to vector<8x32xf32>
    %385 = arith.mulf %384, %371 : vector<8x32xf32>
    %386 = arith.addf %365, %385 : vector<8x32xf32>
    %cst_106 = arith.constant 2.000000e+00 : f32
    %387 = vector.broadcast %cst_106 : f32 to vector<8x32xf32>
    %388 = arith.mulf %387, %377 : vector<8x32xf32>
    %389 = arith.addf %386, %388 : vector<8x32xf32>
    %390 = arith.addf %389, %383 : vector<8x32xf32>
    %391 = arith.addf %359, %390 : vector<8x32xf32>
    %392 = arith.truncf %390 : vector<8x32xf32> to vector<8x32xbf16>
    %cst_107 = arith.constant dense<0.000000e+00> : vector<8x32xf32>
    %393 = tpu.matmul %392, %10, %cst_107 {dimension_numbers = #tpu.dot_dimension_numbers<[1], [0], [0], [1], [0, 0, 1, 1], [], []>} : vector<8x32xbf16>, vector<32x32xbf16>, vector<8x32xf32> -> vector<8x32xf32>
    %394 = arith.mulf %323, %393 : vector<8x32xf32>
    %395 = arith.addf %364, %394 : vector<8x32xf32>
    %396 = arith.addf %395, %327 : vector<8x32xf32>
    %397 = math.tanh %396 : vector<8x32xf32>
    %398 = arith.truncf %397 : vector<8x32xf32> to vector<8x32xbf16>
    %cst_108 = arith.constant dense<0.000000e+00> : vector<8x32xf32>
    %399 = tpu.matmul %398, %10, %cst_108 {dimension_numbers = #tpu.dot_dimension_numbers<[1], [0], [0], [1], [0, 0, 1, 1], [], []>} : vector<8x32xbf16>, vector<32x32xbf16>, vector<8x32xf32> -> vector<8x32xf32>
    %400 = arith.mulf %321, %399 : vector<8x32xf32>
    %401 = arith.addf %396, %400 : vector<8x32xf32>
    %402 = arith.addf %401, %325 : vector<8x32xf32>
    %403 = math.tanh %402 : vector<8x32xf32>
    %404 = arith.truncf %403 : vector<8x32xf32> to vector<8x32xbf16>
    %cst_109 = arith.constant dense<0.000000e+00> : vector<8x32xf32>
    %405 = tpu.matmul %404, %10, %cst_109 {dimension_numbers = #tpu.dot_dimension_numbers<[1], [0], [0], [1], [0, 0, 1, 1], [], []>} : vector<8x32xbf16>, vector<32x32xbf16>, vector<8x32xf32> -> vector<8x32xf32>
    %406 = arith.mulf %321, %405 : vector<8x32xf32>
    %407 = arith.addf %396, %406 : vector<8x32xf32>
    %408 = arith.addf %407, %325 : vector<8x32xf32>
    %409 = math.tanh %408 : vector<8x32xf32>
    %410 = arith.truncf %409 : vector<8x32xf32> to vector<8x32xbf16>
    %cst_110 = arith.constant dense<0.000000e+00> : vector<8x32xf32>
    %411 = tpu.matmul %410, %10, %cst_110 {dimension_numbers = #tpu.dot_dimension_numbers<[1], [0], [0], [1], [0, 0, 1, 1], [], []>} : vector<8x32xbf16>, vector<32x32xbf16>, vector<8x32xf32> -> vector<8x32xf32>
    %412 = arith.mulf %319, %411 : vector<8x32xf32>
    %413 = arith.addf %396, %412 : vector<8x32xf32>
    %414 = arith.addf %413, %327 : vector<8x32xf32>
    %415 = math.tanh %414 : vector<8x32xf32>
    %cst_111 = arith.constant 2.000000e+00 : f32
    %416 = vector.broadcast %cst_111 : f32 to vector<8x32xf32>
    %417 = arith.mulf %416, %403 : vector<8x32xf32>
    %418 = arith.addf %397, %417 : vector<8x32xf32>
    %cst_112 = arith.constant 2.000000e+00 : f32
    %419 = vector.broadcast %cst_112 : f32 to vector<8x32xf32>
    %420 = arith.mulf %419, %409 : vector<8x32xf32>
    %421 = arith.addf %418, %420 : vector<8x32xf32>
    %422 = arith.addf %421, %415 : vector<8x32xf32>
    %423 = arith.addf %391, %422 : vector<8x32xf32>
    %424 = arith.truncf %423 : vector<8x32xf32> to vector<8x32xbf16>
    %cst_113 = arith.constant dense<0.000000e+00> : vector<8x32xf32>
    %425 = tpu.matmul %424, %11, %cst_113 {dimension_numbers = #tpu.dot_dimension_numbers<[1], [0], [0], [1], [0, 0, 1, 1], [], []>} : vector<8x32xbf16>, vector<32x32xbf16>, vector<8x32xf32> -> vector<8x32xf32>
    %426 = arith.mulf %323, %425 : vector<8x32xf32>
    %427 = arith.addf %313, %426 : vector<8x32xf32>
    %428 = vector.broadcast %15 : vector<1x32xf32> to vector<8x32xf32>
    %429 = arith.mulf %319, %428 : vector<8x32xf32>
    %430 = arith.addf %427, %429 : vector<8x32xf32>
    %c16_114 = arith.constant 16 : index
    %c0_115 = arith.constant 0 : index
    %431 = vector.load %arg16[%c16_114, %c0_115] : memref<64x32xf32, #tpu.memory_space<vmem>>, vector<8x32xf32>
    tpu.vector_store %arg16[%c16_114, %c0_115], %430 {strides = array<i32>} : memref<64x32xf32, #tpu.memory_space<vmem>>, vector<8x32xf32>,
    %c24 = arith.constant 24 : index
    %c0_116 = arith.constant 0 : index
    %432 = vector.load %arg15[%c24, %c0_116] : memref<64x128xf32, #tpu.memory_space<vmem>>, vector<8x128xf32>
    %433 = arith.truncf %430 : vector<8x32xf32> to vector<8x32xbf16>
    %cst_117 = arith.constant dense<0.000000e+00> : vector<8x128xf32>
    %434 = tpu.matmul %433, %7, %cst_117 {dimension_numbers = #tpu.dot_dimension_numbers<[1], [0], [0], [1], [0, 0, 1, 1], [], []>} : vector<8x32xbf16>, vector<32x128xbf16>, vector<8x128xf32> -> vector<8x128xf32>
    %435 = arith.addf %432, %434 : vector<8x128xf32>
    %436 = vector.extract_strided_slice %435 {offsets = [0, 0], sizes = [8, 96], strides = [1, 1]} : vector<8x128xf32> to vector<8x96xf32>
    %437 = arith.negf %436 : vector<8x96xf32>
    %438 = math.exp %437 : vector<8x96xf32>
    %cst_118 = arith.constant 1.000000e+00 : f32
    %439 = vector.broadcast %cst_118 : f32 to vector<8x96xf32>
    %440 = arith.addf %439, %438 : vector<8x96xf32>
    %441 = arith.divf %439, %440 : vector<8x96xf32>
    %442 = vector.extract_strided_slice %435 {offsets = [0, 96], sizes = [8, 32], strides = [1, 1]} : vector<8x128xf32> to vector<8x32xf32>
    %443 = math.tanh %442 : vector<8x32xf32>
    %444 = vector.extract_strided_slice %441 {offsets = [0, 0], sizes = [8, 32], strides = [1, 1]} : vector<8x96xf32> to vector<8x32xf32>
    %445 = vector.extract_strided_slice %441 {offsets = [0, 32], sizes = [8, 32], strides = [1, 1]} : vector<8x96xf32> to vector<8x32xf32>
    %446 = vector.extract_strided_slice %441 {offsets = [0, 64], sizes = [8, 32], strides = [1, 1]} : vector<8x96xf32> to vector<8x32xf32>
    %447 = arith.mulf %445, %311 : vector<8x32xf32>
    %448 = arith.mulf %444, %443 : vector<8x32xf32>
    %449 = arith.addf %447, %448 : vector<8x32xf32>
    %450 = math.tanh %449 : vector<8x32xf32>
    %451 = arith.mulf %446, %450 : vector<8x32xf32>
    %c3 = arith.constant 3 : index
    %c0_119 = arith.constant 0 : index
    %c0_120 = arith.constant 0 : index
    %452 = vector.load %arg2[%c3, %c0_119, %c0_120] : memref<8x8x1xf32, #tpu.memory_space<vmem>>, vector<1x8x1xf32>
    %453 = vector.shape_cast %452 : vector<1x8x1xf32> to vector<8x1xf32>
    %cst_121 = arith.constant 0.333333343 : f32
    %454 = vector.broadcast %cst_121 : f32 to vector<8x1xf32>
    %455 = arith.mulf %453, %454 : vector<8x1xf32>
    %456 = vector.shape_cast %455 : vector<8x1xf32> to vector<8x1xf32>
    %457 = vector.broadcast %456 : vector<8x1xf32> to vector<8x32xf32>
    %cst_122 = arith.constant 5.000000e-01 : f32
    %458 = vector.broadcast %cst_122 : f32 to vector<8x32xf32>
    %459 = arith.mulf %457, %458 : vector<8x32xf32>
    %cst_123 = arith.constant 0.166666672 : f32
    %460 = vector.broadcast %cst_123 : f32 to vector<8x32xf32>
    %461 = arith.mulf %457, %460 : vector<8x32xf32>
    %462 = vector.broadcast %13 : vector<1x32xf32> to vector<8x32xf32>
    %463 = arith.mulf %459, %462 : vector<8x32xf32>
    %464 = vector.broadcast %13 : vector<1x32xf32> to vector<8x32xf32>
    %465 = arith.mulf %457, %464 : vector<8x32xf32>
    %466 = arith.truncf %451 : vector<8x32xf32> to vector<8x32xbf16>
    %cst_124 = arith.constant dense<0.000000e+00> : vector<8x32xf32>
    %467 = tpu.matmul %466, %8, %cst_124 {dimension_numbers = #tpu.dot_dimension_numbers<[1], [0], [0], [1], [0, 0, 1, 1], [], []>} : vector<8x32xbf16>, vector<32x32xbf16>, vector<8x32xf32> -> vector<8x32xf32>
    %468 = vector.broadcast %9 : vector<1x32xf32> to vector<8x32xf32>
    %469 = arith.addf %467, %468 : vector<8x32xf32>
    %cst_125 = arith.constant 0.000000e+00 : f32
    %470 = vector.broadcast %cst_125 : f32 to vector<8x32xf32>
    %471 = math.tanh %469 : vector<8x32xf32>
    %472 = arith.truncf %471 : vector<8x32xf32> to vector<8x32xbf16>
    %cst_126 = arith.constant dense<0.000000e+00> : vector<8x32xf32>
    %473 = tpu.matmul %472, %10, %cst_126 {dimension_numbers = #tpu.dot_dimension_numbers<[1], [0], [0], [1], [0, 0, 1, 1], [], []>} : vector<8x32xbf16>, vector<32x32xbf16>, vector<8x32xf32> -> vector<8x32xf32>
    %474 = arith.mulf %459, %473 : vector<8x32xf32>
    %475 = arith.addf %469, %474 : vector<8x32xf32>
    %476 = arith.addf %475, %463 : vector<8x32xf32>
    %477 = math.tanh %476 : vector<8x32xf32>
    %478 = arith.truncf %477 : vector<8x32xf32> to vector<8x32xbf16>
    %cst_127 = arith.constant dense<0.000000e+00> : vector<8x32xf32>
    %479 = tpu.matmul %478, %10, %cst_127 {dimension_numbers = #tpu.dot_dimension_numbers<[1], [0], [0], [1], [0, 0, 1, 1], [], []>} : vector<8x32xbf16>, vector<32x32xbf16>, vector<8x32xf32> -> vector<8x32xf32>
    %480 = arith.mulf %459, %479 : vector<8x32xf32>
    %481 = arith.addf %469, %480 : vector<8x32xf32>
    %482 = arith.addf %481, %463 : vector<8x32xf32>
    %483 = math.tanh %482 : vector<8x32xf32>
    %484 = arith.truncf %483 : vector<8x32xf32> to vector<8x32xbf16>
    %cst_128 = arith.constant dense<0.000000e+00> : vector<8x32xf32>
    %485 = tpu.matmul %484, %10, %cst_128 {dimension_numbers = #tpu.dot_dimension_numbers<[1], [0], [0], [1], [0, 0, 1, 1], [], []>} : vector<8x32xbf16>, vector<32x32xbf16>, vector<8x32xf32> -> vector<8x32xf32>
    %486 = arith.mulf %457, %485 : vector<8x32xf32>
    %487 = arith.addf %469, %486 : vector<8x32xf32>
    %488 = arith.addf %487, %465 : vector<8x32xf32>
    %489 = math.tanh %488 : vector<8x32xf32>
    %cst_129 = arith.constant 2.000000e+00 : f32
    %490 = vector.broadcast %cst_129 : f32 to vector<8x32xf32>
    %491 = arith.mulf %490, %477 : vector<8x32xf32>
    %492 = arith.addf %471, %491 : vector<8x32xf32>
    %cst_130 = arith.constant 2.000000e+00 : f32
    %493 = vector.broadcast %cst_130 : f32 to vector<8x32xf32>
    %494 = arith.mulf %493, %483 : vector<8x32xf32>
    %495 = arith.addf %492, %494 : vector<8x32xf32>
    %496 = arith.addf %495, %489 : vector<8x32xf32>
    %497 = arith.addf %470, %496 : vector<8x32xf32>
    %498 = arith.truncf %496 : vector<8x32xf32> to vector<8x32xbf16>
    %cst_131 = arith.constant dense<0.000000e+00> : vector<8x32xf32>
    %499 = tpu.matmul %498, %10, %cst_131 {dimension_numbers = #tpu.dot_dimension_numbers<[1], [0], [0], [1], [0, 0, 1, 1], [], []>} : vector<8x32xbf16>, vector<32x32xbf16>, vector<8x32xf32> -> vector<8x32xf32>
    %500 = arith.mulf %461, %499 : vector<8x32xf32>
    %501 = arith.addf %469, %500 : vector<8x32xf32>
    %502 = arith.addf %501, %465 : vector<8x32xf32>
    %503 = math.tanh %502 : vector<8x32xf32>
    %504 = arith.truncf %503 : vector<8x32xf32> to vector<8x32xbf16>
    %cst_132 = arith.constant dense<0.000000e+00> : vector<8x32xf32>
    %505 = tpu.matmul %504, %10, %cst_132 {dimension_numbers = #tpu.dot_dimension_numbers<[1], [0], [0], [1], [0, 0, 1, 1], [], []>} : vector<8x32xbf16>, vector<32x32xbf16>, vector<8x32xf32> -> vector<8x32xf32>
    %506 = arith.mulf %459, %505 : vector<8x32xf32>
    %507 = arith.addf %502, %506 : vector<8x32xf32>
    %508 = arith.addf %507, %463 : vector<8x32xf32>
    %509 = math.tanh %508 : vector<8x32xf32>
    %510 = arith.truncf %509 : vector<8x32xf32> to vector<8x32xbf16>
    %cst_133 = arith.constant dense<0.000000e+00> : vector<8x32xf32>
    %511 = tpu.matmul %510, %10, %cst_133 {dimension_numbers = #tpu.dot_dimension_numbers<[1], [0], [0], [1], [0, 0, 1, 1], [], []>} : vector<8x32xbf16>, vector<32x32xbf16>, vector<8x32xf32> -> vector<8x32xf32>
    %512 = arith.mulf %459, %511 : vector<8x32xf32>
    %513 = arith.addf %502, %512 : vector<8x32xf32>
    %514 = arith.addf %513, %463 : vector<8x32xf32>
    %515 = math.tanh %514 : vector<8x32xf32>
    %516 = arith.truncf %515 : vector<8x32xf32> to vector<8x32xbf16>
    %cst_134 = arith.constant dense<0.000000e+00> : vector<8x32xf32>
    %517 = tpu.matmul %516, %10, %cst_134 {dimension_numbers = #tpu.dot_dimension_numbers<[1], [0], [0], [1], [0, 0, 1, 1], [], []>} : vector<8x32xbf16>, vector<32x32xbf16>, vector<8x32xf32> -> vector<8x32xf32>
    %518 = arith.mulf %457, %517 : vector<8x32xf32>
    %519 = arith.addf %502, %518 : vector<8x32xf32>
    %520 = arith.addf %519, %465 : vector<8x32xf32>
    %521 = math.tanh %520 : vector<8x32xf32>
    %cst_135 = arith.constant 2.000000e+00 : f32
    %522 = vector.broadcast %cst_135 : f32 to vector<8x32xf32>
    %523 = arith.mulf %522, %509 : vector<8x32xf32>
    %524 = arith.addf %503, %523 : vector<8x32xf32>
    %cst_136 = arith.constant 2.000000e+00 : f32
    %525 = vector.broadcast %cst_136 : f32 to vector<8x32xf32>
    %526 = arith.mulf %525, %515 : vector<8x32xf32>
    %527 = arith.addf %524, %526 : vector<8x32xf32>
    %528 = arith.addf %527, %521 : vector<8x32xf32>
    %529 = arith.addf %497, %528 : vector<8x32xf32>
    %530 = arith.truncf %528 : vector<8x32xf32> to vector<8x32xbf16>
    %cst_137 = arith.constant dense<0.000000e+00> : vector<8x32xf32>
    %531 = tpu.matmul %530, %10, %cst_137 {dimension_numbers = #tpu.dot_dimension_numbers<[1], [0], [0], [1], [0, 0, 1, 1], [], []>} : vector<8x32xbf16>, vector<32x32xbf16>, vector<8x32xf32> -> vector<8x32xf32>
    %532 = arith.mulf %461, %531 : vector<8x32xf32>
    %533 = arith.addf %502, %532 : vector<8x32xf32>
    %534 = arith.addf %533, %465 : vector<8x32xf32>
    %535 = math.tanh %534 : vector<8x32xf32>
    %536 = arith.truncf %535 : vector<8x32xf32> to vector<8x32xbf16>
    %cst_138 = arith.constant dense<0.000000e+00> : vector<8x32xf32>
    %537 = tpu.matmul %536, %10, %cst_138 {dimension_numbers = #tpu.dot_dimension_numbers<[1], [0], [0], [1], [0, 0, 1, 1], [], []>} : vector<8x32xbf16>, vector<32x32xbf16>, vector<8x32xf32> -> vector<8x32xf32>
    %538 = arith.mulf %459, %537 : vector<8x32xf32>
    %539 = arith.addf %534, %538 : vector<8x32xf32>
    %540 = arith.addf %539, %463 : vector<8x32xf32>
    %541 = math.tanh %540 : vector<8x32xf32>
    %542 = arith.truncf %541 : vector<8x32xf32> to vector<8x32xbf16>
    %cst_139 = arith.constant dense<0.000000e+00> : vector<8x32xf32>
    %543 = tpu.matmul %542, %10, %cst_139 {dimension_numbers = #tpu.dot_dimension_numbers<[1], [0], [0], [1], [0, 0, 1, 1], [], []>} : vector<8x32xbf16>, vector<32x32xbf16>, vector<8x32xf32> -> vector<8x32xf32>
    %544 = arith.mulf %459, %543 : vector<8x32xf32>
    %545 = arith.addf %534, %544 : vector<8x32xf32>
    %546 = arith.addf %545, %463 : vector<8x32xf32>
    %547 = math.tanh %546 : vector<8x32xf32>
    %548 = arith.truncf %547 : vector<8x32xf32> to vector<8x32xbf16>
    %cst_140 = arith.constant dense<0.000000e+00> : vector<8x32xf32>
    %549 = tpu.matmul %548, %10, %cst_140 {dimension_numbers = #tpu.dot_dimension_numbers<[1], [0], [0], [1], [0, 0, 1, 1], [], []>} : vector<8x32xbf16>, vector<32x32xbf16>, vector<8x32xf32> -> vector<8x32xf32>
    %550 = arith.mulf %457, %549 : vector<8x32xf32>
    %551 = arith.addf %534, %550 : vector<8x32xf32>
    %552 = arith.addf %551, %465 : vector<8x32xf32>
    %553 = math.tanh %552 : vector<8x32xf32>
    %cst_141 = arith.constant 2.000000e+00 : f32
    %554 = vector.broadcast %cst_141 : f32 to vector<8x32xf32>
    %555 = arith.mulf %554, %541 : vector<8x32xf32>
    %556 = arith.addf %535, %555 : vector<8x32xf32>
    %cst_142 = arith.constant 2.000000e+00 : f32
    %557 = vector.broadcast %cst_142 : f32 to vector<8x32xf32>
    %558 = arith.mulf %557, %547 : vector<8x32xf32>
    %559 = arith.addf %556, %558 : vector<8x32xf32>
    %560 = arith.addf %559, %553 : vector<8x32xf32>
    %561 = arith.addf %529, %560 : vector<8x32xf32>
    %562 = arith.truncf %561 : vector<8x32xf32> to vector<8x32xbf16>
    %cst_143 = arith.constant dense<0.000000e+00> : vector<8x32xf32>
    %563 = tpu.matmul %562, %11, %cst_143 {dimension_numbers = #tpu.dot_dimension_numbers<[1], [0], [0], [1], [0, 0, 1, 1], [], []>} : vector<8x32xbf16>, vector<32x32xbf16>, vector<8x32xf32> -> vector<8x32xf32>
    %564 = arith.mulf %461, %563 : vector<8x32xf32>
    %565 = arith.addf %451, %564 : vector<8x32xf32>
    %566 = vector.broadcast %15 : vector<1x32xf32> to vector<8x32xf32>
    %567 = arith.mulf %457, %566 : vector<8x32xf32>
    %568 = arith.addf %565, %567 : vector<8x32xf32>
    %c24_144 = arith.constant 24 : index
    %c0_145 = arith.constant 0 : index
    %569 = vector.load %arg16[%c24_144, %c0_145] : memref<64x32xf32, #tpu.memory_space<vmem>>, vector<8x32xf32>
    tpu.vector_store %arg16[%c24_144, %c0_145], %568 {strides = array<i32>} : memref<64x32xf32, #tpu.memory_space<vmem>>, vector<8x32xf32>,
    %c32 = arith.constant 32 : index
    %c0_146 = arith.constant 0 : index
    %570 = vector.load %arg15[%c32, %c0_146] : memref<64x128xf32, #tpu.memory_space<vmem>>, vector<8x128xf32>
    %571 = arith.truncf %568 : vector<8x32xf32> to vector<8x32xbf16>
    %cst_147 = arith.constant dense<0.000000e+00> : vector<8x128xf32>
    %572 = tpu.matmul %571, %7, %cst_147 {dimension_numbers = #tpu.dot_dimension_numbers<[1], [0], [0], [1], [0, 0, 1, 1], [], []>} : vector<8x32xbf16>, vector<32x128xbf16>, vector<8x128xf32> -> vector<8x128xf32>
    %573 = arith.addf %570, %572 : vector<8x128xf32>
    %574 = vector.extract_strided_slice %573 {offsets = [0, 0], sizes = [8, 96], strides = [1, 1]} : vector<8x128xf32> to vector<8x96xf32>
    %575 = arith.negf %574 : vector<8x96xf32>
    %576 = math.exp %575 : vector<8x96xf32>
    %cst_148 = arith.constant 1.000000e+00 : f32
    %577 = vector.broadcast %cst_148 : f32 to vector<8x96xf32>
    %578 = arith.addf %577, %576 : vector<8x96xf32>
    %579 = arith.divf %577, %578 : vector<8x96xf32>
    %580 = vector.extract_strided_slice %573 {offsets = [0, 96], sizes = [8, 32], strides = [1, 1]} : vector<8x128xf32> to vector<8x32xf32>
    %581 = math.tanh %580 : vector<8x32xf32>
    %582 = vector.extract_strided_slice %579 {offsets = [0, 0], sizes = [8, 32], strides = [1, 1]} : vector<8x96xf32> to vector<8x32xf32>
    %583 = vector.extract_strided_slice %579 {offsets = [0, 32], sizes = [8, 32], strides = [1, 1]} : vector<8x96xf32> to vector<8x32xf32>
    %584 = vector.extract_strided_slice %579 {offsets = [0, 64], sizes = [8, 32], strides = [1, 1]} : vector<8x96xf32> to vector<8x32xf32>
    %585 = arith.mulf %583, %449 : vector<8x32xf32>
    %586 = arith.mulf %582, %581 : vector<8x32xf32>
    %587 = arith.addf %585, %586 : vector<8x32xf32>
    %588 = math.tanh %587 : vector<8x32xf32>
    %589 = arith.mulf %584, %588 : vector<8x32xf32>
    %c4 = arith.constant 4 : index
    %c0_149 = arith.constant 0 : index
    %c0_150 = arith.constant 0 : index
    %590 = vector.load %arg2[%c4, %c0_149, %c0_150] : memref<8x8x1xf32, #tpu.memory_space<vmem>>, vector<1x8x1xf32>
    %591 = vector.shape_cast %590 : vector<1x8x1xf32> to vector<8x1xf32>
    %cst_151 = arith.constant 0.333333343 : f32
    %592 = vector.broadcast %cst_151 : f32 to vector<8x1xf32>
    %593 = arith.mulf %591, %592 : vector<8x1xf32>
    %594 = vector.shape_cast %593 : vector<8x1xf32> to vector<8x1xf32>
    %595 = vector.broadcast %594 : vector<8x1xf32> to vector<8x32xf32>
    %cst_152 = arith.constant 5.000000e-01 : f32
    %596 = vector.broadcast %cst_152 : f32 to vector<8x32xf32>
    %597 = arith.mulf %595, %596 : vector<8x32xf32>
    %cst_153 = arith.constant 0.166666672 : f32
    %598 = vector.broadcast %cst_153 : f32 to vector<8x32xf32>
    %599 = arith.mulf %595, %598 : vector<8x32xf32>
    %600 = vector.broadcast %13 : vector<1x32xf32> to vector<8x32xf32>
    %601 = arith.mulf %597, %600 : vector<8x32xf32>
    %602 = vector.broadcast %13 : vector<1x32xf32> to vector<8x32xf32>
    %603 = arith.mulf %595, %602 : vector<8x32xf32>
    %604 = arith.truncf %589 : vector<8x32xf32> to vector<8x32xbf16>
    %cst_154 = arith.constant dense<0.000000e+00> : vector<8x32xf32>
    %605 = tpu.matmul %604, %8, %cst_154 {dimension_numbers = #tpu.dot_dimension_numbers<[1], [0], [0], [1], [0, 0, 1, 1], [], []>} : vector<8x32xbf16>, vector<32x32xbf16>, vector<8x32xf32> -> vector<8x32xf32>
    %606 = vector.broadcast %9 : vector<1x32xf32> to vector<8x32xf32>
    %607 = arith.addf %605, %606 : vector<8x32xf32>
    %cst_155 = arith.constant 0.000000e+00 : f32
    %608 = vector.broadcast %cst_155 : f32 to vector<8x32xf32>
    %609 = math.tanh %607 : vector<8x32xf32>
    %610 = arith.truncf %609 : vector<8x32xf32> to vector<8x32xbf16>
    %cst_156 = arith.constant dense<0.000000e+00> : vector<8x32xf32>
    %611 = tpu.matmul %610, %10, %cst_156 {dimension_numbers = #tpu.dot_dimension_numbers<[1], [0], [0], [1], [0, 0, 1, 1], [], []>} : vector<8x32xbf16>, vector<32x32xbf16>, vector<8x32xf32> -> vector<8x32xf32>
    %612 = arith.mulf %597, %611 : vector<8x32xf32>
    %613 = arith.addf %607, %612 : vector<8x32xf32>
    %614 = arith.addf %613, %601 : vector<8x32xf32>
    %615 = math.tanh %614 : vector<8x32xf32>
    %616 = arith.truncf %615 : vector<8x32xf32> to vector<8x32xbf16>
    %cst_157 = arith.constant dense<0.000000e+00> : vector<8x32xf32>
    %617 = tpu.matmul %616, %10, %cst_157 {dimension_numbers = #tpu.dot_dimension_numbers<[1], [0], [0], [1], [0, 0, 1, 1], [], []>} : vector<8x32xbf16>, vector<32x32xbf16>, vector<8x32xf32> -> vector<8x32xf32>
    %618 = arith.mulf %597, %617 : vector<8x32xf32>
    %619 = arith.addf %607, %618 : vector<8x32xf32>
    %620 = arith.addf %619, %601 : vector<8x32xf32>
    %621 = math.tanh %620 : vector<8x32xf32>
    %622 = arith.truncf %621 : vector<8x32xf32> to vector<8x32xbf16>
    %cst_158 = arith.constant dense<0.000000e+00> : vector<8x32xf32>
    %623 = tpu.matmul %622, %10, %cst_158 {dimension_numbers = #tpu.dot_dimension_numbers<[1], [0], [0], [1], [0, 0, 1, 1], [], []>} : vector<8x32xbf16>, vector<32x32xbf16>, vector<8x32xf32> -> vector<8x32xf32>
    %624 = arith.mulf %595, %623 : vector<8x32xf32>
    %625 = arith.addf %607, %624 : vector<8x32xf32>
    %626 = arith.addf %625, %603 : vector<8x32xf32>
    %627 = math.tanh %626 : vector<8x32xf32>
    %cst_159 = arith.constant 2.000000e+00 : f32
    %628 = vector.broadcast %cst_159 : f32 to vector<8x32xf32>
    %629 = arith.mulf %628, %615 : vector<8x32xf32>
    %630 = arith.addf %609, %629 : vector<8x32xf32>
    %cst_160 = arith.constant 2.000000e+00 : f32
    %631 = vector.broadcast %cst_160 : f32 to vector<8x32xf32>
    %632 = arith.mulf %631, %621 : vector<8x32xf32>
    %633 = arith.addf %630, %632 : vector<8x32xf32>
    %634 = arith.addf %633, %627 : vector<8x32xf32>
    %635 = arith.addf %608, %634 : vector<8x32xf32>
    %636 = arith.truncf %634 : vector<8x32xf32> to vector<8x32xbf16>
    %cst_161 = arith.constant dense<0.000000e+00> : vector<8x32xf32>
    %637 = tpu.matmul %636, %10, %cst_161 {dimension_numbers = #tpu.dot_dimension_numbers<[1], [0], [0], [1], [0, 0, 1, 1], [], []>} : vector<8x32xbf16>, vector<32x32xbf16>, vector<8x32xf32> -> vector<8x32xf32>
    %638 = arith.mulf %599, %637 : vector<8x32xf32>
    %639 = arith.addf %607, %638 : vector<8x32xf32>
    %640 = arith.addf %639, %603 : vector<8x32xf32>
    %641 = math.tanh %640 : vector<8x32xf32>
    %642 = arith.truncf %641 : vector<8x32xf32> to vector<8x32xbf16>
    %cst_162 = arith.constant dense<0.000000e+00> : vector<8x32xf32>
    %643 = tpu.matmul %642, %10, %cst_162 {dimension_numbers = #tpu.dot_dimension_numbers<[1], [0], [0], [1], [0, 0, 1, 1], [], []>} : vector<8x32xbf16>, vector<32x32xbf16>, vector<8x32xf32> -> vector<8x32xf32>
    %644 = arith.mulf %597, %643 : vector<8x32xf32>
    %645 = arith.addf %640, %644 : vector<8x32xf32>
    %646 = arith.addf %645, %601 : vector<8x32xf32>
    %647 = math.tanh %646 : vector<8x32xf32>
    %648 = arith.truncf %647 : vector<8x32xf32> to vector<8x32xbf16>
    %cst_163 = arith.constant dense<0.000000e+00> : vector<8x32xf32>
    %649 = tpu.matmul %648, %10, %cst_163 {dimension_numbers = #tpu.dot_dimension_numbers<[1], [0], [0], [1], [0, 0, 1, 1], [], []>} : vector<8x32xbf16>, vector<32x32xbf16>, vector<8x32xf32> -> vector<8x32xf32>
    %650 = arith.mulf %597, %649 : vector<8x32xf32>
    %651 = arith.addf %640, %650 : vector<8x32xf32>
    %652 = arith.addf %651, %601 : vector<8x32xf32>
    %653 = math.tanh %652 : vector<8x32xf32>
    %654 = arith.truncf %653 : vector<8x32xf32> to vector<8x32xbf16>
    %cst_164 = arith.constant dense<0.000000e+00> : vector<8x32xf32>
    %655 = tpu.matmul %654, %10, %cst_164 {dimension_numbers = #tpu.dot_dimension_numbers<[1], [0], [0], [1], [0, 0, 1, 1], [], []>} : vector<8x32xbf16>, vector<32x32xbf16>, vector<8x32xf32> -> vector<8x32xf32>
    %656 = arith.mulf %595, %655 : vector<8x32xf32>
    %657 = arith.addf %640, %656 : vector<8x32xf32>
    %658 = arith.addf %657, %603 : vector<8x32xf32>
    %659 = math.tanh %658 : vector<8x32xf32>
    %cst_165 = arith.constant 2.000000e+00 : f32
    %660 = vector.broadcast %cst_165 : f32 to vector<8x32xf32>
    %661 = arith.mulf %660, %647 : vector<8x32xf32>
    %662 = arith.addf %641, %661 : vector<8x32xf32>
    %cst_166 = arith.constant 2.000000e+00 : f32
    %663 = vector.broadcast %cst_166 : f32 to vector<8x32xf32>
    %664 = arith.mulf %663, %653 : vector<8x32xf32>
    %665 = arith.addf %662, %664 : vector<8x32xf32>
    %666 = arith.addf %665, %659 : vector<8x32xf32>
    %667 = arith.addf %635, %666 : vector<8x32xf32>
    %668 = arith.truncf %666 : vector<8x32xf32> to vector<8x32xbf16>
    %cst_167 = arith.constant dense<0.000000e+00> : vector<8x32xf32>
    %669 = tpu.matmul %668, %10, %cst_167 {dimension_numbers = #tpu.dot_dimension_numbers<[1], [0], [0], [1], [0, 0, 1, 1], [], []>} : vector<8x32xbf16>, vector<32x32xbf16>, vector<8x32xf32> -> vector<8x32xf32>
    %670 = arith.mulf %599, %669 : vector<8x32xf32>
    %671 = arith.addf %640, %670 : vector<8x32xf32>
    %672 = arith.addf %671, %603 : vector<8x32xf32>
    %673 = math.tanh %672 : vector<8x32xf32>
    %674 = arith.truncf %673 : vector<8x32xf32> to vector<8x32xbf16>
    %cst_168 = arith.constant dense<0.000000e+00> : vector<8x32xf32>
    %675 = tpu.matmul %674, %10, %cst_168 {dimension_numbers = #tpu.dot_dimension_numbers<[1], [0], [0], [1], [0, 0, 1, 1], [], []>} : vector<8x32xbf16>, vector<32x32xbf16>, vector<8x32xf32> -> vector<8x32xf32>
    %676 = arith.mulf %597, %675 : vector<8x32xf32>
    %677 = arith.addf %672, %676 : vector<8x32xf32>
    %678 = arith.addf %677, %601 : vector<8x32xf32>
    %679 = math.tanh %678 : vector<8x32xf32>
    %680 = arith.truncf %679 : vector<8x32xf32> to vector<8x32xbf16>
    %cst_169 = arith.constant dense<0.000000e+00> : vector<8x32xf32>
    %681 = tpu.matmul %680, %10, %cst_169 {dimension_numbers = #tpu.dot_dimension_numbers<[1], [0], [0], [1], [0, 0, 1, 1], [], []>} : vector<8x32xbf16>, vector<32x32xbf16>, vector<8x32xf32> -> vector<8x32xf32>
    %682 = arith.mulf %597, %681 : vector<8x32xf32>
    %683 = arith.addf %672, %682 : vector<8x32xf32>
    %684 = arith.addf %683, %601 : vector<8x32xf32>
    %685 = math.tanh %684 : vector<8x32xf32>
    %686 = arith.truncf %685 : vector<8x32xf32> to vector<8x32xbf16>
    %cst_170 = arith.constant dense<0.000000e+00> : vector<8x32xf32>
    %687 = tpu.matmul %686, %10, %cst_170 {dimension_numbers = #tpu.dot_dimension_numbers<[1], [0], [0], [1], [0, 0, 1, 1], [], []>} : vector<8x32xbf16>, vector<32x32xbf16>, vector<8x32xf32> -> vector<8x32xf32>
    %688 = arith.mulf %595, %687 : vector<8x32xf32>
    %689 = arith.addf %672, %688 : vector<8x32xf32>
    %690 = arith.addf %689, %603 : vector<8x32xf32>
    %691 = math.tanh %690 : vector<8x32xf32>
    %cst_171 = arith.constant 2.000000e+00 : f32
    %692 = vector.broadcast %cst_171 : f32 to vector<8x32xf32>
    %693 = arith.mulf %692, %679 : vector<8x32xf32>
    %694 = arith.addf %673, %693 : vector<8x32xf32>
    %cst_172 = arith.constant 2.000000e+00 : f32
    %695 = vector.broadcast %cst_172 : f32 to vector<8x32xf32>
    %696 = arith.mulf %695, %685 : vector<8x32xf32>
    %697 = arith.addf %694, %696 : vector<8x32xf32>
    %698 = arith.addf %697, %691 : vector<8x32xf32>
    %699 = arith.addf %667, %698 : vector<8x32xf32>
    %700 = arith.truncf %699 : vector<8x32xf32> to vector<8x32xbf16>
    %cst_173 = arith.constant dense<0.000000e+00> : vector<8x32xf32>
    %701 = tpu.matmul %700, %11, %cst_173 {dimension_numbers = #tpu.dot_dimension_numbers<[1], [0], [0], [1], [0, 0, 1, 1], [], []>} : vector<8x32xbf16>, vector<32x32xbf16>, vector<8x32xf32> -> vector<8x32xf32>
    %702 = arith.mulf %599, %701 : vector<8x32xf32>
    %703 = arith.addf %589, %702 : vector<8x32xf32>
    %704 = vector.broadcast %15 : vector<1x32xf32> to vector<8x32xf32>
    %705 = arith.mulf %595, %704 : vector<8x32xf32>
    %706 = arith.addf %703, %705 : vector<8x32xf32>
    %c32_174 = arith.constant 32 : index
    %c0_175 = arith.constant 0 : index
    %707 = vector.load %arg16[%c32_174, %c0_175] : memref<64x32xf32, #tpu.memory_space<vmem>>, vector<8x32xf32>
    tpu.vector_store %arg16[%c32_174, %c0_175], %706 {strides = array<i32>} : memref<64x32xf32, #tpu.memory_space<vmem>>, vector<8x32xf32>,
    %c40 = arith.constant 40 : index
    %c0_176 = arith.constant 0 : index
    %708 = vector.load %arg15[%c40, %c0_176] : memref<64x128xf32, #tpu.memory_space<vmem>>, vector<8x128xf32>
    %709 = arith.truncf %706 : vector<8x32xf32> to vector<8x32xbf16>
    %cst_177 = arith.constant dense<0.000000e+00> : vector<8x128xf32>
    %710 = tpu.matmul %709, %7, %cst_177 {dimension_numbers = #tpu.dot_dimension_numbers<[1], [0], [0], [1], [0, 0, 1, 1], [], []>} : vector<8x32xbf16>, vector<32x128xbf16>, vector<8x128xf32> -> vector<8x128xf32>
    %711 = arith.addf %708, %710 : vector<8x128xf32>
    %712 = vector.extract_strided_slice %711 {offsets = [0, 0], sizes = [8, 96], strides = [1, 1]} : vector<8x128xf32> to vector<8x96xf32>
    %713 = arith.negf %712 : vector<8x96xf32>
    %714 = math.exp %713 : vector<8x96xf32>
    %cst_178 = arith.constant 1.000000e+00 : f32
    %715 = vector.broadcast %cst_178 : f32 to vector<8x96xf32>
    %716 = arith.addf %715, %714 : vector<8x96xf32>
    %717 = arith.divf %715, %716 : vector<8x96xf32>
    %718 = vector.extract_strided_slice %711 {offsets = [0, 96], sizes = [8, 32], strides = [1, 1]} : vector<8x128xf32> to vector<8x32xf32>
    %719 = math.tanh %718 : vector<8x32xf32>
    %720 = vector.extract_strided_slice %717 {offsets = [0, 0], sizes = [8, 32], strides = [1, 1]} : vector<8x96xf32> to vector<8x32xf32>
    %721 = vector.extract_strided_slice %717 {offsets = [0, 32], sizes = [8, 32], strides = [1, 1]} : vector<8x96xf32> to vector<8x32xf32>
    %722 = vector.extract_strided_slice %717 {offsets = [0, 64], sizes = [8, 32], strides = [1, 1]} : vector<8x96xf32> to vector<8x32xf32>
    %723 = arith.mulf %721, %587 : vector<8x32xf32>
    %724 = arith.mulf %720, %719 : vector<8x32xf32>
    %725 = arith.addf %723, %724 : vector<8x32xf32>
    %726 = math.tanh %725 : vector<8x32xf32>
    %727 = arith.mulf %722, %726 : vector<8x32xf32>
    %c5 = arith.constant 5 : index
    %c0_179 = arith.constant 0 : index
    %c0_180 = arith.constant 0 : index
    %728 = vector.load %arg2[%c5, %c0_179, %c0_180] : memref<8x8x1xf32, #tpu.memory_space<vmem>>, vector<1x8x1xf32>
    %729 = vector.shape_cast %728 : vector<1x8x1xf32> to vector<8x1xf32>
    %cst_181 = arith.constant 0.333333343 : f32
    %730 = vector.broadcast %cst_181 : f32 to vector<8x1xf32>
    %731 = arith.mulf %729, %730 : vector<8x1xf32>
    %732 = vector.shape_cast %731 : vector<8x1xf32> to vector<8x1xf32>
    %733 = vector.broadcast %732 : vector<8x1xf32> to vector<8x32xf32>
    %cst_182 = arith.constant 5.000000e-01 : f32
    %734 = vector.broadcast %cst_182 : f32 to vector<8x32xf32>
    %735 = arith.mulf %733, %734 : vector<8x32xf32>
    %cst_183 = arith.constant 0.166666672 : f32
    %736 = vector.broadcast %cst_183 : f32 to vector<8x32xf32>
    %737 = arith.mulf %733, %736 : vector<8x32xf32>
    %738 = vector.broadcast %13 : vector<1x32xf32> to vector<8x32xf32>
    %739 = arith.mulf %735, %738 : vector<8x32xf32>
    %740 = vector.broadcast %13 : vector<1x32xf32> to vector<8x32xf32>
    %741 = arith.mulf %733, %740 : vector<8x32xf32>
    %742 = arith.truncf %727 : vector<8x32xf32> to vector<8x32xbf16>
    %cst_184 = arith.constant dense<0.000000e+00> : vector<8x32xf32>
    %743 = tpu.matmul %742, %8, %cst_184 {dimension_numbers = #tpu.dot_dimension_numbers<[1], [0], [0], [1], [0, 0, 1, 1], [], []>} : vector<8x32xbf16>, vector<32x32xbf16>, vector<8x32xf32> -> vector<8x32xf32>
    %744 = vector.broadcast %9 : vector<1x32xf32> to vector<8x32xf32>
    %745 = arith.addf %743, %744 : vector<8x32xf32>
    %cst_185 = arith.constant 0.000000e+00 : f32
    %746 = vector.broadcast %cst_185 : f32 to vector<8x32xf32>
    %747 = math.tanh %745 : vector<8x32xf32>
    %748 = arith.truncf %747 : vector<8x32xf32> to vector<8x32xbf16>
    %cst_186 = arith.constant dense<0.000000e+00> : vector<8x32xf32>
    %749 = tpu.matmul %748, %10, %cst_186 {dimension_numbers = #tpu.dot_dimension_numbers<[1], [0], [0], [1], [0, 0, 1, 1], [], []>} : vector<8x32xbf16>, vector<32x32xbf16>, vector<8x32xf32> -> vector<8x32xf32>
    %750 = arith.mulf %735, %749 : vector<8x32xf32>
    %751 = arith.addf %745, %750 : vector<8x32xf32>
    %752 = arith.addf %751, %739 : vector<8x32xf32>
    %753 = math.tanh %752 : vector<8x32xf32>
    %754 = arith.truncf %753 : vector<8x32xf32> to vector<8x32xbf16>
    %cst_187 = arith.constant dense<0.000000e+00> : vector<8x32xf32>
    %755 = tpu.matmul %754, %10, %cst_187 {dimension_numbers = #tpu.dot_dimension_numbers<[1], [0], [0], [1], [0, 0, 1, 1], [], []>} : vector<8x32xbf16>, vector<32x32xbf16>, vector<8x32xf32> -> vector<8x32xf32>
    %756 = arith.mulf %735, %755 : vector<8x32xf32>
    %757 = arith.addf %745, %756 : vector<8x32xf32>
    %758 = arith.addf %757, %739 : vector<8x32xf32>
    %759 = math.tanh %758 : vector<8x32xf32>
    %760 = arith.truncf %759 : vector<8x32xf32> to vector<8x32xbf16>
    %cst_188 = arith.constant dense<0.000000e+00> : vector<8x32xf32>
    %761 = tpu.matmul %760, %10, %cst_188 {dimension_numbers = #tpu.dot_dimension_numbers<[1], [0], [0], [1], [0, 0, 1, 1], [], []>} : vector<8x32xbf16>, vector<32x32xbf16>, vector<8x32xf32> -> vector<8x32xf32>
    %762 = arith.mulf %733, %761 : vector<8x32xf32>
    %763 = arith.addf %745, %762 : vector<8x32xf32>
    %764 = arith.addf %763, %741 : vector<8x32xf32>
    %765 = math.tanh %764 : vector<8x32xf32>
    %cst_189 = arith.constant 2.000000e+00 : f32
    %766 = vector.broadcast %cst_189 : f32 to vector<8x32xf32>
    %767 = arith.mulf %766, %753 : vector<8x32xf32>
    %768 = arith.addf %747, %767 : vector<8x32xf32>
    %cst_190 = arith.constant 2.000000e+00 : f32
    %769 = vector.broadcast %cst_190 : f32 to vector<8x32xf32>
    %770 = arith.mulf %769, %759 : vector<8x32xf32>
    %771 = arith.addf %768, %770 : vector<8x32xf32>
    %772 = arith.addf %771, %765 : vector<8x32xf32>
    %773 = arith.addf %746, %772 : vector<8x32xf32>
    %774 = arith.truncf %772 : vector<8x32xf32> to vector<8x32xbf16>
    %cst_191 = arith.constant dense<0.000000e+00> : vector<8x32xf32>
    %775 = tpu.matmul %774, %10, %cst_191 {dimension_numbers = #tpu.dot_dimension_numbers<[1], [0], [0], [1], [0, 0, 1, 1], [], []>} : vector<8x32xbf16>, vector<32x32xbf16>, vector<8x32xf32> -> vector<8x32xf32>
    %776 = arith.mulf %737, %775 : vector<8x32xf32>
    %777 = arith.addf %745, %776 : vector<8x32xf32>
    %778 = arith.addf %777, %741 : vector<8x32xf32>
    %779 = math.tanh %778 : vector<8x32xf32>
    %780 = arith.truncf %779 : vector<8x32xf32> to vector<8x32xbf16>
    %cst_192 = arith.constant dense<0.000000e+00> : vector<8x32xf32>
    %781 = tpu.matmul %780, %10, %cst_192 {dimension_numbers = #tpu.dot_dimension_numbers<[1], [0], [0], [1], [0, 0, 1, 1], [], []>} : vector<8x32xbf16>, vector<32x32xbf16>, vector<8x32xf32> -> vector<8x32xf32>
    %782 = arith.mulf %735, %781 : vector<8x32xf32>
    %783 = arith.addf %778, %782 : vector<8x32xf32>
    %784 = arith.addf %783, %739 : vector<8x32xf32>
    %785 = math.tanh %784 : vector<8x32xf32>
    %786 = arith.truncf %785 : vector<8x32xf32> to vector<8x32xbf16>
    %cst_193 = arith.constant dense<0.000000e+00> : vector<8x32xf32>
    %787 = tpu.matmul %786, %10, %cst_193 {dimension_numbers = #tpu.dot_dimension_numbers<[1], [0], [0], [1], [0, 0, 1, 1], [], []>} : vector<8x32xbf16>, vector<32x32xbf16>, vector<8x32xf32> -> vector<8x32xf32>
    %788 = arith.mulf %735, %787 : vector<8x32xf32>
    %789 = arith.addf %778, %788 : vector<8x32xf32>
    %790 = arith.addf %789, %739 : vector<8x32xf32>
    %791 = math.tanh %790 : vector<8x32xf32>
    %792 = arith.truncf %791 : vector<8x32xf32> to vector<8x32xbf16>
    %cst_194 = arith.constant dense<0.000000e+00> : vector<8x32xf32>
    %793 = tpu.matmul %792, %10, %cst_194 {dimension_numbers = #tpu.dot_dimension_numbers<[1], [0], [0], [1], [0, 0, 1, 1], [], []>} : vector<8x32xbf16>, vector<32x32xbf16>, vector<8x32xf32> -> vector<8x32xf32>
    %794 = arith.mulf %733, %793 : vector<8x32xf32>
    %795 = arith.addf %778, %794 : vector<8x32xf32>
    %796 = arith.addf %795, %741 : vector<8x32xf32>
    %797 = math.tanh %796 : vector<8x32xf32>
    %cst_195 = arith.constant 2.000000e+00 : f32
    %798 = vector.broadcast %cst_195 : f32 to vector<8x32xf32>
    %799 = arith.mulf %798, %785 : vector<8x32xf32>
    %800 = arith.addf %779, %799 : vector<8x32xf32>
    %cst_196 = arith.constant 2.000000e+00 : f32
    %801 = vector.broadcast %cst_196 : f32 to vector<8x32xf32>
    %802 = arith.mulf %801, %791 : vector<8x32xf32>
    %803 = arith.addf %800, %802 : vector<8x32xf32>
    %804 = arith.addf %803, %797 : vector<8x32xf32>
    %805 = arith.addf %773, %804 : vector<8x32xf32>
    %806 = arith.truncf %804 : vector<8x32xf32> to vector<8x32xbf16>
    %cst_197 = arith.constant dense<0.000000e+00> : vector<8x32xf32>
    %807 = tpu.matmul %806, %10, %cst_197 {dimension_numbers = #tpu.dot_dimension_numbers<[1], [0], [0], [1], [0, 0, 1, 1], [], []>} : vector<8x32xbf16>, vector<32x32xbf16>, vector<8x32xf32> -> vector<8x32xf32>
    %808 = arith.mulf %737, %807 : vector<8x32xf32>
    %809 = arith.addf %778, %808 : vector<8x32xf32>
    %810 = arith.addf %809, %741 : vector<8x32xf32>
    %811 = math.tanh %810 : vector<8x32xf32>
    %812 = arith.truncf %811 : vector<8x32xf32> to vector<8x32xbf16>
    %cst_198 = arith.constant dense<0.000000e+00> : vector<8x32xf32>
    %813 = tpu.matmul %812, %10, %cst_198 {dimension_numbers = #tpu.dot_dimension_numbers<[1], [0], [0], [1], [0, 0, 1, 1], [], []>} : vector<8x32xbf16>, vector<32x32xbf16>, vector<8x32xf32> -> vector<8x32xf32>
    %814 = arith.mulf %735, %813 : vector<8x32xf32>
    %815 = arith.addf %810, %814 : vector<8x32xf32>
    %816 = arith.addf %815, %739 : vector<8x32xf32>
    %817 = math.tanh %816 : vector<8x32xf32>
    %818 = arith.truncf %817 : vector<8x32xf32> to vector<8x32xbf16>
    %cst_199 = arith.constant dense<0.000000e+00> : vector<8x32xf32>
    %819 = tpu.matmul %818, %10, %cst_199 {dimension_numbers = #tpu.dot_dimension_numbers<[1], [0], [0], [1], [0, 0, 1, 1], [], []>} : vector<8x32xbf16>, vector<32x32xbf16>, vector<8x32xf32> -> vector<8x32xf32>
    %820 = arith.mulf %735, %819 : vector<8x32xf32>
    %821 = arith.addf %810, %820 : vector<8x32xf32>
    %822 = arith.addf %821, %739 : vector<8x32xf32>
    %823 = math.tanh %822 : vector<8x32xf32>
    %824 = arith.truncf %823 : vector<8x32xf32> to vector<8x32xbf16>
    %cst_200 = arith.constant dense<0.000000e+00> : vector<8x32xf32>
    %825 = tpu.matmul %824, %10, %cst_200 {dimension_numbers = #tpu.dot_dimension_numbers<[1], [0], [0], [1], [0, 0, 1, 1], [], []>} : vector<8x32xbf16>, vector<32x32xbf16>, vector<8x32xf32> -> vector<8x32xf32>
    %826 = arith.mulf %733, %825 : vector<8x32xf32>
    %827 = arith.addf %810, %826 : vector<8x32xf32>
    %828 = arith.addf %827, %741 : vector<8x32xf32>
    %829 = math.tanh %828 : vector<8x32xf32>
    %cst_201 = arith.constant 2.000000e+00 : f32
    %830 = vector.broadcast %cst_201 : f32 to vector<8x32xf32>
    %831 = arith.mulf %830, %817 : vector<8x32xf32>
    %832 = arith.addf %811, %831 : vector<8x32xf32>
    %cst_202 = arith.constant 2.000000e+00 : f32
    %833 = vector.broadcast %cst_202 : f32 to vector<8x32xf32>
    %834 = arith.mulf %833, %823 : vector<8x32xf32>
    %835 = arith.addf %832, %834 : vector<8x32xf32>
    %836 = arith.addf %835, %829 : vector<8x32xf32>
    %837 = arith.addf %805, %836 : vector<8x32xf32>
    %838 = arith.truncf %837 : vector<8x32xf32> to vector<8x32xbf16>
    %cst_203 = arith.constant dense<0.000000e+00> : vector<8x32xf32>
    %839 = tpu.matmul %838, %11, %cst_203 {dimension_numbers = #tpu.dot_dimension_numbers<[1], [0], [0], [1], [0, 0, 1, 1], [], []>} : vector<8x32xbf16>, vector<32x32xbf16>, vector<8x32xf32> -> vector<8x32xf32>
    %840 = arith.mulf %737, %839 : vector<8x32xf32>
    %841 = arith.addf %727, %840 : vector<8x32xf32>
    %842 = vector.broadcast %15 : vector<1x32xf32> to vector<8x32xf32>
    %843 = arith.mulf %733, %842 : vector<8x32xf32>
    %844 = arith.addf %841, %843 : vector<8x32xf32>
    %c40_204 = arith.constant 40 : index
    %c0_205 = arith.constant 0 : index
    %845 = vector.load %arg16[%c40_204, %c0_205] : memref<64x32xf32, #tpu.memory_space<vmem>>, vector<8x32xf32>
    tpu.vector_store %arg16[%c40_204, %c0_205], %844 {strides = array<i32>} : memref<64x32xf32, #tpu.memory_space<vmem>>, vector<8x32xf32>,
    %c48 = arith.constant 48 : index
    %c0_206 = arith.constant 0 : index
    %846 = vector.load %arg15[%c48, %c0_206] : memref<64x128xf32, #tpu.memory_space<vmem>>, vector<8x128xf32>
    %847 = arith.truncf %844 : vector<8x32xf32> to vector<8x32xbf16>
    %cst_207 = arith.constant dense<0.000000e+00> : vector<8x128xf32>
    %848 = tpu.matmul %847, %7, %cst_207 {dimension_numbers = #tpu.dot_dimension_numbers<[1], [0], [0], [1], [0, 0, 1, 1], [], []>} : vector<8x32xbf16>, vector<32x128xbf16>, vector<8x128xf32> -> vector<8x128xf32>
    %849 = arith.addf %846, %848 : vector<8x128xf32>
    %850 = vector.extract_strided_slice %849 {offsets = [0, 0], sizes = [8, 96], strides = [1, 1]} : vector<8x128xf32> to vector<8x96xf32>
    %851 = arith.negf %850 : vector<8x96xf32>
    %852 = math.exp %851 : vector<8x96xf32>
    %cst_208 = arith.constant 1.000000e+00 : f32
    %853 = vector.broadcast %cst_208 : f32 to vector<8x96xf32>
    %854 = arith.addf %853, %852 : vector<8x96xf32>
    %855 = arith.divf %853, %854 : vector<8x96xf32>
    %856 = vector.extract_strided_slice %849 {offsets = [0, 96], sizes = [8, 32], strides = [1, 1]} : vector<8x128xf32> to vector<8x32xf32>
    %857 = math.tanh %856 : vector<8x32xf32>
    %858 = vector.extract_strided_slice %855 {offsets = [0, 0], sizes = [8, 32], strides = [1, 1]} : vector<8x96xf32> to vector<8x32xf32>
    %859 = vector.extract_strided_slice %855 {offsets = [0, 32], sizes = [8, 32], strides = [1, 1]} : vector<8x96xf32> to vector<8x32xf32>
    %860 = vector.extract_strided_slice %855 {offsets = [0, 64], sizes = [8, 32], strides = [1, 1]} : vector<8x96xf32> to vector<8x32xf32>
    %861 = arith.mulf %859, %725 : vector<8x32xf32>
    %862 = arith.mulf %858, %857 : vector<8x32xf32>
    %863 = arith.addf %861, %862 : vector<8x32xf32>
    %864 = math.tanh %863 : vector<8x32xf32>
    %865 = arith.mulf %860, %864 : vector<8x32xf32>
    %c6 = arith.constant 6 : index
    %c0_209 = arith.constant 0 : index
    %c0_210 = arith.constant 0 : index
    %866 = vector.load %arg2[%c6, %c0_209, %c0_210] : memref<8x8x1xf32, #tpu.memory_space<vmem>>, vector<1x8x1xf32>
    %867 = vector.shape_cast %866 : vector<1x8x1xf32> to vector<8x1xf32>
    %cst_211 = arith.constant 0.333333343 : f32
    %868 = vector.broadcast %cst_211 : f32 to vector<8x1xf32>
    %869 = arith.mulf %867, %868 : vector<8x1xf32>
    %870 = vector.shape_cast %869 : vector<8x1xf32> to vector<8x1xf32>
    %871 = vector.broadcast %870 : vector<8x1xf32> to vector<8x32xf32>
    %cst_212 = arith.constant 5.000000e-01 : f32
    %872 = vector.broadcast %cst_212 : f32 to vector<8x32xf32>
    %873 = arith.mulf %871, %872 : vector<8x32xf32>
    %cst_213 = arith.constant 0.166666672 : f32
    %874 = vector.broadcast %cst_213 : f32 to vector<8x32xf32>
    %875 = arith.mulf %871, %874 : vector<8x32xf32>
    %876 = vector.broadcast %13 : vector<1x32xf32> to vector<8x32xf32>
    %877 = arith.mulf %873, %876 : vector<8x32xf32>
    %878 = vector.broadcast %13 : vector<1x32xf32> to vector<8x32xf32>
    %879 = arith.mulf %871, %878 : vector<8x32xf32>
    %880 = arith.truncf %865 : vector<8x32xf32> to vector<8x32xbf16>
    %cst_214 = arith.constant dense<0.000000e+00> : vector<8x32xf32>
    %881 = tpu.matmul %880, %8, %cst_214 {dimension_numbers = #tpu.dot_dimension_numbers<[1], [0], [0], [1], [0, 0, 1, 1], [], []>} : vector<8x32xbf16>, vector<32x32xbf16>, vector<8x32xf32> -> vector<8x32xf32>
    %882 = vector.broadcast %9 : vector<1x32xf32> to vector<8x32xf32>
    %883 = arith.addf %881, %882 : vector<8x32xf32>
    %cst_215 = arith.constant 0.000000e+00 : f32
    %884 = vector.broadcast %cst_215 : f32 to vector<8x32xf32>
    %885 = math.tanh %883 : vector<8x32xf32>
    %886 = arith.truncf %885 : vector<8x32xf32> to vector<8x32xbf16>
    %cst_216 = arith.constant dense<0.000000e+00> : vector<8x32xf32>
    %887 = tpu.matmul %886, %10, %cst_216 {dimension_numbers = #tpu.dot_dimension_numbers<[1], [0], [0], [1], [0, 0, 1, 1], [], []>} : vector<8x32xbf16>, vector<32x32xbf16>, vector<8x32xf32> -> vector<8x32xf32>
    %888 = arith.mulf %873, %887 : vector<8x32xf32>
    %889 = arith.addf %883, %888 : vector<8x32xf32>
    %890 = arith.addf %889, %877 : vector<8x32xf32>
    %891 = math.tanh %890 : vector<8x32xf32>
    %892 = arith.truncf %891 : vector<8x32xf32> to vector<8x32xbf16>
    %cst_217 = arith.constant dense<0.000000e+00> : vector<8x32xf32>
    %893 = tpu.matmul %892, %10, %cst_217 {dimension_numbers = #tpu.dot_dimension_numbers<[1], [0], [0], [1], [0, 0, 1, 1], [], []>} : vector<8x32xbf16>, vector<32x32xbf16>, vector<8x32xf32> -> vector<8x32xf32>
    %894 = arith.mulf %873, %893 : vector<8x32xf32>
    %895 = arith.addf %883, %894 : vector<8x32xf32>
    %896 = arith.addf %895, %877 : vector<8x32xf32>
    %897 = math.tanh %896 : vector<8x32xf32>
    %898 = arith.truncf %897 : vector<8x32xf32> to vector<8x32xbf16>
    %cst_218 = arith.constant dense<0.000000e+00> : vector<8x32xf32>
    %899 = tpu.matmul %898, %10, %cst_218 {dimension_numbers = #tpu.dot_dimension_numbers<[1], [0], [0], [1], [0, 0, 1, 1], [], []>} : vector<8x32xbf16>, vector<32x32xbf16>, vector<8x32xf32> -> vector<8x32xf32>
    %900 = arith.mulf %871, %899 : vector<8x32xf32>
    %901 = arith.addf %883, %900 : vector<8x32xf32>
    %902 = arith.addf %901, %879 : vector<8x32xf32>
    %903 = math.tanh %902 : vector<8x32xf32>
    %cst_219 = arith.constant 2.000000e+00 : f32
    %904 = vector.broadcast %cst_219 : f32 to vector<8x32xf32>
    %905 = arith.mulf %904, %891 : vector<8x32xf32>
    %906 = arith.addf %885, %905 : vector<8x32xf32>
    %cst_220 = arith.constant 2.000000e+00 : f32
    %907 = vector.broadcast %cst_220 : f32 to vector<8x32xf32>
    %908 = arith.mulf %907, %897 : vector<8x32xf32>
    %909 = arith.addf %906, %908 : vector<8x32xf32>
    %910 = arith.addf %909, %903 : vector<8x32xf32>
    %911 = arith.addf %884, %910 : vector<8x32xf32>
    %912 = arith.truncf %910 : vector<8x32xf32> to vector<8x32xbf16>
    %cst_221 = arith.constant dense<0.000000e+00> : vector<8x32xf32>
    %913 = tpu.matmul %912, %10, %cst_221 {dimension_numbers = #tpu.dot_dimension_numbers<[1], [0], [0], [1], [0, 0, 1, 1], [], []>} : vector<8x32xbf16>, vector<32x32xbf16>, vector<8x32xf32> -> vector<8x32xf32>
    %914 = arith.mulf %875, %913 : vector<8x32xf32>
    %915 = arith.addf %883, %914 : vector<8x32xf32>
    %916 = arith.addf %915, %879 : vector<8x32xf32>
    %917 = math.tanh %916 : vector<8x32xf32>
    %918 = arith.truncf %917 : vector<8x32xf32> to vector<8x32xbf16>
    %cst_222 = arith.constant dense<0.000000e+00> : vector<8x32xf32>
    %919 = tpu.matmul %918, %10, %cst_222 {dimension_numbers = #tpu.dot_dimension_numbers<[1], [0], [0], [1], [0, 0, 1, 1], [], []>} : vector<8x32xbf16>, vector<32x32xbf16>, vector<8x32xf32> -> vector<8x32xf32>
    %920 = arith.mulf %873, %919 : vector<8x32xf32>
    %921 = arith.addf %916, %920 : vector<8x32xf32>
    %922 = arith.addf %921, %877 : vector<8x32xf32>
    %923 = math.tanh %922 : vector<8x32xf32>
    %924 = arith.truncf %923 : vector<8x32xf32> to vector<8x32xbf16>
    %cst_223 = arith.constant dense<0.000000e+00> : vector<8x32xf32>
    %925 = tpu.matmul %924, %10, %cst_223 {dimension_numbers = #tpu.dot_dimension_numbers<[1], [0], [0], [1], [0, 0, 1, 1], [], []>} : vector<8x32xbf16>, vector<32x32xbf16>, vector<8x32xf32> -> vector<8x32xf32>
    %926 = arith.mulf %873, %925 : vector<8x32xf32>
    %927 = arith.addf %916, %926 : vector<8x32xf32>
    %928 = arith.addf %927, %877 : vector<8x32xf32>
    %929 = math.tanh %928 : vector<8x32xf32>
    %930 = arith.truncf %929 : vector<8x32xf32> to vector<8x32xbf16>
    %cst_224 = arith.constant dense<0.000000e+00> : vector<8x32xf32>
    %931 = tpu.matmul %930, %10, %cst_224 {dimension_numbers = #tpu.dot_dimension_numbers<[1], [0], [0], [1], [0, 0, 1, 1], [], []>} : vector<8x32xbf16>, vector<32x32xbf16>, vector<8x32xf32> -> vector<8x32xf32>
    %932 = arith.mulf %871, %931 : vector<8x32xf32>
    %933 = arith.addf %916, %932 : vector<8x32xf32>
    %934 = arith.addf %933, %879 : vector<8x32xf32>
    %935 = math.tanh %934 : vector<8x32xf32>
    %cst_225 = arith.constant 2.000000e+00 : f32
    %936 = vector.broadcast %cst_225 : f32 to vector<8x32xf32>
    %937 = arith.mulf %936, %923 : vector<8x32xf32>
    %938 = arith.addf %917, %937 : vector<8x32xf32>
    %cst_226 = arith.constant 2.000000e+00 : f32
    %939 = vector.broadcast %cst_226 : f32 to vector<8x32xf32>
    %940 = arith.mulf %939, %929 : vector<8x32xf32>
    %941 = arith.addf %938, %940 : vector<8x32xf32>
    %942 = arith.addf %941, %935 : vector<8x32xf32>
    %943 = arith.addf %911, %942 : vector<8x32xf32>
    %944 = arith.truncf %942 : vector<8x32xf32> to vector<8x32xbf16>
    %cst_227 = arith.constant dense<0.000000e+00> : vector<8x32xf32>
    %945 = tpu.matmul %944, %10, %cst_227 {dimension_numbers = #tpu.dot_dimension_numbers<[1], [0], [0], [1], [0, 0, 1, 1], [], []>} : vector<8x32xbf16>, vector<32x32xbf16>, vector<8x32xf32> -> vector<8x32xf32>
    %946 = arith.mulf %875, %945 : vector<8x32xf32>
    %947 = arith.addf %916, %946 : vector<8x32xf32>
    %948 = arith.addf %947, %879 : vector<8x32xf32>
    %949 = math.tanh %948 : vector<8x32xf32>
    %950 = arith.truncf %949 : vector<8x32xf32> to vector<8x32xbf16>
    %cst_228 = arith.constant dense<0.000000e+00> : vector<8x32xf32>
    %951 = tpu.matmul %950, %10, %cst_228 {dimension_numbers = #tpu.dot_dimension_numbers<[1], [0], [0], [1], [0, 0, 1, 1], [], []>} : vector<8x32xbf16>, vector<32x32xbf16>, vector<8x32xf32> -> vector<8x32xf32>
    %952 = arith.mulf %873, %951 : vector<8x32xf32>
    %953 = arith.addf %948, %952 : vector<8x32xf32>
    %954 = arith.addf %953, %877 : vector<8x32xf32>
    %955 = math.tanh %954 : vector<8x32xf32>
    %956 = arith.truncf %955 : vector<8x32xf32> to vector<8x32xbf16>
    %cst_229 = arith.constant dense<0.000000e+00> : vector<8x32xf32>
    %957 = tpu.matmul %956, %10, %cst_229 {dimension_numbers = #tpu.dot_dimension_numbers<[1], [0], [0], [1], [0, 0, 1, 1], [], []>} : vector<8x32xbf16>, vector<32x32xbf16>, vector<8x32xf32> -> vector<8x32xf32>
    %958 = arith.mulf %873, %957 : vector<8x32xf32>
    %959 = arith.addf %948, %958 : vector<8x32xf32>
    %960 = arith.addf %959, %877 : vector<8x32xf32>
    %961 = math.tanh %960 : vector<8x32xf32>
    %962 = arith.truncf %961 : vector<8x32xf32> to vector<8x32xbf16>
    %cst_230 = arith.constant dense<0.000000e+00> : vector<8x32xf32>
    %963 = tpu.matmul %962, %10, %cst_230 {dimension_numbers = #tpu.dot_dimension_numbers<[1], [0], [0], [1], [0, 0, 1, 1], [], []>} : vector<8x32xbf16>, vector<32x32xbf16>, vector<8x32xf32> -> vector<8x32xf32>
    %964 = arith.mulf %871, %963 : vector<8x32xf32>
    %965 = arith.addf %948, %964 : vector<8x32xf32>
    %966 = arith.addf %965, %879 : vector<8x32xf32>
    %967 = math.tanh %966 : vector<8x32xf32>
    %cst_231 = arith.constant 2.000000e+00 : f32
    %968 = vector.broadcast %cst_231 : f32 to vector<8x32xf32>
    %969 = arith.mulf %968, %955 : vector<8x32xf32>
    %970 = arith.addf %949, %969 : vector<8x32xf32>
    %cst_232 = arith.constant 2.000000e+00 : f32
    %971 = vector.broadcast %cst_232 : f32 to vector<8x32xf32>
    %972 = arith.mulf %971, %961 : vector<8x32xf32>
    %973 = arith.addf %970, %972 : vector<8x32xf32>
    %974 = arith.addf %973, %967 : vector<8x32xf32>
    %975 = arith.addf %943, %974 : vector<8x32xf32>
    %976 = arith.truncf %975 : vector<8x32xf32> to vector<8x32xbf16>
    %cst_233 = arith.constant dense<0.000000e+00> : vector<8x32xf32>
    %977 = tpu.matmul %976, %11, %cst_233 {dimension_numbers = #tpu.dot_dimension_numbers<[1], [0], [0], [1], [0, 0, 1, 1], [], []>} : vector<8x32xbf16>, vector<32x32xbf16>, vector<8x32xf32> -> vector<8x32xf32>
    %978 = arith.mulf %875, %977 : vector<8x32xf32>
    %979 = arith.addf %865, %978 : vector<8x32xf32>
    %980 = vector.broadcast %15 : vector<1x32xf32> to vector<8x32xf32>
    %981 = arith.mulf %871, %980 : vector<8x32xf32>
    %982 = arith.addf %979, %981 : vector<8x32xf32>
    %c48_234 = arith.constant 48 : index
    %c0_235 = arith.constant 0 : index
    %983 = vector.load %arg16[%c48_234, %c0_235] : memref<64x32xf32, #tpu.memory_space<vmem>>, vector<8x32xf32>
    tpu.vector_store %arg16[%c48_234, %c0_235], %982 {strides = array<i32>} : memref<64x32xf32, #tpu.memory_space<vmem>>, vector<8x32xf32>,
    %c56 = arith.constant 56 : index
    %c0_236 = arith.constant 0 : index
    %984 = vector.load %arg15[%c56, %c0_236] : memref<64x128xf32, #tpu.memory_space<vmem>>, vector<8x128xf32>
    %985 = arith.truncf %982 : vector<8x32xf32> to vector<8x32xbf16>
    %cst_237 = arith.constant dense<0.000000e+00> : vector<8x128xf32>
    %986 = tpu.matmul %985, %7, %cst_237 {dimension_numbers = #tpu.dot_dimension_numbers<[1], [0], [0], [1], [0, 0, 1, 1], [], []>} : vector<8x32xbf16>, vector<32x128xbf16>, vector<8x128xf32> -> vector<8x128xf32>
    %987 = arith.addf %984, %986 : vector<8x128xf32>
    %988 = vector.extract_strided_slice %987 {offsets = [0, 0], sizes = [8, 96], strides = [1, 1]} : vector<8x128xf32> to vector<8x96xf32>
    %989 = arith.negf %988 : vector<8x96xf32>
    %990 = math.exp %989 : vector<8x96xf32>
    %cst_238 = arith.constant 1.000000e+00 : f32
    %991 = vector.broadcast %cst_238 : f32 to vector<8x96xf32>
    %992 = arith.addf %991, %990 : vector<8x96xf32>
    %993 = arith.divf %991, %992 : vector<8x96xf32>
    %994 = vector.extract_strided_slice %987 {offsets = [0, 96], sizes = [8, 32], strides = [1, 1]} : vector<8x128xf32> to vector<8x32xf32>
    %995 = math.tanh %994 : vector<8x32xf32>
    %996 = vector.extract_strided_slice %993 {offsets = [0, 0], sizes = [8, 32], strides = [1, 1]} : vector<8x96xf32> to vector<8x32xf32>
    %997 = vector.extract_strided_slice %993 {offsets = [0, 32], sizes = [8, 32], strides = [1, 1]} : vector<8x96xf32> to vector<8x32xf32>
    %998 = vector.extract_strided_slice %993 {offsets = [0, 64], sizes = [8, 32], strides = [1, 1]} : vector<8x96xf32> to vector<8x32xf32>
    %999 = arith.mulf %997, %863 : vector<8x32xf32>
    %1000 = arith.mulf %996, %995 : vector<8x32xf32>
    %1001 = arith.addf %999, %1000 : vector<8x32xf32>
    %1002 = math.tanh %1001 : vector<8x32xf32>
    %1003 = arith.mulf %998, %1002 : vector<8x32xf32>
    %c7 = arith.constant 7 : index
    %c0_239 = arith.constant 0 : index
    %c0_240 = arith.constant 0 : index
    %1004 = vector.load %arg2[%c7, %c0_239, %c0_240] : memref<8x8x1xf32, #tpu.memory_space<vmem>>, vector<1x8x1xf32>
    %1005 = vector.shape_cast %1004 : vector<1x8x1xf32> to vector<8x1xf32>
    %cst_241 = arith.constant 0.333333343 : f32
    %1006 = vector.broadcast %cst_241 : f32 to vector<8x1xf32>
    %1007 = arith.mulf %1005, %1006 : vector<8x1xf32>
    %1008 = vector.shape_cast %1007 : vector<8x1xf32> to vector<8x1xf32>
    %1009 = vector.broadcast %1008 : vector<8x1xf32> to vector<8x32xf32>
    %cst_242 = arith.constant 5.000000e-01 : f32
    %1010 = vector.broadcast %cst_242 : f32 to vector<8x32xf32>
    %1011 = arith.mulf %1009, %1010 : vector<8x32xf32>
    %cst_243 = arith.constant 0.166666672 : f32
    %1012 = vector.broadcast %cst_243 : f32 to vector<8x32xf32>
    %1013 = arith.mulf %1009, %1012 : vector<8x32xf32>
    %1014 = vector.broadcast %13 : vector<1x32xf32> to vector<8x32xf32>
    %1015 = arith.mulf %1011, %1014 : vector<8x32xf32>
    %1016 = vector.broadcast %13 : vector<1x32xf32> to vector<8x32xf32>
    %1017 = arith.mulf %1009, %1016 : vector<8x32xf32>
    %1018 = arith.truncf %1003 : vector<8x32xf32> to vector<8x32xbf16>
    %cst_244 = arith.constant dense<0.000000e+00> : vector<8x32xf32>
    %1019 = tpu.matmul %1018, %8, %cst_244 {dimension_numbers = #tpu.dot_dimension_numbers<[1], [0], [0], [1], [0, 0, 1, 1], [], []>} : vector<8x32xbf16>, vector<32x32xbf16>, vector<8x32xf32> -> vector<8x32xf32>
    %1020 = vector.broadcast %9 : vector<1x32xf32> to vector<8x32xf32>
    %1021 = arith.addf %1019, %1020 : vector<8x32xf32>
    %cst_245 = arith.constant 0.000000e+00 : f32
    %1022 = vector.broadcast %cst_245 : f32 to vector<8x32xf32>
    %1023 = math.tanh %1021 : vector<8x32xf32>
    %1024 = arith.truncf %1023 : vector<8x32xf32> to vector<8x32xbf16>
    %cst_246 = arith.constant dense<0.000000e+00> : vector<8x32xf32>
    %1025 = tpu.matmul %1024, %10, %cst_246 {dimension_numbers = #tpu.dot_dimension_numbers<[1], [0], [0], [1], [0, 0, 1, 1], [], []>} : vector<8x32xbf16>, vector<32x32xbf16>, vector<8x32xf32> -> vector<8x32xf32>
    %1026 = arith.mulf %1011, %1025 : vector<8x32xf32>
    %1027 = arith.addf %1021, %1026 : vector<8x32xf32>
    %1028 = arith.addf %1027, %1015 : vector<8x32xf32>
    %1029 = math.tanh %1028 : vector<8x32xf32>
    %1030 = arith.truncf %1029 : vector<8x32xf32> to vector<8x32xbf16>
    %cst_247 = arith.constant dense<0.000000e+00> : vector<8x32xf32>
    %1031 = tpu.matmul %1030, %10, %cst_247 {dimension_numbers = #tpu.dot_dimension_numbers<[1], [0], [0], [1], [0, 0, 1, 1], [], []>} : vector<8x32xbf16>, vector<32x32xbf16>, vector<8x32xf32> -> vector<8x32xf32>
    %1032 = arith.mulf %1011, %1031 : vector<8x32xf32>
    %1033 = arith.addf %1021, %1032 : vector<8x32xf32>
    %1034 = arith.addf %1033, %1015 : vector<8x32xf32>
    %1035 = math.tanh %1034 : vector<8x32xf32>
    %1036 = arith.truncf %1035 : vector<8x32xf32> to vector<8x32xbf16>
    %cst_248 = arith.constant dense<0.000000e+00> : vector<8x32xf32>
    %1037 = tpu.matmul %1036, %10, %cst_248 {dimension_numbers = #tpu.dot_dimension_numbers<[1], [0], [0], [1], [0, 0, 1, 1], [], []>} : vector<8x32xbf16>, vector<32x32xbf16>, vector<8x32xf32> -> vector<8x32xf32>
    %1038 = arith.mulf %1009, %1037 : vector<8x32xf32>
    %1039 = arith.addf %1021, %1038 : vector<8x32xf32>
    %1040 = arith.addf %1039, %1017 : vector<8x32xf32>
    %1041 = math.tanh %1040 : vector<8x32xf32>
    %cst_249 = arith.constant 2.000000e+00 : f32
    %1042 = vector.broadcast %cst_249 : f32 to vector<8x32xf32>
    %1043 = arith.mulf %1042, %1029 : vector<8x32xf32>
    %1044 = arith.addf %1023, %1043 : vector<8x32xf32>
    %cst_250 = arith.constant 2.000000e+00 : f32
    %1045 = vector.broadcast %cst_250 : f32 to vector<8x32xf32>
    %1046 = arith.mulf %1045, %1035 : vector<8x32xf32>
    %1047 = arith.addf %1044, %1046 : vector<8x32xf32>
    %1048 = arith.addf %1047, %1041 : vector<8x32xf32>
    %1049 = arith.addf %1022, %1048 : vector<8x32xf32>
    %1050 = arith.truncf %1048 : vector<8x32xf32> to vector<8x32xbf16>
    %cst_251 = arith.constant dense<0.000000e+00> : vector<8x32xf32>
    %1051 = tpu.matmul %1050, %10, %cst_251 {dimension_numbers = #tpu.dot_dimension_numbers<[1], [0], [0], [1], [0, 0, 1, 1], [], []>} : vector<8x32xbf16>, vector<32x32xbf16>, vector<8x32xf32> -> vector<8x32xf32>
    %1052 = arith.mulf %1013, %1051 : vector<8x32xf32>
    %1053 = arith.addf %1021, %1052 : vector<8x32xf32>
    %1054 = arith.addf %1053, %1017 : vector<8x32xf32>
    %1055 = math.tanh %1054 : vector<8x32xf32>
    %1056 = arith.truncf %1055 : vector<8x32xf32> to vector<8x32xbf16>
    %cst_252 = arith.constant dense<0.000000e+00> : vector<8x32xf32>
    %1057 = tpu.matmul %1056, %10, %cst_252 {dimension_numbers = #tpu.dot_dimension_numbers<[1], [0], [0], [1], [0, 0, 1, 1], [], []>} : vector<8x32xbf16>, vector<32x32xbf16>, vector<8x32xf32> -> vector<8x32xf32>
    %1058 = arith.mulf %1011, %1057 : vector<8x32xf32>
    %1059 = arith.addf %1054, %1058 : vector<8x32xf32>
    %1060 = arith.addf %1059, %1015 : vector<8x32xf32>
    %1061 = math.tanh %1060 : vector<8x32xf32>
    %1062 = arith.truncf %1061 : vector<8x32xf32> to vector<8x32xbf16>
    %cst_253 = arith.constant dense<0.000000e+00> : vector<8x32xf32>
    %1063 = tpu.matmul %1062, %10, %cst_253 {dimension_numbers = #tpu.dot_dimension_numbers<[1], [0], [0], [1], [0, 0, 1, 1], [], []>} : vector<8x32xbf16>, vector<32x32xbf16>, vector<8x32xf32> -> vector<8x32xf32>
    %1064 = arith.mulf %1011, %1063 : vector<8x32xf32>
    %1065 = arith.addf %1054, %1064 : vector<8x32xf32>
    %1066 = arith.addf %1065, %1015 : vector<8x32xf32>
    %1067 = math.tanh %1066 : vector<8x32xf32>
    %1068 = arith.truncf %1067 : vector<8x32xf32> to vector<8x32xbf16>
    %cst_254 = arith.constant dense<0.000000e+00> : vector<8x32xf32>
    %1069 = tpu.matmul %1068, %10, %cst_254 {dimension_numbers = #tpu.dot_dimension_numbers<[1], [0], [0], [1], [0, 0, 1, 1], [], []>} : vector<8x32xbf16>, vector<32x32xbf16>, vector<8x32xf32> -> vector<8x32xf32>
    %1070 = arith.mulf %1009, %1069 : vector<8x32xf32>
    %1071 = arith.addf %1054, %1070 : vector<8x32xf32>
    %1072 = arith.addf %1071, %1017 : vector<8x32xf32>
    %1073 = math.tanh %1072 : vector<8x32xf32>
    %cst_255 = arith.constant 2.000000e+00 : f32
    %1074 = vector.broadcast %cst_255 : f32 to vector<8x32xf32>
    %1075 = arith.mulf %1074, %1061 : vector<8x32xf32>
    %1076 = arith.addf %1055, %1075 : vector<8x32xf32>
    %cst_256 = arith.constant 2.000000e+00 : f32
    %1077 = vector.broadcast %cst_256 : f32 to vector<8x32xf32>
    %1078 = arith.mulf %1077, %1067 : vector<8x32xf32>
    %1079 = arith.addf %1076, %1078 : vector<8x32xf32>
    %1080 = arith.addf %1079, %1073 : vector<8x32xf32>
    %1081 = arith.addf %1049, %1080 : vector<8x32xf32>
    %1082 = arith.truncf %1080 : vector<8x32xf32> to vector<8x32xbf16>
    %cst_257 = arith.constant dense<0.000000e+00> : vector<8x32xf32>
    %1083 = tpu.matmul %1082, %10, %cst_257 {dimension_numbers = #tpu.dot_dimension_numbers<[1], [0], [0], [1], [0, 0, 1, 1], [], []>} : vector<8x32xbf16>, vector<32x32xbf16>, vector<8x32xf32> -> vector<8x32xf32>
    %1084 = arith.mulf %1013, %1083 : vector<8x32xf32>
    %1085 = arith.addf %1054, %1084 : vector<8x32xf32>
    %1086 = arith.addf %1085, %1017 : vector<8x32xf32>
    %1087 = math.tanh %1086 : vector<8x32xf32>
    %1088 = arith.truncf %1087 : vector<8x32xf32> to vector<8x32xbf16>
    %cst_258 = arith.constant dense<0.000000e+00> : vector<8x32xf32>
    %1089 = tpu.matmul %1088, %10, %cst_258 {dimension_numbers = #tpu.dot_dimension_numbers<[1], [0], [0], [1], [0, 0, 1, 1], [], []>} : vector<8x32xbf16>, vector<32x32xbf16>, vector<8x32xf32> -> vector<8x32xf32>
    %1090 = arith.mulf %1011, %1089 : vector<8x32xf32>
    %1091 = arith.addf %1086, %1090 : vector<8x32xf32>
    %1092 = arith.addf %1091, %1015 : vector<8x32xf32>
    %1093 = math.tanh %1092 : vector<8x32xf32>
    %1094 = arith.truncf %1093 : vector<8x32xf32> to vector<8x32xbf16>
    %cst_259 = arith.constant dense<0.000000e+00> : vector<8x32xf32>
    %1095 = tpu.matmul %1094, %10, %cst_259 {dimension_numbers = #tpu.dot_dimension_numbers<[1], [0], [0], [1], [0, 0, 1, 1], [], []>} : vector<8x32xbf16>, vector<32x32xbf16>, vector<8x32xf32> -> vector<8x32xf32>
    %1096 = arith.mulf %1011, %1095 : vector<8x32xf32>
    %1097 = arith.addf %1086, %1096 : vector<8x32xf32>
    %1098 = arith.addf %1097, %1015 : vector<8x32xf32>
    %1099 = math.tanh %1098 : vector<8x32xf32>
    %1100 = arith.truncf %1099 : vector<8x32xf32> to vector<8x32xbf16>
    %cst_260 = arith.constant dense<0.000000e+00> : vector<8x32xf32>
    %1101 = tpu.matmul %1100, %10, %cst_260 {dimension_numbers = #tpu.dot_dimension_numbers<[1], [0], [0], [1], [0, 0, 1, 1], [], []>} : vector<8x32xbf16>, vector<32x32xbf16>, vector<8x32xf32> -> vector<8x32xf32>
    %1102 = arith.mulf %1009, %1101 : vector<8x32xf32>
    %1103 = arith.addf %1086, %1102 : vector<8x32xf32>
    %1104 = arith.addf %1103, %1017 : vector<8x32xf32>
    %1105 = math.tanh %1104 : vector<8x32xf32>
    %cst_261 = arith.constant 2.000000e+00 : f32
    %1106 = vector.broadcast %cst_261 : f32 to vector<8x32xf32>
    %1107 = arith.mulf %1106, %1093 : vector<8x32xf32>
    %1108 = arith.addf %1087, %1107 : vector<8x32xf32>
    %cst_262 = arith.constant 2.000000e+00 : f32
    %1109 = vector.broadcast %cst_262 : f32 to vector<8x32xf32>
    %1110 = arith.mulf %1109, %1099 : vector<8x32xf32>
    %1111 = arith.addf %1108, %1110 : vector<8x32xf32>
    %1112 = arith.addf %1111, %1105 : vector<8x32xf32>
    %1113 = arith.addf %1081, %1112 : vector<8x32xf32>
    %1114 = arith.truncf %1113 : vector<8x32xf32> to vector<8x32xbf16>
    %cst_263 = arith.constant dense<0.000000e+00> : vector<8x32xf32>
    %1115 = tpu.matmul %1114, %11, %cst_263 {dimension_numbers = #tpu.dot_dimension_numbers<[1], [0], [0], [1], [0, 0, 1, 1], [], []>} : vector<8x32xbf16>, vector<32x32xbf16>, vector<8x32xf32> -> vector<8x32xf32>
    %1116 = arith.mulf %1013, %1115 : vector<8x32xf32>
    %1117 = arith.addf %1003, %1116 : vector<8x32xf32>
    %1118 = vector.broadcast %15 : vector<1x32xf32> to vector<8x32xf32>
    %1119 = arith.mulf %1009, %1118 : vector<8x32xf32>
    %1120 = arith.addf %1117, %1119 : vector<8x32xf32>
    %c56_264 = arith.constant 56 : index
    %c0_265 = arith.constant 0 : index
    %1121 = vector.load %arg16[%c56_264, %c0_265] : memref<64x32xf32, #tpu.memory_space<vmem>>, vector<8x32xf32>
    tpu.vector_store %arg16[%c56_264, %c0_265], %1120 {strides = array<i32>} : memref<64x32xf32, #tpu.memory_space<vmem>>, vector<8x32xf32>,
    %c0_266 = arith.constant 0 : index
    %c0_267 = arith.constant 0 : index
    %1122 = vector.load %arg16[%c0_266, %c0_267] : memref<64x32xf32, #tpu.memory_space<vmem>>, vector<64x32xf32>
    %1123 = arith.truncf %1122 : vector<64x32xf32> to vector<64x32xbf16>
    %c0_268 = arith.constant 0 : index
    %c0_269 = arith.constant 0 : index
    %1124 = vector.load %arg12[%c0_268, %c0_269] : memref<32x128xbf16, #tpu.memory_space<vmem>>, vector<32x128xbf16>
    %cst_270 = arith.constant dense<0.000000e+00> : vector<64x128xf32>
    %1125 = tpu.matmul %1123, %1124, %cst_270 {dimension_numbers = #tpu.dot_dimension_numbers<[1], [0], [0], [1], [0, 0, 1, 1], [], []>} : vector<64x32xbf16>, vector<32x128xbf16>, vector<64x128xf32> -> vector<64x128xf32>
    %c0_271 = arith.constant 0 : index
    %c0_272 = arith.constant 0 : index
    %1126 = vector.load %arg13[%c0_271, %c0_272] : memref<1x128xf32, #tpu.memory_space<vmem>>, vector<1x128xf32>
    %1127 = vector.broadcast %1126 : vector<1x128xf32> to vector<64x128xf32>
    %1128 = arith.addf %1125, %1127 : vector<64x128xf32>
    %c0_273 = arith.constant 0 : index
    %c0_274 = arith.constant 0 : index
    %1129 = vector.load %arg14[%c0_273, %c0_274] : memref<64x128xf32, #tpu.memory_space<vmem>>, vector<64x128xf32>
    tpu.vector_store %arg14[%c0_273, %c0_274], %1128 {strides = array<i32>} : memref<64x128xf32, #tpu.memory_space<vmem>>, vector<64x128xf32>,
    return
  }
  func.func @transform_0(%arg0: i32) -> (i32, i32) {
    %c0_i32 = arith.constant 0 : i32
    %c0_i32_0 = arith.constant 0 : i32
    return %arg0, %c0_i32 : i32, i32
  }
  func.func @transform_1(%arg0: i32) -> (i32, i32, i32) {
    %c0_i32 = arith.constant 0 : i32
    %c0_i32_0 = arith.constant 0 : i32
    %c0_i32_1 = arith.constant 0 : i32
    return %arg0, %c0_i32, %c0_i32_0 : i32, i32, i32
  }
  func.func @transform_2(%arg0: i32) -> (i32, i32) {
    %c0_i32 = arith.constant 0 : i32
    %c0_i32_0 = arith.constant 0 : i32
    %c0_i32_1 = arith.constant 0 : i32
    return %c0_i32, %c0_i32_0 : i32, i32
  }
  func.func @transform_3(%arg0: i32) -> (i32, i32) {
    %c0_i32 = arith.constant 0 : i32
    %c0_i32_0 = arith.constant 0 : i32
    %c0_i32_1 = arith.constant 0 : i32
    return %c0_i32, %c0_i32_0 : i32, i32
  }
  func.func @transform_4(%arg0: i32) -> (i32, i32) {
    %c0_i32 = arith.constant 0 : i32
    %c0_i32_0 = arith.constant 0 : i32
    %c0_i32_1 = arith.constant 0 : i32
    return %c0_i32, %c0_i32_0 : i32, i32
  }
  func.func @transform_5(%arg0: i32) -> (i32, i32) {
    %c0_i32 = arith.constant 0 : i32
    %c0_i32_0 = arith.constant 0 : i32
    %c0_i32_1 = arith.constant 0 : i32
    return %c0_i32, %c0_i32_0 : i32, i32
  }
  func.func @transform_6(%arg0: i32) -> (i32, i32) {
    %c0_i32 = arith.constant 0 : i32
    %c0_i32_0 = arith.constant 0 : i32
    %c0_i32_1 = arith.constant 0 : i32
    return %c0_i32, %c0_i32_0 : i32, i32
  }
  func.func @transform_7(%arg0: i32) -> (i32, i32) {
    %c0_i32 = arith.constant 0 : i32
    %c0_i32_0 = arith.constant 0 : i32
    %c0_i32_1 = arith.constant 0 : i32
    return %c0_i32, %c0_i32_0 : i32, i32
  }
  func.func @transform_8(%arg0: i32) -> (i32, i32) {
    %c0_i32 = arith.constant 0 : i32
    %c0_i32_0 = arith.constant 0 : i32
    %c0_i32_1 = arith.constant 0 : i32
    return %c0_i32, %c0_i32_0 : i32, i32
  }
  func.func @transform_9(%arg0: i32) -> (i32, i32) {
    %c0_i32 = arith.constant 0 : i32
    %c0_i32_0 = arith.constant 0 : i32
    %c0_i32_1 = arith.constant 0 : i32
    return %c0_i32, %c0_i32_0 : i32, i32
  }
  func.func @transform_10(%arg0: i32) -> (i32, i32) {
    %c0_i32 = arith.constant 0 : i32
    %c0_i32_0 = arith.constant 0 : i32
    %c0_i32_1 = arith.constant 0 : i32
    return %c0_i32, %c0_i32_0 : i32, i32
  }
  func.func @transform_11(%arg0: i32) -> (i32, i32) {
    %c0_i32 = arith.constant 0 : i32
    %c0_i32_0 = arith.constant 0 : i32
    %c0_i32_1 = arith.constant 0 : i32
    return %c0_i32, %c0_i32_0 : i32, i32
  }
  func.func @transform_12(%arg0: i32) -> (i32, i32) {
    %c0_i32 = arith.constant 0 : i32
    %c0_i32_0 = arith.constant 0 : i32
    %c0_i32_1 = arith.constant 0 : i32
    return %c0_i32, %c0_i32_0 : i32, i32
  }
  func.func @transform_13(%arg0: i32) -> (i32, i32) {
    %c0_i32 = arith.constant 0 : i32
    %c0_i32_0 = arith.constant 0 : i32
    return %arg0, %c0_i32 : i32, i32
  }
}

</mosaic_0001>

<llo_original>
// kernel: tpu_custom_call.1
$region0: #{tpu_custom_call.1}
  #allocation0 [shape = 'u32[]', space=smem, size = 0x4, offset = 0x4, fixed_abs, tag = 'smem constant byte address 0x4 - core index']
  #allocation1 [shape = 'u32[144,128]{1,0:T(1,128)}', space=vmem, size = 0x12000, scoped, tag = 'internal scratch']
  #allocation2 [shape = 'f32[64,128]{1,0:T(8,128)}', space=vmem, size = 0x8000, scoped, tag = 'scratch operand']
  #allocation3 [shape = 'f32[64,32]{1,0:T(8,128)}', space=vmem, size = 0x8000, scoped, tag = 'scratch operand']
  %s0 = inlined_call_operand.vmem [shape: bf16[64,16], index: 0, kind: input, shape index: {}]
  %s1 = inlined_call_operand.vmem [shape: f32[8,8,1], index: 1, kind: input, shape index: {}]
  %s2 = inlined_call_operand.vmem [shape: bf16[16,128], index: 2, kind: input, shape index: {}]
  %s3 = inlined_call_operand.vmem [shape: bf16[32,128], index: 3, kind: input, shape index: {}]
  %s4 = inlined_call_operand.vmem [shape: f32[1,128], index: 4, kind: input, shape index: {}]
  %s5 = inlined_call_operand.vmem [shape: bf16[32,32], index: 5, kind: input, shape index: {}]
  %s6 = inlined_call_operand.vmem [shape: f32[1,32], index: 6, kind: input, shape index: {}]
  %s7 = inlined_call_operand.vmem [shape: bf16[32,32], index: 7, kind: input, shape index: {}]
  %s8 = inlined_call_operand.vmem [shape: bf16[32,32], index: 8, kind: input, shape index: {}]
  %s9 = inlined_call_operand.vmem [shape: f32[1,32], index: 9, kind: input, shape index: {}]
  %s10 = inlined_call_operand.vmem [shape: f32[1,32], index: 10, kind: input, shape index: {}]
  %s11 = inlined_call_operand.vmem [shape: bf16[32,128], index: 11, kind: input, shape index: {}]
  %s12 = inlined_call_operand.vmem [shape: f32[1,128], index: 12, kind: input, shape index: {}]
  %s13 = inlined_call_operand.hbm [shape: f32[64,128], index: 13, kind: output, shape index: {}]
  %s14 = sld [smem:[#allocation0]]
  $region62: #{tpu_custom_call.1} parent=0
    _
  %s16 = ssub.s32 1, %s14
  %s17 = scalar_select 0, %s16, %s14
  $region1: #{tpu_custom_call.1} parent=0
    #allocation4 [shape = 'u8[32768]{0}', space=vmem, size = 0x8000, scoped, tag = 'output window, operand 0, single buffered']
    #allocation5 [shape = 's32[1]{0}', space=sflag, size = 0x4, scoped, tag = 'scoped memory for tpu_custom_call.1']
    %18 = vsyncpa [#allocation5], 0
    // Predicated region
    $region2: #{tpu_custom_call.1} parent=1 // pred_check
      _
    $region3: #{tpu_custom_call.1} parent=1 // pred_check_branch
      %20 = sbr.rel (0) target = $region5
    $region4: #{tpu_custom_call.1} parent=1 // pred_region
      _
    $region5: #{tpu_custom_call.1} parent=1 // pred_fallthru
      _
    // Predicated region
    $region6: #{tpu_custom_call.1} parent=1 // pred_check
      _
    $region7: #{tpu_custom_call.1} parent=1 // pred_check_branch
      %22 = sbr.rel (0) target = $region9
    $region8: #{tpu_custom_call.1} parent=1 // pred_region
      _
    $region9: #{tpu_custom_call.1} parent=1 // pred_fallthru
      _
    // Predicated region
    $region10: #{tpu_custom_call.1} parent=1 // pred_check
      _
    $region11: #{tpu_custom_call.1} parent=1 // pred_check_branch
      %24 = sbr.rel (0) target = $region13
    $region12: #{tpu_custom_call.1} parent=1 // pred_region
      _
    $region13: #{tpu_custom_call.1} parent=1 // pred_fallthru
      _
    // Predicated region
    $region14: #{tpu_custom_call.1} parent=1 // pred_check
      _
    $region15: #{tpu_custom_call.1} parent=1 // pred_check_branch
      %26 = sbr.rel (0) target = $region17
    $region16: #{tpu_custom_call.1} parent=1 // pred_region
      _
    $region17: #{tpu_custom_call.1} parent=1 // pred_fallthru
      _
    // Predicated region
    $region18: #{tpu_custom_call.1} parent=1 // pred_check
      _
    $region19: #{tpu_custom_call.1} parent=1 // pred_check_branch
      %28 = sbr.rel (0) target = $region21
    $region20: #{tpu_custom_call.1} parent=1 // pred_region
      _
    $region21: #{tpu_custom_call.1} parent=1 // pred_fallthru
      _
    // Predicated region
    $region22: #{tpu_custom_call.1} parent=1 // pred_check
      _
    $region23: #{tpu_custom_call.1} parent=1 // pred_check_branch
      %30 = sbr.rel (0) target = $region25
    $region24: #{tpu_custom_call.1} parent=1 // pred_region
      _
    $region25: #{tpu_custom_call.1} parent=1 // pred_fallthru
      _
    // Predicated region
    $region26: #{tpu_custom_call.1} parent=1 // pred_check
      _
    $region27: #{tpu_custom_call.1} parent=1 // pred_check_branch
      %32 = sbr.rel (0) target = $region29
    $region28: #{tpu_custom_call.1} parent=1 // pred_region
      _
    $region29: #{tpu_custom_call.1} parent=1 // pred_fallthru
      _
    // Predicated region
    $region30: #{tpu_custom_call.1} parent=1 // pred_check
      _
    $region31: #{tpu_custom_call.1} parent=1 // pred_check_branch
      %34 = sbr.rel (0) target = $region33
    $region32: #{tpu_custom_call.1} parent=1 // pred_region
      _
    $region33: #{tpu_custom_call.1} parent=1 // pred_fallthru
      _
    // Predicated region
    $region34: #{tpu_custom_call.1} parent=1 // pred_check
      _
    $region35: #{tpu_custom_call.1} parent=1 // pred_check_branch
      %36 = sbr.rel (0) target = $region37
    $region36: #{tpu_custom_call.1} parent=1 // pred_region
      _
    $region37: #{tpu_custom_call.1} parent=1 // pred_fallthru
      _
    // Predicated region
    $region38: #{tpu_custom_call.1} parent=1 // pred_check
      _
    $region39: #{tpu_custom_call.1} parent=1 // pred_check_branch
      %38 = sbr.rel (0) target = $region41
    $region40: #{tpu_custom_call.1} parent=1 // pred_region
      _
    $region41: #{tpu_custom_call.1} parent=1 // pred_fallthru
      _
    // Predicated region
    $region42: #{tpu_custom_call.1} parent=1 // pred_check
      _
    $region43: #{tpu_custom_call.1} parent=1 // pred_check_branch
      %40 = sbr.rel (0) target = $region45
    $region44: #{tpu_custom_call.1} parent=1 // pred_region
      _
    $region45: #{tpu_custom_call.1} parent=1 // pred_fallthru
      _
    // Predicated region
    $region46: #{tpu_custom_call.1} parent=1 // pred_check
      _
    $region47: #{tpu_custom_call.1} parent=1 // pred_check_branch
      %42 = sbr.rel (0) target = $region49
    $region48: #{tpu_custom_call.1} parent=1 // pred_region
      _
    $region49: #{tpu_custom_call.1} parent=1 // pred_fallthru
      _
    // Predicated region
    $region50: #{tpu_custom_call.1} parent=1 // pred_check
      _
    $region51: #{tpu_custom_call.1} parent=1 // pred_check_branch
      %44 = sbr.rel (0) target = $region53
    $region52: #{tpu_custom_call.1} parent=1 // pred_region
      _
    $region53: #{tpu_custom_call.1} parent=1 // pred_fallthru
      _
    %v46 = vld [vmem:[%s0] sm:$0xf]
    %v47 = vld [vmem:[%s0 + $0x4] sm:$0xf]
    %v48 = vld [vmem:[%s0 + $0x8] sm:$0xf]
    %v49 = vld [vmem:[%s0 + $0xc] sm:$0xf]
    %v50 = vld [vmem:[%s0 + $0x10] sm:$0xf]
    %v51 = vld [vmem:[%s0 + $0x14] sm:$0xf]
    %v52 = vld [vmem:[%s0 + $0x18] sm:$0xf]
    %v53 = vld [vmem:[%s0 + $0x1c] sm:$0xf]
    %v54 = vld [vmem:[%s2] sm:$0xf]
    %v55 = vld [vmem:[%s2 + $0x4] sm:$0xf]
    %v56 = vld [vmem:[%s4] sm:$0x1]
    %v58 = vlaneseq
    %v59 = vshrl.u32 %v58, 7
    %v60 = vsub.s32 0, %v59
    %v61 = vrot.slane %v56, %v60
    %v71 = vunpack.c.l.b16 %v46
    %v72 = vunpack.c.l.b16 %v47
    %v73 = vunpack.c.l.b16 %v48
    %v74 = vunpack.c.l.b16 %v49
    %v75 = vunpack.c.l.b16 %v50
    %v76 = vunpack.c.l.b16 %v51
    %v77 = vunpack.c.l.b16 %v52
    %v78 = vunpack.c.l.b16 %v53
    %v79 = vpack.c.b16 %v72, %v71
    %v80 = vpack.c.b16 %v74, %v73
    %v81 = vpack.c.b16 %v76, %v75
    %v82 = vpack.c.b16 %v78, %v77
    %v85 = vunpack.c.l.b16 %v54
    %v86 = vunpack.c.l.b16 %v55
    %v87 = vpack.c.b16 %v86, %v85
    %vm89 = vcmask 130048
    %v91 = vsel %vm89, %v79, 0
    %v94 = vsel %vm89, %v80, 0
    %v97 = vsel %vm89, %v81, 0
    %v100 = vsel %vm89, %v82, 0
    %102 = vmatprep.subr.bf16.mxu0 0
    %103 = vmatpush1.bf16.msra.mxu0 %v87
    %104 = vmatprep.subr.bf16.mxu0 0
    %105 = vmatpush1.bf16.msra.mxu0 0
    %106 = vmatprep.subr.bf16.mxu0 0
    %107 = vmatpush1.bf16.msra.mxu0 0
    %108 = vmatprep.subr.bf16.mxu0 0
    %109 = vmatpush1.bf16.msra.mxu0 0
    %110 = vmatprep.subr.bf16.mxu0 0
    %111 = vmatpush1.bf16.msra.mxu0 0
    %112 = vmatprep.subr.bf16.mxu0 0
    %113 = vmatpush1.bf16.msra.mxu0 0
    %114 = vmatprep.subr.bf16.mxu0 0
    %115 = vmatpush1.bf16.msra.mxu0 0
    %116 = vmatprep.subr.bf16.mxu0 0
    %117 = vmatpush1.bf16.msra.mxu0 0
    %118 = vmatprep.subr.bf16.mxu0 0
    %119 = vmatpush1.bf16.msra.mxu0 0
    %120 = vmatprep.subr.bf16.mxu0 0
    %121 = vmatpush1.bf16.msra.mxu0 0
    %122 = vmatprep.subr.bf16.mxu0 0
    %123 = vmatpush1.bf16.msra.mxu0 0
    %124 = vmatprep.subr.bf16.mxu0 0
    %125 = vmatpush1.bf16.msra.mxu0 0
    %126 = vmatprep.subr.bf16.mxu0 0
    %127 = vmatpush1.bf16.msra.mxu0 0
    %128 = vmatprep.subr.bf16.mxu0 0
    %129 = vmatpush1.bf16.msra.mxu0 0
    %130 = vmatprep.subr.bf16.mxu0 0
    %131 = vmatpush1.bf16.msra.mxu0 0
    %132 = vmatprep.subr.bf16.mxu0 0
    %133 = vmatpush1.bf16.msra.mxu0 0
    %134 = vmatprep.mubr.bf16.mxu0 0
    %135 = vmatmul.mubr.bf16.gmra.mrb[0].mxu0 %v91
    %v136 = vpop.f32.mrb[0].mxu0
    %v137 = vadd.f32 %v61, %v136
    %v138 = vpop.f32.mrb[0].mxu0
    %v139 = vpop.f32.mrb[0].mxu0
    %v140 = vadd.f32 %v61, %v139
    %v141 = vpop.f32.mrb[0].mxu0
    %142 = vmatprep.mubr.bf16.mxu0 0
    %143 = vmatmul.mubr.bf16.gmra.mrb[0].mxu0 %v94
    %v144 = vpop.f32.mrb[0].mxu0
    %v145 = vadd.f32 %v61, %v144
    %v146 = vpop.f32.mrb[0].mxu0
    %v147 = vpop.f32.mrb[0].mxu0
    %v148 = vadd.f32 %v61, %v147
    %v149 = vpop.f32.mrb[0].mxu0
    %150 = vmatprep.mubr.bf16.mxu0 0
    %151 = vmatmul.mubr.bf16.gmra.mrb[0].mxu0 %v97
    %v152 = vpop.f32.mrb[0].mxu0
    %v153 = vadd.f32 %v61, %v152
    %v154 = vpop.f32.mrb[0].mxu0
    %v155 = vpop.f32.mrb[0].mxu0
    %v156 = vadd.f32 %v61, %v155
    %v157 = vpop.f32.mrb[0].mxu0
    %158 = vmatprep.mubr.bf16.mxu0 0
    %159 = vmatmul.mubr.bf16.gmra.mrb[0].mxu0 %v100
    %v160 = vpop.f32.mrb[0].mxu0
    %v161 = vadd.f32 %v61, %v160
    %v162 = vpop.f32.mrb[0].mxu0
    %v163 = vpop.f32.mrb[0].mxu0
    %v164 = vadd.f32 %v61, %v163
    %v165 = vpop.f32.mrb[0].mxu0
    %166 = vdwg.mxu0
    %167 = vst [vmem:[#allocation2] sm:$0xff] %v137
    %168 = vst [vmem:[#allocation2 + $0x8] sm:$0xff] %v140
    %169 = vst [vmem:[#allocation2 + $0x10] sm:$0xff] %v145
    %170 = vst [vmem:[#allocation2 + $0x18] sm:$0xff] %v148
    %171 = vst [vmem:[#allocation2 + $0x20] sm:$0xff] %v153
    %172 = vst [vmem:[#allocation2 + $0x28] sm:$0xff] %v156
    %173 = vst [vmem:[#allocation2 + $0x30] sm:$0xff] %v161
    %174 = vst [vmem:[#allocation2 + $0x38] sm:$0xff] %v164
    %v175 = vld [vmem:[%s3] sm:$0xf]
    %v176 = vld [vmem:[%s3 + $0x4] sm:$0xf]
    %v177 = vld [vmem:[%s3 + $0x8] sm:$0xf]
    %v178 = vld [vmem:[%s3 + $0xc] sm:$0xf]
    %v179 = vld [vmem:[%s5] sm:$0xf]
    %v180 = vld [vmem:[%s5 + $0x4] sm:$0xf]
    %v181 = vld [vmem:[%s5 + $0x8] sm:$0xf]
    %v182 = vld [vmem:[%s5 + $0xc] sm:$0xf]
    %v183 = vld [vmem:[%s6] sm:$0x1]
    %v184 = vld [vmem:[%s7] sm:$0xf]
    %v185 = vld [vmem:[%s7 + $0x4] sm:$0xf]
    %v186 = vld [vmem:[%s7 + $0x8] sm:$0xf]
    %v187 = vld [vmem:[%s7 + $0xc] sm:$0xf]
    %v188 = vld [vmem:[%s8] sm:$0xf]
    %v189 = vld [vmem:[%s8 + $0x4] sm:$0xf]
    %v190 = vld [vmem:[%s8 + $0x8] sm:$0xf]
    %v191 = vld [vmem:[%s8 + $0xc] sm:$0xf]
    %v192 = vld [vmem:[%s9] sm:$0x1]
    %v193 = vld [vmem:[%s10] sm:$0x1]
    %v194 = vmul.f32 %v192, 3.0
    %v195 = vld [vmem:[#allocation2] sm:$0xff]
    %v200 = vunpack.c.l.b16 %v175
    %v201 = vunpack.c.l.b16 %v176
    %v202 = vunpack.c.l.b16 %v177
    %v203 = vunpack.c.l.b16 %v178
    %v204 = vpack.c.b16 %v201, %v200
    %v205 = vpack.c.b16 %v203, %v202
    %vm208 = vcmask 261120
    %v210 = vsel %vm208, 0, 0
    %212 = vmatprep.subr.bf16.mxu0 0
    %213 = vmatpush1.bf16.msra.mxu0 %v204
    %214 = vmatprep.subr.bf16.mxu0 0
    %215 = vmatpush1.bf16.msra.mxu0 %v205
    %216 = vmatprep.subr.bf16.mxu0 0
    %217 = vmatpush1.bf16.msra.mxu0 0
    %218 = vmatprep.subr.bf16.mxu0 0
    %219 = vmatpush1.bf16.msra.mxu0 0
    %220 = vmatprep.subr.bf16.mxu0 0
    %221 = vmatpush1.bf16.msra.mxu0 0
    %222 = vmatprep.subr.bf16.mxu0 0
    %223 = vmatpush1.bf16.msra.mxu0 0
    %224 = vmatprep.subr.bf16.mxu0 0
    %225 = vmatpush1.bf16.msra.mxu0 0
    %226 = vmatprep.subr.bf16.mxu0 0
    %227 = vmatpush1.bf16.msra.mxu0 0
    %228 = vmatprep.subr.bf16.mxu0 0
    %229 = vmatpush1.bf16.msra.mxu0 0
    %230 = vmatprep.subr.bf16.mxu0 0
    %231 = vmatpush1.bf16.msra.mxu0 0
    %232 = vmatprep.subr.bf16.mxu0 0
    %233 = vmatpush1.bf16.msra.mxu0 0
    %234 = vmatprep.subr.bf16.mxu0 0
    %235 = vmatpush1.bf16.msra.mxu0 0
    %236 = vmatprep.subr.bf16.mxu0 0
    %237 = vmatpush1.bf16.msra.mxu0 0
    %238 = vmatprep.subr.bf16.mxu0 0
    %239 = vmatpush1.bf16.msra.mxu0 0
    %240 = vmatprep.subr.bf16.mxu0 0
    %241 = vmatpush1.bf16.msra.mxu0 0
    %242 = vmatprep.subr.bf16.mxu0 0
    %243 = vmatpush1.bf16.msra.mxu0 0
    %244 = vmatprep.mubr.bf16.mxu0 0
    %245 = vmatmul.mubr.bf16.gmra.mrb[0].mxu0 %v210
    %v246 = vpop.f32.mrb[0].mxu0
    %v247 = vadd.f32 0.0, %v246
    %v248 = vpop.f32.mrb[0].mxu0
    %v249 = vpop.f32.mrb[0].mxu0
    %v250 = vpop.f32.mrb[0].mxu0
    %251 = vdwg.mxu0
    %v252 = vadd.f32 %v195, %v247
    %v253 = vxor.u32 %v252, 2147483648
    %v254 = vmul.f32 %v253, 1.442695
    %v255 = vpow.pop %v254
    %v256 = vadd.f32 %v255, 1.0
    %v257 = vrcp.pop %v256
    %v258 = vmul.f32 1.0, %v257
    %v259 = vtanh.pop %v252
    %v260 = vmul.f32 %v258, 0.0
    %262 = vrot.lane.b32.xlu0 %v259, 32
    %v263 = vpop.permute.xlu0 %262
    %v265 = vmul.f32 %v258, %v263
    %267 = vrot.lane.b32.xlu0 %v265, 32
    %v268 = vpop.permute.xlu0 %267
    %v270 = vadd.f32 %v260, %v268
    %v271 = vtanh.pop %v270
    %273 = vrot.lane.b32.xlu0 %v271, 32
    %v274 = vpop.permute.xlu0 %273
    %v276 = vmul.f32 %v258, %v274
    %v277 = vld [vmem:[%s1] sm:$0xff]
    %v278 = vmul.f32 %v277, 0.33333334
    %280 = vset.pattern.permute.xlu0 0
    %281 = vperm.xlu0 %280, %v278
    %v282 = vpop.permute.xlu0 %281
    %v284 = vmul.f32 %v282, 0.5
    %v285 = vmul.f32 %v282, 0.16666667
    %v287 = vlaneseq
    %v288 = vshrl.u32 %v287, 7
    %v289 = vsub.s32 0, %v288
    %v290 = vrot.slane %v193, %v289
    %v292 = vmul.f32 %v284, %v290
    %v293 = vmul.f32 %v282, %v290
    %v294 = vpack.c.bf16 %v276, %v276
    %v296 = vlaneseq
    %v297 = vshrl.u32 %v296, 7
    %v298 = vsub.s32 0, %v297
    %v299 = vrot.slane %v183, %v298
    %302 = vrot.lane.b32.xlu0 %v294, 64
    %v303 = vpop.permute.xlu0 %302
    %v308 = vunpack.c.l.b16 %v179
    %v309 = vunpack.c.l.b16 %v180
    %v310 = vunpack.c.l.b16 %v181
    %v311 = vunpack.c.l.b16 %v182
    %v312 = vpack.c.b16 %v309, %v308
    %v313 = vpack.c.b16 %v311, %v310
    %v317 = vsel %vm208, %v303, 0
    %319 = vmatprep.subr.bf16.mxu0 0
    %320 = vmatpush1.bf16.msra.mxu0 %v312
    %321 = vmatprep.subr.bf16.mxu0 0
    %322 = vmatpush1.bf16.msra.mxu0 %v313
    %323 = vmatprep.subr.bf16.mxu0 0
    %324 = vmatpush1.bf16.msra.mxu0 0
    %325 = vmatprep.subr.bf16.mxu0 0
    %326 = vmatpush1.bf16.msra.mxu0 0
    %327 = vmatprep.subr.bf16.mxu0 0
    %328 = vmatpush1.bf16.msra.mxu0 0
    %329 = vmatprep.subr.bf16.mxu0 0
    %330 = vmatpush1.bf16.msra.mxu0 0
    %331 = vmatprep.subr.bf16.mxu0 0
    %332 = vmatpush1.bf16.msra.mxu0 0
    %333 = vmatprep.subr.bf16.mxu0 0
    %334 = vmatpush1.bf16.msra.mxu0 0
    %335 = vmatprep.subr.bf16.mxu0 0
    %336 = vmatpush1.bf16.msra.mxu0 0
    %337 = vmatprep.subr.bf16.mxu0 0
    %338 = vmatpush1.bf16.msra.mxu0 0
    %339 = vmatprep.subr.bf16.mxu0 0
    %340 = vmatpush1.bf16.msra.mxu0 0
    %341 = vmatprep.subr.bf16.mxu0 0
    %342 = vmatpush1.bf16.msra.mxu0 0
    %343 = vmatprep.subr.bf16.mxu0 0
    %344 = vmatpush1.bf16.msra.mxu0 0
    %345 = vmatprep.subr.bf16.mxu0 0
    %346 = vmatpush1.bf16.msra.mxu0 0
    %347 = vmatprep.subr.bf16.mxu0 0
    %348 = vmatpush1.bf16.msra.mxu0 0
    %349 = vmatprep.subr.bf16.mxu0 0
    %350 = vmatpush1.bf16.msra.mxu0 0
    %351 = vmatprep.mubr.bf16.mxu0 0
    %352 = vmatmul.mubr.bf16.gmra.mrb[0].mxu0 %v317
    %v353 = vpop.f32.mrb[0].mxu0
    %v354 = vadd.f32 %v299, %v353
    %v355 = vpop.f32.mrb[0].mxu0
    %v356 = vpop.f32.mrb[0].mxu0
    %v357 = vpop.f32.mrb[0].mxu0
    %358 = vdwg.mxu0
    %v359 = vtanh.pop %v354
    %v360 = vpack.c.bf16 %v359, %v359
    %v365 = vunpack.c.l.b16 %v184
    %v366 = vunpack.c.l.b16 %v185
    %v367 = vunpack.c.l.b16 %v186
    %v368 = vunpack.c.l.b16 %v187
    %v369 = vpack.c.b16 %v366, %v365
    %v370 = vpack.c.b16 %v368, %v367
    %v374 = vsel %vm208, %v360, 0
    %376 = vmatprep.subr.bf16.mxu0 0
    %377 = vmatpush1.bf16.msra.mxu0 %v369
    %378 = vmatprep.subr.bf16.mxu0 0
    %379 = vmatpush1.bf16.msra.mxu0 %v370
    %380 = vmatprep.subr.bf16.mxu0 0
    %381 = vmatpush1.bf16.msra.mxu0 0
    %382 = vmatprep.subr.bf16.mxu0 0
    %383 = vmatpush1.bf16.msra.mxu0 0
    %384 = vmatprep.subr.bf16.mxu0 0
    %385 = vmatpush1.bf16.msra.mxu0 0
    %386 = vmatprep.subr.bf16.mxu0 0
    %387 = vmatpush1.bf16.msra.mxu0 0
    %388 = vmatprep.subr.bf16.mxu0 0
    %389 = vmatpush1.bf16.msra.mxu0 0
    %390 = vmatprep.subr.bf16.mxu0 0
    %391 = vmatpush1.bf16.msra.mxu0 0
    %392 = vmatprep.subr.bf16.mxu0 0
    %393 = vmatpush1.bf16.msra.mxu0 0
    %394 = vmatprep.subr.bf16.mxu0 0
    %395 = vmatpush1.bf16.msra.mxu0 0
    %396 = vmatprep.subr.bf16.mxu0 0
    %397 = vmatpush1.bf16.msra.mxu0 0
    %398 = vmatprep.subr.bf16.mxu0 0
    %399 = vmatpush1.bf16.msra.mxu0 0
    %400 = vmatprep.subr.bf16.mxu0 0
    %401 = vmatpush1.bf16.msra.mxu0 0
    %402 = vmatprep.subr.bf16.mxu0 0
    %403 = vmatpush1.bf16.msra.mxu0 0
    %404 = vmatprep.subr.bf16.mxu0 0
    %405 = vmatpush1.bf16.msra.mxu0 0
    %406 = vmatprep.subr.bf16.mxu0 0
    %407 = vmatpush1.bf16.msra.mxu0 0
    %408 = vmatprep.mubr.bf16.mxu0 0
    %409 = vmatmul.mubr.bf16.gmra.mrb[0].mxu0 %v374
    %v410 = vpop.f32.mrb[0].mxu0
    %v411 = vadd.f32 0.0, %v410
    %v412 = vpop.f32.mrb[0].mxu0
    %v413 = vpop.f32.mrb[0].mxu0
    %v414 = vpop.f32.mrb[0].mxu0
    %415 = vdwg.mxu0
    %v416 = vmul.f32 %v284, %v411
    %v417 = vadd.f32 %v354, %v416
    %v418 = vadd.f32 %v417, %v292
    %v419 = vtanh.pop %v418
    %v420 = vpack.c.bf16 %v419, %v419
    %v422 = vsel %vm208, %v420, 0
    %424 = vmatprep.subr.bf16.mxu0 0
    %425 = vmatpush1.bf16.msra.mxu0 %v369
    %426 = vmatprep.subr.bf16.mxu0 0
    %427 = vmatpush1.bf16.msra.mxu0 %v370
    %428 = vmatprep.subr.bf16.mxu0 0
    %429 = vmatpush1.bf16.msra.mxu0 0
    %430 = vmatprep.subr.bf16.mxu0 0
    %431 = vmatpush1.bf16.msra.mxu0 0
    %432 = vmatprep.subr.bf16.mxu0 0
    %433 = vmatpush1.bf16.msra.mxu0 0
    %434 = vmatprep.subr.bf16.mxu0 0
    %435 = vmatpush1.bf16.msra.mxu0 0
    %436 = vmatprep.subr.bf16.mxu0 0
    %437 = vmatpush1.bf16.msra.mxu0 0
    %438 = vmatprep.subr.bf16.mxu0 0
    %439 = vmatpush1.bf16.msra.mxu0 0
    %440 = vmatprep.subr.bf16.mxu0 0
    %441 = vmatpush1.bf16.msra.mxu0 0
    %442 = vmatprep.subr.bf16.mxu0 0
    %443 = vmatpush1.bf16.msra.mxu0 0
    %444 = vmatprep.subr.bf16.mxu0 0
    %445 = vmatpush1.bf16.msra.mxu0 0
    %446 = vmatprep.subr.bf16.mxu0 0
    %447 = vmatpush1.bf16.msra.mxu0 0
    %448 = vmatprep.subr.bf16.mxu0 0
    %449 = vmatpush1.bf16.msra.mxu0 0
    %450 = vmatprep.subr.bf16.mxu0 0
    %451 = vmatpush1.bf16.msra.mxu0 0
    %452 = vmatprep.subr.bf16.mxu0 0
    %453 = vmatpush1.bf16.msra.mxu0 0
    %454 = vmatprep.subr.bf16.mxu0 0
    %455 = vmatpush1.bf16.msra.mxu0 0
    %456 = vmatprep.mubr.bf16.mxu0 0
    %457 = vmatmul.mubr.bf16.gmra.mrb[0].mxu0 %v422
    %v458 = vpop.f32.mrb[0].mxu0
    %v459 = vadd.f32 0.0, %v458
    %v460 = vpop.f32.mrb[0].mxu0
    %v461 = vpop.f32.mrb[0].mxu0
    %v462 = vpop.f32.mrb[0].mxu0
    %463 = vdwg.mxu0
    %v464 = vmul.f32 %v284, %v459
    %v465 = vadd.f32 %v354, %v464
    %v466 = vadd.f32 %v465, %v292
    %v467 = vtanh.pop %v466
    %v468 = vpack.c.bf16 %v467, %v467
    %v470 = vsel %vm208, %v468, 0
    %472 = vmatprep.subr.bf16.mxu0 0
    %473 = vmatpush1.bf16.msra.mxu0 %v369
    %474 = vmatprep.subr.bf16.mxu0 0
    %475 = vmatpush1.bf16.msra.mxu0 %v370
    %476 = vmatprep.subr.bf16.mxu0 0
    %477 = vmatpush1.bf16.msra.mxu0 0
    %478 = vmatprep.subr.bf16.mxu0 0
    %479 = vmatpush1.bf16.msra.mxu0 0
    %480 = vmatprep.subr.bf16.mxu0 0
    %481 = vmatpush1.bf16.msra.mxu0 0
    %482 = vmatprep.subr.bf16.mxu0 0
    %483 = vmatpush1.bf16.msra.mxu0 0
    %484 = vmatprep.subr.bf16.mxu0 0
    %485 = vmatpush1.bf16.msra.mxu0 0
    %486 = vmatprep.subr.bf16.mxu0 0
    %487 = vmatpush1.bf16.msra.mxu0 0
    %488 = vmatprep.subr.bf16.mxu0 0
    %489 = vmatpush1.bf16.msra.mxu0 0
    %490 = vmatprep.subr.bf16.mxu0 0
    %491 = vmatpush1.bf16.msra.mxu0 0
    %492 = vmatprep.subr.bf16.mxu0 0
    %493 = vmatpush1.bf16.msra.mxu0 0
    %494 = vmatprep.subr.bf16.mxu0 0
    %495 = vmatpush1.bf16.msra.mxu0 0
    %496 = vmatprep.subr.bf16.mxu0 0
    %497 = vmatpush1.bf16.msra.mxu0 0
    %498 = vmatprep.subr.bf16.mxu0 0
    %499 = vmatpush1.bf16.msra.mxu0 0
    %500 = vmatprep.subr.bf16.mxu0 0
    %501 = vmatpush1.bf16.msra.mxu0 0
    %502 = vmatprep.subr.bf16.mxu0 0
    %503 = vmatpush1.bf16.msra.mxu0 0
    %504 = vmatprep.mubr.bf16.mxu0 0
    %505 = vmatmul.mubr.bf16.gmra.mrb[0].mxu0 %v470
    %v506 = vpop.f32.mrb[0].mxu0
    %v507 = vadd.f32 0.0, %v506
    %v508 = vpop.f32.mrb[0].mxu0
    %v509 = vpop.f32.mrb[0].mxu0
    %v510 = vpop.f32.mrb[0].mxu0
    %511 = vdwg.mxu0
    %v512 = vmul.f32 %v282, %v507
    %v513 = vadd.f32 %v354, %v512
    %v514 = vadd.f32 %v513, %v293
    %v515 = vtanh.pop %v514
    %v516 = vmul.f32 %v419, 2.0
    %v517 = vadd.f32 %v359, %v516
    %v518 = vmul.f32 %v467, 2.0
    %v519 = vadd.f32 %v517, %v518
    %v520 = vadd.f32 %v519, %v515
    %v521 = vadd.f32 %v520, 0.0
    %v522 = vpack.c.bf16 %v520, %v520
    %v524 = vsel %vm208, %v522, 0
    %526 = vmatprep.subr.bf16.mxu0 0
    %527 = vmatpush1.bf16.msra.mxu0 %v369
    %528 = vmatprep.subr.bf16.mxu0 0
    %529 = vmatpush1.bf16.msra.mxu0 %v370
    %530 = vmatprep.subr.bf16.mxu0 0
    %531 = vmatpush1.bf16.msra.mxu0 0
    %532 = vmatprep.subr.bf16.mxu0 0
    %533 = vmatpush1.bf16.msra.mxu0 0
    %534 = vmatprep.subr.bf16.mxu0 0
    %535 = vmatpush1.bf16.msra.mxu0 0
    %536 = vmatprep.subr.bf16.mxu0 0
    %537 = vmatpush1.bf16.msra.mxu0 0
    %538 = vmatprep.subr.bf16.mxu0 0
    %539 = vmatpush1.bf16.msra.mxu0 0
    %540 = vmatprep.subr.bf16.mxu0 0
    %541 = vmatpush1.bf16.msra.mxu0 0
    %542 = vmatprep.subr.bf16.mxu0 0
    %543 = vmatpush1.bf16.msra.mxu0 0
    %544 = vmatprep.subr.bf16.mxu0 0
    %545 = vmatpush1.bf16.msra.mxu0 0
    %546 = vmatprep.subr.bf16.mxu0 0
    %547 = vmatpush1.bf16.msra.mxu0 0
    %548 = vmatprep.subr.bf16.mxu0 0
    %549 = vmatpush1.bf16.msra.mxu0 0
    %550 = vmatprep.subr.bf16.mxu0 0
    %551 = vmatpush1.bf16.msra.mxu0 0
    %552 = vmatprep.subr.bf16.mxu0 0
    %553 = vmatpush1.bf16.msra.mxu0 0
    %554 = vmatprep.subr.bf16.mxu0 0
    %555 = vmatpush1.bf16.msra.mxu0 0
    %556 = vmatprep.subr.bf16.mxu0 0
    %557 = vmatpush1.bf16.msra.mxu0 0
    %558 = vmatprep.mubr.bf16.mxu0 0
    %559 = vmatmul.mubr.bf16.gmra.mrb[0].mxu0 %v524
    %v560 = vpop.f32.mrb[0].mxu0
    %v561 = vadd.f32 0.0, %v560
    %v562 = vpop.f32.mrb[0].mxu0
    %v563 = vpop.f32.mrb[0].mxu0
    %v564 = vpop.f32.mrb[0].mxu0
    %565 = vdwg.mxu0
    %v566 = vmul.f32 %v285, %v561
    %v567 = vadd.f32 %v354, %v566
    %v568 = vadd.f32 %v567, %v293
    %v569 = vtanh.pop %v568
    %v570 = vpack.c.bf16 %v569, %v569
    %v572 = vsel %vm208, %v570, 0
    %574 = vmatprep.subr.bf16.mxu0 0
    %575 = vmatpush1.bf16.msra.mxu0 %v369
    %576 = vmatprep.subr.bf16.mxu0 0
    %577 = vmatpush1.bf16.msra.mxu0 %v370
    %578 = vmatprep.subr.bf16.mxu0 0
    %579 = vmatpush1.bf16.msra.mxu0 0
    %580 = vmatprep.subr.bf16.mxu0 0
    %581 = vmatpush1.bf16.msra.mxu0 0
    %582 = vmatprep.subr.bf16.mxu0 0
    %583 = vmatpush1.bf16.msra.mxu0 0
    %584 = vmatprep.subr.bf16.mxu0 0
    %585 = vmatpush1.bf16.msra.mxu0 0
    %586 = vmatprep.subr.bf16.mxu0 0
    %587 = vmatpush1.bf16.msra.mxu0 0
    %588 = vmatprep.subr.bf16.mxu0 0
    %589 = vmatpush1.bf16.msra.mxu0 0
    %590 = vmatprep.subr.bf16.mxu0 0
    %591 = vmatpush1.bf16.msra.mxu0 0
    %592 = vmatprep.subr.bf16.mxu0 0
    %593 = vmatpush1.bf16.msra.mxu0 0
    %594 = vmatprep.subr.bf16.mxu0 0
    %595 = vmatpush1.bf16.msra.mxu0 0
    %596 = vmatprep.subr.bf16.mxu0 0
    %597 = vmatpush1.bf16.msra.mxu0 0
    %598 = vmatprep.subr.bf16.mxu0 0
    %599 = vmatpush1.bf16.msra.mxu0 0
    %600 = vmatprep.subr.bf16.mxu0 0
    %601 = vmatpush1.bf16.msra.mxu0 0
    %602 = vmatprep.subr.bf16.mxu0 0
    %603 = vmatpush1.bf16.msra.mxu0 0
    %604 = vmatprep.subr.bf16.mxu0 0
    %605 = vmatpush1.bf16.msra.mxu0 0
    %606 = vmatprep.mubr.bf16.mxu0 0
    %607 = vmatmul.mubr.bf16.gmra.mrb[0].mxu0 %v572
    %v608 = vpop.f32.mrb[0].mxu0
    %v609 = vadd.f32 0.0, %v608
    %v610 = vpop.f32.mrb[0].mxu0
    %v611 = vpop.f32.mrb[0].mxu0
    %v612 = vpop.f32.mrb[0].mxu0
    %613 = vdwg.mxu0
    %v614 = vmul.f32 %v284, %v609
    %v615 = vadd.f32 %v568, %v614
    %v616 = vadd.f32 %v615, %v292
    %v617 = vtanh.pop %v616
    %v618 = vpack.c.bf16 %v617, %v617
    %v620 = vsel %vm208, %v618, 0
    %622 = vmatprep.subr.bf16.mxu0 0
    %623 = vmatpush1.bf16.msra.mxu0 %v369
    %624 = vmatprep.subr.bf16.mxu0 0
    %625 = vmatpush1.bf16.msra.mxu0 %v370
    %626 = vmatprep.subr.bf16.mxu0 0
    %627 = vmatpush1.bf16.msra.mxu0 0
    %628 = vmatprep.subr.bf16.mxu0 0
    %629 = vmatpush1.bf16.msra.mxu0 0
    %630 = vmatprep.subr.bf16.mxu0 0
    %631 = vmatpush1.bf16.msra.mxu0 0
    %632 = vmatprep.subr.bf16.mxu0 0
    %633 = vmatpush1.bf16.msra.mxu0 0
    %634 = vmatprep.subr.bf16.mxu0 0
    %635 = vmatpush1.bf16.msra.mxu0 0
    %636 = vmatprep.subr.bf16.mxu0 0
    %637 = vmatpush1.bf16.msra.mxu0 0
    %638 = vmatprep.subr.bf16.mxu0 0
    %639 = vmatpush1.bf16.msra.mxu0 0
    %640 = vmatprep.subr.bf16.mxu0 0
    %641 = vmatpush1.bf16.msra.mxu0 0
    %642 = vmatprep.subr.bf16.mxu0 0
    %643 = vmatpush1.bf16.msra.mxu0 0
    %644 = vmatprep.subr.bf16.mxu0 0
    %645 = vmatpush1.bf16.msra.mxu0 0
    %646 = vmatprep.subr.bf16.mxu0 0
    %647 = vmatpush1.bf16.msra.mxu0 0
    %648 = vmatprep.subr.bf16.mxu0 0
    %649 = vmatpush1.bf16.msra.mxu0 0
    %650 = vmatprep.subr.bf16.mxu0 0
    %651 = vmatpush1.bf16.msra.mxu0 0
    %652 = vmatprep.subr.bf16.mxu0 0
    %653 = vmatpush1.bf16.msra.mxu0 0
    %654 = vmatprep.mubr.bf16.mxu0 0
    %655 = vmatmul.mubr.bf16.gmra.mrb[0].mxu0 %v620
    %v656 = vpop.f32.mrb[0].mxu0
    %v657 = vadd.f32 0.0, %v656
    %v658 = vpop.f32.mrb[0].mxu0
    %v659 = vpop.f32.mrb[0].mxu0
    %v660 = vpop.f32.mrb[0].mxu0
    %661 = vdwg.mxu0
    %v662 = vmul.f32 %v284, %v657
    %v663 = vadd.f32 %v568, %v662
    %v664 = vadd.f32 %v663, %v292
    %v665 = vtanh.pop %v664
    %v666 = vpack.c.bf16 %v665, %v665
    %v668 = vsel %vm208, %v666, 0
    %670 = vmatprep.subr.bf16.mxu0 0
    %671 = vmatpush1.bf16.msra.mxu0 %v369
    %672 = vmatprep.subr.bf16.mxu0 0
    %673 = vmatpush1.bf16.msra.mxu0 %v370
    %674 = vmatprep.subr.bf16.mxu0 0
    %675 = vmatpush1.bf16.msra.mxu0 0
    %676 = vmatprep.subr.bf16.mxu0 0
    %677 = vmatpush1.bf16.msra.mxu0 0
    %678 = vmatprep.subr.bf16.mxu0 0
    %679 = vmatpush1.bf16.msra.mxu0 0
    %680 = vmatprep.subr.bf16.mxu0 0
    %681 = vmatpush1.bf16.msra.mxu0 0
    %682 = vmatprep.subr.bf16.mxu0 0
    %683 = vmatpush1.bf16.msra.mxu0 0
    %684 = vmatprep.subr.bf16.mxu0 0
    %685 = vmatpush1.bf16.msra.mxu0 0
    %686 = vmatprep.subr.bf16.mxu0 0
    %687 = vmatpush1.bf16.msra.mxu0 0
    %688 = vmatprep.subr.bf16.mxu0 0
    %689 = vmatpush1.bf16.msra.mxu0 0
    %690 = vmatprep.subr.bf16.mxu0 0
    %691 = vmatpush1.bf16.msra.mxu0 0
    %692 = vmatprep.subr.bf16.mxu0 0
    %693 = vmatpush1.bf16.msra.mxu0 0
    %694 = vmatprep.subr.bf16.mxu0 0
    %695 = vmatpush1.bf16.msra.mxu0 0
    %696 = vmatprep.subr.bf16.mxu0 0
    %697 = vmatpush1.bf16.msra.mxu0 0
    %698 = vmatprep.subr.bf16.mxu0 0
    %699 = vmatpush1.bf16.msra.mxu0 0
    %700 = vmatprep.subr.bf16.mxu0 0
    %701 = vmatpush1.bf16.msra.mxu0 0
    %702 = vmatprep.mubr.bf16.mxu0 0
    %703 = vmatmul.mubr.bf16.gmra.mrb[0].mxu0 %v668
    %v704 = vpop.f32.mrb[0].mxu0
    %v705 = vadd.f32 0.0, %v704
    %v706 = vpop.f32.mrb[0].mxu0
    %v707 = vpop.f32.mrb[0].mxu0
    %v708 = vpop.f32.mrb[0].mxu0
    %709 = vdwg.mxu0
    %v710 = vmul.f32 %v282, %v705
    %v711 = vadd.f32 %v568, %v710
    %v712 = vadd.f32 %v711, %v293
    %v713 = vtanh.pop %v712
    %v714 = vmul.f32 %v617, 2.0
    %v715 = vadd.f32 %v569, %v714
    %v716 = vmul.f32 %v665, 2.0
    %v717 = vadd.f32 %v715, %v716
    %v718 = vadd.f32 %v717, %v713
    %v719 = vadd.f32 %v521, %v718
    %v720 = vpack.c.bf16 %v718, %v718
    %v722 = vsel %vm208, %v720, 0
    %724 = vmatprep.subr.bf16.mxu0 0
    %725 = vmatpush1.bf16.msra.mxu0 %v369
    %726 = vmatprep.subr.bf16.mxu0 0
    %727 = vmatpush1.bf16.msra.mxu0 %v370
    %728 = vmatprep.subr.bf16.mxu0 0
    %729 = vmatpush1.bf16.msra.mxu0 0
    %730 = vmatprep.subr.bf16.mxu0 0
    %731 = vmatpush1.bf16.msra.mxu0 0
    %732 = vmatprep.subr.bf16.mxu0 0
    %733 = vmatpush1.bf16.msra.mxu0 0
    %734 = vmatprep.subr.bf16.mxu0 0
    %735 = vmatpush1.bf16.msra.mxu0 0
    %736 = vmatprep.subr.bf16.mxu0 0
    %737 = vmatpush1.bf16.msra.mxu0 0
    %738 = vmatprep.subr.bf16.mxu0 0
    %739 = vmatpush1.bf16.msra.mxu0 0
    %740 = vmatprep.subr.bf16.mxu0 0
    %741 = vmatpush1.bf16.msra.mxu0 0
    %742 = vmatprep.subr.bf16.mxu0 0
    %743 = vmatpush1.bf16.msra.mxu0 0
    %744 = vmatprep.subr.bf16.mxu0 0
    %745 = vmatpush1.bf16.msra.mxu0 0
    %746 = vmatprep.subr.bf16.mxu0 0
    %747 = vmatpush1.bf16.msra.mxu0 0
    %748 = vmatprep.subr.bf16.mxu0 0
    %749 = vmatpush1.bf16.msra.mxu0 0
    %750 = vmatprep.subr.bf16.mxu0 0
    %751 = vmatpush1.bf16.msra.mxu0 0
    %752 = vmatprep.subr.bf16.mxu0 0
    %753 = vmatpush1.bf16.msra.mxu0 0
    %754 = vmatprep.subr.bf16.mxu0 0
    %755 = vmatpush1.bf16.msra.mxu0 0
    %756 = vmatprep.mubr.bf16.mxu0 0
    %757 = vmatmul.mubr.bf16.gmra.mrb[0].mxu0 %v722
    %v758 = vpop.f32.mrb[0].mxu0
    %v759 = vadd.f32 0.0, %v758
    %v760 = vpop.f32.mrb[0].mxu0
    %v761 = vpop.f32.mrb[0].mxu0
    %v762 = vpop.f32.mrb[0].mxu0
    %763 = vdwg.mxu0
    %v764 = vmul.f32 %v285, %v759
    %v765 = vadd.f32 %v568, %v764
    %v766 = vadd.f32 %v765, %v293
    %v767 = vtanh.pop %v766
    %v768 = vpack.c.bf16 %v767, %v767
    %v770 = vsel %vm208, %v768, 0
    %772 = vmatprep.subr.bf16.mxu0 0
    %773 = vmatpush1.bf16.msra.mxu0 %v369
    %774 = vmatprep.subr.bf16.mxu0 0
    %775 = vmatpush1.bf16.msra.mxu0 %v370
    %776 = vmatprep.subr.bf16.mxu0 0
    %777 = vmatpush1.bf16.msra.mxu0 0
    %778 = vmatprep.subr.bf16.mxu0 0
    %779 = vmatpush1.bf16.msra.mxu0 0
    %780 = vmatprep.subr.bf16.mxu0 0
    %781 = vmatpush1.bf16.msra.mxu0 0
    %782 = vmatprep.subr.bf16.mxu0 0
    %783 = vmatpush1.bf16.msra.mxu0 0
    %784 = vmatprep.subr.bf16.mxu0 0
    %785 = vmatpush1.bf16.msra.mxu0 0
    %786 = vmatprep.subr.bf16.mxu0 0
    %787 = vmatpush1.bf16.msra.mxu0 0
    %788 = vmatprep.subr.bf16.mxu0 0
    %789 = vmatpush1.bf16.msra.mxu0 0
    %790 = vmatprep.subr.bf16.mxu0 0
    %791 = vmatpush1.bf16.msra.mxu0 0
    %792 = vmatprep.subr.bf16.mxu0 0
    %793 = vmatpush1.bf16.msra.mxu0 0
    %794 = vmatprep.subr.bf16.mxu0 0
    %795 = vmatpush1.bf16.msra.mxu0 0
    %796 = vmatprep.subr.bf16.mxu0 0
    %797 = vmatpush1.bf16.msra.mxu0 0
    %798 = vmatprep.subr.bf16.mxu0 0
    %799 = vmatpush1.bf16.msra.mxu0 0
    %800 = vmatprep.subr.bf16.mxu0 0
    %801 = vmatpush1.bf16.msra.mxu0 0
    %802 = vmatprep.subr.bf16.mxu0 0
    %803 = vmatpush1.bf16.msra.mxu0 0
    %804 = vmatprep.mubr.bf16.mxu0 0
    %805 = vmatmul.mubr.bf16.gmra.mrb[0].mxu0 %v770
    %v806 = vpop.f32.mrb[0].mxu0
    %v807 = vadd.f32 0.0, %v806
    %v808 = vpop.f32.mrb[0].mxu0
    %v809 = vpop.f32.mrb[0].mxu0
    %v810 = vpop.f32.mrb[0].mxu0
    %811 = vdwg.mxu0
    %v812 = vmul.f32 %v284, %v807
    %v813 = vadd.f32 %v766, %v812
    %v814 = vadd.f32 %v813, %v292
    %v815 = vtanh.pop %v814
    %v816 = vpack.c.bf16 %v815, %v815
    %v818 = vsel %vm208, %v816, 0
    %820 = vmatprep.subr.bf16.mxu0 0
    %821 = vmatpush1.bf16.msra.mxu0 %v369
    %822 = vmatprep.subr.bf16.mxu0 0
    %823 = vmatpush1.bf16.msra.mxu0 %v370
    %824 = vmatprep.subr.bf16.mxu0 0
    %825 = vmatpush1.bf16.msra.mxu0 0
    %826 = vmatprep.subr.bf16.mxu0 0
    %827 = vmatpush1.bf16.msra.mxu0 0
    %828 = vmatprep.subr.bf16.mxu0 0
    %829 = vmatpush1.bf16.msra.mxu0 0
    %830 = vmatprep.subr.bf16.mxu0 0
    %831 = vmatpush1.bf16.msra.mxu0 0
    %832 = vmatprep.subr.bf16.mxu0 0
    %833 = vmatpush1.bf16.msra.mxu0 0
    %834 = vmatprep.subr.bf16.mxu0 0
    %835 = vmatpush1.bf16.msra.mxu0 0
    %836 = vmatprep.subr.bf16.mxu0 0
    %837 = vmatpush1.bf16.msra.mxu0 0
    %838 = vmatprep.subr.bf16.mxu0 0
    %839 = vmatpush1.bf16.msra.mxu0 0
    %840 = vmatprep.subr.bf16.mxu0 0
    %841 = vmatpush1.bf16.msra.mxu0 0
    %842 = vmatprep.subr.bf16.mxu0 0
    %843 = vmatpush1.bf16.msra.mxu0 0
    %844 = vmatprep.subr.bf16.mxu0 0
    %845 = vmatpush1.bf16.msra.mxu0 0
    %846 = vmatprep.subr.bf16.mxu0 0
    %847 = vmatpush1.bf16.msra.mxu0 0
    %848 = vmatprep.subr.bf16.mxu0 0
    %849 = vmatpush1.bf16.msra.mxu0 0
    %850 = vmatprep.subr.bf16.mxu0 0
    %851 = vmatpush1.bf16.msra.mxu0 0
    %852 = vmatprep.mubr.bf16.mxu0 0
    %853 = vmatmul.mubr.bf16.gmra.mrb[0].mxu0 %v818
    %v854 = vpop.f32.mrb[0].mxu0
    %v855 = vadd.f32 0.0, %v854
    %v856 = vpop.f32.mrb[0].mxu0
    %v857 = vpop.f32.mrb[0].mxu0
    %v858 = vpop.f32.mrb[0].mxu0
    %859 = vdwg.mxu0
    %v860 = vmul.f32 %v284, %v855
    %v861 = vadd.f32 %v766, %v860
    %v862 = vadd.f32 %v861, %v292
    %v863 = vtanh.pop %v862
    %v864 = vpack.c.bf16 %v863, %v863
    %v866 = vsel %vm208, %v864, 0
    %868 = vmatprep.subr.bf16.mxu0 0
    %869 = vmatpush1.bf16.msra.mxu0 %v369
    %870 = vmatprep.subr.bf16.mxu0 0
    %871 = vmatpush1.bf16.msra.mxu0 %v370
    %872 = vmatprep.subr.bf16.mxu0 0
    %873 = vmatpush1.bf16.msra.mxu0 0
    %874 = vmatprep.subr.bf16.mxu0 0
    %875 = vmatpush1.bf16.msra.mxu0 0
    %876 = vmatprep.subr.bf16.mxu0 0
    %877 = vmatpush1.bf16.msra.mxu0 0
    %878 = vmatprep.subr.bf16.mxu0 0
    %879 = vmatpush1.bf16.msra.mxu0 0
    %880 = vmatprep.subr.bf16.mxu0 0
    %881 = vmatpush1.bf16.msra.mxu0 0
    %882 = vmatprep.subr.bf16.mxu0 0
    %883 = vmatpush1.bf16.msra.mxu0 0
    %884 = vmatprep.subr.bf16.mxu0 0
    %885 = vmatpush1.bf16.msra.mxu0 0
    %886 = vmatprep.subr.bf16.mxu0 0
    %887 = vmatpush1.bf16.msra.mxu0 0
    %888 = vmatprep.subr.bf16.mxu0 0
    %889 = vmatpush1.bf16.msra.mxu0 0
    %890 = vmatprep.subr.bf16.mxu0 0
    %891 = vmatpush1.bf16.msra.mxu0 0
    %892 = vmatprep.subr.bf16.mxu0 0
    %893 = vmatpush1.bf16.msra.mxu0 0
    %894 = vmatprep.subr.bf16.mxu0 0
    %895 = vmatpush1.bf16.msra.mxu0 0
    %896 = vmatprep.subr.bf16.mxu0 0
    %897 = vmatpush1.bf16.msra.mxu0 0
    %898 = vmatprep.subr.bf16.mxu0 0
    %899 = vmatpush1.bf16.msra.mxu0 0
    %900 = vmatprep.mubr.bf16.mxu0 0
    %901 = vmatmul.mubr.bf16.gmra.mrb[0].mxu0 %v866
    %v902 = vpop.f32.mrb[0].mxu0
    %v903 = vadd.f32 0.0, %v902
    %v904 = vpop.f32.mrb[0].mxu0
    %v905 = vpop.f32.mrb[0].mxu0
    %v906 = vpop.f32.mrb[0].mxu0
    %907 = vdwg.mxu0
    %v908 = vmul.f32 %v282, %v903
    %v909 = vadd.f32 %v766, %v908
    %v910 = vadd.f32 %v909, %v293
    %v911 = vtanh.pop %v910
    %v912 = vmul.f32 %v815, 2.0
    %v913 = vadd.f32 %v767, %v912
    %v914 = vmul.f32 %v863, 2.0
    %v915 = vadd.f32 %v913, %v914
    %v916 = vadd.f32 %v915, %v911
    %v917 = vadd.f32 %v719, %v916
    %v918 = vpack.c.bf16 %v917, %v917
    %v923 = vunpack.c.l.b16 %v188
    %v924 = vunpack.c.l.b16 %v189
    %v925 = vunpack.c.l.b16 %v190
    %v926 = vunpack.c.l.b16 %v191
    %v927 = vpack.c.b16 %v924, %v923
    %v928 = vpack.c.b16 %v926, %v925
    %v932 = vsel %vm208, %v918, 0
    %934 = vmatprep.subr.bf16.mxu0 0
    %935 = vmatpush1.bf16.msra.mxu0 %v927
    %936 = vmatprep.subr.bf16.mxu0 0
    %937 = vmatpush1.bf16.msra.mxu0 %v928
    %938 = vmatprep.subr.bf16.mxu0 0
    %939 = vmatpush1.bf16.msra.mxu0 0
    %940 = vmatprep.subr.bf16.mxu0 0
    %941 = vmatpush1.bf16.msra.mxu0 0
    %942 = vmatprep.subr.bf16.mxu0 0
    %943 = vmatpush1.bf16.msra.mxu0 0
    %944 = vmatprep.subr.bf16.mxu0 0
    %945 = vmatpush1.bf16.msra.mxu0 0
    %946 = vmatprep.subr.bf16.mxu0 0
    %947 = vmatpush1.bf16.msra.mxu0 0
    %948 = vmatprep.subr.bf16.mxu0 0
    %949 = vmatpush1.bf16.msra.mxu0 0
    %950 = vmatprep.subr.bf16.mxu0 0
    %951 = vmatpush1.bf16.msra.mxu0 0
    %952 = vmatprep.subr.bf16.mxu0 0
    %953 = vmatpush1.bf16.msra.mxu0 0
    %954 = vmatprep.subr.bf16.mxu0 0
    %955 = vmatpush1.bf16.msra.mxu0 0
    %956 = vmatprep.subr.bf16.mxu0 0
    %957 = vmatpush1.bf16.msra.mxu0 0
    %958 = vmatprep.subr.bf16.mxu0 0
    %959 = vmatpush1.bf16.msra.mxu0 0
    %960 = vmatprep.subr.bf16.mxu0 0
    %961 = vmatpush1.bf16.msra.mxu0 0
    %962 = vmatprep.subr.bf16.mxu0 0
    %963 = vmatpush1.bf16.msra.mxu0 0
    %964 = vmatprep.subr.bf16.mxu0 0
    %965 = vmatpush1.bf16.msra.mxu0 0
    %966 = vmatprep.mubr.bf16.mxu0 0
    %967 = vmatmul.mubr.bf16.gmra.mrb[0].mxu0 %v932
    %v968 = vpop.f32.mrb[0].mxu0
    %v969 = vadd.f32 0.0, %v968
    %v970 = vpop.f32.mrb[0].mxu0
    %v971 = vpop.f32.mrb[0].mxu0
    %v972 = vpop.f32.mrb[0].mxu0
    %973 = vdwg.mxu0
    %v974 = vmul.f32 %v285, %v969
    %976 = vrot.lane.b32.xlu0 %v974, 64
    %v977 = vpop.permute.xlu0 %976
    %v979 = vadd.f32 %v276, %v977
    %v981 = vlaneseq
    %v982 = vshrl.u32 %v981, 7
    %v983 = vsub.s32 0, %v982
    %v984 = vrot.slane %v194, %v983
    %v986 = vmul.f32 %v282, %v984
    %988 = vrot.lane.b32.xlu0 %v986, 64
    %v989 = vpop.permute.xlu0 %988
    %v991 = vadd.f32 %v979, %v989
    %993 = vrot.lane.b32.xlu0 %v991, 64
    %v994 = vpop.permute.xlu0 %993
    %996 = vst.msk [vmem:[#allocation3] sm:$0xff] %vm208, %v994
    %v997 = vld [vmem:[#allocation2 + $0x8] sm:$0xff]
    %v998 = vpack.c.bf16 %v991, %v991
    %1000 = vrot.lane.b32.xlu0 %v998, 64
    %v1001 = vpop.permute.xlu0 %1000
    %v1003 = vsel %vm208, %v1001, 0
    %1005 = vmatprep.subr.bf16.mxu0 0
    %1006 = vmatpush1.bf16.msra.mxu0 %v204
    %1007 = vmatprep.subr.bf16.mxu0 0
    %1008 = vmatpush1.bf16.msra.mxu0 %v205
    %1009 = vmatprep.subr.bf16.mxu0 0
    %1010 = vmatpush1.bf16.msra.mxu0 0
    %1011 = vmatprep.subr.bf16.mxu0 0
    %1012 = vmatpush1.bf16.msra.mxu0 0
    %1013 = vmatprep.subr.bf16.mxu0 0
    %1014 = vmatpush1.bf16.msra.mxu0 0
    %1015 = vmatprep.subr.bf16.mxu0 0
    %1016 = vmatpush1.bf16.msra.mxu0 0
    %1017 = vmatprep.subr.bf16.mxu0 0
    %1018 = vmatpush1.bf16.msra.mxu0 0
    %1019 = vmatprep.subr.bf16.mxu0 0
    %1020 = vmatpush1.bf16.msra.mxu0 0
    %1021 = vmatprep.subr.bf16.mxu0 0
    %1022 = vmatpush1.bf16.msra.mxu0 0
    %1023 = vmatprep.subr.bf16.mxu0 0
    %1024 = vmatpush1.bf16.msra.mxu0 0
    %1025 = vmatprep.subr.bf16.mxu0 0
    %1026 = vmatpush1.bf16.msra.mxu0 0
    %1027 = vmatprep.subr.bf16.mxu0 0
    %1028 = vmatpush1.bf16.msra.mxu0 0
    %1029 = vmatprep.subr.bf16.mxu0 0
    %1030 = vmatpush1.bf16.msra.mxu0 0
    %1031 = vmatprep.subr.bf16.mxu0 0
    %1032 = vmatpush1.bf16.msra.mxu0 0
    %1033 = vmatprep.subr.bf16.mxu0 0
    %1034 = vmatpush1.bf16.msra.mxu0 0
    %1035 = vmatprep.subr.bf16.mxu0 0
    %1036 = vmatpush1.bf16.msra.mxu0 0
    %1037 = vmatprep.mubr.bf16.mxu0 0
    %1038 = vmatmul.mubr.bf16.gmra.mrb[0].mxu0 %v1003
    %v1039 = vpop.f32.mrb[0].mxu0
    %v1040 = vadd.f32 0.0, %v1039
    %v1041 = vpop.f32.mrb[0].mxu0
    %v1042 = vpop.f32.mrb[0].mxu0
    %v1043 = vpop.f32.mrb[0].mxu0
    %1044 = vdwg.mxu0
    %v1045 = vadd.f32 %v997, %v1040
    %v1046 = vxor.u32 %v1045, 2147483648
    %v1047 = vmul.f32 %v1046, 1.442695
    %v1048 = vpow.pop %v1047
    %v1049 = vadd.f32 %v1048, 1.0
    %v1050 = vrcp.pop %v1049
    %v1051 = vmul.f32 1.0, %v1050
    %v1052 = vtanh.pop %v1045
    %v1053 = vmul.f32 %v1051, %v270
    %1055 = vrot.lane.b32.xlu0 %v1052, 32
    %v1056 = vpop.permute.xlu0 %1055
    %v1058 = vmul.f32 %v1051, %v1056
    %1060 = vrot.lane.b32.xlu0 %v1058, 32
    %v1061 = vpop.permute.xlu0 %1060
    %v1063 = vadd.f32 %v1053, %v1061
    %v1064 = vtanh.pop %v1063
    %1066 = vrot.lane.b32.xlu0 %v1064, 32
    %v1067 = vpop.permute.xlu0 %1066
    %v1069 = vmul.f32 %v1051, %v1067
    %s1070 = scalar_lea.vmem %s1, 8
    %v1071 = vld [vmem:[%s1070] sm:$0xff]
    %v1072 = vmul.f32 %v1071, 0.33333334
    %1074 = vset.pattern.permute.xlu0 0
    %1075 = vperm.xlu0 %1074, %v1072
    %v1076 = vpop.permute.xlu0 %1075
    %v1078 = vmul.f32 %v1076, 0.5
    %v1079 = vmul.f32 %v1076, 0.16666667
    %v1080 = vmul.f32 %v1078, %v290
    %v1081 = vmul.f32 %v1076, %v290
    %v1082 = vpack.c.bf16 %v1069, %v1069
    %1084 = vrot.lane.b32.xlu0 %v1082, 64
    %v1085 = vpop.permute.xlu0 %1084
    %v1087 = vsel %vm208, %v1085, 0
    %1089 = vmatprep.subr.bf16.mxu0 0
    %1090 = vmatpush1.bf16.msra.mxu0 %v312
    %1091 = vmatprep.subr.bf16.mxu0 0
    %1092 = vmatpush1.bf16.msra.mxu0 %v313
    %1093 = vmatprep.subr.bf16.mxu0 0
    %1094 = vmatpush1.bf16.msra.mxu0 0
    %1095 = vmatprep.subr.bf16.mxu0 0
    %1096 = vmatpush1.bf16.msra.mxu0 0
    %1097 = vmatprep.subr.bf16.mxu0 0
    %1098 = vmatpush1.bf16.msra.mxu0 0
    %1099 = vmatprep.subr.bf16.mxu0 0
    %1100 = vmatpush1.bf16.msra.mxu0 0
    %1101 = vmatprep.subr.bf16.mxu0 0
    %1102 = vmatpush1.bf16.msra.mxu0 0
    %1103 = vmatprep.subr.bf16.mxu0 0
    %1104 = vmatpush1.bf16.msra.mxu0 0
    %1105 = vmatprep.subr.bf16.mxu0 0
    %1106 = vmatpush1.bf16.msra.mxu0 0
    %1107 = vmatprep.subr.bf16.mxu0 0
    %1108 = vmatpush1.bf16.msra.mxu0 0
    %1109 = vmatprep.subr.bf16.mxu0 0
    %1110 = vmatpush1.bf16.msra.mxu0 0
    %1111 = vmatprep.subr.bf16.mxu0 0
    %1112 = vmatpush1.bf16.msra.mxu0 0
    %1113 = vmatprep.subr.bf16.mxu0 0
    %1114 = vmatpush1.bf16.msra.mxu0 0
    %1115 = vmatprep.subr.bf16.mxu0 0
    %1116 = vmatpush1.bf16.msra.mxu0 0
    %1117 = vmatprep.subr.bf16.mxu0 0
    %1118 = vmatpush1.bf16.msra.mxu0 0
    %1119 = vmatprep.subr.bf16.mxu0 0
    %1120 = vmatpush1.bf16.msra.mxu0 0
    %1121 = vmatprep.mubr.bf16.mxu0 0
    %1122 = vmatmul.mubr.bf16.gmra.mrb[0].mxu0 %v1087
    %v1123 = vpop.f32.mrb[0].mxu0
    %v1124 = vadd.f32 %v299, %v1123
    %v1125 = vpop.f32.mrb[0].mxu0
    %v1126 = vpop.f32.mrb[0].mxu0
    %v1127 = vpop.f32.mrb[0].mxu0
    %1128 = vdwg.mxu0
    %v1129 = vtanh.pop %v1124
    %v1130 = vpack.c.bf16 %v1129, %v1129
    %v1132 = vsel %vm208, %v1130, 0
    %1134 = vmatprep.subr.bf16.mxu0 0
    %1135 = vmatpush1.bf16.msra.mxu0 %v369
    %1136 = vmatprep.subr.bf16.mxu0 0
    %1137 = vmatpush1.bf16.msra.mxu0 %v370
    %1138 = vmatprep.subr.bf16.mxu0 0
    %1139 = vmatpush1.bf16.msra.mxu0 0
    %1140 = vmatprep.subr.bf16.mxu0 0
    %1141 = vmatpush1.bf16.msra.mxu0 0
    %1142 = vmatprep.subr.bf16.mxu0 0
    %1143 = vmatpush1.bf16.msra.mxu0 0
    %1144 = vmatprep.subr.bf16.mxu0 0
    %1145 = vmatpush1.bf16.msra.mxu0 0
    %1146 = vmatprep.subr.bf16.mxu0 0
    %1147 = vmatpush1.bf16.msra.mxu0 0
    %1148 = vmatprep.subr.bf16.mxu0 0
    %1149 = vmatpush1.bf16.msra.mxu0 0
    %1150 = vmatprep.subr.bf16.mxu0 0
    %1151 = vmatpush1.bf16.msra.mxu0 0
    %1152 = vmatprep.subr.bf16.mxu0 0
    %1153 = vmatpush1.bf16.msra.mxu0 0
    %1154 = vmatprep.subr.bf16.mxu0 0
    %1155 = vmatpush1.bf16.msra.mxu0 0
    %1156 = vmatprep.subr.bf16.mxu0 0
    %1157 = vmatpush1.bf16.msra.mxu0 0
    %1158 = vmatprep.subr.bf16.mxu0 0
    %1159 = vmatpush1.bf16.msra.mxu0 0
    %1160 = vmatprep.subr.bf16.mxu0 0
    %1161 = vmatpush1.bf16.msra.mxu0 0
    %1162 = vmatprep.subr.bf16.mxu0 0
    %1163 = vmatpush1.bf16.msra.mxu0 0
    %1164 = vmatprep.subr.bf16.mxu0 0
    %1165 = vmatpush1.bf16.msra.mxu0 0
    %1166 = vmatprep.mubr.bf16.mxu0 0
    %1167 = vmatmul.mubr.bf16.gmra.mrb[0].mxu0 %v1132
    %v1168 = vpop.f32.mrb[0].mxu0
    %v1169 = vadd.f32 0.0, %v1168
    %v1170 = vpop.f32.mrb[0].mxu0
    %v1171 = vpop.f32.mrb[0].mxu0
    %v1172 = vpop.f32.mrb[0].mxu0
    %1173 = vdwg.mxu0
    %v1174 = vmul.f32 %v1078, %v1169
    %v1175 = vadd.f32 %v1124, %v1174
    %v1176 = vadd.f32 %v1175, %v1080
    %v1177 = vtanh.pop %v1176
    %v1178 = vpack.c.bf16 %v1177, %v1177
    %v1180 = vsel %vm208, %v1178, 0
    %1182 = vmatprep.subr.bf16.mxu0 0
    %1183 = vmatpush1.bf16.msra.mxu0 %v369
    %1184 = vmatprep.subr.bf16.mxu0 0
    %1185 = vmatpush1.bf16.msra.mxu0 %v370
    %1186 = vmatprep.subr.bf16.mxu0 0
    %1187 = vmatpush1.bf16.msra.mxu0 0
    %1188 = vmatprep.subr.bf16.mxu0 0
    %1189 = vmatpush1.bf16.msra.mxu0 0
    %1190 = vmatprep.subr.bf16.mxu0 0
    %1191 = vmatpush1.bf16.msra.mxu0 0
    %1192 = vmatprep.subr.bf16.mxu0 0
    %1193 = vmatpush1.bf16.msra.mxu0 0
    %1194 = vmatprep.subr.bf16.mxu0 0
    %1195 = vmatpush1.bf16.msra.mxu0 0
    %1196 = vmatprep.subr.bf16.mxu0 0
    %1197 = vmatpush1.bf16.msra.mxu0 0
    %1198 = vmatprep.subr.bf16.mxu0 0
    %1199 = vmatpush1.bf16.msra.mxu0 0
    %1200 = vmatprep.subr.bf16.mxu0 0
    %1201 = vmatpush1.bf16.msra.mxu0 0
    %1202 = vmatprep.subr.bf16.mxu0 0
    %1203 = vmatpush1.bf16.msra.mxu0 0
    %1204 = vmatprep.subr.bf16.mxu0 0
    %1205 = vmatpush1.bf16.msra.mxu0 0
    %1206 = vmatprep.subr.bf16.mxu0 0
    %1207 = vmatpush1.bf16.msra.mxu0 0
    %1208 = vmatprep.subr.bf16.mxu0 0
    %1209 = vmatpush1.bf16.msra.mxu0 0
    %1210 = vmatprep.subr.bf16.mxu0 0
    %1211 = vmatpush1.bf16.msra.mxu0 0
    %1212 = vmatprep.subr.bf16.mxu0 0
    %1213 = vmatpush1.bf16.msra.mxu0 0
    %1214 = vmatprep.mubr.bf16.mxu0 0
    %1215 = vmatmul.mubr.bf16.gmra.mrb[0].mxu0 %v1180
    %v1216 = vpop.f32.mrb[0].mxu0
    %v1217 = vadd.f32 0.0, %v1216
    %v1218 = vpop.f32.mrb[0].mxu0
    %v1219 = vpop.f32.mrb[0].mxu0
    %v1220 = vpop.f32.mrb[0].mxu0
    %1221 = vdwg.mxu0
    %v1222 = vmul.f32 %v1078, %v1217
    %v1223 = vadd.f32 %v1124, %v1222
    %v1224 = vadd.f32 %v1223, %v1080
    %v1225 = vtanh.pop %v1224
    %v1226 = vpack.c.bf16 %v1225, %v1225
    %v1228 = vsel %vm208, %v1226, 0
    %1230 = vmatprep.subr.bf16.mxu0 0
    %1231 = vmatpush1.bf16.msra.mxu0 %v369
    %1232 = vmatprep.subr.bf16.mxu0 0
    %1233 = vmatpush1.bf16.msra.mxu0 %v370
    %1234 = vmatprep.subr.bf16.mxu0 0
    %1235 = vmatpush1.bf16.msra.mxu0 0
    %1236 = vmatprep.subr.bf16.mxu0 0
    %1237 = vmatpush1.bf16.msra.mxu0 0
    %1238 = vmatprep.subr.bf16.mxu0 0
    %1239 = vmatpush1.bf16.msra.mxu0 0
    %1240 = vmatprep.subr.bf16.mxu0 0
    %1241 = vmatpush1.bf16.msra.mxu0 0
    %1242 = vmatprep.subr.bf16.mxu0 0
    %1243 = vmatpush1.bf16.msra.mxu0 0
    %1244 = vmatprep.subr.bf16.mxu0 0
    %1245 = vmatpush1.bf16.msra.mxu0 0
    %1246 = vmatprep.subr.bf16.mxu0 0
    %1247 = vmatpush1.bf16.msra.mxu0 0
    %1248 = vmatprep.subr.bf16.mxu0 0
    %1249 = vmatpush1.bf16.msra.mxu0 0
    %1250 = vmatprep.subr.bf16.mxu0 0
    %1251 = vmatpush1.bf16.msra.mxu0 0
    %1252 = vmatprep.subr.bf16.mxu0 0
    %1253 = vmatpush1.bf16.msra.mxu0 0
    %1254 = vmatprep.subr.bf16.mxu0 0
    %1255 = vmatpush1.bf16.msra.mxu0 0
    %1256 = vmatprep.subr.bf16.mxu0 0
    %1257 = vmatpush1.bf16.msra.mxu0 0
    %1258 = vmatprep.subr.bf16.mxu0 0
    %1259 = vmatpush1.bf16.msra.mxu0 0
    %1260 = vmatprep.subr.bf16.mxu0 0
    %1261 = vmatpush1.bf16.msra.mxu0 0
    %1262 = vmatprep.mubr.bf16.mxu0 0
    %1263 = vmatmul.mubr.bf16.gmra.mrb[0].mxu0 %v1228
    %v1264 = vpop.f32.mrb[0].mxu0
    %v1265 = vadd.f32 0.0, %v1264
    %v1266 = vpop.f32.mrb[0].mxu0
    %v1267 = vpop.f32.mrb[0].mxu0
    %v1268 = vpop.f32.mrb[0].mxu0
    %1269 = vdwg.mxu0
    %v1270 = vmul.f32 %v1076, %v1265
    %v1271 = vadd.f32 %v1124, %v1270
    %v1272 = vadd.f32 %v1271, %v1081
    %v1273 = vtanh.pop %v1272
    %v1274 = vmul.f32 %v1177, 2.0
    %v1275 = vadd.f32 %v1129, %v1274
    %v1276 = vmul.f32 %v1225, 2.0
    %v1277 = vadd.f32 %v1275, %v1276
    %v1278 = vadd.f32 %v1277, %v1273
    %v1279 = vadd.f32 %v1278, 0.0
    %v1280 = vpack.c.bf16 %v1278, %v1278
    %v1282 = vsel %vm208, %v1280, 0
    %1284 = vmatprep.subr.bf16.mxu0 0
    %1285 = vmatpush1.bf16.msra.mxu0 %v369
    %1286 = vmatprep.subr.bf16.mxu0 0
    %1287 = vmatpush1.bf16.msra.mxu0 %v370
    %1288 = vmatprep.subr.bf16.mxu0 0
    %1289 = vmatpush1.bf16.msra.mxu0 0
    %1290 = vmatprep.subr.bf16.mxu0 0
    %1291 = vmatpush1.bf16.msra.mxu0 0
    %1292 = vmatprep.subr.bf16.mxu0 0
    %1293 = vmatpush1.bf16.msra.mxu0 0
    %1294 = vmatprep.subr.bf16.mxu0 0
    %1295 = vmatpush1.bf16.msra.mxu0 0
    %1296 = vmatprep.subr.bf16.mxu0 0
    %1297 = vmatpush1.bf16.msra.mxu0 0
    %1298 = vmatprep.subr.bf16.mxu0 0
    %1299 = vmatpush1.bf16.msra.mxu0 0
    %1300 = vmatprep.subr.bf16.mxu0 0
    %1301 = vmatpush1.bf16.msra.mxu0 0
    %1302 = vmatprep.subr.bf16.mxu0 0
    %1303 = vmatpush1.bf16.msra.mxu0 0
    %1304 = vmatprep.subr.bf16.mxu0 0
    %1305 = vmatpush1.bf16.msra.mxu0 0
    %1306 = vmatprep.subr.bf16.mxu0 0
    %1307 = vmatpush1.bf16.msra.mxu0 0
    %1308 = vmatprep.subr.bf16.mxu0 0
    %1309 = vmatpush1.bf16.msra.mxu0 0
    %1310 = vmatprep.subr.bf16.mxu0 0
    %1311 = vmatpush1.bf16.msra.mxu0 0
    %1312 = vmatprep.subr.bf16.mxu0 0
    %1313 = vmatpush1.bf16.msra.mxu0 0
    %1314 = vmatprep.subr.bf16.mxu0 0
    %1315 = vmatpush1.bf16.msra.mxu0 0
    %1316 = vmatprep.mubr.bf16.mxu0 0
    %1317 = vmatmul.mubr.bf16.gmra.mrb[0].mxu0 %v1282
    %v1318 = vpop.f32.mrb[0].mxu0
    %v1319 = vadd.f32 0.0, %v1318
    %v1320 = vpop.f32.mrb[0].mxu0
    %v1321 = vpop.f32.mrb[0].mxu0
    %v1322 = vpop.f32.mrb[0].mxu0
    %1323 = vdwg.mxu0
    %v1324 = vmul.f32 %v1079, %v1319
    %v1325 = vadd.f32 %v1124, %v1324
    %v1326 = vadd.f32 %v1325, %v1081
    %v1327 = vtanh.pop %v1326
    %v1328 = vpack.c.bf16 %v1327, %v1327
    %v1330 = vsel %vm208, %v1328, 0
    %1332 = vmatprep.subr.bf16.mxu0 0
    %1333 = vmatpush1.bf16.msra.mxu0 %v369
    %1334 = vmatprep.subr.bf16.mxu0 0
    %1335 = vmatpush1.bf16.msra.mxu0 %v370
    %1336 = vmatprep.subr.bf16.mxu0 0
    %1337 = vmatpush1.bf16.msra.mxu0 0
    %1338 = vmatprep.subr.bf16.mxu0 0
    %1339 = vmatpush1.bf16.msra.mxu0 0
    %1340 = vmatprep.subr.bf16.mxu0 0
    %1341 = vmatpush1.bf16.msra.mxu0 0
    %1342 = vmatprep.subr.bf16.mxu0 0
    %1343 = vmatpush1.bf16.msra.mxu0 0
    %1344 = vmatprep.subr.bf16.mxu0 0
    %1345 = vmatpush1.bf16.msra.mxu0 0
    %1346 = vmatprep.subr.bf16.mxu0 0
    %1347 = vmatpush1.bf16.msra.mxu0 0
    %1348 = vmatprep.subr.bf16.mxu0 0
    %1349 = vmatpush1.bf16.msra.mxu0 0
    %1350 = vmatprep.subr.bf16.mxu0 0
    %1351 = vmatpush1.bf16.msra.mxu0 0
    %1352 = vmatprep.subr.bf16.mxu0 0
    %1353 = vmatpush1.bf16.msra.mxu0 0
    %1354 = vmatprep.subr.bf16.mxu0 0
    %1355 = vmatpush1.bf16.msra.mxu0 0
    %1356 = vmatprep.subr.bf16.mxu0 0
    %1357 = vmatpush1.bf16.msra.mxu0 0
    %1358 = vmatprep.subr.bf16.mxu0 0
    %1359 = vmatpush1.bf16.msra.mxu0 0
    %1360 = vmatprep.subr.bf16.mxu0 0
    %1361 = vmatpush1.bf16.msra.mxu0 0
    %1362 = vmatprep.subr.bf16.mxu0 0
    %1363 = vmatpush1.bf16.msra.mxu0 0
    %1364 = vmatprep.mubr.bf16.mxu0 0
    %1365 = vmatmul.mubr.bf16.gmra.mrb[0].mxu0 %v1330
    %v1366 = vpop.f32.mrb[0].mxu0
    %v1367 = vadd.f32 0.0, %v1366
    %v1368 = vpop.f32.mrb[0].mxu0
    %v1369 = vpop.f32.mrb[0].mxu0
    %v1370 = vpop.f32.mrb[0].mxu0
    %1371 = vdwg.mxu0
    %v1372 = vmul.f32 %v1078, %v1367
    %v1373 = vadd.f32 %v1326, %v1372
    %v1374 = vadd.f32 %v1373, %v1080
    %v1375 = vtanh.pop %v1374
    %v1376 = vpack.c.bf16 %v1375, %v1375
    %v1378 = vsel %vm208, %v1376, 0
    %1380 = vmatprep.subr.bf16.mxu0 0
    %1381 = vmatpush1.bf16.msra.mxu0 %v369
    %1382 = vmatprep.subr.bf16.mxu0 0
    %1383 = vmatpush1.bf16.msra.mxu0 %v370
    %1384 = vmatprep.subr.bf16.mxu0 0
    %1385 = vmatpush1.bf16.msra.mxu0 0
    %1386 = vmatprep.subr.bf16.mxu0 0
    %1387 = vmatpush1.bf16.msra.mxu0 0
    %1388 = vmatprep.subr.bf16.mxu0 0
    %1389 = vmatpush1.bf16.msra.mxu0 0
    %1390 = vmatprep.subr.bf16.mxu0 0
    %1391 = vmatpush1.bf16.msra.mxu0 0
    %1392 = vmatprep.subr.bf16.mxu0 0
    %1393 = vmatpush1.bf16.msra.mxu0 0
    %1394 = vmatprep.subr.bf16.mxu0 0
    %1395 = vmatpush1.bf16.msra.mxu0 0
    %1396 = vmatprep.subr.bf16.mxu0 0
    %1397 = vmatpush1.bf16.msra.mxu0 0
    %1398 = vmatprep.subr.bf16.mxu0 0
    %1399 = vmatpush1.bf16.msra.mxu0 0
    %1400 = vmatprep.subr.bf16.mxu0 0
    %1401 = vmatpush1.bf16.msra.mxu0 0
    %1402 = vmatprep.subr.bf16.mxu0 0
    %1403 = vmatpush1.bf16.msra.mxu0 0
    %1404 = vmatprep.subr.bf16.mxu0 0
    %1405 = vmatpush1.bf16.msra.mxu0 0
    %1406 = vmatprep.subr.bf16.mxu0 0
    %1407 = vmatpush1.bf16.msra.mxu0 0
    %1408 = vmatprep.subr.bf16.mxu0 0
    %1409 = vmatpush1.bf16.msra.mxu0 0
    %1410 = vmatprep.subr.bf16.mxu0 0
    %1411 = vmatpush1.bf16.msra.mxu0 0
    %1412 = vmatprep.mubr.bf16.mxu0 0
    %1413 = vmatmul.mubr.bf16.gmra.mrb[0].mxu0 %v1378
    %v1414 = vpop.f32.mrb[0].mxu0
    %v1415 = vadd.f32 0.0, %v1414
    %v1416 = vpop.f32.mrb[0].mxu0
    %v1417 = vpop.f32.mrb[0].mxu0
    %v1418 = vpop.f32.mrb[0].mxu0
    %1419 = vdwg.mxu0
    %v1420 = vmul.f32 %v1078, %v1415
    %v1421 = vadd.f32 %v1326, %v1420
    %v1422 = vadd.f32 %v1421, %v1080
    %v1423 = vtanh.pop %v1422
    %v1424 = vpack.c.bf16 %v1423, %v1423
    %v1426 = vsel %vm208, %v1424, 0
    %1428 = vmatprep.subr.bf16.mxu0 0
    %1429 = vmatpush1.bf16.msra.mxu0 %v369
    %1430 = vmatprep.subr.bf16.mxu0 0
    %1431 = vmatpush1.bf16.msra.mxu0 %v370
    %1432 = vmatprep.subr.bf16.mxu0 0
    %1433 = vmatpush1.bf16.msra.mxu0 0
    %1434 = vmatprep.subr.bf16.mxu0 0
    %1435 = vmatpush1.bf16.msra.mxu0 0
    %1436 = vmatprep.subr.bf16.mxu0 0
    %1437 = vmatpush1.bf16.msra.mxu0 0
    %1438 = vmatprep.subr.bf16.mxu0 0
    %1439 = vmatpush1.bf16.msra.mxu0 0
    %1440 = vmatprep.subr.bf16.mxu0 0
    %1441 = vmatpush1.bf16.msra.mxu0 0
    %1442 = vmatprep.subr.bf16.mxu0 0
    %1443 = vmatpush1.bf16.msra.mxu0 0
    %1444 = vmatprep.subr.bf16.mxu0 0
    %1445 = vmatpush1.bf16.msra.mxu0 0
    %1446 = vmatprep.subr.bf16.mxu0 0
    %1447 = vmatpush1.bf16.msra.mxu0 0
    %1448 = vmatprep.subr.bf16.mxu0 0
    %1449 = vmatpush1.bf16.msra.mxu0 0
    %1450 = vmatprep.subr.bf16.mxu0 0
    %1451 = vmatpush1.bf16.msra.mxu0 0
    %1452 = vmatprep.subr.bf16.mxu0 0
    %1453 = vmatpush1.bf16.msra.mxu0 0
    %1454 = vmatprep.subr.bf16.mxu0 0
    %1455 = vmatpush1.bf16.msra.mxu0 0
    %1456 = vmatprep.subr.bf16.mxu0 0
    %1457 = vmatpush1.bf16.msra.mxu0 0
    %1458 = vmatprep.subr.bf16.mxu0 0
    %1459 = vmatpush1.bf16.msra.mxu0 0
    %1460 = vmatprep.mubr.bf16.mxu0 0
    %1461 = vmatmul.mubr.bf16.gmra.mrb[0].mxu0 %v1426
    %v1462 = vpop.f32.mrb[0].mxu0
    %v1463 = vadd.f32 0.0, %v1462
    %v1464 = vpop.f32.mrb[0].mxu0
    %v1465 = vpop.f32.mrb[0].mxu0
    %v1466 = vpop.f32.mrb[0].mxu0
    %1467 = vdwg.mxu0
    %v1468 = vmul.f32 %v1076, %v1463
    %v1469 = vadd.f32 %v1326, %v1468
    %v1470 = vadd.f32 %v1469, %v1081
    %v1471 = vtanh.pop %v1470
    %v1472 = vmul.f32 %v1375, 2.0
    %v1473 = vadd.f32 %v1327, %v1472
    %v1474 = vmul.f32 %v1423, 2.0
    %v1475 = vadd.f32 %v1473, %v1474
    %v1476 = vadd.f32 %v1475, %v1471
    %v1477 = vadd.f32 %v1279, %v1476
    %v1478 = vpack.c.bf16 %v1476, %v1476
    %v1480 = vsel %vm208, %v1478, 0
    %1482 = vmatprep.subr.bf16.mxu0 0
    %1483 = vmatpush1.bf16.msra.mxu0 %v369
    %1484 = vmatprep.subr.bf16.mxu0 0
    %1485 = vmatpush1.bf16.msra.mxu0 %v370
    %1486 = vmatprep.subr.bf16.mxu0 0
    %1487 = vmatpush1.bf16.msra.mxu0 0
    %1488 = vmatprep.subr.bf16.mxu0 0
    %1489 = vmatpush1.bf16.msra.mxu0 0
    %1490 = vmatprep.subr.bf16.mxu0 0
    %1491 = vmatpush1.bf16.msra.mxu0 0
    %1492 = vmatprep.subr.bf16.mxu0 0
    %1493 = vmatpush1.bf16.msra.mxu0 0
    %1494 = vmatprep.subr.bf16.mxu0 0
    %1495 = vmatpush1.bf16.msra.mxu0 0
    %1496 = vmatprep.subr.bf16.mxu0 0
    %1497 = vmatpush1.bf16.msra.mxu0 0
    %1498 = vmatprep.subr.bf16.mxu0 0
    %1499 = vmatpush1.bf16.msra.mxu0 0
    %1500 = vmatprep.subr.bf16.mxu0 0
    %1501 = vmatpush1.bf16.msra.mxu0 0
    %1502 = vmatprep.subr.bf16.mxu0 0
    %1503 = vmatpush1.bf16.msra.mxu0 0
    %1504 = vmatprep.subr.bf16.mxu0 0
    %1505 = vmatpush1.bf16.msra.mxu0 0
    %1506 = vmatprep.subr.bf16.mxu0 0
    %1507 = vmatpush1.bf16.msra.mxu0 0
    %1508 = vmatprep.subr.bf16.mxu0 0
    %1509 = vmatpush1.bf16.msra.mxu0 0
    %1510 = vmatprep.subr.bf16.mxu0 0
    %1511 = vmatpush1.bf16.msra.mxu0 0
    %1512 = vmatprep.subr.bf16.mxu0 0
    %1513 = vmatpush1.bf16.msra.mxu0 0
    %1514 = vmatprep.mubr.bf16.mxu0 0
    %1515 = vmatmul.mubr.bf16.gmra.mrb[0].mxu0 %v1480
    %v1516 = vpop.f32.mrb[0].mxu0
    %v1517 = vadd.f32 0.0, %v1516
    %v1518 = vpop.f32.mrb[0].mxu0
    %v1519 = vpop.f32.mrb[0].mxu0
    %v1520 = vpop.f32.mrb[0].mxu0
    %1521 = vdwg.mxu0
    %v1522 = vmul.f32 %v1079, %v1517
    %v1523 = vadd.f32 %v1326, %v1522
    %v1524 = vadd.f32 %v1523, %v1081
    %v1525 = vtanh.pop %v1524
    %v1526 = vpack.c.bf16 %v1525, %v1525
    %v1528 = vsel %vm208, %v1526, 0
    %1530 = vmatprep.subr.bf16.mxu0 0
    %1531 = vmatpush1.bf16.msra.mxu0 %v369
    %1532 = vmatprep.subr.bf16.mxu0 0
    %1533 = vmatpush1.bf16.msra.mxu0 %v370
    %1534 = vmatprep.subr.bf16.mxu0 0
    %1535 = vmatpush1.bf16.msra.mxu0 0
    %1536 = vmatprep.subr.bf16.mxu0 0
    %1537 = vmatpush1.bf16.msra.mxu0 0
    %1538 = vmatprep.subr.bf16.mxu0 0
    %1539 = vmatpush1.bf16.msra.mxu0 0
    %1540 = vmatprep.subr.bf16.mxu0 0
    %1541 = vmatpush1.bf16.msra.mxu0 0
    %1542 = vmatprep.subr.bf16.mxu0 0
    %1543 = vmatpush1.bf16.msra.mxu0 0
    %1544 = vmatprep.subr.bf16.mxu0 0
    %1545 = vmatpush1.bf16.msra.mxu0 0
    %1546 = vmatprep.subr.bf16.mxu0 0
    %1547 = vmatpush1.bf16.msra.mxu0 0
    %1548 = vmatprep.subr.bf16.mxu0 0
    %1549 = vmatpush1.bf16.msra.mxu0 0
    %1550 = vmatprep.subr.bf16.mxu0 0
    %1551 = vmatpush1.bf16.msra.mxu0 0
    %1552 = vmatprep.subr.bf16.mxu0 0
    %1553 = vmatpush1.bf16.msra.mxu0 0
    %1554 = vmatprep.subr.bf16.mxu0 0
    %1555 = vmatpush1.bf16.msra.mxu0 0
    %1556 = vmatprep.subr.bf16.mxu0 0
    %1557 = vmatpush1.bf16.msra.mxu0 0
    %1558 = vmatprep.subr.bf16.mxu0 0
    %1559 = vmatpush1.bf16.msra.mxu0 0
    %1560 = vmatprep.subr.bf16.mxu0 0
    %1561 = vmatpush1.bf16.msra.mxu0 0
    %1562 = vmatprep.mubr.bf16.mxu0 0
    %1563 = vmatmul.mubr.bf16.gmra.mrb[0].mxu0 %v1528
    %v1564 = vpop.f32.mrb[0].mxu0
    %v1565 = vadd.f32 0.0, %v1564
    %v1566 = vpop.f32.mrb[0].mxu0
    %v1567 = vpop.f32.mrb[0].mxu0
    %v1568 = vpop.f32.mrb[0].mxu0
    %1569 = vdwg.mxu0
    %v1570 = vmul.f32 %v1078, %v1565
    %v1571 = vadd.f32 %v1524, %v1570
    %v1572 = vadd.f32 %v1571, %v1080
    %v1573 = vtanh.pop %v1572
    %v1574 = vpack.c.bf16 %v1573, %v1573
    %v1576 = vsel %vm208, %v1574, 0
    %1578 = vmatprep.subr.bf16.mxu0 0
    %1579 = vmatpush1.bf16.msra.mxu0 %v369
    %1580 = vmatprep.subr.bf16.mxu0 0
    %1581 = vmatpush1.bf16.msra.mxu0 %v370
    %1582 = vmatprep.subr.bf16.mxu0 0
    %1583 = vmatpush1.bf16.msra.mxu0 0
    %1584 = vmatprep.subr.bf16.mxu0 0
    %1585 = vmatpush1.bf16.msra.mxu0 0
    %1586 = vmatprep.subr.bf16.mxu0 0
    %1587 = vmatpush1.bf16.msra.mxu0 0
    %1588 = vmatprep.subr.bf16.mxu0 0
    %1589 = vmatpush1.bf16.msra.mxu0 0
    %1590 = vmatprep.subr.bf16.mxu0 0
    %1591 = vmatpush1.bf16.msra.mxu0 0
    %1592 = vmatprep.subr.bf16.mxu0 0
    %1593 = vmatpush1.bf16.msra.mxu0 0
    %1594 = vmatprep.subr.bf16.mxu0 0
    %1595 = vmatpush1.bf16.msra.mxu0 0
    %1596 = vmatprep.subr.bf16.mxu0 0
    %1597 = vmatpush1.bf16.msra.mxu0 0
    %1598 = vmatprep.subr.bf16.mxu0 0
    %1599 = vmatpush1.bf16.msra.mxu0 0
    %1600 = vmatprep.subr.bf16.mxu0 0
    %1601 = vmatpush1.bf16.msra.mxu0 0
    %1602 = vmatprep.subr.bf16.mxu0 0
    %1603 = vmatpush1.bf16.msra.mxu0 0
    %1604 = vmatprep.subr.bf16.mxu0 0
    %1605 = vmatpush1.bf16.msra.mxu0 0
    %1606 = vmatprep.subr.bf16.mxu0 0
    %1607 = vmatpush1.bf16.msra.mxu0 0
    %1608 = vmatprep.subr.bf16.mxu0 0
    %1609 = vmatpush1.bf16.msra.mxu0 0
    %1610 = vmatprep.mubr.bf16.mxu0 0
    %1611 = vmatmul.mubr.bf16.gmra.mrb[0].mxu0 %v1576
    %v1612 = vpop.f32.mrb[0].mxu0
    %v1613 = vadd.f32 0.0, %v1612
    %v1614 = vpop.f32.mrb[0].mxu0
    %v1615 = vpop.f32.mrb[0].mxu0
    %v1616 = vpop.f32.mrb[0].mxu0
    %1617 = vdwg.mxu0
    %v1618 = vmul.f32 %v1078, %v1613
    %v1619 = vadd.f32 %v1524, %v1618
    %v1620 = vadd.f32 %v1619, %v1080
    %v1621 = vtanh.pop %v1620
    %v1622 = vpack.c.bf16 %v1621, %v1621
    %v1624 = vsel %vm208, %v1622, 0
    %1626 = vmatprep.subr.bf16.mxu0 0
    %1627 = vmatpush1.bf16.msra.mxu0 %v369
    %1628 = vmatprep.subr.bf16.mxu0 0
    %1629 = vmatpush1.bf16.msra.mxu0 %v370
    %1630 = vmatprep.subr.bf16.mxu0 0
    %1631 = vmatpush1.bf16.msra.mxu0 0
    %1632 = vmatprep.subr.bf16.mxu0 0
    %1633 = vmatpush1.bf16.msra.mxu0 0
    %1634 = vmatprep.subr.bf16.mxu0 0
    %1635 = vmatpush1.bf16.msra.mxu0 0
    %1636 = vmatprep.subr.bf16.mxu0 0
    %1637 = vmatpush1.bf16.msra.mxu0 0
    %1638 = vmatprep.subr.bf16.mxu0 0
    %1639 = vmatpush1.bf16.msra.mxu0 0
    %1640 = vmatprep.subr.bf16.mxu0 0
    %1641 = vmatpush1.bf16.msra.mxu0 0
    %1642 = vmatprep.subr.bf16.mxu0 0
    %1643 = vmatpush1.bf16.msra.mxu0 0
    %1644 = vmatprep.subr.bf16.mxu0 0
    %1645 = vmatpush1.bf16.msra.mxu0 0
    %1646 = vmatprep.subr.bf16.mxu0 0
    %1647 = vmatpush1.bf16.msra.mxu0 0
    %1648 = vmatprep.subr.bf16.mxu0 0
    %1649 = vmatpush1.bf16.msra.mxu0 0
    %1650 = vmatprep.subr.bf16.mxu0 0
    %1651 = vmatpush1.bf16.msra.mxu0 0
    %1652 = vmatprep.subr.bf16.mxu0 0
    %1653 = vmatpush1.bf16.msra.mxu0 0
    %1654 = vmatprep.subr.bf16.mxu0 0
    %1655 = vmatpush1.bf16.msra.mxu0 0
    %1656 = vmatprep.subr.bf16.mxu0 0
    %1657 = vmatpush1.bf16.msra.mxu0 0
    %1658 = vmatprep.mubr.bf16.mxu0 0
    %1659 = vmatmul.mubr.bf16.gmra.mrb[0].mxu0 %v1624
    %v1660 = vpop.f32.mrb[0].mxu0
    %v1661 = vadd.f32 0.0, %v1660
    %v1662 = vpop.f32.mrb[0].mxu0
    %v1663 = vpop.f32.mrb[0].mxu0
    %v1664 = vpop.f32.mrb[0].mxu0
    %1665 = vdwg.mxu0
    %v1666 = vmul.f32 %v1076, %v1661
    %v1667 = vadd.f32 %v1524, %v1666
    %v1668 = vadd.f32 %v1667, %v1081
    %v1669 = vtanh.pop %v1668
    %v1670 = vmul.f32 %v1573, 2.0
    %v1671 = vadd.f32 %v1525, %v1670
    %v1672 = vmul.f32 %v1621, 2.0
    %v1673 = vadd.f32 %v1671, %v1672
    %v1674 = vadd.f32 %v1673, %v1669
    %v1675 = vadd.f32 %v1477, %v1674
    %v1676 = vpack.c.bf16 %v1675, %v1675
    %v1678 = vsel %vm208, %v1676, 0
    %1680 = vmatprep.subr.bf16.mxu0 0
    %1681 = vmatpush1.bf16.msra.mxu0 %v927
    %1682 = vmatprep.subr.bf16.mxu0 0
    %1683 = vmatpush1.bf16.msra.mxu0 %v928
    %1684 = vmatprep.subr.bf16.mxu0 0
    %1685 = vmatpush1.bf16.msra.mxu0 0
    %1686 = vmatprep.subr.bf16.mxu0 0
    %1687 = vmatpush1.bf16.msra.mxu0 0
    %1688 = vmatprep.subr.bf16.mxu0 0
    %1689 = vmatpush1.bf16.msra.mxu0 0
    %1690 = vmatprep.subr.bf16.mxu0 0
    %1691 = vmatpush1.bf16.msra.mxu0 0
    %1692 = vmatprep.subr.bf16.mxu0 0
    %1693 = vmatpush1.bf16.msra.mxu0 0
    %1694 = vmatprep.subr.bf16.mxu0 0
    %1695 = vmatpush1.bf16.msra.mxu0 0
    %1696 = vmatprep.subr.bf16.mxu0 0
    %1697 = vmatpush1.bf16.msra.mxu0 0
    %1698 = vmatprep.subr.bf16.mxu0 0
    %1699 = vmatpush1.bf16.msra.mxu0 0
    %1700 = vmatprep.subr.bf16.mxu0 0
    %1701 = vmatpush1.bf16.msra.mxu0 0
    %1702 = vmatprep.subr.bf16.mxu0 0
    %1703 = vmatpush1.bf16.msra.mxu0 0
    %1704 = vmatprep.subr.bf16.mxu0 0
    %1705 = vmatpush1.bf16.msra.mxu0 0
    %1706 = vmatprep.subr.bf16.mxu0 0
    %1707 = vmatpush1.bf16.msra.mxu0 0
    %1708 = vmatprep.subr.bf16.mxu0 0
    %1709 = vmatpush1.bf16.msra.mxu0 0
    %1710 = vmatprep.subr.bf16.mxu0 0
    %1711 = vmatpush1.bf16.msra.mxu0 0
    %1712 = vmatprep.mubr.bf16.mxu0 0
    %1713 = vmatmul.mubr.bf16.gmra.mrb[0].mxu0 %v1678
    %v1714 = vpop.f32.mrb[0].mxu0
    %v1715 = vadd.f32 0.0, %v1714
    %v1716 = vpop.f32.mrb[0].mxu0
    %v1717 = vpop.f32.mrb[0].mxu0
    %v1718 = vpop.f32.mrb[0].mxu0
    %1719 = vdwg.mxu0
    %v1720 = vmul.f32 %v1079, %v1715
    %1722 = vrot.lane.b32.xlu0 %v1720, 64
    %v1723 = vpop.permute.xlu0 %1722
    %v1725 = vadd.f32 %v1069, %v1723
    %v1726 = vmul.f32 %v1076, %v984
    %1728 = vrot.lane.b32.xlu0 %v1726, 64
    %v1729 = vpop.permute.xlu0 %1728
    %v1731 = vadd.f32 %v1725, %v1729
    %1733 = vrot.lane.b32.xlu0 %v1731, 64
    %v1734 = vpop.permute.xlu0 %1733
    %1736 = vst.msk [vmem:[#allocation3 + $0x8] sm:$0xff] %vm208, %v1734
    %v1737 = vld [vmem:[#allocation2 + $0x10] sm:$0xff]
    %v1738 = vpack.c.bf16 %v1731, %v1731
    %1740 = vrot.lane.b32.xlu0 %v1738, 64
    %v1741 = vpop.permute.xlu0 %1740
    %v1743 = vsel %vm208, %v1741, 0
    %1745 = vmatprep.subr.bf16.mxu0 0
    %1746 = vmatpush1.bf16.msra.mxu0 %v204
    %1747 = vmatprep.subr.bf16.mxu0 0
    %1748 = vmatpush1.bf16.msra.mxu0 %v205
    %1749 = vmatprep.subr.bf16.mxu0 0
    %1750 = vmatpush1.bf16.msra.mxu0 0
    %1751 = vmatprep.subr.bf16.mxu0 0
    %1752 = vmatpush1.bf16.msra.mxu0 0
    %1753 = vmatprep.subr.bf16.mxu0 0
    %1754 = vmatpush1.bf16.msra.mxu0 0
    %1755 = vmatprep.subr.bf16.mxu0 0
    %1756 = vmatpush1.bf16.msra.mxu0 0
    %1757 = vmatprep.subr.bf16.mxu0 0
    %1758 = vmatpush1.bf16.msra.mxu0 0
    %1759 = vmatprep.subr.bf16.mxu0 0
    %1760 = vmatpush1.bf16.msra.mxu0 0
    %1761 = vmatprep.subr.bf16.mxu0 0
    %1762 = vmatpush1.bf16.msra.mxu0 0
    %1763 = vmatprep.subr.bf16.mxu0 0
    %1764 = vmatpush1.bf16.msra.mxu0 0
    %1765 = vmatprep.subr.bf16.mxu0 0
    %1766 = vmatpush1.bf16.msra.mxu0 0
    %1767 = vmatprep.subr.bf16.mxu0 0
    %1768 = vmatpush1.bf16.msra.mxu0 0
    %1769 = vmatprep.subr.bf16.mxu0 0
    %1770 = vmatpush1.bf16.msra.mxu0 0
    %1771 = vmatprep.subr.bf16.mxu0 0
    %1772 = vmatpush1.bf16.msra.mxu0 0
    %1773 = vmatprep.subr.bf16.mxu0 0
    %1774 = vmatpush1.bf16.msra.mxu0 0
    %1775 = vmatprep.subr.bf16.mxu0 0
    %1776 = vmatpush1.bf16.msra.mxu0 0
    %1777 = vmatprep.mubr.bf16.mxu0 0
    %1778 = vmatmul.mubr.bf16.gmra.mrb[0].mxu0 %v1743
    %v1779 = vpop.f32.mrb[0].mxu0
    %v1780 = vadd.f32 0.0, %v1779
    %v1781 = vpop.f32.mrb[0].mxu0
    %v1782 = vpop.f32.mrb[0].mxu0
    %v1783 = vpop.f32.mrb[0].mxu0
    %1784 = vdwg.mxu0
    %v1785 = vadd.f32 %v1737, %v1780
    %v1786 = vxor.u32 %v1785, 2147483648
    %v1787 = vmul.f32 %v1786, 1.442695
    %v1788 = vpow.pop %v1787
    %v1789 = vadd.f32 %v1788, 1.0
    %v1790 = vrcp.pop %v1789
    %v1791 = vmul.f32 1.0, %v1790
    %v1792 = vtanh.pop %v1785
    %v1793 = vmul.f32 %v1791, %v1063
    %1795 = vrot.lane.b32.xlu0 %v1792, 32
    %v1796 = vpop.permute.xlu0 %1795
    %v1798 = vmul.f32 %v1791, %v1796
    %1800 = vrot.lane.b32.xlu0 %v1798, 32
    %v1801 = vpop.permute.xlu0 %1800
    %v1803 = vadd.f32 %v1793, %v1801
    %v1804 = vtanh.pop %v1803
    %1806 = vrot.lane.b32.xlu0 %v1804, 32
    %v1807 = vpop.permute.xlu0 %1806
    %v1809 = vmul.f32 %v1791, %v1807
    %s1810 = scalar_lea.vmem %s1, 16
    %v1811 = vld [vmem:[%s1810] sm:$0xff]
    %v1812 = vmul.f32 %v1811, 0.33333334
    %1814 = vset.pattern.permute.xlu0 0
    %1815 = vperm.xlu0 %1814, %v1812
    %v1816 = vpop.permute.xlu0 %1815
    %v1818 = vmul.f32 %v1816, 0.5
    %v1819 = vmul.f32 %v1816, 0.16666667
    %v1820 = vmul.f32 %v1818, %v290
    %v1821 = vmul.f32 %v1816, %v290
    %v1822 = vpack.c.bf16 %v1809, %v1809
    %1824 = vrot.lane.b32.xlu0 %v1822, 64
    %v1825 = vpop.permute.xlu0 %1824
    %v1827 = vsel %vm208, %v1825, 0
    %1829 = vmatprep.subr.bf16.mxu0 0
    %1830 = vmatpush1.bf16.msra.mxu0 %v312
    %1831 = vmatprep.subr.bf16.mxu0 0
    %1832 = vmatpush1.bf16.msra.mxu0 %v313
    %1833 = vmatprep.subr.bf16.mxu0 0
    %1834 = vmatpush1.bf16.msra.mxu0 0
    %1835 = vmatprep.subr.bf16.mxu0 0
    %1836 = vmatpush1.bf16.msra.mxu0 0
    %1837 = vmatprep.subr.bf16.mxu0 0
    %1838 = vmatpush1.bf16.msra.mxu0 0
    %1839 = vmatprep.subr.bf16.mxu0 0
    %1840 = vmatpush1.bf16.msra.mxu0 0
    %1841 = vmatprep.subr.bf16.mxu0 0
    %1842 = vmatpush1.bf16.msra.mxu0 0
    %1843 = vmatprep.subr.bf16.mxu0 0
    %1844 = vmatpush1.bf16.msra.mxu0 0
    %1845 = vmatprep.subr.bf16.mxu0 0
    %1846 = vmatpush1.bf16.msra.mxu0 0
    %1847 = vmatprep.subr.bf16.mxu0 0
    %1848 = vmatpush1.bf16.msra.mxu0 0
    %1849 = vmatprep.subr.bf16.mxu0 0
    %1850 = vmatpush1.bf16.msra.mxu0 0
    %1851 = vmatprep.subr.bf16.mxu0 0
    %1852 = vmatpush1.bf16.msra.mxu0 0
    %1853 = vmatprep.subr.bf16.mxu0 0
    %1854 = vmatpush1.bf16.msra.mxu0 0
    %1855 = vmatprep.subr.bf16.mxu0 0
    %1856 = vmatpush1.bf16.msra.mxu0 0
    %1857 = vmatprep.subr.bf16.mxu0 0
    %1858 = vmatpush1.bf16.msra.mxu0 0
    %1859 = vmatprep.subr.bf16.mxu0 0
    %1860 = vmatpush1.bf16.msra.mxu0 0
    %1861 = vmatprep.mubr.bf16.mxu0 0
    %1862 = vmatmul.mubr.bf16.gmra.mrb[0].mxu0 %v1827
    %v1863 = vpop.f32.mrb[0].mxu0
    %v1864 = vadd.f32 %v299, %v1863
    %v1865 = vpop.f32.mrb[0].mxu0
    %v1866 = vpop.f32.mrb[0].mxu0
    %v1867 = vpop.f32.mrb[0].mxu0
    %1868 = vdwg.mxu0
    %v1869 = vtanh.pop %v1864
    %v1870 = vpack.c.bf16 %v1869, %v1869
    %v1872 = vsel %vm208, %v1870, 0
    %1874 = vmatprep.subr.bf16.mxu0 0
    %1875 = vmatpush1.bf16.msra.mxu0 %v369
    %1876 = vmatprep.subr.bf16.mxu0 0
    %1877 = vmatpush1.bf16.msra.mxu0 %v370
    %1878 = vmatprep.subr.bf16.mxu0 0
    %1879 = vmatpush1.bf16.msra.mxu0 0
    %1880 = vmatprep.subr.bf16.mxu0 0
    %1881 = vmatpush1.bf16.msra.mxu0 0
    %1882 = vmatprep.subr.bf16.mxu0 0
    %1883 = vmatpush1.bf16.msra.mxu0 0
    %1884 = vmatprep.subr.bf16.mxu0 0
    %1885 = vmatpush1.bf16.msra.mxu0 0
    %1886 = vmatprep.subr.bf16.mxu0 0
    %1887 = vmatpush1.bf16.msra.mxu0 0
    %1888 = vmatprep.subr.bf16.mxu0 0
    %1889 = vmatpush1.bf16.msra.mxu0 0
    %1890 = vmatprep.subr.bf16.mxu0 0
    %1891 = vmatpush1.bf16.msra.mxu0 0
    %1892 = vmatprep.subr.bf16.mxu0 0
    %1893 = vmatpush1.bf16.msra.mxu0 0
    %1894 = vmatprep.subr.bf16.mxu0 0
    %1895 = vmatpush1.bf16.msra.mxu0 0
    %1896 = vmatprep.subr.bf16.mxu0 0
    %1897 = vmatpush1.bf16.msra.mxu0 0
    %1898 = vmatprep.subr.bf16.mxu0 0
    %1899 = vmatpush1.bf16.msra.mxu0 0
    %1900 = vmatprep.subr.bf16.mxu0 0
    %1901 = vmatpush1.bf16.msra.mxu0 0
    %1902 = vmatprep.subr.bf16.mxu0 0
    %1903 = vmatpush1.bf16.msra.mxu0 0
    %1904 = vmatprep.subr.bf16.mxu0 0
    %1905 = vmatpush1.bf16.msra.mxu0 0
    %1906 = vmatprep.mubr.bf16.mxu0 0
    %1907 = vmatmul.mubr.bf16.gmra.mrb[0].mxu0 %v1872
    %v1908 = vpop.f32.mrb[0].mxu0
    %v1909 = vadd.f32 0.0, %v1908
    %v1910 = vpop.f32.mrb[0].mxu0
    %v1911 = vpop.f32.mrb[0].mxu0
    %v1912 = vpop.f32.mrb[0].mxu0
    %1913 = vdwg.mxu0
    %v1914 = vmul.f32 %v1818, %v1909
    %v1915 = vadd.f32 %v1864, %v1914
    %v1916 = vadd.f32 %v1915, %v1820
    %v1917 = vtanh.pop %v1916
    %v1918 = vpack.c.bf16 %v1917, %v1917
    %v1920 = vsel %vm208, %v1918, 0
    %1922 = vmatprep.subr.bf16.mxu0 0
    %1923 = vmatpush1.bf16.msra.mxu0 %v369
    %1924 = vmatprep.subr.bf16.mxu0 0
    %1925 = vmatpush1.bf16.msra.mxu0 %v370
    %1926 = vmatprep.subr.bf16.mxu0 0
    %1927 = vmatpush1.bf16.msra.mxu0 0
    %1928 = vmatprep.subr.bf16.mxu0 0
    %1929 = vmatpush1.bf16.msra.mxu0 0
    %1930 = vmatprep.subr.bf16.mxu0 0
    %1931 = vmatpush1.bf16.msra.mxu0 0
    %1932 = vmatprep.subr.bf16.mxu0 0
    %1933 = vmatpush1.bf16.msra.mxu0 0
    %1934 = vmatprep.subr.bf16.mxu0 0
    %1935 = vmatpush1.bf16.msra.mxu0 0
    %1936 = vmatprep.subr.bf16.mxu0 0
    %1937 = vmatpush1.bf16.msra.mxu0 0
    %1938 = vmatprep.subr.bf16.mxu0 0
    %1939 = vmatpush1.bf16.msra.mxu0 0
    %1940 = vmatprep.subr.bf16.mxu0 0
    %1941 = vmatpush1.bf16.msra.mxu0 0
    %1942 = vmatprep.subr.bf16.mxu0 0
    %1943 = vmatpush1.bf16.msra.mxu0 0
    %1944 = vmatprep.subr.bf16.mxu0 0
    %1945 = vmatpush1.bf16.msra.mxu0 0
    %1946 = vmatprep.subr.bf16.mxu0 0
    %1947 = vmatpush1.bf16.msra.mxu0 0
    %1948 = vmatprep.subr.bf16.mxu0 0
    %1949 = vmatpush1.bf16.msra.mxu0 0
    %1950 = vmatprep.subr.bf16.mxu0 0
    %1951 = vmatpush1.bf16.msra.mxu0 0
    %1952 = vmatprep.subr.bf16.mxu0 0
    %1953 = vmatpush1.bf16.msra.mxu0 0
    %1954 = vmatprep.mubr.bf16.mxu0 0
    %1955 = vmatmul.mubr.bf16.gmra.mrb[0].mxu0 %v1920
    %v1956 = vpop.f32.mrb[0].mxu0
    %v1957 = vadd.f32 0.0, %v1956
    %v1958 = vpop.f32.mrb[0].mxu0
    %v1959 = vpop.f32.mrb[0].mxu0
    %v1960 = vpop.f32.mrb[0].mxu0
    %1961 = vdwg.mxu0
    %v1962 = vmul.f32 %v1818, %v1957
    %v1963 = vadd.f32 %v1864, %v1962
    %v1964 = vadd.f32 %v1963, %v1820
    %v1965 = vtanh.pop %v1964
    %v1966 = vpack.c.bf16 %v1965, %v1965
    %v1968 = vsel %vm208, %v1966, 0
    %1970 = vmatprep.subr.bf16.mxu0 0
    %1971 = vmatpush1.bf16.msra.mxu0 %v369
    %1972 = vmatprep.subr.bf16.mxu0 0
    %1973 = vmatpush1.bf16.msra.mxu0 %v370
    %1974 = vmatprep.subr.bf16.mxu0 0
    %1975 = vmatpush1.bf16.msra.mxu0 0
    %1976 = vmatprep.subr.bf16.mxu0 0
    %1977 = vmatpush1.bf16.msra.mxu0 0
    %1978 = vmatprep.subr.bf16.mxu0 0
    %1979 = vmatpush1.bf16.msra.mxu0 0
    %1980 = vmatprep.subr.bf16.mxu0 0
    %1981 = vmatpush1.bf16.msra.mxu0 0
    %1982 = vmatprep.subr.bf16.mxu0 0
    %1983 = vmatpush1.bf16.msra.mxu0 0
    %1984 = vmatprep.subr.bf16.mxu0 0
    %1985 = vmatpush1.bf16.msra.mxu0 0
    %1986 = vmatprep.subr.bf16.mxu0 0
    %1987 = vmatpush1.bf16.msra.mxu0 0
    %1988 = vmatprep.subr.bf16.mxu0 0
    %1989 = vmatpush1.bf16.msra.mxu0 0
    %1990 = vmatprep.subr.bf16.mxu0 0
    %1991 = vmatpush1.bf16.msra.mxu0 0
    %1992 = vmatprep.subr.bf16.mxu0 0
    %1993 = vmatpush1.bf16.msra.mxu0 0
    %1994 = vmatprep.subr.bf16.mxu0 0
    %1995 = vmatpush1.bf16.msra.mxu0 0
    %1996 = vmatprep.subr.bf16.mxu0 0
    %1997 = vmatpush1.bf16.msra.mxu0 0
    %1998 = vmatprep.subr.bf16.mxu0 0
    %1999 = vmatpush1.bf16.msra.mxu0 0
    %2000 = vmatprep.subr.bf16.mxu0 0
    %2001 = vmatpush1.bf16.msra.mxu0 0
    %2002 = vmatprep.mubr.bf16.mxu0 0
    %2003 = vmatmul.mubr.bf16.gmra.mrb[0].mxu0 %v1968
    %v2004 = vpop.f32.mrb[0].mxu0
    %v2005 = vadd.f32 0.0, %v2004
    %v2006 = vpop.f32.mrb[0].mxu0
    %v2007 = vpop.f32.mrb[0].mxu0
    %v2008 = vpop.f32.mrb[0].mxu0
    %2009 = vdwg.mxu0
    %v2010 = vmul.f32 %v1816, %v2005
    %v2011 = vadd.f32 %v1864, %v2010
    %v2012 = vadd.f32 %v2011, %v1821
    %v2013 = vtanh.pop %v2012
    %v2014 = vmul.f32 %v1917, 2.0
    %v2015 = vadd.f32 %v1869, %v2014
    %v2016 = vmul.f32 %v1965, 2.0
    %v2017 = vadd.f32 %v2015, %v2016
    %v2018 = vadd.f32 %v2017, %v2013
    %v2019 = vadd.f32 %v2018, 0.0
    %v2020 = vpack.c.bf16 %v2018, %v2018
    %v2022 = vsel %vm208, %v2020, 0
    %2024 = vmatprep.subr.bf16.mxu0 0
    %2025 = vmatpush1.bf16.msra.mxu0 %v369
    %2026 = vmatprep.subr.bf16.mxu0 0
    %2027 = vmatpush1.bf16.msra.mxu0 %v370
    %2028 = vmatprep.subr.bf16.mxu0 0
    %2029 = vmatpush1.bf16.msra.mxu0 0
    %2030 = vmatprep.subr.bf16.mxu0 0
    %2031 = vmatpush1.bf16.msra.mxu0 0
    %2032 = vmatprep.subr.bf16.mxu0 0
    %2033 = vmatpush1.bf16.msra.mxu0 0
    %2034 = vmatprep.subr.bf16.mxu0 0
    %2035 = vmatpush1.bf16.msra.mxu0 0
    %2036 = vmatprep.subr.bf16.mxu0 0
    %2037 = vmatpush1.bf16.msra.mxu0 0
    %2038 = vmatprep.subr.bf16.mxu0 0
    %2039 = vmatpush1.bf16.msra.mxu0 0
    %2040 = vmatprep.subr.bf16.mxu0 0
    %2041 = vmatpush1.bf16.msra.mxu0 0
    %2042 = vmatprep.subr.bf16.mxu0 0
    %2043 = vmatpush1.bf16.msra.mxu0 0
    %2044 = vmatprep.subr.bf16.mxu0 0
    %2045 = vmatpush1.bf16.msra.mxu0 0
    %2046 = vmatprep.subr.bf16.mxu0 0
    %2047 = vmatpush1.bf16.msra.mxu0 0
    %2048 = vmatprep.subr.bf16.mxu0 0
    %2049 = vmatpush1.bf16.msra.mxu0 0
    %2050 = vmatprep.subr.bf16.mxu0 0
    %2051 = vmatpush1.bf16.msra.mxu0 0
    %2052 = vmatprep.subr.bf16.mxu0 0
    %2053 = vmatpush1.bf16.msra.mxu0 0
    %2054 = vmatprep.subr.bf16.mxu0 0
    %2055 = vmatpush1.bf16.msra.mxu0 0
    %2056 = vmatprep.mubr.bf16.mxu0 0
    %2057 = vmatmul.mubr.bf16.gmra.mrb[0].mxu0 %v2022
    %v2058 = vpop.f32.mrb[0].mxu0
    %v2059 = vadd.f32 0.0, %v2058
    %v2060 = vpop.f32.mrb[0].mxu0
    %v2061 = vpop.f32.mrb[0].mxu0
    %v2062 = vpop.f32.mrb[0].mxu0
    %2063 = vdwg.mxu0
    %v2064 = vmul.f32 %v1819, %v2059
    %v2065 = vadd.f32 %v1864, %v2064
    %v2066 = vadd.f32 %v2065, %v1821
    %v2067 = vtanh.pop %v2066
    %v2068 = vpack.c.bf16 %v2067, %v2067
    %v2070 = vsel %vm208, %v2068, 0
    %2072 = vmatprep.subr.bf16.mxu0 0
    %2073 = vmatpush1.bf16.msra.mxu0 %v369
    %2074 = vmatprep.subr.bf16.mxu0 0
    %2075 = vmatpush1.bf16.msra.mxu0 %v370
    %2076 = vmatprep.subr.bf16.mxu0 0
    %2077 = vmatpush1.bf16.msra.mxu0 0
    %2078 = vmatprep.subr.bf16.mxu0 0
    %2079 = vmatpush1.bf16.msra.mxu0 0
    %2080 = vmatprep.subr.bf16.mxu0 0
    %2081 = vmatpush1.bf16.msra.mxu0 0
    %2082 = vmatprep.subr.bf16.mxu0 0
    %2083 = vmatpush1.bf16.msra.mxu0 0
    %2084 = vmatprep.subr.bf16.mxu0 0
    %2085 = vmatpush1.bf16.msra.mxu0 0
    %2086 = vmatprep.subr.bf16.mxu0 0
    %2087 = vmatpush1.bf16.msra.mxu0 0
    %2088 = vmatprep.subr.bf16.mxu0 0
    %2089 = vmatpush1.bf16.msra.mxu0 0
    %2090 = vmatprep.subr.bf16.mxu0 0
    %2091 = vmatpush1.bf16.msra.mxu0 0
    %2092 = vmatprep.subr.bf16.mxu0 0
    %2093 = vmatpush1.bf16.msra.mxu0 0
    %2094 = vmatprep.subr.bf16.mxu0 0
    %2095 = vmatpush1.bf16.msra.mxu0 0
    %2096 = vmatprep.subr.bf16.mxu0 0
    %2097 = vmatpush1.bf16.msra.mxu0 0
    %2098 = vmatprep.subr.bf16.mxu0 0
    %2099 = vmatpush1.bf16.msra.mxu0 0
    %2100 = vmatprep.subr.bf16.mxu0 0
    %2101 = vmatpush1.bf16.msra.mxu0 0
    %2102 = vmatprep.subr.bf16.mxu0 0
    %2103 = vmatpush1.bf16.msra.mxu0 0
    %2104 = vmatprep.mubr.bf16.mxu0 0
    %2105 = vmatmul.mubr.bf16.gmra.mrb[0].mxu0 %v2070
    %v2106 = vpop.f32.mrb[0].mxu0
    %v2107 = vadd.f32 0.0, %v2106
    %v2108 = vpop.f32.mrb[0].mxu0
    %v2109 = vpop.f32.mrb[0].mxu0
    %v2110 = vpop.f32.mrb[0].mxu0
    %2111 = vdwg.mxu0
    %v2112 = vmul.f32 %v1818, %v2107
    %v2113 = vadd.f32 %v2066, %v2112
    %v2114 = vadd.f32 %v2113, %v1820
    %v2115 = vtanh.pop %v2114
    %v2116 = vpack.c.bf16 %v2115, %v2115
    %v2118 = vsel %vm208, %v2116, 0
    %2120 = vmatprep.subr.bf16.mxu0 0
    %2121 = vmatpush1.bf16.msra.mxu0 %v369
    %2122 = vmatprep.subr.bf16.mxu0 0
    %2123 = vmatpush1.bf16.msra.mxu0 %v370
    %2124 = vmatprep.subr.bf16.mxu0 0
    %2125 = vmatpush1.bf16.msra.mxu0 0
    %2126 = vmatprep.subr.bf16.mxu0 0
    %2127 = vmatpush1.bf16.msra.mxu0 0
    %2128 = vmatprep.subr.bf16.mxu0 0
    %2129 = vmatpush1.bf16.msra.mxu0 0
    %2130 = vmatprep.subr.bf16.mxu0 0
    %2131 = vmatpush1.bf16.msra.mxu0 0
    %2132 = vmatprep.subr.bf16.mxu0 0
    %2133 = vmatpush1.bf16.msra.mxu0 0
    %2134 = vmatprep.subr.bf16.mxu0 0
    %2135 = vmatpush1.bf16.msra.mxu0 0
    %2136 = vmatprep.subr.bf16.mxu0 0
    %2137 = vmatpush1.bf16.msra.mxu0 0
    %2138 = vmatprep.subr.bf16.mxu0 0
    %2139 = vmatpush1.bf16.msra.mxu0 0
    %2140 = vmatprep.subr.bf16.mxu0 0
    %2141 = vmatpush1.bf16.msra.mxu0 0
    %2142 = vmatprep.subr.bf16.mxu0 0
    %2143 = vmatpush1.bf16.msra.mxu0 0
    %2144 = vmatprep.subr.bf16.mxu0 0
    %2145 = vmatpush1.bf16.msra.mxu0 0
    %2146 = vmatprep.subr.bf16.mxu0 0
    %2147 = vmatpush1.bf16.msra.mxu0 0
    %2148 = vmatprep.subr.bf16.mxu0 0
    %2149 = vmatpush1.bf16.msra.mxu0 0
    %2150 = vmatprep.subr.bf16.mxu0 0
    %2151 = vmatpush1.bf16.msra.mxu0 0
    %2152 = vmatprep.mubr.bf16.mxu0 0
    %2153 = vmatmul.mubr.bf16.gmra.mrb[0].mxu0 %v2118
    %v2154 = vpop.f32.mrb[0].mxu0
    %v2155 = vadd.f32 0.0, %v2154
    %v2156 = vpop.f32.mrb[0].mxu0
    %v2157 = vpop.f32.mrb[0].mxu0
    %v2158 = vpop.f32.mrb[0].mxu0
    %2159 = vdwg.mxu0
    %v2160 = vmul.f32 %v1818, %v2155
    %v2161 = vadd.f32 %v2066, %v2160
    %v2162 = vadd.f32 %v2161, %v1820
    %v2163 = vtanh.pop %v2162
    %v2164 = vpack.c.bf16 %v2163, %v2163
    %v2166 = vsel %vm208, %v2164, 0
    %2168 = vmatprep.subr.bf16.mxu0 0
    %2169 = vmatpush1.bf16.msra.mxu0 %v369
    %2170 = vmatprep.subr.bf16.mxu0 0
    %2171 = vmatpush1.bf16.msra.mxu0 %v370
    %2172 = vmatprep.subr.bf16.mxu0 0
    %2173 = vmatpush1.bf16.msra.mxu0 0
    %2174 = vmatprep.subr.bf16.mxu0 0
    %2175 = vmatpush1.bf16.msra.mxu0 0
    %2176 = vmatprep.subr.bf16.mxu0 0
    %2177 = vmatpush1.bf16.msra.mxu0 0
    %2178 = vmatprep.subr.bf16.mxu0 0
    %2179 = vmatpush1.bf16.msra.mxu0 0
    %2180 = vmatprep.subr.bf16.mxu0 0
    %2181 = vmatpush1.bf16.msra.mxu0 0
    %2182 = vmatprep.subr.bf16.mxu0 0
    %2183 = vmatpush1.bf16.msra.mxu0 0
    %2184 = vmatprep.subr.bf16.mxu0 0
    %2185 = vmatpush1.bf16.msra.mxu0 0
    %2186 = vmatprep.subr.bf16.mxu0 0
    %2187 = vmatpush1.bf16.msra.mxu0 0
    %2188 = vmatprep.subr.bf16.mxu0 0
    %2189 = vmatpush1.bf16.msra.mxu0 0
    %2190 = vmatprep.subr.bf16.mxu0 0
    %2191 = vmatpush1.bf16.msra.mxu0 0
    %2192 = vmatprep.subr.bf16.mxu0 0
    %2193 = vmatpush1.bf16.msra.mxu0 0
    %2194 = vmatprep.subr.bf16.mxu0 0
    %2195 = vmatpush1.bf16.msra.mxu0 0
    %2196 = vmatprep.subr.bf16.mxu0 0
    %2197 = vmatpush1.bf16.msra.mxu0 0
    %2198 = vmatprep.subr.bf16.mxu0 0
    %2199 = vmatpush1.bf16.msra.mxu0 0
    %2200 = vmatprep.mubr.bf16.mxu0 0
    %2201 = vmatmul.mubr.bf16.gmra.mrb[0].mxu0 %v2166
    %v2202 = vpop.f32.mrb[0].mxu0
    %v2203 = vadd.f32 0.0, %v2202
    %v2204 = vpop.f32.mrb[0].mxu0
    %v2205 = vpop.f32.mrb[0].mxu0
    %v2206 = vpop.f32.mrb[0].mxu0
    %2207 = vdwg.mxu0
    %v2208 = vmul.f32 %v1816, %v2203
    %v2209 = vadd.f32 %v2066, %v2208
    %v2210 = vadd.f32 %v2209, %v1821
    %v2211 = vtanh.pop %v2210
    %v2212 = vmul.f32 %v2115, 2.0
    %v2213 = vadd.f32 %v2067, %v2212
    %v2214 = vmul.f32 %v2163, 2.0
    %v2215 = vadd.f32 %v2213, %v2214
    %v2216 = vadd.f32 %v2215, %v2211
    %v2217 = vadd.f32 %v2019, %v2216
    %v2218 = vpack.c.bf16 %v2216, %v2216
    %v2220 = vsel %vm208, %v2218, 0
    %2222 = vmatprep.subr.bf16.mxu0 0
    %2223 = vmatpush1.bf16.msra.mxu0 %v369
    %2224 = vmatprep.subr.bf16.mxu0 0
    %2225 = vmatpush1.bf16.msra.mxu0 %v370
    %2226 = vmatprep.subr.bf16.mxu0 0
    %2227 = vmatpush1.bf16.msra.mxu0 0
    %2228 = vmatprep.subr.bf16.mxu0 0
    %2229 = vmatpush1.bf16.msra.mxu0 0
    %2230 = vmatprep.subr.bf16.mxu0 0
    %2231 = vmatpush1.bf16.msra.mxu0 0
    %2232 = vmatprep.subr.bf16.mxu0 0
    %2233 = vmatpush1.bf16.msra.mxu0 0
    %2234 = vmatprep.subr.bf16.mxu0 0
    %2235 = vmatpush1.bf16.msra.mxu0 0
    %2236 = vmatprep.subr.bf16.mxu0 0
    %2237 = vmatpush1.bf16.msra.mxu0 0
    %2238 = vmatprep.subr.bf16.mxu0 0
    %2239 = vmatpush1.bf16.msra.mxu0 0
    %2240 = vmatprep.subr.bf16.mxu0 0
    %2241 = vmatpush1.bf16.msra.mxu0 0
    %2242 = vmatprep.subr.bf16.mxu0 0
    %2243 = vmatpush1.bf16.msra.mxu0 0
    %2244 = vmatprep.subr.bf16.mxu0 0
    %2245 = vmatpush1.bf16.msra.mxu0 0
    %2246 = vmatprep.subr.bf16.mxu0 0
    %2247 = vmatpush1.bf16.msra.mxu0 0
    %2248 = vmatprep.subr.bf16.mxu0 0
    %2249 = vmatpush1.bf16.msra.mxu0 0
    %2250 = vmatprep.subr.bf16.mxu0 0
    %2251 = vmatpush1.bf16.msra.mxu0 0
    %2252 = vmatprep.subr.bf16.mxu0 0
    %2253 = vmatpush1.bf16.msra.mxu0 0
    %2254 = vmatprep.mubr.bf16.mxu0 0
    %2255 = vmatmul.mubr.bf16.gmra.mrb[0].mxu0 %v2220
    %v2256 = vpop.f32.mrb[0].mxu0
    %v2257 = vadd.f32 0.0, %v2256
    %v2258 = vpop.f32.mrb[0].mxu0
    %v2259 = vpop.f32.mrb[0].mxu0
    %v2260 = vpop.f32.mrb[0].mxu0
    %2261 = vdwg.mxu0
    %v2262 = vmul.f32 %v1819, %v2257
    %v2263 = vadd.f32 %v2066, %v2262
    %v2264 = vadd.f32 %v2263, %v1821
    %v2265 = vtanh.pop %v2264
    %v2266 = vpack.c.bf16 %v2265, %v2265
    %v2268 = vsel %vm208, %v2266, 0
    %2270 = vmatprep.subr.bf16.mxu0 0
    %2271 = vmatpush1.bf16.msra.mxu0 %v369
    %2272 = vmatprep.subr.bf16.mxu0 0
    %2273 = vmatpush1.bf16.msra.mxu0 %v370
    %2274 = vmatprep.subr.bf16.mxu0 0
    %2275 = vmatpush1.bf16.msra.mxu0 0
    %2276 = vmatprep.subr.bf16.mxu0 0
    %2277 = vmatpush1.bf16.msra.mxu0 0
    %2278 = vmatprep.subr.bf16.mxu0 0
    %2279 = vmatpush1.bf16.msra.mxu0 0
    %2280 = vmatprep.subr.bf16.mxu0 0
    %2281 = vmatpush1.bf16.msra.mxu0 0
    %2282 = vmatprep.subr.bf16.mxu0 0
    %2283 = vmatpush1.bf16.msra.mxu0 0
    %2284 = vmatprep.subr.bf16.mxu0 0
    %2285 = vmatpush1.bf16.msra.mxu0 0
    %2286 = vmatprep.subr.bf16.mxu0 0
    %2287 = vmatpush1.bf16.msra.mxu0 0
    %2288 = vmatprep.subr.bf16.mxu0 0
    %2289 = vmatpush1.bf16.msra.mxu0 0
    %2290 = vmatprep.subr.bf16.mxu0 0
    %2291 = vmatpush1.bf16.msra.mxu0 0
    %2292 = vmatprep.subr.bf16.mxu0 0
    %2293 = vmatpush1.bf16.msra.mxu0 0
    %2294 = vmatprep.subr.bf16.mxu0 0
    %2295 = vmatpush1.bf16.msra.mxu0 0
    %2296 = vmatprep.subr.bf16.mxu0 0
    %2297 = vmatpush1.bf16.msra.mxu0 0
    %2298 = vmatprep.subr.bf16.mxu0 0
    %2299 = vmatpush1.bf16.msra.mxu0 0
    %2300 = vmatprep.subr.bf16.mxu0 0
    %2301 = vmatpush1.bf16.msra.mxu0 0
    %2302 = vmatprep.mubr.bf16.mxu0 0
    %2303 = vmatmul.mubr.bf16.gmra.mrb[0].mxu0 %v2268
    %v2304 = vpop.f32.mrb[0].mxu0
    %v2305 = vadd.f32 0.0, %v2304
    %v2306 = vpop.f32.mrb[0].mxu0
    %v2307 = vpop.f32.mrb[0].mxu0
    %v2308 = vpop.f32.mrb[0].mxu0
    %2309 = vdwg.mxu0
    %v2310 = vmul.f32 %v1818, %v2305
    %v2311 = vadd.f32 %v2264, %v2310
    %v2312 = vadd.f32 %v2311, %v1820
    %v2313 = vtanh.pop %v2312
    %v2314 = vpack.c.bf16 %v2313, %v2313
    %v2316 = vsel %vm208, %v2314, 0
    %2318 = vmatprep.subr.bf16.mxu0 0
    %2319 = vmatpush1.bf16.msra.mxu0 %v369
    %2320 = vmatprep.subr.bf16.mxu0 0
    %2321 = vmatpush1.bf16.msra.mxu0 %v370
    %2322 = vmatprep.subr.bf16.mxu0 0
    %2323 = vmatpush1.bf16.msra.mxu0 0
    %2324 = vmatprep.subr.bf16.mxu0 0
    %2325 = vmatpush1.bf16.msra.mxu0 0
    %2326 = vmatprep.subr.bf16.mxu0 0
    %2327 = vmatpush1.bf16.msra.mxu0 0
    %2328 = vmatprep.subr.bf16.mxu0 0
    %2329 = vmatpush1.bf16.msra.mxu0 0
    %2330 = vmatprep.subr.bf16.mxu0 0
    %2331 = vmatpush1.bf16.msra.mxu0 0
    %2332 = vmatprep.subr.bf16.mxu0 0
    %2333 = vmatpush1.bf16.msra.mxu0 0
    %2334 = vmatprep.subr.bf16.mxu0 0
    %2335 = vmatpush1.bf16.msra.mxu0 0
    %2336 = vmatprep.subr.bf16.mxu0 0
    %2337 = vmatpush1.bf16.msra.mxu0 0
    %2338 = vmatprep.subr.bf16.mxu0 0
    %2339 = vmatpush1.bf16.msra.mxu0 0
    %2340 = vmatprep.subr.bf16.mxu0 0
    %2341 = vmatpush1.bf16.msra.mxu0 0
    %2342 = vmatprep.subr.bf16.mxu0 0
    %2343 = vmatpush1.bf16.msra.mxu0 0
    %2344 = vmatprep.subr.bf16.mxu0 0
    %2345 = vmatpush1.bf16.msra.mxu0 0
    %2346 = vmatprep.subr.bf16.mxu0 0
    %2347 = vmatpush1.bf16.msra.mxu0 0
    %2348 = vmatprep.subr.bf16.mxu0 0
    %2349 = vmatpush1.bf16.msra.mxu0 0
    %2350 = vmatprep.mubr.bf16.mxu0 0
    %2351 = vmatmul.mubr.bf16.gmra.mrb[0].mxu0 %v2316
    %v2352 = vpop.f32.mrb[0].mxu0
    %v2353 = vadd.f32 0.0, %v2352
    %v2354 = vpop.f32.mrb[0].mxu0
    %v2355 = vpop.f32.mrb[0].mxu0
    %v2356 = vpop.f32.mrb[0].mxu0
    %2357 = vdwg.mxu0
    %v2358 = vmul.f32 %v1818, %v2353
    %v2359 = vadd.f32 %v2264, %v2358
    %v2360 = vadd.f32 %v2359, %v1820
    %v2361 = vtanh.pop %v2360
    %v2362 = vpack.c.bf16 %v2361, %v2361
    %v2364 = vsel %vm208, %v2362, 0
    %2366 = vmatprep.subr.bf16.mxu0 0
    %2367 = vmatpush1.bf16.msra.mxu0 %v369
    %2368 = vmatprep.subr.bf16.mxu0 0
    %2369 = vmatpush1.bf16.msra.mxu0 %v370
    %2370 = vmatprep.subr.bf16.mxu0 0
    %2371 = vmatpush1.bf16.msra.mxu0 0
    %2372 = vmatprep.subr.bf16.mxu0 0
    %2373 = vmatpush1.bf16.msra.mxu0 0
    %2374 = vmatprep.subr.bf16.mxu0 0
    %2375 = vmatpush1.bf16.msra.mxu0 0
    %2376 = vmatprep.subr.bf16.mxu0 0
    %2377 = vmatpush1.bf16.msra.mxu0 0
    %2378 = vmatprep.subr.bf16.mxu0 0
    %2379 = vmatpush1.bf16.msra.mxu0 0
    %2380 = vmatprep.subr.bf16.mxu0 0
    %2381 = vmatpush1.bf16.msra.mxu0 0
    %2382 = vmatprep.subr.bf16.mxu0 0
    %2383 = vmatpush1.bf16.msra.mxu0 0
    %2384 = vmatprep.subr.bf16.mxu0 0
    %2385 = vmatpush1.bf16.msra.mxu0 0
    %2386 = vmatprep.subr.bf16.mxu0 0
    %2387 = vmatpush1.bf16.msra.mxu0 0
    %2388 = vmatprep.subr.bf16.mxu0 0
    %2389 = vmatpush1.bf16.msra.mxu0 0
    %2390 = vmatprep.subr.bf16.mxu0 0
    %2391 = vmatpush1.bf16.msra.mxu0 0
    %2392 = vmatprep.subr.bf16.mxu0 0
    %2393 = vmatpush1.bf16.msra.mxu0 0
    %2394 = vmatprep.subr.bf16.mxu0 0
    %2395 = vmatpush1.bf16.msra.mxu0 0
    %2396 = vmatprep.subr.bf16.mxu0 0
    %2397 = vmatpush1.bf16.msra.mxu0 0
    %2398 = vmatprep.mubr.bf16.mxu0 0
    %2399 = vmatmul.mubr.bf16.gmra.mrb[0].mxu0 %v2364
    %v2400 = vpop.f32.mrb[0].mxu0
    %v2401 = vadd.f32 0.0, %v2400
    %v2402 = vpop.f32.mrb[0].mxu0
    %v2403 = vpop.f32.mrb[0].mxu0
    %v2404 = vpop.f32.mrb[0].mxu0
    %2405 = vdwg.mxu0
    %v2406 = vmul.f32 %v1816, %v2401
    %v2407 = vadd.f32 %v2264, %v2406
    %v2408 = vadd.f32 %v2407, %v1821
    %v2409 = vtanh.pop %v2408
    %v2410 = vmul.f32 %v2313, 2.0
    %v2411 = vadd.f32 %v2265, %v2410
    %v2412 = vmul.f32 %v2361, 2.0
    %v2413 = vadd.f32 %v2411, %v2412
    %v2414 = vadd.f32 %v2413, %v2409
    %v2415 = vadd.f32 %v2217, %v2414
    %v2416 = vpack.c.bf16 %v2415, %v2415
    %v2418 = vsel %vm208, %v2416, 0
    %2420 = vmatprep.subr.bf16.mxu0 0
    %2421 = vmatpush1.bf16.msra.mxu0 %v927
    %2422 = vmatprep.subr.bf16.mxu0 0
    %2423 = vmatpush1.bf16.msra.mxu0 %v928
    %2424 = vmatprep.subr.bf16.mxu0 0
    %2425 = vmatpush1.bf16.msra.mxu0 0
    %2426 = vmatprep.subr.bf16.mxu0 0
    %2427 = vmatpush1.bf16.msra.mxu0 0
    %2428 = vmatprep.subr.bf16.mxu0 0
    %2429 = vmatpush1.bf16.msra.mxu0 0
    %2430 = vmatprep.subr.bf16.mxu0 0
    %2431 = vmatpush1.bf16.msra.mxu0 0
    %2432 = vmatprep.subr.bf16.mxu0 0
    %2433 = vmatpush1.bf16.msra.mxu0 0
    %2434 = vmatprep.subr.bf16.mxu0 0
    %2435 = vmatpush1.bf16.msra.mxu0 0
    %2436 = vmatprep.subr.bf16.mxu0 0
    %2437 = vmatpush1.bf16.msra.mxu0 0
    %2438 = vmatprep.subr.bf16.mxu0 0
    %2439 = vmatpush1.bf16.msra.mxu0 0
    %2440 = vmatprep.subr.bf16.mxu0 0
    %2441 = vmatpush1.bf16.msra.mxu0 0
    %2442 = vmatprep.subr.bf16.mxu0 0
    %2443 = vmatpush1.bf16.msra.mxu0 0
    %2444 = vmatprep.subr.bf16.mxu0 0
    %2445 = vmatpush1.bf16.msra.mxu0 0
    %2446 = vmatprep.subr.bf16.mxu0 0
    %2447 = vmatpush1.bf16.msra.mxu0 0
    %2448 = vmatprep.subr.bf16.mxu0 0
    %2449 = vmatpush1.bf16.msra.mxu0 0
    %2450 = vmatprep.subr.bf16.mxu0 0
    %2451 = vmatpush1.bf16.msra.mxu0 0
    %2452 = vmatprep.mubr.bf16.mxu0 0
    %2453 = vmatmul.mubr.bf16.gmra.mrb[0].mxu0 %v2418
    %v2454 = vpop.f32.mrb[0].mxu0
    %v2455 = vadd.f32 0.0, %v2454
    %v2456 = vpop.f32.mrb[0].mxu0
    %v2457 = vpop.f32.mrb[0].mxu0
    %v2458 = vpop.f32.mrb[0].mxu0
    %2459 = vdwg.mxu0
    %v2460 = vmul.f32 %v1819, %v2455
    %2462 = vrot.lane.b32.xlu0 %v2460, 64
    %v2463 = vpop.permute.xlu0 %2462
    %v2465 = vadd.f32 %v1809, %v2463
    %v2466 = vmul.f32 %v1816, %v984
    %2468 = vrot.lane.b32.xlu0 %v2466, 64
    %v2469 = vpop.permute.xlu0 %2468
    %v2471 = vadd.f32 %v2465, %v2469
    %2473 = vrot.lane.b32.xlu0 %v2471, 64
    %v2474 = vpop.permute.xlu0 %2473
    %2476 = vst.msk [vmem:[#allocation3 + $0x10] sm:$0xff] %vm208, %v2474
    %v2477 = vld [vmem:[#allocation2 + $0x18] sm:$0xff]
    %v2478 = vpack.c.bf16 %v2471, %v2471
    %2480 = vrot.lane.b32.xlu0 %v2478, 64
    %v2481 = vpop.permute.xlu0 %2480
    %v2483 = vsel %vm208, %v2481, 0
    %2485 = vmatprep.subr.bf16.mxu0 0
    %2486 = vmatpush1.bf16.msra.mxu0 %v204
    %2487 = vmatprep.subr.bf16.mxu0 0
    %2488 = vmatpush1.bf16.msra.mxu0 %v205
    %2489 = vmatprep.subr.bf16.mxu0 0
    %2490 = vmatpush1.bf16.msra.mxu0 0
    %2491 = vmatprep.subr.bf16.mxu0 0
    %2492 = vmatpush1.bf16.msra.mxu0 0
    %2493 = vmatprep.subr.bf16.mxu0 0
    %2494 = vmatpush1.bf16.msra.mxu0 0
    %2495 = vmatprep.subr.bf16.mxu0 0
    %2496 = vmatpush1.bf16.msra.mxu0 0
    %2497 = vmatprep.subr.bf16.mxu0 0
    %2498 = vmatpush1.bf16.msra.mxu0 0
    %2499 = vmatprep.subr.bf16.mxu0 0
    %2500 = vmatpush1.bf16.msra.mxu0 0
    %2501 = vmatprep.subr.bf16.mxu0 0
    %2502 = vmatpush1.bf16.msra.mxu0 0
    %2503 = vmatprep.subr.bf16.mxu0 0
    %2504 = vmatpush1.bf16.msra.mxu0 0
    %2505 = vmatprep.subr.bf16.mxu0 0
    %2506 = vmatpush1.bf16.msra.mxu0 0
    %2507 = vmatprep.subr.bf16.mxu0 0
    %2508 = vmatpush1.bf16.msra.mxu0 0
    %2509 = vmatprep.subr.bf16.mxu0 0
    %2510 = vmatpush1.bf16.msra.mxu0 0
    %2511 = vmatprep.subr.bf16.mxu0 0
    %2512 = vmatpush1.bf16.msra.mxu0 0
    %2513 = vmatprep.subr.bf16.mxu0 0
    %2514 = vmatpush1.bf16.msra.mxu0 0
    %2515 = vmatprep.subr.bf16.mxu0 0
    %2516 = vmatpush1.bf16.msra.mxu0 0
    %2517 = vmatprep.mubr.bf16.mxu0 0
    %2518 = vmatmul.mubr.bf16.gmra.mrb[0].mxu0 %v2483
    %v2519 = vpop.f32.mrb[0].mxu0
    %v2520 = vadd.f32 0.0, %v2519
    %v2521 = vpop.f32.mrb[0].mxu0
    %v2522 = vpop.f32.mrb[0].mxu0
    %v2523 = vpop.f32.mrb[0].mxu0
    %2524 = vdwg.mxu0
    %v2525 = vadd.f32 %v2477, %v2520
    %v2526 = vxor.u32 %v2525, 2147483648
    %v2527 = vmul.f32 %v2526, 1.442695
    %v2528 = vpow.pop %v2527
    %v2529 = vadd.f32 %v2528, 1.0
    %v2530 = vrcp.pop %v2529
    %v2531 = vmul.f32 1.0, %v2530
    %v2532 = vtanh.pop %v2525
    %v2533 = vmul.f32 %v2531, %v1803
    %2535 = vrot.lane.b32.xlu0 %v2532, 32
    %v2536 = vpop.permute.xlu0 %2535
    %v2538 = vmul.f32 %v2531, %v2536
    %2540 = vrot.lane.b32.xlu0 %v2538, 32
    %v2541 = vpop.permute.xlu0 %2540
    %v2543 = vadd.f32 %v2533, %v2541
    %v2544 = vtanh.pop %v2543
    %2546 = vrot.lane.b32.xlu0 %v2544, 32
    %v2547 = vpop.permute.xlu0 %2546
    %v2549 = vmul.f32 %v2531, %v2547
    %s2550 = scalar_lea.vmem %s1, 24
    %v2551 = vld [vmem:[%s2550] sm:$0xff]
    %v2552 = vmul.f32 %v2551, 0.33333334
    %2554 = vset.pattern.permute.xlu0 0
    %2555 = vperm.xlu0 %2554, %v2552
    %v2556 = vpop.permute.xlu0 %2555
    %v2558 = vmul.f32 %v2556, 0.5
    %v2559 = vmul.f32 %v2556, 0.16666667
    %v2560 = vmul.f32 %v2558, %v290
    %v2561 = vmul.f32 %v2556, %v290
    %v2562 = vpack.c.bf16 %v2549, %v2549
    %2564 = vrot.lane.b32.xlu0 %v2562, 64
    %v2565 = vpop.permute.xlu0 %2564
    %v2567 = vsel %vm208, %v2565, 0
    %2569 = vmatprep.subr.bf16.mxu0 0
    %2570 = vmatpush1.bf16.msra.mxu0 %v312
    %2571 = vmatprep.subr.bf16.mxu0 0
    %2572 = vmatpush1.bf16.msra.mxu0 %v313
    %2573 = vmatprep.subr.bf16.mxu0 0
    %2574 = vmatpush1.bf16.msra.mxu0 0
    %2575 = vmatprep.subr.bf16.mxu0 0
    %2576 = vmatpush1.bf16.msra.mxu0 0
    %2577 = vmatprep.subr.bf16.mxu0 0
    %2578 = vmatpush1.bf16.msra.mxu0 0
    %2579 = vmatprep.subr.bf16.mxu0 0
    %2580 = vmatpush1.bf16.msra.mxu0 0
    %2581 = vmatprep.subr.bf16.mxu0 0
    %2582 = vmatpush1.bf16.msra.mxu0 0
    %2583 = vmatprep.subr.bf16.mxu0 0
    %2584 = vmatpush1.bf16.msra.mxu0 0
    %2585 = vmatprep.subr.bf16.mxu0 0
    %2586 = vmatpush1.bf16.msra.mxu0 0
    %2587 = vmatprep.subr.bf16.mxu0 0
    %2588 = vmatpush1.bf16.msra.mxu0 0
    %2589 = vmatprep.subr.bf16.mxu0 0
    %2590 = vmatpush1.bf16.msra.mxu0 0
    %2591 = vmatprep.subr.bf16.mxu0 0
    %2592 = vmatpush1.bf16.msra.mxu0 0
    %2593 = vmatprep.subr.bf16.mxu0 0
    %2594 = vmatpush1.bf16.msra.mxu0 0
    %2595 = vmatprep.subr.bf16.mxu0 0
    %2596 = vmatpush1.bf16.msra.mxu0 0
    %2597 = vmatprep.subr.bf16.mxu0 0
    %2598 = vmatpush1.bf16.msra.mxu0 0
    %2599 = vmatprep.subr.bf16.mxu0 0
    %2600 = vmatpush1.bf16.msra.mxu0 0
    %2601 = vmatprep.mubr.bf16.mxu0 0
    %2602 = vmatmul.mubr.bf16.gmra.mrb[0].mxu0 %v2567
    %v2603 = vpop.f32.mrb[0].mxu0
    %v2604 = vadd.f32 %v299, %v2603
    %v2605 = vpop.f32.mrb[0].mxu0
    %v2606 = vpop.f32.mrb[0].mxu0
    %v2607 = vpop.f32.mrb[0].mxu0
    %2608 = vdwg.mxu0
    %v2609 = vtanh.pop %v2604
    %v2610 = vpack.c.bf16 %v2609, %v2609
    %v2612 = vsel %vm208, %v2610, 0
    %2614 = vmatprep.subr.bf16.mxu0 0
    %2615 = vmatpush1.bf16.msra.mxu0 %v369
    %2616 = vmatprep.subr.bf16.mxu0 0
    %2617 = vmatpush1.bf16.msra.mxu0 %v370
    %2618 = vmatprep.subr.bf16.mxu0 0
    %2619 = vmatpush1.bf16.msra.mxu0 0
    %2620 = vmatprep.subr.bf16.mxu0 0
    %2621 = vmatpush1.bf16.msra.mxu0 0
    %2622 = vmatprep.subr.bf16.mxu0 0
    %2623 = vmatpush1.bf16.msra.mxu0 0
    %2624 = vmatprep.subr.bf16.mxu0 0
    %2625 = vmatpush1.bf16.msra.mxu0 0
    %2626 = vmatprep.subr.bf16.mxu0 0
    %2627 = vmatpush1.bf16.msra.mxu0 0
    %2628 = vmatprep.subr.bf16.mxu0 0
    %2629 = vmatpush1.bf16.msra.mxu0 0
    %2630 = vmatprep.subr.bf16.mxu0 0
    %2631 = vmatpush1.bf16.msra.mxu0 0
    %2632 = vmatprep.subr.bf16.mxu0 0
    %2633 = vmatpush1.bf16.msra.mxu0 0
    %2634 = vmatprep.subr.bf16.mxu0 0
    %2635 = vmatpush1.bf16.msra.mxu0 0
    %2636 = vmatprep.subr.bf16.mxu0 0
    %2637 = vmatpush1.bf16.msra.mxu0 0
    %2638 = vmatprep.subr.bf16.mxu0 0
    %2639 = vmatpush1.bf16.msra.mxu0 0
    %2640 = vmatprep.subr.bf16.mxu0 0
    %2641 = vmatpush1.bf16.msra.mxu0 0
    %2642 = vmatprep.subr.bf16.mxu0 0
    %2643 = vmatpush1.bf16.msra.mxu0 0
    %2644 = vmatprep.subr.bf16.mxu0 0
    %2645 = vmatpush1.bf16.msra.mxu0 0
    %2646 = vmatprep.mubr.bf16.mxu0 0
    %2647 = vmatmul.mubr.bf16.gmra.mrb[0].mxu0 %v2612
    %v2648 = vpop.f32.mrb[0].mxu0
    %v2649 = vadd.f32 0.0, %v2648
    %v2650 = vpop.f32.mrb[0].mxu0
    %v2651 = vpop.f32.mrb[0].mxu0
    %v2652 = vpop.f32.mrb[0].mxu0
    %2653 = vdwg.mxu0
    %v2654 = vmul.f32 %v2558, %v2649
    %v2655 = vadd.f32 %v2604, %v2654
    %v2656 = vadd.f32 %v2655, %v2560
    %v2657 = vtanh.pop %v2656
    %v2658 = vpack.c.bf16 %v2657, %v2657
    %v2660 = vsel %vm208, %v2658, 0
    %2662 = vmatprep.subr.bf16.mxu0 0
    %2663 = vmatpush1.bf16.msra.mxu0 %v369
    %2664 = vmatprep.subr.bf16.mxu0 0
    %2665 = vmatpush1.bf16.msra.mxu0 %v370
    %2666 = vmatprep.subr.bf16.mxu0 0
    %2667 = vmatpush1.bf16.msra.mxu0 0
    %2668 = vmatprep.subr.bf16.mxu0 0
    %2669 = vmatpush1.bf16.msra.mxu0 0
    %2670 = vmatprep.subr.bf16.mxu0 0
    %2671 = vmatpush1.bf16.msra.mxu0 0
    %2672 = vmatprep.subr.bf16.mxu0 0
    %2673 = vmatpush1.bf16.msra.mxu0 0
    %2674 = vmatprep.subr.bf16.mxu0 0
    %2675 = vmatpush1.bf16.msra.mxu0 0
    %2676 = vmatprep.subr.bf16.mxu0 0
    %2677 = vmatpush1.bf16.msra.mxu0 0
    %2678 = vmatprep.subr.bf16.mxu0 0
    %2679 = vmatpush1.bf16.msra.mxu0 0
    %2680 = vmatprep.subr.bf16.mxu0 0
    %2681 = vmatpush1.bf16.msra.mxu0 0
    %2682 = vmatprep.subr.bf16.mxu0 0
    %2683 = vmatpush1.bf16.msra.mxu0 0
    %2684 = vmatprep.subr.bf16.mxu0 0
    %2685 = vmatpush1.bf16.msra.mxu0 0
    %2686 = vmatprep.subr.bf16.mxu0 0
    %2687 = vmatpush1.bf16.msra.mxu0 0
    %2688 = vmatprep.subr.bf16.mxu0 0
    %2689 = vmatpush1.bf16.msra.mxu0 0
    %2690 = vmatprep.subr.bf16.mxu0 0
    %2691 = vmatpush1.bf16.msra.mxu0 0
    %2692 = vmatprep.subr.bf16.mxu0 0
    %2693 = vmatpush1.bf16.msra.mxu0 0
    %2694 = vmatprep.mubr.bf16.mxu0 0
    %2695 = vmatmul.mubr.bf16.gmra.mrb[0].mxu0 %v2660
    %v2696 = vpop.f32.mrb[0].mxu0
    %v2697 = vadd.f32 0.0, %v2696
    %v2698 = vpop.f32.mrb[0].mxu0
    %v2699 = vpop.f32.mrb[0].mxu0
    %v2700 = vpop.f32.mrb[0].mxu0
    %2701 = vdwg.mxu0
    %v2702 = vmul.f32 %v2558, %v2697
    %v2703 = vadd.f32 %v2604, %v2702
    %v2704 = vadd.f32 %v2703, %v2560
    %v2705 = vtanh.pop %v2704
    %v2706 = vpack.c.bf16 %v2705, %v2705
    %v2708 = vsel %vm208, %v2706, 0
    %2710 = vmatprep.subr.bf16.mxu0 0
    %2711 = vmatpush1.bf16.msra.mxu0 %v369
    %2712 = vmatprep.subr.bf16.mxu0 0
    %2713 = vmatpush1.bf16.msra.mxu0 %v370
    %2714 = vmatprep.subr.bf16.mxu0 0
    %2715 = vmatpush1.bf16.msra.mxu0 0
    %2716 = vmatprep.subr.bf16.mxu0 0
    %2717 = vmatpush1.bf16.msra.mxu0 0
    %2718 = vmatprep.subr.bf16.mxu0 0
    %2719 = vmatpush1.bf16.msra.mxu0 0
    %2720 = vmatprep.subr.bf16.mxu0 0
    %2721 = vmatpush1.bf16.msra.mxu0 0
    %2722 = vmatprep.subr.bf16.mxu0 0
    %2723 = vmatpush1.bf16.msra.mxu0 0
    %2724 = vmatprep.subr.bf16.mxu0 0
    %2725 = vmatpush1.bf16.msra.mxu0 0
    %2726 = vmatprep.subr.bf16.mxu0 0
    %2727 = vmatpush1.bf16.msra.mxu0 0
    %2728 = vmatprep.subr.bf16.mxu0 0
    %2729 = vmatpush1.bf16.msra.mxu0 0
    %2730 = vmatprep.subr.bf16.mxu0 0
    %2731 = vmatpush1.bf16.msra.mxu0 0
    %2732 = vmatprep.subr.bf16.mxu0 0
    %2733 = vmatpush1.bf16.msra.mxu0 0
    %2734 = vmatprep.subr.bf16.mxu0 0
    %2735 = vmatpush1.bf16.msra.mxu0 0
    %2736 = vmatprep.subr.bf16.mxu0 0
    %2737 = vmatpush1.bf16.msra.mxu0 0
    %2738 = vmatprep.subr.bf16.mxu0 0
    %2739 = vmatpush1.bf16.msra.mxu0 0
    %2740 = vmatprep.subr.bf16.mxu0 0
    %2741 = vmatpush1.bf16.msra.mxu0 0
    %2742 = vmatprep.mubr.bf16.mxu0 0
    %2743 = vmatmul.mubr.bf16.gmra.mrb[0].mxu0 %v2708
    %v2744 = vpop.f32.mrb[0].mxu0
    %v2745 = vadd.f32 0.0, %v2744
    %v2746 = vpop.f32.mrb[0].mxu0
    %v2747 = vpop.f32.mrb[0].mxu0
    %v2748 = vpop.f32.mrb[0].mxu0
    %2749 = vdwg.mxu0
    %v2750 = vmul.f32 %v2556, %v2745
    %v2751 = vadd.f32 %v2604, %v2750
    %v2752 = vadd.f32 %v2751, %v2561
    %v2753 = vtanh.pop %v2752
    %v2754 = vmul.f32 %v2657, 2.0
    %v2755 = vadd.f32 %v2609, %v2754
    %v2756 = vmul.f32 %v2705, 2.0
    %v2757 = vadd.f32 %v2755, %v2756
    %v2758 = vadd.f32 %v2757, %v2753
    %v2759 = vadd.f32 %v2758, 0.0
    %v2760 = vpack.c.bf16 %v2758, %v2758
    %v2762 = vsel %vm208, %v2760, 0
    %2764 = vmatprep.subr.bf16.mxu0 0
    %2765 = vmatpush1.bf16.msra.mxu0 %v369
    %2766 = vmatprep.subr.bf16.mxu0 0
    %2767 = vmatpush1.bf16.msra.mxu0 %v370
    %2768 = vmatprep.subr.bf16.mxu0 0
    %2769 = vmatpush1.bf16.msra.mxu0 0
    %2770 = vmatprep.subr.bf16.mxu0 0
    %2771 = vmatpush1.bf16.msra.mxu0 0
    %2772 = vmatprep.subr.bf16.mxu0 0
    %2773 = vmatpush1.bf16.msra.mxu0 0
    %2774 = vmatprep.subr.bf16.mxu0 0
    %2775 = vmatpush1.bf16.msra.mxu0 0
    %2776 = vmatprep.subr.bf16.mxu0 0
    %2777 = vmatpush1.bf16.msra.mxu0 0
    %2778 = vmatprep.subr.bf16.mxu0 0
    %2779 = vmatpush1.bf16.msra.mxu0 0
    %2780 = vmatprep.subr.bf16.mxu0 0
    %2781 = vmatpush1.bf16.msra.mxu0 0
    %2782 = vmatprep.subr.bf16.mxu0 0
    %2783 = vmatpush1.bf16.msra.mxu0 0
    %2784 = vmatprep.subr.bf16.mxu0 0
    %2785 = vmatpush1.bf16.msra.mxu0 0
    %2786 = vmatprep.subr.bf16.mxu0 0
    %2787 = vmatpush1.bf16.msra.mxu0 0
    %2788 = vmatprep.subr.bf16.mxu0 0
    %2789 = vmatpush1.bf16.msra.mxu0 0
    %2790 = vmatprep.subr.bf16.mxu0 0
    %2791 = vmatpush1.bf16.msra.mxu0 0
    %2792 = vmatprep.subr.bf16.mxu0 0
    %2793 = vmatpush1.bf16.msra.mxu0 0
    %2794 = vmatprep.subr.bf16.mxu0 0
    %2795 = vmatpush1.bf16.msra.mxu0 0
    %2796 = vmatprep.mubr.bf16.mxu0 0
    %2797 = vmatmul.mubr.bf16.gmra.mrb[0].mxu0 %v2762
    %v2798 = vpop.f32.mrb[0].mxu0
    %v2799 = vadd.f32 0.0, %v2798
    %v2800 = vpop.f32.mrb[0].mxu0
    %v2801 = vpop.f32.mrb[0].mxu0
    %v2802 = vpop.f32.mrb[0].mxu0
    %2803 = vdwg.mxu0
    %v2804 = vmul.f32 %v2559, %v2799
    %v2805 = vadd.f32 %v2604, %v2804
    %v2806 = vadd.f32 %v2805, %v2561
    %v2807 = vtanh.pop %v2806
    %v2808 = vpack.c.bf16 %v2807, %v2807
    %v2810 = vsel %vm208, %v2808, 0
    %2812 = vmatprep.subr.bf16.mxu0 0
    %2813 = vmatpush1.bf16.msra.mxu0 %v369
    %2814 = vmatprep.subr.bf16.mxu0 0
    %2815 = vmatpush1.bf16.msra.mxu0 %v370
    %2816 = vmatprep.subr.bf16.mxu0 0
    %2817 = vmatpush1.bf16.msra.mxu0 0
    %2818 = vmatprep.subr.bf16.mxu0 0
    %2819 = vmatpush1.bf16.msra.mxu0 0
    %2820 = vmatprep.subr.bf16.mxu0 0
    %2821 = vmatpush1.bf16.msra.mxu0 0
    %2822 = vmatprep.subr.bf16.mxu0 0
    %2823 = vmatpush1.bf16.msra.mxu0 0
    %2824 = vmatprep.subr.bf16.mxu0 0
    %2825 = vmatpush1.bf16.msra.mxu0 0
    %2826 = vmatprep.subr.bf16.mxu0 0
    %2827 = vmatpush1.bf16.msra.mxu0 0
    %2828 = vmatprep.subr.bf16.mxu0 0
    %2829 = vmatpush1.bf16.msra.mxu0 0
    %2830 = vmatprep.subr.bf16.mxu0 0
    %2831 = vmatpush1.bf16.msra.mxu0 0
    %2832 = vmatprep.subr.bf16.mxu0 0
    %2833 = vmatpush1.bf16.msra.mxu0 0
    %2834 = vmatprep.subr.bf16.mxu0 0
    %2835 = vmatpush1.bf16.msra.mxu0 0
    %2836 = vmatprep.subr.bf16.mxu0 0
    %2837 = vmatpush1.bf16.msra.mxu0 0
    %2838 = vmatprep.subr.bf16.mxu0 0
    %2839 = vmatpush1.bf16.msra.mxu0 0
    %2840 = vmatprep.subr.bf16.mxu0 0
    %2841 = vmatpush1.bf16.msra.mxu0 0
    %2842 = vmatprep.subr.bf16.mxu0 0
    %2843 = vmatpush1.bf16.msra.mxu0 0
    %2844 = vmatprep.mubr.bf16.mxu0 0
    %2845 = vmatmul.mubr.bf16.gmra.mrb[0].mxu0 %v2810
    %v2846 = vpop.f32.mrb[0].mxu0
    %v2847 = vadd.f32 0.0, %v2846
    %v2848 = vpop.f32.mrb[0].mxu0
    %v2849 = vpop.f32.mrb[0].mxu0
    %v2850 = vpop.f32.mrb[0].mxu0
    %2851 = vdwg.mxu0
    %v2852 = vmul.f32 %v2558, %v2847
    %v2853 = vadd.f32 %v2806, %v2852
    %v2854 = vadd.f32 %v2853, %v2560
    %v2855 = vtanh.pop %v2854
    %v2856 = vpack.c.bf16 %v2855, %v2855
    %v2858 = vsel %vm208, %v2856, 0
    %2860 = vmatprep.subr.bf16.mxu0 0
    %2861 = vmatpush1.bf16.msra.mxu0 %v369
    %2862 = vmatprep.subr.bf16.mxu0 0
    %2863 = vmatpush1.bf16.msra.mxu0 %v370
    %2864 = vmatprep.subr.bf16.mxu0 0
    %2865 = vmatpush1.bf16.msra.mxu0 0
    %2866 = vmatprep.subr.bf16.mxu0 0
    %2867 = vmatpush1.bf16.msra.mxu0 0
    %2868 = vmatprep.subr.bf16.mxu0 0
    %2869 = vmatpush1.bf16.msra.mxu0 0
    %2870 = vmatprep.subr.bf16.mxu0 0
    %2871 = vmatpush1.bf16.msra.mxu0 0
    %2872 = vmatprep.subr.bf16.mxu0 0
    %2873 = vmatpush1.bf16.msra.mxu0 0
    %2874 = vmatprep.subr.bf16.mxu0 0
    %2875 = vmatpush1.bf16.msra.mxu0 0
    %2876 = vmatprep.subr.bf16.mxu0 0
    %2877 = vmatpush1.bf16.msra.mxu0 0
    %2878 = vmatprep.subr.bf16.mxu0 0
    %2879 = vmatpush1.bf16.msra.mxu0 0
    %2880 = vmatprep.subr.bf16.mxu0 0
    %2881 = vmatpush1.bf16.msra.mxu0 0
    %2882 = vmatprep.subr.bf16.mxu0 0
    %2883 = vmatpush1.bf16.msra.mxu0 0
    %2884 = vmatprep.subr.bf16.mxu0 0
    %2885 = vmatpush1.bf16.msra.mxu0 0
    %2886 = vmatprep.subr.bf16.mxu0 0
    %2887 = vmatpush1.bf16.msra.mxu0 0
    %2888 = vmatprep.subr.bf16.mxu0 0
    %2889 = vmatpush1.bf16.msra.mxu0 0
    %2890 = vmatprep.subr.bf16.mxu0 0
    %2891 = vmatpush1.bf16.msra.mxu0 0
    %2892 = vmatprep.mubr.bf16.mxu0 0
    %2893 = vmatmul.mubr.bf16.gmra.mrb[0].mxu0 %v2858
    %v2894 = vpop.f32.mrb[0].mxu0
    %v2895 = vadd.f32 0.0, %v2894
    %v2896 = vpop.f32.mrb[0].mxu0
    %v2897 = vpop.f32.mrb[0].mxu0
    %v2898 = vpop.f32.mrb[0].mxu0
    %2899 = vdwg.mxu0
    %v2900 = vmul.f32 %v2558, %v2895
    %v2901 = vadd.f32 %v2806, %v2900
    %v2902 = vadd.f32 %v2901, %v2560
    %v2903 = vtanh.pop %v2902
    %v2904 = vpack.c.bf16 %v2903, %v2903
    %v2906 = vsel %vm208, %v2904, 0
    %2908 = vmatprep.subr.bf16.mxu0 0
    %2909 = vmatpush1.bf16.msra.mxu0 %v369
    %2910 = vmatprep.subr.bf16.mxu0 0
    %2911 = vmatpush1.bf16.msra.mxu0 %v370
    %2912 = vmatprep.subr.bf16.mxu0 0
    %2913 = vmatpush1.bf16.msra.mxu0 0
    %2914 = vmatprep.subr.bf16.mxu0 0
    %2915 = vmatpush1.bf16.msra.mxu0 0
    %2916 = vmatprep.subr.bf16.mxu0 0
    %2917 = vmatpush1.bf16.msra.mxu0 0
    %2918 = vmatprep.subr.bf16.mxu0 0
    %2919 = vmatpush1.bf16.msra.mxu0 0
    %2920 = vmatprep.subr.bf16.mxu0 0
    %2921 = vmatpush1.bf16.msra.mxu0 0
    %2922 = vmatprep.subr.bf16.mxu0 0
    %2923 = vmatpush1.bf16.msra.mxu0 0
    %2924 = vmatprep.subr.bf16.mxu0 0
    %2925 = vmatpush1.bf16.msra.mxu0 0
    %2926 = vmatprep.subr.bf16.mxu0 0
    %2927 = vmatpush1.bf16.msra.mxu0 0
    %2928 = vmatprep.subr.bf16.mxu0 0
    %2929 = vmatpush1.bf16.msra.mxu0 0
    %2930 = vmatprep.subr.bf16.mxu0 0
    %2931 = vmatpush1.bf16.msra.mxu0 0
    %2932 = vmatprep.subr.bf16.mxu0 0
    %2933 = vmatpush1.bf16.msra.mxu0 0
    %2934 = vmatprep.subr.bf16.mxu0 0
    %2935 = vmatpush1.bf16.msra.mxu0 0
    %2936 = vmatprep.subr.bf16.mxu0 0
    %2937 = vmatpush1.bf16.msra.mxu0 0
    %2938 = vmatprep.subr.bf16.mxu0 0
    %2939 = vmatpush1.bf16.msra.mxu0 0
    %2940 = vmatprep.mubr.bf16.mxu0 0
    %2941 = vmatmul.mubr.bf16.gmra.mrb[0].mxu0 %v2906
    %v2942 = vpop.f32.mrb[0].mxu0
    %v2943 = vadd.f32 0.0, %v2942
    %v2944 = vpop.f32.mrb[0].mxu0
    %v2945 = vpop.f32.mrb[0].mxu0
    %v2946 = vpop.f32.mrb[0].mxu0
    %2947 = vdwg.mxu0
    %v2948 = vmul.f32 %v2556, %v2943
    %v2949 = vadd.f32 %v2806, %v2948
    %v2950 = vadd.f32 %v2949, %v2561
    %v2951 = vtanh.pop %v2950
    %v2952 = vmul.f32 %v2855, 2.0
    %v2953 = vadd.f32 %v2807, %v2952
    %v2954 = vmul.f32 %v2903, 2.0
    %v2955 = vadd.f32 %v2953, %v2954
    %v2956 = vadd.f32 %v2955, %v2951
    %v2957 = vadd.f32 %v2759, %v2956
    %v2958 = vpack.c.bf16 %v2956, %v2956
    %v2960 = vsel %vm208, %v2958, 0
    %2962 = vmatprep.subr.bf16.mxu0 0
    %2963 = vmatpush1.bf16.msra.mxu0 %v369
    %2964 = vmatprep.subr.bf16.mxu0 0
    %2965 = vmatpush1.bf16.msra.mxu0 %v370
    %2966 = vmatprep.subr.bf16.mxu0 0
    %2967 = vmatpush1.bf16.msra.mxu0 0
    %2968 = vmatprep.subr.bf16.mxu0 0
    %2969 = vmatpush1.bf16.msra.mxu0 0
    %2970 = vmatprep.subr.bf16.mxu0 0
    %2971 = vmatpush1.bf16.msra.mxu0 0
    %2972 = vmatprep.subr.bf16.mxu0 0
    %2973 = vmatpush1.bf16.msra.mxu0 0
    %2974 = vmatprep.subr.bf16.mxu0 0
    %2975 = vmatpush1.bf16.msra.mxu0 0
    %2976 = vmatprep.subr.bf16.mxu0 0
    %2977 = vmatpush1.bf16.msra.mxu0 0
    %2978 = vmatprep.subr.bf16.mxu0 0
    %2979 = vmatpush1.bf16.msra.mxu0 0
    %2980 = vmatprep.subr.bf16.mxu0 0
    %2981 = vmatpush1.bf16.msra.mxu0 0
    %2982 = vmatprep.subr.bf16.mxu0 0
    %2983 = vmatpush1.bf16.msra.mxu0 0
    %2984 = vmatprep.subr.bf16.mxu0 0
    %2985 = vmatpush1.bf16.msra.mxu0 0
    %2986 = vmatprep.subr.bf16.mxu0 0
    %2987 = vmatpush1.bf16.msra.mxu0 0
    %2988 = vmatprep.subr.bf16.mxu0 0
    %2989 = vmatpush1.bf16.msra.mxu0 0
    %2990 = vmatprep.subr.bf16.mxu0 0
    %2991 = vmatpush1.bf16.msra.mxu0 0
    %2992 = vmatprep.subr.bf16.mxu0 0
    %2993 = vmatpush1.bf16.msra.mxu0 0
    %2994 = vmatprep.mubr.bf16.mxu0 0
    %2995 = vmatmul.mubr.bf16.gmra.mrb[0].mxu0 %v2960
    %v2996 = vpop.f32.mrb[0].mxu0
    %v2997 = vadd.f32 0.0, %v2996
    %v2998 = vpop.f32.mrb[0].mxu0
    %v2999 = vpop.f32.mrb[0].mxu0
    %v3000 = vpop.f32.mrb[0].mxu0
    %3001 = vdwg.mxu0
    %v3002 = vmul.f32 %v2559, %v2997
    %v3003 = vadd.f32 %v2806, %v3002
    %v3004 = vadd.f32 %v3003, %v2561
    %v3005 = vtanh.pop %v3004
    %v3006 = vpack.c.bf16 %v3005, %v3005
    %v3008 = vsel %vm208, %v3006, 0
    %3010 = vmatprep.subr.bf16.mxu0 0
    %3011 = vmatpush1.bf16.msra.mxu0 %v369
    %3012 = vmatprep.subr.bf16.mxu0 0
    %3013 = vmatpush1.bf16.msra.mxu0 %v370
    %3014 = vmatprep.subr.bf16.mxu0 0
    %3015 = vmatpush1.bf16.msra.mxu0 0
    %3016 = vmatprep.subr.bf16.mxu0 0
    %3017 = vmatpush1.bf16.msra.mxu0 0
    %3018 = vmatprep.subr.bf16.mxu0 0
    %3019 = vmatpush1.bf16.msra.mxu0 0
    %3020 = vmatprep.subr.bf16.mxu0 0
    %3021 = vmatpush1.bf16.msra.mxu0 0
    %3022 = vmatprep.subr.bf16.mxu0 0
    %3023 = vmatpush1.bf16.msra.mxu0 0
    %3024 = vmatprep.subr.bf16.mxu0 0
    %3025 = vmatpush1.bf16.msra.mxu0 0
    %3026 = vmatprep.subr.bf16.mxu0 0
    %3027 = vmatpush1.bf16.msra.mxu0 0
    %3028 = vmatprep.subr.bf16.mxu0 0
    %3029 = vmatpush1.bf16.msra.mxu0 0
    %3030 = vmatprep.subr.bf16.mxu0 0
    %3031 = vmatpush1.bf16.msra.mxu0 0
    %3032 = vmatprep.subr.bf16.mxu0 0
    %3033 = vmatpush1.bf16.msra.mxu0 0
    %3034 = vmatprep.subr.bf16.mxu0 0
    %3035 = vmatpush1.bf16.msra.mxu0 0
    %3036 = vmatprep.subr.bf16.mxu0 0
    %3037 = vmatpush1.bf16.msra.mxu0 0
    %3038 = vmatprep.subr.bf16.mxu0 0
    %3039 = vmatpush1.bf16.msra.mxu0 0
    %3040 = vmatprep.subr.bf16.mxu0 0
    %3041 = vmatpush1.bf16.msra.mxu0 0
    %3042 = vmatprep.mubr.bf16.mxu0 0
    %3043 = vmatmul.mubr.bf16.gmra.mrb[0].mxu0 %v3008
    %v3044 = vpop.f32.mrb[0].mxu0
    %v3045 = vadd.f32 0.0, %v3044
    %v3046 = vpop.f32.mrb[0].mxu0
    %v3047 = vpop.f32.mrb[0].mxu0
    %v3048 = vpop.f32.mrb[0].mxu0
    %3049 = vdwg.mxu0
    %v3050 = vmul.f32 %v2558, %v3045
    %v3051 = vadd.f32 %v3004, %v3050
    %v3052 = vadd.f32 %v3051, %v2560
    %v3053 = vtanh.pop %v3052
    %v3054 = vpack.c.bf16 %v3053, %v3053
    %v3056 = vsel %vm208, %v3054, 0
    %3058 = vmatprep.subr.bf16.mxu0 0
    %3059 = vmatpush1.bf16.msra.mxu0 %v369
    %3060 = vmatprep.subr.bf16.mxu0 0
    %3061 = vmatpush1.bf16.msra.mxu0 %v370
    %3062 = vmatprep.subr.bf16.mxu0 0
    %3063 = vmatpush1.bf16.msra.mxu0 0
    %3064 = vmatprep.subr.bf16.mxu0 0
    %3065 = vmatpush1.bf16.msra.mxu0 0
    %3066 = vmatprep.subr.bf16.mxu0 0
    %3067 = vmatpush1.bf16.msra.mxu0 0
    %3068 = vmatprep.subr.bf16.mxu0 0
    %3069 = vmatpush1.bf16.msra.mxu0 0
    %3070 = vmatprep.subr.bf16.mxu0 0
    %3071 = vmatpush1.bf16.msra.mxu0 0
    %3072 = vmatprep.subr.bf16.mxu0 0
    %3073 = vmatpush1.bf16.msra.mxu0 0
    %3074 = vmatprep.subr.bf16.mxu0 0
    %3075 = vmatpush1.bf16.msra.mxu0 0
    %3076 = vmatprep.subr.bf16.mxu0 0
    %3077 = vmatpush1.bf16.msra.mxu0 0
    %3078 = vmatprep.subr.bf16.mxu0 0
    %3079 = vmatpush1.bf16.msra.mxu0 0
    %3080 = vmatprep.subr.bf16.mxu0 0
    %3081 = vmatpush1.bf16.msra.mxu0 0
    %3082 = vmatprep.subr.bf16.mxu0 0
    %3083 = vmatpush1.bf16.msra.mxu0 0
    %3084 = vmatprep.subr.bf16.mxu0 0
    %3085 = vmatpush1.bf16.msra.mxu0 0
    %3086 = vmatprep.subr.bf16.mxu0 0
    %3087 = vmatpush1.bf16.msra.mxu0 0
    %3088 = vmatprep.subr.bf16.mxu0 0
    %3089 = vmatpush1.bf16.msra.mxu0 0
    %3090 = vmatprep.mubr.bf16.mxu0 0
    %3091 = vmatmul.mubr.bf16.gmra.mrb[0].mxu0 %v3056
    %v3092 = vpop.f32.mrb[0].mxu0
    %v3093 = vadd.f32 0.0, %v3092
    %v3094 = vpop.f32.mrb[0].mxu0
    %v3095 = vpop.f32.mrb[0].mxu0
    %v3096 = vpop.f32.mrb[0].mxu0
    %3097 = vdwg.mxu0
    %v3098 = vmul.f32 %v2558, %v3093
    %v3099 = vadd.f32 %v3004, %v3098
    %v3100 = vadd.f32 %v3099, %v2560
    %v3101 = vtanh.pop %v3100
    %v3102 = vpack.c.bf16 %v3101, %v3101
    %v3104 = vsel %vm208, %v3102, 0
    %3106 = vmatprep.subr.bf16.mxu0 0
    %3107 = vmatpush1.bf16.msra.mxu0 %v369
    %3108 = vmatprep.subr.bf16.mxu0 0
    %3109 = vmatpush1.bf16.msra.mxu0 %v370
    %3110 = vmatprep.subr.bf16.mxu0 0
    %3111 = vmatpush1.bf16.msra.mxu0 0
    %3112 = vmatprep.subr.bf16.mxu0 0
    %3113 = vmatpush1.bf16.msra.mxu0 0
    %3114 = vmatprep.subr.bf16.mxu0 0
    %3115 = vmatpush1.bf16.msra.mxu0 0
    %3116 = vmatprep.subr.bf16.mxu0 0
    %3117 = vmatpush1.bf16.msra.mxu0 0
    %3118 = vmatprep.subr.bf16.mxu0 0
    %3119 = vmatpush1.bf16.msra.mxu0 0
    %3120 = vmatprep.subr.bf16.mxu0 0
    %3121 = vmatpush1.bf16.msra.mxu0 0
    %3122 = vmatprep.subr.bf16.mxu0 0
    %3123 = vmatpush1.bf16.msra.mxu0 0
    %3124 = vmatprep.subr.bf16.mxu0 0
    %3125 = vmatpush1.bf16.msra.mxu0 0
    %3126 = vmatprep.subr.bf16.mxu0 0
    %3127 = vmatpush1.bf16.msra.mxu0 0
    %3128 = vmatprep.subr.bf16.mxu0 0
    %3129 = vmatpush1.bf16.msra.mxu0 0
    %3130 = vmatprep.subr.bf16.mxu0 0
    %3131 = vmatpush1.bf16.msra.mxu0 0
    %3132 = vmatprep.subr.bf16.mxu0 0
    %3133 = vmatpush1.bf16.msra.mxu0 0
    %3134 = vmatprep.subr.bf16.mxu0 0
    %3135 = vmatpush1.bf16.msra.mxu0 0
    %3136 = vmatprep.subr.bf16.mxu0 0
    %3137 = vmatpush1.bf16.msra.mxu0 0
    %3138 = vmatprep.mubr.bf16.mxu0 0
    %3139 = vmatmul.mubr.bf16.gmra.mrb[0].mxu0 %v3104
    %v3140 = vpop.f32.mrb[0].mxu0
    %v3141 = vadd.f32 0.0, %v3140
    %v3142 = vpop.f32.mrb[0].mxu0
    %v3143 = vpop.f32.mrb[0].mxu0
    %v3144 = vpop.f32.mrb[0].mxu0
    %3145 = vdwg.mxu0
    %v3146 = vmul.f32 %v2556, %v3141
    %v3147 = vadd.f32 %v3004, %v3146
    %v3148 = vadd.f32 %v3147, %v2561
    %v3149 = vtanh.pop %v3148
    %v3150 = vmul.f32 %v3053, 2.0
    %v3151 = vadd.f32 %v3005, %v3150
    %v3152 = vmul.f32 %v3101, 2.0
    %v3153 = vadd.f32 %v3151, %v3152
    %v3154 = vadd.f32 %v3153, %v3149
    %v3155 = vadd.f32 %v2957, %v3154
    %v3156 = vpack.c.bf16 %v3155, %v3155
    %v3158 = vsel %vm208, %v3156, 0
    %3160 = vmatprep.subr.bf16.mxu0 0
    %3161 = vmatpush1.bf16.msra.mxu0 %v927
    %3162 = vmatprep.subr.bf16.mxu0 0
    %3163 = vmatpush1.bf16.msra.mxu0 %v928
    %3164 = vmatprep.subr.bf16.mxu0 0
    %3165 = vmatpush1.bf16.msra.mxu0 0
    %3166 = vmatprep.subr.bf16.mxu0 0
    %3167 = vmatpush1.bf16.msra.mxu0 0
    %3168 = vmatprep.subr.bf16.mxu0 0
    %3169 = vmatpush1.bf16.msra.mxu0 0
    %3170 = vmatprep.subr.bf16.mxu0 0
    %3171 = vmatpush1.bf16.msra.mxu0 0
    %3172 = vmatprep.subr.bf16.mxu0 0
    %3173 = vmatpush1.bf16.msra.mxu0 0
    %3174 = vmatprep.subr.bf16.mxu0 0
    %3175 = vmatpush1.bf16.msra.mxu0 0
    %3176 = vmatprep.subr.bf16.mxu0 0
    %3177 = vmatpush1.bf16.msra.mxu0 0
    %3178 = vmatprep.subr.bf16.mxu0 0
    %3179 = vmatpush1.bf16.msra.mxu0 0
    %3180 = vmatprep.subr.bf16.mxu0 0
    %3181 = vmatpush1.bf16.msra.mxu0 0
    %3182 = vmatprep.subr.bf16.mxu0 0
    %3183 = vmatpush1.bf16.msra.mxu0 0
    %3184 = vmatprep.subr.bf16.mxu0 0
    %3185 = vmatpush1.bf16.msra.mxu0 0
    %3186 = vmatprep.subr.bf16.mxu0 0
    %3187 = vmatpush1.bf16.msra.mxu0 0
    %3188 = vmatprep.subr.bf16.mxu0 0
    %3189 = vmatpush1.bf16.msra.mxu0 0
    %3190 = vmatprep.subr.bf16.mxu0 0
    %3191 = vmatpush1.bf16.msra.mxu0 0
    %3192 = vmatprep.mubr.bf16.mxu0 0
    %3193 = vmatmul.mubr.bf16.gmra.mrb[0].mxu0 %v3158
    %v3194 = vpop.f32.mrb[0].mxu0
    %v3195 = vadd.f32 0.0, %v3194
    %v3196 = vpop.f32.mrb[0].mxu0
    %v3197 = vpop.f32.mrb[0].mxu0
    %v3198 = vpop.f32.mrb[0].mxu0
    %3199 = vdwg.mxu0
    %v3200 = vmul.f32 %v2559, %v3195
    %3202 = vrot.lane.b32.xlu0 %v3200, 64
    %v3203 = vpop.permute.xlu0 %3202
    %v3205 = vadd.f32 %v2549, %v3203
    %v3206 = vmul.f32 %v2556, %v984
    %3208 = vrot.lane.b32.xlu0 %v3206, 64
    %v3209 = vpop.permute.xlu0 %3208
    %v3211 = vadd.f32 %v3205, %v3209
    %3213 = vrot.lane.b32.xlu0 %v3211, 64
    %v3214 = vpop.permute.xlu0 %3213
    %3216 = vst.msk [vmem:[#allocation3 + $0x18] sm:$0xff] %vm208, %v3214
    %v3217 = vld [vmem:[#allocation2 + $0x20] sm:$0xff]
    %v3218 = vpack.c.bf16 %v3211, %v3211
    %3220 = vrot.lane.b32.xlu0 %v3218, 64
    %v3221 = vpop.permute.xlu0 %3220
    %v3223 = vsel %vm208, %v3221, 0
    %3225 = vmatprep.subr.bf16.mxu0 0
    %3226 = vmatpush1.bf16.msra.mxu0 %v204
    %3227 = vmatprep.subr.bf16.mxu0 0
    %3228 = vmatpush1.bf16.msra.mxu0 %v205
    %3229 = vmatprep.subr.bf16.mxu0 0
    %3230 = vmatpush1.bf16.msra.mxu0 0
    %3231 = vmatprep.subr.bf16.mxu0 0
    %3232 = vmatpush1.bf16.msra.mxu0 0
    %3233 = vmatprep.subr.bf16.mxu0 0
    %3234 = vmatpush1.bf16.msra.mxu0 0
    %3235 = vmatprep.subr.bf16.mxu0 0
    %3236 = vmatpush1.bf16.msra.mxu0 0
    %3237 = vmatprep.subr.bf16.mxu0 0
    %3238 = vmatpush1.bf16.msra.mxu0 0
    %3239 = vmatprep.subr.bf16.mxu0 0
    %3240 = vmatpush1.bf16.msra.mxu0 0
    %3241 = vmatprep.subr.bf16.mxu0 0
    %3242 = vmatpush1.bf16.msra.mxu0 0
    %3243 = vmatprep.subr.bf16.mxu0 0
    %3244 = vmatpush1.bf16.msra.mxu0 0
    %3245 = vmatprep.subr.bf16.mxu0 0
    %3246 = vmatpush1.bf16.msra.mxu0 0
    %3247 = vmatprep.subr.bf16.mxu0 0
    %3248 = vmatpush1.bf16.msra.mxu0 0
    %3249 = vmatprep.subr.bf16.mxu0 0
    %3250 = vmatpush1.bf16.msra.mxu0 0
    %3251 = vmatprep.subr.bf16.mxu0 0
    %3252 = vmatpush1.bf16.msra.mxu0 0
    %3253 = vmatprep.subr.bf16.mxu0 0
    %3254 = vmatpush1.bf16.msra.mxu0 0
    %3255 = vmatprep.subr.bf16.mxu0 0
    %3256 = vmatpush1.bf16.msra.mxu0 0
    %3257 = vmatprep.mubr.bf16.mxu0 0
    %3258 = vmatmul.mubr.bf16.gmra.mrb[0].mxu0 %v3223
    %v3259 = vpop.f32.mrb[0].mxu0
    %v3260 = vadd.f32 0.0, %v3259
    %v3261 = vpop.f32.mrb[0].mxu0
    %v3262 = vpop.f32.mrb[0].mxu0
    %v3263 = vpop.f32.mrb[0].mxu0
    %3264 = vdwg.mxu0
    %v3265 = vadd.f32 %v3217, %v3260
    %v3266 = vxor.u32 %v3265, 2147483648
    %v3267 = vmul.f32 %v3266, 1.442695
    %v3268 = vpow.pop %v3267
    %v3269 = vadd.f32 %v3268, 1.0
    %v3270 = vrcp.pop %v3269
    %v3271 = vmul.f32 1.0, %v3270
    %v3272 = vtanh.pop %v3265
    %v3273 = vmul.f32 %v3271, %v2543
    %3275 = vrot.lane.b32.xlu0 %v3272, 32
    %v3276 = vpop.permute.xlu0 %3275
    %v3278 = vmul.f32 %v3271, %v3276
    %3280 = vrot.lane.b32.xlu0 %v3278, 32
    %v3281 = vpop.permute.xlu0 %3280
    %v3283 = vadd.f32 %v3273, %v3281
    %v3284 = vtanh.pop %v3283
    %3286 = vrot.lane.b32.xlu0 %v3284, 32
    %v3287 = vpop.permute.xlu0 %3286
    %v3289 = vmul.f32 %v3271, %v3287
    %s3290 = scalar_lea.vmem %s1, 32
    %v3291 = vld [vmem:[%s3290] sm:$0xff]
    %v3292 = vmul.f32 %v3291, 0.33333334
    %3294 = vset.pattern.permute.xlu0 0
    %3295 = vperm.xlu0 %3294, %v3292
    %v3296 = vpop.permute.xlu0 %3295
    %v3298 = vmul.f32 %v3296, 0.5
    %v3299 = vmul.f32 %v3296, 0.16666667
    %v3300 = vmul.f32 %v3298, %v290
    %v3301 = vmul.f32 %v3296, %v290
    %v3302 = vpack.c.bf16 %v3289, %v3289
    %3304 = vrot.lane.b32.xlu0 %v3302, 64
    %v3305 = vpop.permute.xlu0 %3304
    %v3307 = vsel %vm208, %v3305, 0
    %3309 = vmatprep.subr.bf16.mxu0 0
    %3310 = vmatpush1.bf16.msra.mxu0 %v312
    %3311 = vmatprep.subr.bf16.mxu0 0
    %3312 = vmatpush1.bf16.msra.mxu0 %v313
    %3313 = vmatprep.subr.bf16.mxu0 0
    %3314 = vmatpush1.bf16.msra.mxu0 0
    %3315 = vmatprep.subr.bf16.mxu0 0
    %3316 = vmatpush1.bf16.msra.mxu0 0
    %3317 = vmatprep.subr.bf16.mxu0 0
    %3318 = vmatpush1.bf16.msra.mxu0 0
    %3319 = vmatprep.subr.bf16.mxu0 0
    %3320 = vmatpush1.bf16.msra.mxu0 0
    %3321 = vmatprep.subr.bf16.mxu0 0
    %3322 = vmatpush1.bf16.msra.mxu0 0
    %3323 = vmatprep.subr.bf16.mxu0 0
    %3324 = vmatpush1.bf16.msra.mxu0 0
    %3325 = vmatprep.subr.bf16.mxu0 0
    %3326 = vmatpush1.bf16.msra.mxu0 0
    %3327 = vmatprep.subr.bf16.mxu0 0
    %3328 = vmatpush1.bf16.msra.mxu0 0
    %3329 = vmatprep.subr.bf16.mxu0 0
    %3330 = vmatpush1.bf16.msra.mxu0 0
    %3331 = vmatprep.subr.bf16.mxu0 0
    %3332 = vmatpush1.bf16.msra.mxu0 0
    %3333 = vmatprep.subr.bf16.mxu0 0
    %3334 = vmatpush1.bf16.msra.mxu0 0
    %3335 = vmatprep.subr.bf16.mxu0 0
    %3336 = vmatpush1.bf16.msra.mxu0 0
    %3337 = vmatprep.subr.bf16.mxu0 0
    %3338 = vmatpush1.bf16.msra.mxu0 0
    %3339 = vmatprep.subr.bf16.mxu0 0
    %3340 = vmatpush1.bf16.msra.mxu0 0
    %3341 = vmatprep.mubr.bf16.mxu0 0
    %3342 = vmatmul.mubr.bf16.gmra.mrb[0].mxu0 %v3307
    %v3343 = vpop.f32.mrb[0].mxu0
    %v3344 = vadd.f32 %v299, %v3343
    %v3345 = vpop.f32.mrb[0].mxu0
    %v3346 = vpop.f32.mrb[0].mxu0
    %v3347 = vpop.f32.mrb[0].mxu0
    %3348 = vdwg.mxu0
    %v3349 = vtanh.pop %v3344
    %v3350 = vpack.c.bf16 %v3349, %v3349
    %v3352 = vsel %vm208, %v3350, 0
    %3354 = vmatprep.subr.bf16.mxu0 0
    %3355 = vmatpush1.bf16.msra.mxu0 %v369
    %3356 = vmatprep.subr.bf16.mxu0 0
    %3357 = vmatpush1.bf16.msra.mxu0 %v370
    %3358 = vmatprep.subr.bf16.mxu0 0
    %3359 = vmatpush1.bf16.msra.mxu0 0
    %3360 = vmatprep.subr.bf16.mxu0 0
    %3361 = vmatpush1.bf16.msra.mxu0 0
    %3362 = vmatprep.subr.bf16.mxu0 0
    %3363 = vmatpush1.bf16.msra.mxu0 0
    %3364 = vmatprep.subr.bf16.mxu0 0
    %3365 = vmatpush1.bf16.msra.mxu0 0
    %3366 = vmatprep.subr.bf16.mxu0 0
    %3367 = vmatpush1.bf16.msra.mxu0 0
    %3368 = vmatprep.subr.bf16.mxu0 0
    %3369 = vmatpush1.bf16.msra.mxu0 0
    %3370 = vmatprep.subr.bf16.mxu0 0
    %3371 = vmatpush1.bf16.msra.mxu0 0
    %3372 = vmatprep.subr.bf16.mxu0 0
    %3373 = vmatpush1.bf16.msra.mxu0 0
    %3374 = vmatprep.subr.bf16.mxu0 0
    %3375 = vmatpush1.bf16.msra.mxu0 0
    %3376 = vmatprep.subr.bf16.mxu0 0
    %3377 = vmatpush1.bf16.msra.mxu0 0
    %3378 = vmatprep.subr.bf16.mxu0 0
    %3379 = vmatpush1.bf16.msra.mxu0 0
    %3380 = vmatprep.subr.bf16.mxu0 0
    %3381 = vmatpush1.bf16.msra.mxu0 0
    %3382 = vmatprep.subr.bf16.mxu0 0
    %3383 = vmatpush1.bf16.msra.mxu0 0
    %3384 = vmatprep.subr.bf16.mxu0 0
    %3385 = vmatpush1.bf16.msra.mxu0 0
    %3386 = vmatprep.mubr.bf16.mxu0 0
    %3387 = vmatmul.mubr.bf16.gmra.mrb[0].mxu0 %v3352
    %v3388 = vpop.f32.mrb[0].mxu0
    %v3389 = vadd.f32 0.0, %v3388
    %v3390 = vpop.f32.mrb[0].mxu0
    %v3391 = vpop.f32.mrb[0].mxu0
    %v3392 = vpop.f32.mrb[0].mxu0
    %3393 = vdwg.mxu0
    %v3394 = vmul.f32 %v3298, %v3389
    %v3395 = vadd.f32 %v3344, %v3394
    %v3396 = vadd.f32 %v3395, %v3300
    %v3397 = vtanh.pop %v3396
    %v3398 = vpack.c.bf16 %v3397, %v3397
    %v3400 = vsel %vm208, %v3398, 0
    %3402 = vmatprep.subr.bf16.mxu0 0
    %3403 = vmatpush1.bf16.msra.mxu0 %v369
    %3404 = vmatprep.subr.bf16.mxu0 0
    %3405 = vmatpush1.bf16.msra.mxu0 %v370
    %3406 = vmatprep.subr.bf16.mxu0 0
    %3407 = vmatpush1.bf16.msra.mxu0 0
    %3408 = vmatprep.subr.bf16.mxu0 0
    %3409 = vmatpush1.bf16.msra.mxu0 0
    %3410 = vmatprep.subr.bf16.mxu0 0
    %3411 = vmatpush1.bf16.msra.mxu0 0
    %3412 = vmatprep.subr.bf16.mxu0 0
    %3413 = vmatpush1.bf16.msra.mxu0 0
    %3414 = vmatprep.subr.bf16.mxu0 0
    %3415 = vmatpush1.bf16.msra.mxu0 0
    %3416 = vmatprep.subr.bf16.mxu0 0
    %3417 = vmatpush1.bf16.msra.mxu0 0
    %3418 = vmatprep.subr.bf16.mxu0 0
    %3419 = vmatpush1.bf16.msra.mxu0 0
    %3420 = vmatprep.subr.bf16.mxu0 0
    %3421 = vmatpush1.bf16.msra.mxu0 0
    %3422 = vmatprep.subr.bf16.mxu0 0
    %3423 = vmatpush1.bf16.msra.mxu0 0
    %3424 = vmatprep.subr.bf16.mxu0 0
    %3425 = vmatpush1.bf16.msra.mxu0 0
    %3426 = vmatprep.subr.bf16.mxu0 0
    %3427 = vmatpush1.bf16.msra.mxu0 0
    %3428 = vmatprep.subr.bf16.mxu0 0
    %3429 = vmatpush1.bf16.msra.mxu0 0
    %3430 = vmatprep.subr.bf16.mxu0 0
    %3431 = vmatpush1.bf16.msra.mxu0 0
    %3432 = vmatprep.subr.bf16.mxu0 0
    %3433 = vmatpush1.bf16.msra.mxu0 0
    %3434 = vmatprep.mubr.bf16.mxu0 0
    %3435 = vmatmul.mubr.bf16.gmra.mrb[0].mxu0 %v3400
    %v3436 = vpop.f32.mrb[0].mxu0
    %v3437 = vadd.f32 0.0, %v3436
    %v3438 = vpop.f32.mrb[0].mxu0
    %v3439 = vpop.f32.mrb[0].mxu0
    %v3440 = vpop.f32.mrb[0].mxu0
    %3441 = vdwg.mxu0
    %v3442 = vmul.f32 %v3298, %v3437
    %v3443 = vadd.f32 %v3344, %v3442
    %v3444 = vadd.f32 %v3443, %v3300
    %v3445 = vtanh.pop %v3444
    %v3446 = vpack.c.bf16 %v3445, %v3445
    %v3448 = vsel %vm208, %v3446, 0
    %3450 = vmatprep.subr.bf16.mxu0 0
    %3451 = vmatpush1.bf16.msra.mxu0 %v369
    %3452 = vmatprep.subr.bf16.mxu0 0
    %3453 = vmatpush1.bf16.msra.mxu0 %v370
    %3454 = vmatprep.subr.bf16.mxu0 0
    %3455 = vmatpush1.bf16.msra.mxu0 0
    %3456 = vmatprep.subr.bf16.mxu0 0
    %3457 = vmatpush1.bf16.msra.mxu0 0
    %3458 = vmatprep.subr.bf16.mxu0 0
    %3459 = vmatpush1.bf16.msra.mxu0 0
    %3460 = vmatprep.subr.bf16.mxu0 0
    %3461 = vmatpush1.bf16.msra.mxu0 0
    %3462 = vmatprep.subr.bf16.mxu0 0
    %3463 = vmatpush1.bf16.msra.mxu0 0
    %3464 = vmatprep.subr.bf16.mxu0 0
    %3465 = vmatpush1.bf16.msra.mxu0 0
    %3466 = vmatprep.subr.bf16.mxu0 0
    %3467 = vmatpush1.bf16.msra.mxu0 0
    %3468 = vmatprep.subr.bf16.mxu0 0
    %3469 = vmatpush1.bf16.msra.mxu0 0
    %3470 = vmatprep.subr.bf16.mxu0 0
    %3471 = vmatpush1.bf16.msra.mxu0 0
    %3472 = vmatprep.subr.bf16.mxu0 0
    %3473 = vmatpush1.bf16.msra.mxu0 0
    %3474 = vmatprep.subr.bf16.mxu0 0
    %3475 = vmatpush1.bf16.msra.mxu0 0
    %3476 = vmatprep.subr.bf16.mxu0 0
    %3477 = vmatpush1.bf16.msra.mxu0 0
    %3478 = vmatprep.subr.bf16.mxu0 0
    %3479 = vmatpush1.bf16.msra.mxu0 0
    %3480 = vmatprep.subr.bf16.mxu0 0
    %3481 = vmatpush1.bf16.msra.mxu0 0
    %3482 = vmatprep.mubr.bf16.mxu0 0
    %3483 = vmatmul.mubr.bf16.gmra.mrb[0].mxu0 %v3448
    %v3484 = vpop.f32.mrb[0].mxu0
    %v3485 = vadd.f32 0.0, %v3484
    %v3486 = vpop.f32.mrb[0].mxu0
    %v3487 = vpop.f32.mrb[0].mxu0
    %v3488 = vpop.f32.mrb[0].mxu0
    %3489 = vdwg.mxu0
    %v3490 = vmul.f32 %v3296, %v3485
    %v3491 = vadd.f32 %v3344, %v3490
    %v3492 = vadd.f32 %v3491, %v3301
    %v3493 = vtanh.pop %v3492
    %v3494 = vmul.f32 %v3397, 2.0
    %v3495 = vadd.f32 %v3349, %v3494
    %v3496 = vmul.f32 %v3445, 2.0
    %v3497 = vadd.f32 %v3495, %v3496
    %v3498 = vadd.f32 %v3497, %v3493
    %v3499 = vadd.f32 %v3498, 0.0
    %v3500 = vpack.c.bf16 %v3498, %v3498
    %v3502 = vsel %vm208, %v3500, 0
    %3504 = vmatprep.subr.bf16.mxu0 0
    %3505 = vmatpush1.bf16.msra.mxu0 %v369
    %3506 = vmatprep.subr.bf16.mxu0 0
    %3507 = vmatpush1.bf16.msra.mxu0 %v370
    %3508 = vmatprep.subr.bf16.mxu0 0
    %3509 = vmatpush1.bf16.msra.mxu0 0
    %3510 = vmatprep.subr.bf16.mxu0 0
    %3511 = vmatpush1.bf16.msra.mxu0 0
    %3512 = vmatprep.subr.bf16.mxu0 0
    %3513 = vmatpush1.bf16.msra.mxu0 0
    %3514 = vmatprep.subr.bf16.mxu0 0
    %3515 = vmatpush1.bf16.msra.mxu0 0
    %3516 = vmatprep.subr.bf16.mxu0 0
    %3517 = vmatpush1.bf16.msra.mxu0 0
    %3518 = vmatprep.subr.bf16.mxu0 0
    %3519 = vmatpush1.bf16.msra.mxu0 0
    %3520 = vmatprep.subr.bf16.mxu0 0
    %3521 = vmatpush1.bf16.msra.mxu0 0
    %3522 = vmatprep.subr.bf16.mxu0 0
    %3523 = vmatpush1.bf16.msra.mxu0 0
    %3524 = vmatprep.subr.bf16.mxu0 0
    %3525 = vmatpush1.bf16.msra.mxu0 0
    %3526 = vmatprep.subr.bf16.mxu0 0
    %3527 = vmatpush1.bf16.msra.mxu0 0
    %3528 = vmatprep.subr.bf16.mxu0 0
    %3529 = vmatpush1.bf16.msra.mxu0 0
    %3530 = vmatprep.subr.bf16.mxu0 0
    %3531 = vmatpush1.bf16.msra.mxu0 0
    %3532 = vmatprep.subr.bf16.mxu0 0
    %3533 = vmatpush1.bf16.msra.mxu0 0
    %3534 = vmatprep.subr.bf16.mxu0 0
    %3535 = vmatpush1.bf16.msra.mxu0 0
    %3536 = vmatprep.mubr.bf16.mxu0 0
    %3537 = vmatmul.mubr.bf16.gmra.mrb[0].mxu0 %v3502
    %v3538 = vpop.f32.mrb[0].mxu0
    %v3539 = vadd.f32 0.0, %v3538
    %v3540 = vpop.f32.mrb[0].mxu0
    %v3541 = vpop.f32.mrb[0].mxu0
    %v3542 = vpop.f32.mrb[0].mxu0
    %3543 = vdwg.mxu0
    %v3544 = vmul.f32 %v3299, %v3539
    %v3545 = vadd.f32 %v3344, %v3544
    %v3546 = vadd.f32 %v3545, %v3301
    %v3547 = vtanh.pop %v3546
    %v3548 = vpack.c.bf16 %v3547, %v3547
    %v3550 = vsel %vm208, %v3548, 0
    %3552 = vmatprep.subr.bf16.mxu0 0
    %3553 = vmatpush1.bf16.msra.mxu0 %v369
    %3554 = vmatprep.subr.bf16.mxu0 0
    %3555 = vmatpush1.bf16.msra.mxu0 %v370
    %3556 = vmatprep.subr.bf16.mxu0 0
    %3557 = vmatpush1.bf16.msra.mxu0 0
    %3558 = vmatprep.subr.bf16.mxu0 0
    %3559 = vmatpush1.bf16.msra.mxu0 0
    %3560 = vmatprep.subr.bf16.mxu0 0
    %3561 = vmatpush1.bf16.msra.mxu0 0
    %3562 = vmatprep.subr.bf16.mxu0 0
    %3563 = vmatpush1.bf16.msra.mxu0 0
    %3564 = vmatprep.subr.bf16.mxu0 0
    %3565 = vmatpush1.bf16.msra.mxu0 0
    %3566 = vmatprep.subr.bf16.mxu0 0
    %3567 = vmatpush1.bf16.msra.mxu0 0
    %3568 = vmatprep.subr.bf16.mxu0 0
    %3569 = vmatpush1.bf16.msra.mxu0 0
    %3570 = vmatprep.subr.bf16.mxu0 0
    %3571 = vmatpush1.bf16.msra.mxu0 0
    %3572 = vmatprep.subr.bf16.mxu0 0
    %3573 = vmatpush1.bf16.msra.mxu0 0
    %3574 = vmatprep.subr.bf16.mxu0 0
    %3575 = vmatpush1.bf16.msra.mxu0 0
    %3576 = vmatprep.subr.bf16.mxu0 0
    %3577 = vmatpush1.bf16.msra.mxu0 0
    %3578 = vmatprep.subr.bf16.mxu0 0
    %3579 = vmatpush1.bf16.msra.mxu0 0
    %3580 = vmatprep.subr.bf16.mxu0 0
    %3581 = vmatpush1.bf16.msra.mxu0 0
    %3582 = vmatprep.subr.bf16.mxu0 0
    %3583 = vmatpush1.bf16.msra.mxu0 0
    %3584 = vmatprep.mubr.bf16.mxu0 0
    %3585 = vmatmul.mubr.bf16.gmra.mrb[0].mxu0 %v3550
    %v3586 = vpop.f32.mrb[0].mxu0
    %v3587 = vadd.f32 0.0, %v3586
    %v3588 = vpop.f32.mrb[0].mxu0
    %v3589 = vpop.f32.mrb[0].mxu0
    %v3590 = vpop.f32.mrb[0].mxu0
    %3591 = vdwg.mxu0
    %v3592 = vmul.f32 %v3298, %v3587
    %v3593 = vadd.f32 %v3546, %v3592
    %v3594 = vadd.f32 %v3593, %v3300
    %v3595 = vtanh.pop %v3594
    %v3596 = vpack.c.bf16 %v3595, %v3595
    %v3598 = vsel %vm208, %v3596, 0
    %3600 = vmatprep.subr.bf16.mxu0 0
    %3601 = vmatpush1.bf16.msra.mxu0 %v369
    %3602 = vmatprep.subr.bf16.mxu0 0
    %3603 = vmatpush1.bf16.msra.mxu0 %v370
    %3604 = vmatprep.subr.bf16.mxu0 0
    %3605 = vmatpush1.bf16.msra.mxu0 0
    %3606 = vmatprep.subr.bf16.mxu0 0
    %3607 = vmatpush1.bf16.msra.mxu0 0
    %3608 = vmatprep.subr.bf16.mxu0 0
    %3609 = vmatpush1.bf16.msra.mxu0 0
    %3610 = vmatprep.subr.bf16.mxu0 0
    %3611 = vmatpush1.bf16.msra.mxu0 0
    %3612 = vmatprep.subr.bf16.mxu0 0
    %3613 = vmatpush1.bf16.msra.mxu0 0
    %3614 = vmatprep.subr.bf16.mxu0 0
    %3615 = vmatpush1.bf16.msra.mxu0 0
    %3616 = vmatprep.subr.bf16.mxu0 0
    %3617 = vmatpush1.bf16.msra.mxu0 0
    %3618 = vmatprep.subr.bf16.mxu0 0
    %3619 = vmatpush1.bf16.msra.mxu0 0
    %3620 = vmatprep.subr.bf16.mxu0 0
    %3621 = vmatpush1.bf16.msra.mxu0 0
    %3622 = vmatprep.subr.bf16.mxu0 0
    %3623 = vmatpush1.bf16.msra.mxu0 0
    %3624 = vmatprep.subr.bf16.mxu0 0
    %3625 = vmatpush1.bf16.msra.mxu0 0
    %3626 = vmatprep.subr.bf16.mxu0 0
    %3627 = vmatpush1.bf16.msra.mxu0 0
    %3628 = vmatprep.subr.bf16.mxu0 0
    %3629 = vmatpush1.bf16.msra.mxu0 0
    %3630 = vmatprep.subr.bf16.mxu0 0
    %3631 = vmatpush1.bf16.msra.mxu0 0
    %3632 = vmatprep.mubr.bf16.mxu0 0
    %3633 = vmatmul.mubr.bf16.gmra.mrb[0].mxu0 %v3598
    %v3634 = vpop.f32.mrb[0].mxu0
    %v3635 = vadd.f32 0.0, %v3634
    %v3636 = vpop.f32.mrb[0].mxu0
    %v3637 = vpop.f32.mrb[0].mxu0
    %v3638 = vpop.f32.mrb[0].mxu0
    %3639 = vdwg.mxu0
    %v3640 = vmul.f32 %v3298, %v3635
    %v3641 = vadd.f32 %v3546, %v3640
    %v3642 = vadd.f32 %v3641, %v3300
    %v3643 = vtanh.pop %v3642
    %v3644 = vpack.c.bf16 %v3643, %v3643
    %v3646 = vsel %vm208, %v3644, 0
    %3648 = vmatprep.subr.bf16.mxu0 0
    %3649 = vmatpush1.bf16.msra.mxu0 %v369
    %3650 = vmatprep.subr.bf16.mxu0 0
    %3651 = vmatpush1.bf16.msra.mxu0 %v370
    %3652 = vmatprep.subr.bf16.mxu0 0
    %3653 = vmatpush1.bf16.msra.mxu0 0
    %3654 = vmatprep.subr.bf16.mxu0 0
    %3655 = vmatpush1.bf16.msra.mxu0 0
    %3656 = vmatprep.subr.bf16.mxu0 0
    %3657 = vmatpush1.bf16.msra.mxu0 0
    %3658 = vmatprep.subr.bf16.mxu0 0
    %3659 = vmatpush1.bf16.msra.mxu0 0
    %3660 = vmatprep.subr.bf16.mxu0 0
    %3661 = vmatpush1.bf16.msra.mxu0 0
    %3662 = vmatprep.subr.bf16.mxu0 0
    %3663 = vmatpush1.bf16.msra.mxu0 0
    %3664 = vmatprep.subr.bf16.mxu0 0
    %3665 = vmatpush1.bf16.msra.mxu0 0
    %3666 = vmatprep.subr.bf16.mxu0 0
    %3667 = vmatpush1.bf16.msra.mxu0 0
    %3668 = vmatprep.subr.bf16.mxu0 0
    %3669 = vmatpush1.bf16.msra.mxu0 0
    %3670 = vmatprep.subr.bf16.mxu0 0
    %3671 = vmatpush1.bf16.msra.mxu0 0
    %3672 = vmatprep.subr.bf16.mxu0 0
    %3673 = vmatpush1.bf16.msra.mxu0 0
    %3674 = vmatprep.subr.bf16.mxu0 0
    %3675 = vmatpush1.bf16.msra.mxu0 0
    %3676 = vmatprep.subr.bf16.mxu0 0
    %3677 = vmatpush1.bf16.msra.mxu0 0
    %3678 = vmatprep.subr.bf16.mxu0 0
    %3679 = vmatpush1.bf16.msra.mxu0 0
    %3680 = vmatprep.mubr.bf16.mxu0 0
    %3681 = vmatmul.mubr.bf16.gmra.mrb[0].mxu0 %v3646
    %v3682 = vpop.f32.mrb[0].mxu0
    %v3683 = vadd.f32 0.0, %v3682
    %v3684 = vpop.f32.mrb[0].mxu0
    %v3685 = vpop.f32.mrb[0].mxu0
    %v3686 = vpop.f32.mrb[0].mxu0
    %3687 = vdwg.mxu0
    %v3688 = vmul.f32 %v3296, %v3683
    %v3689 = vadd.f32 %v3546, %v3688
    %v3690 = vadd.f32 %v3689, %v3301
    %v3691 = vtanh.pop %v3690
    %v3692 = vmul.f32 %v3595, 2.0
    %v3693 = vadd.f32 %v3547, %v3692
    %v3694 = vmul.f32 %v3643, 2.0
    %v3695 = vadd.f32 %v3693, %v3694
    %v3696 = vadd.f32 %v3695, %v3691
    %v3697 = vadd.f32 %v3499, %v3696
    %v3698 = vpack.c.bf16 %v3696, %v3696
    %v3700 = vsel %vm208, %v3698, 0
    %3702 = vmatprep.subr.bf16.mxu0 0
    %3703 = vmatpush1.bf16.msra.mxu0 %v369
    %3704 = vmatprep.subr.bf16.mxu0 0
    %3705 = vmatpush1.bf16.msra.mxu0 %v370
    %3706 = vmatprep.subr.bf16.mxu0 0
    %3707 = vmatpush1.bf16.msra.mxu0 0
    %3708 = vmatprep.subr.bf16.mxu0 0
    %3709 = vmatpush1.bf16.msra.mxu0 0
    %3710 = vmatprep.subr.bf16.mxu0 0
    %3711 = vmatpush1.bf16.msra.mxu0 0
    %3712 = vmatprep.subr.bf16.mxu0 0
    %3713 = vmatpush1.bf16.msra.mxu0 0
    %3714 = vmatprep.subr.bf16.mxu0 0
    %3715 = vmatpush1.bf16.msra.mxu0 0
    %3716 = vmatprep.subr.bf16.mxu0 0
    %3717 = vmatpush1.bf16.msra.mxu0 0
    %3718 = vmatprep.subr.bf16.mxu0 0
    %3719 = vmatpush1.bf16.msra.mxu0 0
    %3720 = vmatprep.subr.bf16.mxu0 0
    %3721 = vmatpush1.bf16.msra.mxu0 0
    %3722 = vmatprep.subr.bf16.mxu0 0
    %3723 = vmatpush1.bf16.msra.mxu0 0
    %3724 = vmatprep.subr.bf16.mxu0 0
    %3725 = vmatpush1.bf16.msra.mxu0 0
    %3726 = vmatprep.subr.bf16.mxu0 0
    %3727 = vmatpush1.bf16.msra.mxu0 0
    %3728 = vmatprep.subr.bf16.mxu0 0
    %3729 = vmatpush1.bf16.msra.mxu0 0
    %3730 = vmatprep.subr.bf16.mxu0 0
    %3731 = vmatpush1.bf16.msra.mxu0 0
    %3732 = vmatprep.subr.bf16.mxu0 0
    %3733 = vmatpush1.bf16.msra.mxu0 0
    %3734 = vmatprep.mubr.bf16.mxu0 0
    %3735 = vmatmul.mubr.bf16.gmra.mrb[0].mxu0 %v3700
    %v3736 = vpop.f32.mrb[0].mxu0
    %v3737 = vadd.f32 0.0, %v3736
    %v3738 = vpop.f32.mrb[0].mxu0
    %v3739 = vpop.f32.mrb[0].mxu0
    %v3740 = vpop.f32.mrb[0].mxu0
    %3741 = vdwg.mxu0
    %v3742 = vmul.f32 %v3299, %v3737
    %v3743 = vadd.f32 %v3546, %v3742
    %v3744 = vadd.f32 %v3743, %v3301
    %v3745 = vtanh.pop %v3744
    %v3746 = vpack.c.bf16 %v3745, %v3745
    %v3748 = vsel %vm208, %v3746, 0
    %3750 = vmatprep.subr.bf16.mxu0 0
    %3751 = vmatpush1.bf16.msra.mxu0 %v369
    %3752 = vmatprep.subr.bf16.mxu0 0
    %3753 = vmatpush1.bf16.msra.mxu0 %v370
    %3754 = vmatprep.subr.bf16.mxu0 0
    %3755 = vmatpush1.bf16.msra.mxu0 0
    %3756 = vmatprep.subr.bf16.mxu0 0
    %3757 = vmatpush1.bf16.msra.mxu0 0
    %3758 = vmatprep.subr.bf16.mxu0 0
    %3759 = vmatpush1.bf16.msra.mxu0 0
    %3760 = vmatprep.subr.bf16.mxu0 0
    %3761 = vmatpush1.bf16.msra.mxu0 0
    %3762 = vmatprep.subr.bf16.mxu0 0
    %3763 = vmatpush1.bf16.msra.mxu0 0
    %3764 = vmatprep.subr.bf16.mxu0 0
    %3765 = vmatpush1.bf16.msra.mxu0 0
    %3766 = vmatprep.subr.bf16.mxu0 0
    %3767 = vmatpush1.bf16.msra.mxu0 0
    %3768 = vmatprep.subr.bf16.mxu0 0
    %3769 = vmatpush1.bf16.msra.mxu0 0
    %3770 = vmatprep.subr.bf16.mxu0 0
    %3771 = vmatpush1.bf16.msra.mxu0 0
    %3772 = vmatprep.subr.bf16.mxu0 0
    %3773 = vmatpush1.bf16.msra.mxu0 0
    %3774 = vmatprep.subr.bf16.mxu0 0
    %3775 = vmatpush1.bf16.msra.mxu0 0
    %3776 = vmatprep.subr.bf16.mxu0 0
    %3777 = vmatpush1.bf16.msra.mxu0 0
    %3778 = vmatprep.subr.bf16.mxu0 0
    %3779 = vmatpush1.bf16.msra.mxu0 0
    %3780 = vmatprep.subr.bf16.mxu0 0
    %3781 = vmatpush1.bf16.msra.mxu0 0
    %3782 = vmatprep.mubr.bf16.mxu0 0
    %3783 = vmatmul.mubr.bf16.gmra.mrb[0].mxu0 %v3748
    %v3784 = vpop.f32.mrb[0].mxu0
    %v3785 = vadd.f32 0.0, %v3784
    %v3786 = vpop.f32.mrb[0].mxu0
    %v3787 = vpop.f32.mrb[0].mxu0
    %v3788 = vpop.f32.mrb[0].mxu0
    %3789 = vdwg.mxu0
    %v3790 = vmul.f32 %v3298, %v3785
    %v3791 = vadd.f32 %v3744, %v3790
    %v3792 = vadd.f32 %v3791, %v3300
    %v3793 = vtanh.pop %v3792
    %v3794 = vpack.c.bf16 %v3793, %v3793
    %v3796 = vsel %vm208, %v3794, 0
    %3798 = vmatprep.subr.bf16.mxu0 0
    %3799 = vmatpush1.bf16.msra.mxu0 %v369
    %3800 = vmatprep.subr.bf16.mxu0 0
    %3801 = vmatpush1.bf16.msra.mxu0 %v370
    %3802 = vmatprep.subr.bf16.mxu0 0
    %3803 = vmatpush1.bf16.msra.mxu0 0
    %3804 = vmatprep.subr.bf16.mxu0 0
    %3805 = vmatpush1.bf16.msra.mxu0 0
    %3806 = vmatprep.subr.bf16.mxu0 0
    %3807 = vmatpush1.bf16.msra.mxu0 0
    %3808 = vmatprep.subr.bf16.mxu0 0
    %3809 = vmatpush1.bf16.msra.mxu0 0
    %3810 = vmatprep.subr.bf16.mxu0 0
    %3811 = vmatpush1.bf16.msra.mxu0 0
    %3812 = vmatprep.subr.bf16.mxu0 0
    %3813 = vmatpush1.bf16.msra.mxu0 0
    %3814 = vmatprep.subr.bf16.mxu0 0
    %3815 = vmatpush1.bf16.msra.mxu0 0
    %3816 = vmatprep.subr.bf16.mxu0 0
    %3817 = vmatpush1.bf16.msra.mxu0 0
    %3818 = vmatprep.subr.bf16.mxu0 0
    %3819 = vmatpush1.bf16.msra.mxu0 0
    %3820 = vmatprep.subr.bf16.mxu0 0
    %3821 = vmatpush1.bf16.msra.mxu0 0
    %3822 = vmatprep.subr.bf16.mxu0 0
    %3823 = vmatpush1.bf16.msra.mxu0 0
    %3824 = vmatprep.subr.bf16.mxu0 0
    %3825 = vmatpush1.bf16.msra.mxu0 0
    %3826 = vmatprep.subr.bf16.mxu0 0
    %3827 = vmatpush1.bf16.msra.mxu0 0
    %3828 = vmatprep.subr.bf16.mxu0 0
    %3829 = vmatpush1.bf16.msra.mxu0 0
    %3830 = vmatprep.mubr.bf16.mxu0 0
    %3831 = vmatmul.mubr.bf16.gmra.mrb[0].mxu0 %v3796
    %v3832 = vpop.f32.mrb[0].mxu0
    %v3833 = vadd.f32 0.0, %v3832
    %v3834 = vpop.f32.mrb[0].mxu0
    %v3835 = vpop.f32.mrb[0].mxu0
    %v3836 = vpop.f32.mrb[0].mxu0
    %3837 = vdwg.mxu0
    %v3838 = vmul.f32 %v3298, %v3833
    %v3839 = vadd.f32 %v3744, %v3838
    %v3840 = vadd.f32 %v3839, %v3300
    %v3841 = vtanh.pop %v3840
    %v3842 = vpack.c.bf16 %v3841, %v3841
    %v3844 = vsel %vm208, %v3842, 0
    %3846 = vmatprep.subr.bf16.mxu0 0
    %3847 = vmatpush1.bf16.msra.mxu0 %v369
    %3848 = vmatprep.subr.bf16.mxu0 0
    %3849 = vmatpush1.bf16.msra.mxu0 %v370
    %3850 = vmatprep.subr.bf16.mxu0 0
    %3851 = vmatpush1.bf16.msra.mxu0 0
    %3852 = vmatprep.subr.bf16.mxu0 0
    %3853 = vmatpush1.bf16.msra.mxu0 0
    %3854 = vmatprep.subr.bf16.mxu0 0
    %3855 = vmatpush1.bf16.msra.mxu0 0
    %3856 = vmatprep.subr.bf16.mxu0 0
    %3857 = vmatpush1.bf16.msra.mxu0 0
    %3858 = vmatprep.subr.bf16.mxu0 0
    %3859 = vmatpush1.bf16.msra.mxu0 0
    %3860 = vmatprep.subr.bf16.mxu0 0
    %3861 = vmatpush1.bf16.msra.mxu0 0
    %3862 = vmatprep.subr.bf16.mxu0 0
    %3863 = vmatpush1.bf16.msra.mxu0 0
    %3864 = vmatprep.subr.bf16.mxu0 0
    %3865 = vmatpush1.bf16.msra.mxu0 0
    %3866 = vmatprep.subr.bf16.mxu0 0
    %3867 = vmatpush1.bf16.msra.mxu0 0
    %3868 = vmatprep.subr.bf16.mxu0 0
    %3869 = vmatpush1.bf16.msra.mxu0 0
    %3870 = vmatprep.subr.bf16.mxu0 0
    %3871 = vmatpush1.bf16.msra.mxu0 0
    %3872 = vmatprep.subr.bf16.mxu0 0
    %3873 = vmatpush1.bf16.msra.mxu0 0
    %3874 = vmatprep.subr.bf16.mxu0 0
    %3875 = vmatpush1.bf16.msra.mxu0 0
    %3876 = vmatprep.subr.bf16.mxu0 0
    %3877 = vmatpush1.bf16.msra.mxu0 0
    %3878 = vmatprep.mubr.bf16.mxu0 0
    %3879 = vmatmul.mubr.bf16.gmra.mrb[0].mxu0 %v3844
    %v3880 = vpop.f32.mrb[0].mxu0
    %v3881 = vadd.f32 0.0, %v3880
    %v3882 = vpop.f32.mrb[0].mxu0
    %v3883 = vpop.f32.mrb[0].mxu0
    %v3884 = vpop.f32.mrb[0].mxu0
    %3885 = vdwg.mxu0
    %v3886 = vmul.f32 %v3296, %v3881
    %v3887 = vadd.f32 %v3744, %v3886
    %v3888 = vadd.f32 %v3887, %v3301
    %v3889 = vtanh.pop %v3888
    %v3890 = vmul.f32 %v3793, 2.0
    %v3891 = vadd.f32 %v3745, %v3890
    %v3892 = vmul.f32 %v3841, 2.0
    %v3893 = vadd.f32 %v3891, %v3892
    %v3894 = vadd.f32 %v3893, %v3889
    %v3895 = vadd.f32 %v3697, %v3894
    %v3896 = vpack.c.bf16 %v3895, %v3895
    %v3898 = vsel %vm208, %v3896, 0
    %3900 = vmatprep.subr.bf16.mxu0 0
    %3901 = vmatpush1.bf16.msra.mxu0 %v927
    %3902 = vmatprep.subr.bf16.mxu0 0
    %3903 = vmatpush1.bf16.msra.mxu0 %v928
    %3904 = vmatprep.subr.bf16.mxu0 0
    %3905 = vmatpush1.bf16.msra.mxu0 0
    %3906 = vmatprep.subr.bf16.mxu0 0
    %3907 = vmatpush1.bf16.msra.mxu0 0
    %3908 = vmatprep.subr.bf16.mxu0 0
    %3909 = vmatpush1.bf16.msra.mxu0 0
    %3910 = vmatprep.subr.bf16.mxu0 0
    %3911 = vmatpush1.bf16.msra.mxu0 0
    %3912 = vmatprep.subr.bf16.mxu0 0
    %3913 = vmatpush1.bf16.msra.mxu0 0
    %3914 = vmatprep.subr.bf16.mxu0 0
    %3915 = vmatpush1.bf16.msra.mxu0 0
    %3916 = vmatprep.subr.bf16.mxu0 0
    %3917 = vmatpush1.bf16.msra.mxu0 0
    %3918 = vmatprep.subr.bf16.mxu0 0
    %3919 = vmatpush1.bf16.msra.mxu0 0
    %3920 = vmatprep.subr.bf16.mxu0 0
    %3921 = vmatpush1.bf16.msra.mxu0 0
    %3922 = vmatprep.subr.bf16.mxu0 0
    %3923 = vmatpush1.bf16.msra.mxu0 0
    %3924 = vmatprep.subr.bf16.mxu0 0
    %3925 = vmatpush1.bf16.msra.mxu0 0
    %3926 = vmatprep.subr.bf16.mxu0 0
    %3927 = vmatpush1.bf16.msra.mxu0 0
    %3928 = vmatprep.subr.bf16.mxu0 0
    %3929 = vmatpush1.bf16.msra.mxu0 0
    %3930 = vmatprep.subr.bf16.mxu0 0
    %3931 = vmatpush1.bf16.msra.mxu0 0
    %3932 = vmatprep.mubr.bf16.mxu0 0
    %3933 = vmatmul.mubr.bf16.gmra.mrb[0].mxu0 %v3898
    %v3934 = vpop.f32.mrb[0].mxu0
    %v3935 = vadd.f32 0.0, %v3934
    %v3936 = vpop.f32.mrb[0].mxu0
    %v3937 = vpop.f32.mrb[0].mxu0
    %v3938 = vpop.f32.mrb[0].mxu0
    %3939 = vdwg.mxu0
    %v3940 = vmul.f32 %v3299, %v3935
    %3942 = vrot.lane.b32.xlu0 %v3940, 64
    %v3943 = vpop.permute.xlu0 %3942
    %v3945 = vadd.f32 %v3289, %v3943
    %v3946 = vmul.f32 %v3296, %v984
    %3948 = vrot.lane.b32.xlu0 %v3946, 64
    %v3949 = vpop.permute.xlu0 %3948
    %v3951 = vadd.f32 %v3945, %v3949
    %3953 = vrot.lane.b32.xlu0 %v3951, 64
    %v3954 = vpop.permute.xlu0 %3953
    %3956 = vst.msk [vmem:[#allocation3 + $0x20] sm:$0xff] %vm208, %v3954
    %v3957 = vld [vmem:[#allocation2 + $0x28] sm:$0xff]
    %v3958 = vpack.c.bf16 %v3951, %v3951
    %3960 = vrot.lane.b32.xlu0 %v3958, 64
    %v3961 = vpop.permute.xlu0 %3960
    %v3963 = vsel %vm208, %v3961, 0
    %3965 = vmatprep.subr.bf16.mxu0 0
    %3966 = vmatpush1.bf16.msra.mxu0 %v204
    %3967 = vmatprep.subr.bf16.mxu0 0
    %3968 = vmatpush1.bf16.msra.mxu0 %v205
    %3969 = vmatprep.subr.bf16.mxu0 0
    %3970 = vmatpush1.bf16.msra.mxu0 0
    %3971 = vmatprep.subr.bf16.mxu0 0
    %3972 = vmatpush1.bf16.msra.mxu0 0
    %3973 = vmatprep.subr.bf16.mxu0 0
    %3974 = vmatpush1.bf16.msra.mxu0 0
    %3975 = vmatprep.subr.bf16.mxu0 0
    %3976 = vmatpush1.bf16.msra.mxu0 0
    %3977 = vmatprep.subr.bf16.mxu0 0
    %3978 = vmatpush1.bf16.msra.mxu0 0
    %3979 = vmatprep.subr.bf16.mxu0 0
    %3980 = vmatpush1.bf16.msra.mxu0 0
    %3981 = vmatprep.subr.bf16.mxu0 0
    %3982 = vmatpush1.bf16.msra.mxu0 0
    %3983 = vmatprep.subr.bf16.mxu0 0
    %3984 = vmatpush1.bf16.msra.mxu0 0
    %3985 = vmatprep.subr.bf16.mxu0 0
    %3986 = vmatpush1.bf16.msra.mxu0 0
    %3987 = vmatprep.subr.bf16.mxu0 0
    %3988 = vmatpush1.bf16.msra.mxu0 0
    %3989 = vmatprep.subr.bf16.mxu0 0
    %3990 = vmatpush1.bf16.msra.mxu0 0
    %3991 = vmatprep.subr.bf16.mxu0 0
    %3992 = vmatpush1.bf16.msra.mxu0 0
    %3993 = vmatprep.subr.bf16.mxu0 0
    %3994 = vmatpush1.bf16.msra.mxu0 0
    %3995 = vmatprep.subr.bf16.mxu0 0
    %3996 = vmatpush1.bf16.msra.mxu0 0
    %3997 = vmatprep.mubr.bf16.mxu0 0
    %3998 = vmatmul.mubr.bf16.gmra.mrb[0].mxu0 %v3963
    %v3999 = vpop.f32.mrb[0].mxu0
    %v4000 = vadd.f32 0.0, %v3999
    %v4001 = vpop.f32.mrb[0].mxu0
    %v4002 = vpop.f32.mrb[0].mxu0
    %v4003 = vpop.f32.mrb[0].mxu0
    %4004 = vdwg.mxu0
    %v4005 = vadd.f32 %v3957, %v4000
    %v4006 = vxor.u32 %v4005, 2147483648
    %v4007 = vmul.f32 %v4006, 1.442695
    %v4008 = vpow.pop %v4007
    %v4009 = vadd.f32 %v4008, 1.0
    %v4010 = vrcp.pop %v4009
    %v4011 = vmul.f32 1.0, %v4010
    %v4012 = vtanh.pop %v4005
    %v4013 = vmul.f32 %v4011, %v3283
    %4015 = vrot.lane.b32.xlu0 %v4012, 32
    %v4016 = vpop.permute.xlu0 %4015
    %v4018 = vmul.f32 %v4011, %v4016
    %4020 = vrot.lane.b32.xlu0 %v4018, 32
    %v4021 = vpop.permute.xlu0 %4020
    %v4023 = vadd.f32 %v4013, %v4021
    %v4024 = vtanh.pop %v4023
    %4026 = vrot.lane.b32.xlu0 %v4024, 32
    %v4027 = vpop.permute.xlu0 %4026
    %v4029 = vmul.f32 %v4011, %v4027
    %s4030 = scalar_lea.vmem %s1, 40
    %v4031 = vld [vmem:[%s4030] sm:$0xff]
    %v4032 = vmul.f32 %v4031, 0.33333334
    %4034 = vset.pattern.permute.xlu0 0
    %4035 = vperm.xlu0 %4034, %v4032
    %v4036 = vpop.permute.xlu0 %4035
    %v4038 = vmul.f32 %v4036, 0.5
    %v4039 = vmul.f32 %v4036, 0.16666667
    %v4040 = vmul.f32 %v4038, %v290
    %v4041 = vmul.f32 %v4036, %v290
    %v4042 = vpack.c.bf16 %v4029, %v4029
    %4044 = vrot.lane.b32.xlu0 %v4042, 64
    %v4045 = vpop.permute.xlu0 %4044
    %v4047 = vsel %vm208, %v4045, 0
    %4049 = vmatprep.subr.bf16.mxu0 0
    %4050 = vmatpush1.bf16.msra.mxu0 %v312
    %4051 = vmatprep.subr.bf16.mxu0 0
    %4052 = vmatpush1.bf16.msra.mxu0 %v313
    %4053 = vmatprep.subr.bf16.mxu0 0
    %4054 = vmatpush1.bf16.msra.mxu0 0
    %4055 = vmatprep.subr.bf16.mxu0 0
    %4056 = vmatpush1.bf16.msra.mxu0 0
    %4057 = vmatprep.subr.bf16.mxu0 0
    %4058 = vmatpush1.bf16.msra.mxu0 0
    %4059 = vmatprep.subr.bf16.mxu0 0
    %4060 = vmatpush1.bf16.msra.mxu0 0
    %4061 = vmatprep.subr.bf16.mxu0 0
    %4062 = vmatpush1.bf16.msra.mxu0 0
    %4063 = vmatprep.subr.bf16.mxu0 0
    %4064 = vmatpush1.bf16.msra.mxu0 0
    %4065 = vmatprep.subr.bf16.mxu0 0
    %4066 = vmatpush1.bf16.msra.mxu0 0
    %4067 = vmatprep.subr.bf16.mxu0 0
    %4068 = vmatpush1.bf16.msra.mxu0 0
    %4069 = vmatprep.subr.bf16.mxu0 0
    %4070 = vmatpush1.bf16.msra.mxu0 0
    %4071 = vmatprep.subr.bf16.mxu0 0
    %4072 = vmatpush1.bf16.msra.mxu0 0
    %4073 = vmatprep.subr.bf16.mxu0 0
    %4074 = vmatpush1.bf16.msra.mxu0 0
    %4075 = vmatprep.subr.bf16.mxu0 0
    %4076 = vmatpush1.bf16.msra.mxu0 0
    %4077 = vmatprep.subr.bf16.mxu0 0
    %4078 = vmatpush1.bf16.msra.mxu0 0
    %4079 = vmatprep.subr.bf16.mxu0 0
    %4080 = vmatpush1.bf16.msra.mxu0 0
    %4081 = vmatprep.mubr.bf16.mxu0 0
    %4082 = vmatmul.mubr.bf16.gmra.mrb[0].mxu0 %v4047
    %v4083 = vpop.f32.mrb[0].mxu0
    %v4084 = vadd.f32 %v299, %v4083
    %v4085 = vpop.f32.mrb[0].mxu0
    %v4086 = vpop.f32.mrb[0].mxu0
    %v4087 = vpop.f32.mrb[0].mxu0
    %4088 = vdwg.mxu0
    %v4089 = vtanh.pop %v4084
    %v4090 = vpack.c.bf16 %v4089, %v4089
    %v4092 = vsel %vm208, %v4090, 0
    %4094 = vmatprep.subr.bf16.mxu0 0
    %4095 = vmatpush1.bf16.msra.mxu0 %v369
    %4096 = vmatprep.subr.bf16.mxu0 0
    %4097 = vmatpush1.bf16.msra.mxu0 %v370
    %4098 = vmatprep.subr.bf16.mxu0 0
    %4099 = vmatpush1.bf16.msra.mxu0 0
    %4100 = vmatprep.subr.bf16.mxu0 0
    %4101 = vmatpush1.bf16.msra.mxu0 0
    %4102 = vmatprep.subr.bf16.mxu0 0
    %4103 = vmatpush1.bf16.msra.mxu0 0
    %4104 = vmatprep.subr.bf16.mxu0 0
    %4105 = vmatpush1.bf16.msra.mxu0 0
    %4106 = vmatprep.subr.bf16.mxu0 0
    %4107 = vmatpush1.bf16.msra.mxu0 0
    %4108 = vmatprep.subr.bf16.mxu0 0
    %4109 = vmatpush1.bf16.msra.mxu0 0
    %4110 = vmatprep.subr.bf16.mxu0 0
    %4111 = vmatpush1.bf16.msra.mxu0 0
    %4112 = vmatprep.subr.bf16.mxu0 0
    %4113 = vmatpush1.bf16.msra.mxu0 0
    %4114 = vmatprep.subr.bf16.mxu0 0
    %4115 = vmatpush1.bf16.msra.mxu0 0
    %4116 = vmatprep.subr.bf16.mxu0 0
    %4117 = vmatpush1.bf16.msra.mxu0 0
    %4118 = vmatprep.subr.bf16.mxu0 0
    %4119 = vmatpush1.bf16.msra.mxu0 0
    %4120 = vmatprep.subr.bf16.mxu0 0
    %4121 = vmatpush1.bf16.msra.mxu0 0
    %4122 = vmatprep.subr.bf16.mxu0 0
    %4123 = vmatpush1.bf16.msra.mxu0 0
    %4124 = vmatprep.subr.bf16.mxu0 0
    %4125 = vmatpush1.bf16.msra.mxu0 0
    %4126 = vmatprep.mubr.bf16.mxu0 0
    %4127 = vmatmul.mubr.bf16.gmra.mrb[0].mxu0 %v4092
    %v4128 = vpop.f32.mrb[0].mxu0
    %v4129 = vadd.f32 0.0, %v4128
    %v4130 = vpop.f32.mrb[0].mxu0
    %v4131 = vpop.f32.mrb[0].mxu0
    %v4132 = vpop.f32.mrb[0].mxu0
    %4133 = vdwg.mxu0
    %v4134 = vmul.f32 %v4038, %v4129
    %v4135 = vadd.f32 %v4084, %v4134
    %v4136 = vadd.f32 %v4135, %v4040
    %v4137 = vtanh.pop %v4136
    %v4138 = vpack.c.bf16 %v4137, %v4137
    %v4140 = vsel %vm208, %v4138, 0
    %4142 = vmatprep.subr.bf16.mxu0 0
    %4143 = vmatpush1.bf16.msra.mxu0 %v369
    %4144 = vmatprep.subr.bf16.mxu0 0
    %4145 = vmatpush1.bf16.msra.mxu0 %v370
    %4146 = vmatprep.subr.bf16.mxu0 0
    %4147 = vmatpush1.bf16.msra.mxu0 0
    %4148 = vmatprep.subr.bf16.mxu0 0
    %4149 = vmatpush1.bf16.msra.mxu0 0
    %4150 = vmatprep.subr.bf16.mxu0 0
    %4151 = vmatpush1.bf16.msra.mxu0 0
    %4152 = vmatprep.subr.bf16.mxu0 0
    %4153 = vmatpush1.bf16.msra.mxu0 0
    %4154 = vmatprep.subr.bf16.mxu0 0
    %4155 = vmatpush1.bf16.msra.mxu0 0
    %4156 = vmatprep.subr.bf16.mxu0 0
    %4157 = vmatpush1.bf16.msra.mxu0 0
    %4158 = vmatprep.subr.bf16.mxu0 0
    %4159 = vmatpush1.bf16.msra.mxu0 0
    %4160 = vmatprep.subr.bf16.mxu0 0
    %4161 = vmatpush1.bf16.msra.mxu0 0
    %4162 = vmatprep.subr.bf16.mxu0 0
    %4163 = vmatpush1.bf16.msra.mxu0 0
    %4164 = vmatprep.subr.bf16.mxu0 0
    %4165 = vmatpush1.bf16.msra.mxu0 0
    %4166 = vmatprep.subr.bf16.mxu0 0
    %4167 = vmatpush1.bf16.msra.mxu0 0
    %4168 = vmatprep.subr.bf16.mxu0 0
    %4169 = vmatpush1.bf16.msra.mxu0 0
    %4170 = vmatprep.subr.bf16.mxu0 0
    %4171 = vmatpush1.bf16.msra.mxu0 0
    %4172 = vmatprep.subr.bf16.mxu0 0
    %4173 = vmatpush1.bf16.msra.mxu0 0
    %4174 = vmatprep.mubr.bf16.mxu0 0
    %4175 = vmatmul.mubr.bf16.gmra.mrb[0].mxu0 %v4140
    %v4176 = vpop.f32.mrb[0].mxu0
    %v4177 = vadd.f32 0.0, %v4176
    %v4178 = vpop.f32.mrb[0].mxu0
    %v4179 = vpop.f32.mrb[0].mxu0
    %v4180 = vpop.f32.mrb[0].mxu0
    %4181 = vdwg.mxu0
    %v4182 = vmul.f32 %v4038, %v4177
    %v4183 = vadd.f32 %v4084, %v4182
    %v4184 = vadd.f32 %v4183, %v4040
    %v4185 = vtanh.pop %v4184
    %v4186 = vpack.c.bf16 %v4185, %v4185
    %v4188 = vsel %vm208, %v4186, 0
    %4190 = vmatprep.subr.bf16.mxu0 0
    %4191 = vmatpush1.bf16.msra.mxu0 %v369
    %4192 = vmatprep.subr.bf16.mxu0 0
    %4193 = vmatpush1.bf16.msra.mxu0 %v370
    %4194 = vmatprep.subr.bf16.mxu0 0
    %4195 = vmatpush1.bf16.msra.mxu0 0
    %4196 = vmatprep.subr.bf16.mxu0 0
    %4197 = vmatpush1.bf16.msra.mxu0 0
    %4198 = vmatprep.subr.bf16.mxu0 0
    %4199 = vmatpush1.bf16.msra.mxu0 0
    %4200 = vmatprep.subr.bf16.mxu0 0
    %4201 = vmatpush1.bf16.msra.mxu0 0
    %4202 = vmatprep.subr.bf16.mxu0 0
    %4203 = vmatpush1.bf16.msra.mxu0 0
    %4204 = vmatprep.subr.bf16.mxu0 0
    %4205 = vmatpush1.bf16.msra.mxu0 0
    %4206 = vmatprep.subr.bf16.mxu0 0
    %4207 = vmatpush1.bf16.msra.mxu0 0
    %4208 = vmatprep.subr.bf16.mxu0 0
    %4209 = vmatpush1.bf16.msra.mxu0 0
    %4210 = vmatprep.subr.bf16.mxu0 0
    %4211 = vmatpush1.bf16.msra.mxu0 0
    %4212 = vmatprep.subr.bf16.mxu0 0
    %4213 = vmatpush1.bf16.msra.mxu0 0
    %4214 = vmatprep.subr.bf16.mxu0 0
    %4215 = vmatpush1.bf16.msra.mxu0 0
    %4216 = vmatprep.subr.bf16.mxu0 0
    %4217 = vmatpush1.bf16.msra.mxu0 0
    %4218 = vmatprep.subr.bf16.mxu0 0
    %4219 = vmatpush1.bf16.msra.mxu0 0
    %4220 = vmatprep.subr.bf16.mxu0 0
    %4221 = vmatpush1.bf16.msra.mxu0 0
    %4222 = vmatprep.mubr.bf16.mxu0 0
    %4223 = vmatmul.mubr.bf16.gmra.mrb[0].mxu0 %v4188
    %v4224 = vpop.f32.mrb[0].mxu0
    %v4225 = vadd.f32 0.0, %v4224
    %v4226 = vpop.f32.mrb[0].mxu0
    %v4227 = vpop.f32.mrb[0].mxu0
    %v4228 = vpop.f32.mrb[0].mxu0
    %4229 = vdwg.mxu0
    %v4230 = vmul.f32 %v4036, %v4225
    %v4231 = vadd.f32 %v4084, %v4230
    %v4232 = vadd.f32 %v4231, %v4041
    %v4233 = vtanh.pop %v4232
    %v4234 = vmul.f32 %v4137, 2.0
    %v4235 = vadd.f32 %v4089, %v4234
    %v4236 = vmul.f32 %v4185, 2.0
    %v4237 = vadd.f32 %v4235, %v4236
    %v4238 = vadd.f32 %v4237, %v4233
    %v4239 = vadd.f32 %v4238, 0.0
    %v4240 = vpack.c.bf16 %v4238, %v4238
    %v4242 = vsel %vm208, %v4240, 0
    %4244 = vmatprep.subr.bf16.mxu0 0
    %4245 = vmatpush1.bf16.msra.mxu0 %v369
    %4246 = vmatprep.subr.bf16.mxu0 0
    %4247 = vmatpush1.bf16.msra.mxu0 %v370
    %4248 = vmatprep.subr.bf16.mxu0 0
    %4249 = vmatpush1.bf16.msra.mxu0 0
    %4250 = vmatprep.subr.bf16.mxu0 0
    %4251 = vmatpush1.bf16.msra.mxu0 0
    %4252 = vmatprep.subr.bf16.mxu0 0
    %4253 = vmatpush1.bf16.msra.mxu0 0
    %4254 = vmatprep.subr.bf16.mxu0 0
    %4255 = vmatpush1.bf16.msra.mxu0 0
    %4256 = vmatprep.subr.bf16.mxu0 0
    %4257 = vmatpush1.bf16.msra.mxu0 0
    %4258 = vmatprep.subr.bf16.mxu0 0
    %4259 = vmatpush1.bf16.msra.mxu0 0
    %4260 = vmatprep.subr.bf16.mxu0 0
    %4261 = vmatpush1.bf16.msra.mxu0 0
    %4262 = vmatprep.subr.bf16.mxu0 0
    %4263 = vmatpush1.bf16.msra.mxu0 0
    %4264 = vmatprep.subr.bf16.mxu0 0
    %4265 = vmatpush1.bf16.msra.mxu0 0
    %4266 = vmatprep.subr.bf16.mxu0 0
    %4267 = vmatpush1.bf16.msra.mxu0 0
    %4268 = vmatprep.subr.bf16.mxu0 0
    %4269 = vmatpush1.bf16.msra.mxu0 0
    %4270 = vmatprep.subr.bf16.mxu0 0
    %4271 = vmatpush1.bf16.msra.mxu0 0
    %4272 = vmatprep.subr.bf16.mxu0 0
    %4273 = vmatpush1.bf16.msra.mxu0 0
    %4274 = vmatprep.subr.bf16.mxu0 0
    %4275 = vmatpush1.bf16.msra.mxu0 0
    %4276 = vmatprep.mubr.bf16.mxu0 0
    %4277 = vmatmul.mubr.bf16.gmra.mrb[0].mxu0 %v4242
    %v4278 = vpop.f32.mrb[0].mxu0
    %v4279 = vadd.f32 0.0, %v4278
    %v4280 = vpop.f32.mrb[0].mxu0
    %v4281 = vpop.f32.mrb[0].mxu0
    %v4282 = vpop.f32.mrb[0].mxu0
    %4283 = vdwg.mxu0
    %v4284 = vmul.f32 %v4039, %v4279
    %v4285 = vadd.f32 %v4084, %v4284
    %v4286 = vadd.f32 %v4285, %v4041
    %v4287 = vtanh.pop %v4286
    %v4288 = vpack.c.bf16 %v4287, %v4287
    %v4290 = vsel %vm208, %v4288, 0
    %4292 = vmatprep.subr.bf16.mxu0 0
    %4293 = vmatpush1.bf16.msra.mxu0 %v369
    %4294 = vmatprep.subr.bf16.mxu0 0
    %4295 = vmatpush1.bf16.msra.mxu0 %v370
    %4296 = vmatprep.subr.bf16.mxu0 0
    %4297 = vmatpush1.bf16.msra.mxu0 0
    %4298 = vmatprep.subr.bf16.mxu0 0
    %4299 = vmatpush1.bf16.msra.mxu0 0
    %4300 = vmatprep.subr.bf16.mxu0 0
    %4301 = vmatpush1.bf16.msra.mxu0 0
    %4302 = vmatprep.subr.bf16.mxu0 0
    %4303 = vmatpush1.bf16.msra.mxu0 0
    %4304 = vmatprep.subr.bf16.mxu0 0
    %4305 = vmatpush1.bf16.msra.mxu0 0
    %4306 = vmatprep.subr.bf16.mxu0 0
    %4307 = vmatpush1.bf16.msra.mxu0 0
    %4308 = vmatprep.subr.bf16.mxu0 0
    %4309 = vmatpush1.bf16.msra.mxu0 0
    %4310 = vmatprep.subr.bf16.mxu0 0
    %4311 = vmatpush1.bf16.msra.mxu0 0
    %4312 = vmatprep.subr.bf16.mxu0 0
    %4313 = vmatpush1.bf16.msra.mxu0 0
    %4314 = vmatprep.subr.bf16.mxu0 0
    %4315 = vmatpush1.bf16.msra.mxu0 0
    %4316 = vmatprep.subr.bf16.mxu0 0
    %4317 = vmatpush1.bf16.msra.mxu0 0
    %4318 = vmatprep.subr.bf16.mxu0 0
    %4319 = vmatpush1.bf16.msra.mxu0 0
    %4320 = vmatprep.subr.bf16.mxu0 0
    %4321 = vmatpush1.bf16.msra.mxu0 0
    %4322 = vmatprep.subr.bf16.mxu0 0
    %4323 = vmatpush1.bf16.msra.mxu0 0
    %4324 = vmatprep.mubr.bf16.mxu0 0
    %4325 = vmatmul.mubr.bf16.gmra.mrb[0].mxu0 %v4290
    %v4326 = vpop.f32.mrb[0].mxu0
    %v4327 = vadd.f32 0.0, %v4326
    %v4328 = vpop.f32.mrb[0].mxu0
    %v4329 = vpop.f32.mrb[0].mxu0
    %v4330 = vpop.f32.mrb[0].mxu0
    %4331 = vdwg.mxu0
    %v4332 = vmul.f32 %v4038, %v4327
    %v4333 = vadd.f32 %v4286, %v4332
    %v4334 = vadd.f32 %v4333, %v4040
    %v4335 = vtanh.pop %v4334
    %v4336 = vpack.c.bf16 %v4335, %v4335
    %v4338 = vsel %vm208, %v4336, 0
    %4340 = vmatprep.subr.bf16.mxu0 0
    %4341 = vmatpush1.bf16.msra.mxu0 %v369
    %4342 = vmatprep.subr.bf16.mxu0 0
    %4343 = vmatpush1.bf16.msra.mxu0 %v370
    %4344 = vmatprep.subr.bf16.mxu0 0
    %4345 = vmatpush1.bf16.msra.mxu0 0
    %4346 = vmatprep.subr.bf16.mxu0 0
    %4347 = vmatpush1.bf16.msra.mxu0 0
    %4348 = vmatprep.subr.bf16.mxu0 0
    %4349 = vmatpush1.bf16.msra.mxu0 0
    %4350 = vmatprep.subr.bf16.mxu0 0
    %4351 = vmatpush1.bf16.msra.mxu0 0
    %4352 = vmatprep.subr.bf16.mxu0 0
    %4353 = vmatpush1.bf16.msra.mxu0 0
    %4354 = vmatprep.subr.bf16.mxu0 0
    %4355 = vmatpush1.bf16.msra.mxu0 0
    %4356 = vmatprep.subr.bf16.mxu0 0
    %4357 = vmatpush1.bf16.msra.mxu0 0
    %4358 = vmatprep.subr.bf16.mxu0 0
    %4359 = vmatpush1.bf16.msra.mxu0 0
    %4360 = vmatprep.subr.bf16.mxu0 0
    %4361 = vmatpush1.bf16.msra.mxu0 0
    %4362 = vmatprep.subr.bf16.mxu0 0
    %4363 = vmatpush1.bf16.msra.mxu0 0
    %4364 = vmatprep.subr.bf16.mxu0 0
    %4365 = vmatpush1.bf16.msra.mxu0 0
    %4366 = vmatprep.subr.bf16.mxu0 0
    %4367 = vmatpush1.bf16.msra.mxu0 0
    %4368 = vmatprep.subr.bf16.mxu0 0
    %4369 = vmatpush1.bf16.msra.mxu0 0
    %4370 = vmatprep.subr.bf16.mxu0 0
    %4371 = vmatpush1.bf16.msra.mxu0 0
    %4372 = vmatprep.mubr.bf16.mxu0 0
    %4373 = vmatmul.mubr.bf16.gmra.mrb[0].mxu0 %v4338
    %v4374 = vpop.f32.mrb[0].mxu0
    %v4375 = vadd.f32 0.0, %v4374
    %v4376 = vpop.f32.mrb[0].mxu0
    %v4377 = vpop.f32.mrb[0].mxu0
    %v4378 = vpop.f32.mrb[0].mxu0
    %4379 = vdwg.mxu0
    %v4380 = vmul.f32 %v4038, %v4375
    %v4381 = vadd.f32 %v4286, %v4380
    %v4382 = vadd.f32 %v4381, %v4040
    %v4383 = vtanh.pop %v4382
    %v4384 = vpack.c.bf16 %v4383, %v4383
    %v4386 = vsel %vm208, %v4384, 0
    %4388 = vmatprep.subr.bf16.mxu0 0
    %4389 = vmatpush1.bf16.msra.mxu0 %v369
    %4390 = vmatprep.subr.bf16.mxu0 0
    %4391 = vmatpush1.bf16.msra.mxu0 %v370
    %4392 = vmatprep.subr.bf16.mxu0 0
    %4393 = vmatpush1.bf16.msra.mxu0 0
    %4394 = vmatprep.subr.bf16.mxu0 0
    %4395 = vmatpush1.bf16.msra.mxu0 0
    %4396 = vmatprep.subr.bf16.mxu0 0
    %4397 = vmatpush1.bf16.msra.mxu0 0
    %4398 = vmatprep.subr.bf16.mxu0 0
    %4399 = vmatpush1.bf16.msra.mxu0 0
    %4400 = vmatprep.subr.bf16.mxu0 0
    %4401 = vmatpush1.bf16.msra.mxu0 0
    %4402 = vmatprep.subr.bf16.mxu0 0
    %4403 = vmatpush1.bf16.msra.mxu0 0
    %4404 = vmatprep.subr.bf16.mxu0 0
    %4405 = vmatpush1.bf16.msra.mxu0 0
    %4406 = vmatprep.subr.bf16.mxu0 0
    %4407 = vmatpush1.bf16.msra.mxu0 0
    %4408 = vmatprep.subr.bf16.mxu0 0
    %4409 = vmatpush1.bf16.msra.mxu0 0
    %4410 = vmatprep.subr.bf16.mxu0 0
    %4411 = vmatpush1.bf16.msra.mxu0 0
    %4412 = vmatprep.subr.bf16.mxu0 0
    %4413 = vmatpush1.bf16.msra.mxu0 0
    %4414 = vmatprep.subr.bf16.mxu0 0
    %4415 = vmatpush1.bf16.msra.mxu0 0
    %4416 = vmatprep.subr.bf16.mxu0 0
    %4417 = vmatpush1.bf16.msra.mxu0 0
    %4418 = vmatprep.subr.bf16.mxu0 0
    %4419 = vmatpush1.bf16.msra.mxu0 0
    %4420 = vmatprep.mubr.bf16.mxu0 0
    %4421 = vmatmul.mubr.bf16.gmra.mrb[0].mxu0 %v4386
    %v4422 = vpop.f32.mrb[0].mxu0
    %v4423 = vadd.f32 0.0, %v4422
    %v4424 = vpop.f32.mrb[0].mxu0
    %v4425 = vpop.f32.mrb[0].mxu0
    %v4426 = vpop.f32.mrb[0].mxu0
    %4427 = vdwg.mxu0
    %v4428 = vmul.f32 %v4036, %v4423
    %v4429 = vadd.f32 %v4286, %v4428
    %v4430 = vadd.f32 %v4429, %v4041
    %v4431 = vtanh.pop %v4430
    %v4432 = vmul.f32 %v4335, 2.0
    %v4433 = vadd.f32 %v4287, %v4432
    %v4434 = vmul.f32 %v4383, 2.0
    %v4435 = vadd.f32 %v4433, %v4434
    %v4436 = vadd.f32 %v4435, %v4431
    %v4437 = vadd.f32 %v4239, %v4436
    %v4438 = vpack.c.bf16 %v4436, %v4436
    %v4440 = vsel %vm208, %v4438, 0
    %4442 = vmatprep.subr.bf16.mxu0 0
    %4443 = vmatpush1.bf16.msra.mxu0 %v369
    %4444 = vmatprep.subr.bf16.mxu0 0
    %4445 = vmatpush1.bf16.msra.mxu0 %v370
    %4446 = vmatprep.subr.bf16.mxu0 0
    %4447 = vmatpush1.bf16.msra.mxu0 0
    %4448 = vmatprep.subr.bf16.mxu0 0
    %4449 = vmatpush1.bf16.msra.mxu0 0
    %4450 = vmatprep.subr.bf16.mxu0 0
    %4451 = vmatpush1.bf16.msra.mxu0 0
    %4452 = vmatprep.subr.bf16.mxu0 0
    %4453 = vmatpush1.bf16.msra.mxu0 0
    %4454 = vmatprep.subr.bf16.mxu0 0
    %4455 = vmatpush1.bf16.msra.mxu0 0
    %4456 = vmatprep.subr.bf16.mxu0 0
    %4457 = vmatpush1.bf16.msra.mxu0 0
    %4458 = vmatprep.subr.bf16.mxu0 0
    %4459 = vmatpush1.bf16.msra.mxu0 0
    %4460 = vmatprep.subr.bf16.mxu0 0
    %4461 = vmatpush1.bf16.msra.mxu0 0
    %4462 = vmatprep.subr.bf16.mxu0 0
    %4463 = vmatpush1.bf16.msra.mxu0 0
    %4464 = vmatprep.subr.bf16.mxu0 0
    %4465 = vmatpush1.bf16.msra.mxu0 0
    %4466 = vmatprep.subr.bf16.mxu0 0
    %4467 = vmatpush1.bf16.msra.mxu0 0
    %4468 = vmatprep.subr.bf16.mxu0 0
    %4469 = vmatpush1.bf16.msra.mxu0 0
    %4470 = vmatprep.subr.bf16.mxu0 0
    %4471 = vmatpush1.bf16.msra.mxu0 0
    %4472 = vmatprep.subr.bf16.mxu0 0
    %4473 = vmatpush1.bf16.msra.mxu0 0
    %4474 = vmatprep.mubr.bf16.mxu0 0
    %4475 = vmatmul.mubr.bf16.gmra.mrb[0].mxu0 %v4440
    %v4476 = vpop.f32.mrb[0].mxu0
    %v4477 = vadd.f32 0.0, %v4476
    %v4478 = vpop.f32.mrb[0].mxu0
    %v4479 = vpop.f32.mrb[0].mxu0
    %v4480 = vpop.f32.mrb[0].mxu0
    %4481 = vdwg.mxu0
    %v4482 = vmul.f32 %v4039, %v4477
    %v4483 = vadd.f32 %v4286, %v4482
    %v4484 = vadd.f32 %v4483, %v4041
    %v4485 = vtanh.pop %v4484
    %v4486 = vpack.c.bf16 %v4485, %v4485
    %v4488 = vsel %vm208, %v4486, 0
    %4490 = vmatprep.subr.bf16.mxu0 0
    %4491 = vmatpush1.bf16.msra.mxu0 %v369
    %4492 = vmatprep.subr.bf16.mxu0 0
    %4493 = vmatpush1.bf16.msra.mxu0 %v370
    %4494 = vmatprep.subr.bf16.mxu0 0
    %4495 = vmatpush1.bf16.msra.mxu0 0
    %4496 = vmatprep.subr.bf16.mxu0 0
    %4497 = vmatpush1.bf16.msra.mxu0 0
    %4498 = vmatprep.subr.bf16.mxu0 0
    %4499 = vmatpush1.bf16.msra.mxu0 0
    %4500 = vmatprep.subr.bf16.mxu0 0
    %4501 = vmatpush1.bf16.msra.mxu0 0
    %4502 = vmatprep.subr.bf16.mxu0 0
    %4503 = vmatpush1.bf16.msra.mxu0 0
    %4504 = vmatprep.subr.bf16.mxu0 0
    %4505 = vmatpush1.bf16.msra.mxu0 0
    %4506 = vmatprep.subr.bf16.mxu0 0
    %4507 = vmatpush1.bf16.msra.mxu0 0
    %4508 = vmatprep.subr.bf16.mxu0 0
    %4509 = vmatpush1.bf16.msra.mxu0 0
    %4510 = vmatprep.subr.bf16.mxu0 0
    %4511 = vmatpush1.bf16.msra.mxu0 0
    %4512 = vmatprep.subr.bf16.mxu0 0
    %4513 = vmatpush1.bf16.msra.mxu0 0
    %4514 = vmatprep.subr.bf16.mxu0 0
    %4515 = vmatpush1.bf16.msra.mxu0 0
    %4516 = vmatprep.subr.bf16.mxu0 0
    %4517 = vmatpush1.bf16.msra.mxu0 0
    %4518 = vmatprep.subr.bf16.mxu0 0
    %4519 = vmatpush1.bf16.msra.mxu0 0
    %4520 = vmatprep.subr.bf16.mxu0 0
    %4521 = vmatpush1.bf16.msra.mxu0 0
    %4522 = vmatprep.mubr.bf16.mxu0 0
    %4523 = vmatmul.mubr.bf16.gmra.mrb[0].mxu0 %v4488
    %v4524 = vpop.f32.mrb[0].mxu0
    %v4525 = vadd.f32 0.0, %v4524
    %v4526 = vpop.f32.mrb[0].mxu0
    %v4527 = vpop.f32.mrb[0].mxu0
    %v4528 = vpop.f32.mrb[0].mxu0
    %4529 = vdwg.mxu0
    %v4530 = vmul.f32 %v4038, %v4525
    %v4531 = vadd.f32 %v4484, %v4530
    %v4532 = vadd.f32 %v4531, %v4040
    %v4533 = vtanh.pop %v4532
    %v4534 = vpack.c.bf16 %v4533, %v4533
    %v4536 = vsel %vm208, %v4534, 0
    %4538 = vmatprep.subr.bf16.mxu0 0
    %4539 = vmatpush1.bf16.msra.mxu0 %v369
    %4540 = vmatprep.subr.bf16.mxu0 0
    %4541 = vmatpush1.bf16.msra.mxu0 %v370
    %4542 = vmatprep.subr.bf16.mxu0 0
    %4543 = vmatpush1.bf16.msra.mxu0 0
    %4544 = vmatprep.subr.bf16.mxu0 0
    %4545 = vmatpush1.bf16.msra.mxu0 0
    %4546 = vmatprep.subr.bf16.mxu0 0
    %4547 = vmatpush1.bf16.msra.mxu0 0
    %4548 = vmatprep.subr.bf16.mxu0 0
    %4549 = vmatpush1.bf16.msra.mxu0 0
    %4550 = vmatprep.subr.bf16.mxu0 0
    %4551 = vmatpush1.bf16.msra.mxu0 0
    %4552 = vmatprep.subr.bf16.mxu0 0
    %4553 = vmatpush1.bf16.msra.mxu0 0
    %4554 = vmatprep.subr.bf16.mxu0 0
    %4555 = vmatpush1.bf16.msra.mxu0 0
    %4556 = vmatprep.subr.bf16.mxu0 0
    %4557 = vmatpush1.bf16.msra.mxu0 0
    %4558 = vmatprep.subr.bf16.mxu0 0
    %4559 = vmatpush1.bf16.msra.mxu0 0
    %4560 = vmatprep.subr.bf16.mxu0 0
    %4561 = vmatpush1.bf16.msra.mxu0 0
    %4562 = vmatprep.subr.bf16.mxu0 0
    %4563 = vmatpush1.bf16.msra.mxu0 0
    %4564 = vmatprep.subr.bf16.mxu0 0
    %4565 = vmatpush1.bf16.msra.mxu0 0
    %4566 = vmatprep.subr.bf16.mxu0 0
    %4567 = vmatpush1.bf16.msra.mxu0 0
    %4568 = vmatprep.subr.bf16.mxu0 0
    %4569 = vmatpush1.bf16.msra.mxu0 0
    %4570 = vmatprep.mubr.bf16.mxu0 0
    %4571 = vmatmul.mubr.bf16.gmra.mrb[0].mxu0 %v4536
    %v4572 = vpop.f32.mrb[0].mxu0
    %v4573 = vadd.f32 0.0, %v4572
    %v4574 = vpop.f32.mrb[0].mxu0
    %v4575 = vpop.f32.mrb[0].mxu0
    %v4576 = vpop.f32.mrb[0].mxu0
    %4577 = vdwg.mxu0
    %v4578 = vmul.f32 %v4038, %v4573
    %v4579 = vadd.f32 %v4484, %v4578
    %v4580 = vadd.f32 %v4579, %v4040
    %v4581 = vtanh.pop %v4580
    %v4582 = vpack.c.bf16 %v4581, %v4581
    %v4584 = vsel %vm208, %v4582, 0
    %4586 = vmatprep.subr.bf16.mxu0 0
    %4587 = vmatpush1.bf16.msra.mxu0 %v369
    %4588 = vmatprep.subr.bf16.mxu0 0
    %4589 = vmatpush1.bf16.msra.mxu0 %v370
    %4590 = vmatprep.subr.bf16.mxu0 0
    %4591 = vmatpush1.bf16.msra.mxu0 0
    %4592 = vmatprep.subr.bf16.mxu0 0
    %4593 = vmatpush1.bf16.msra.mxu0 0
    %4594 = vmatprep.subr.bf16.mxu0 0
    %4595 = vmatpush1.bf16.msra.mxu0 0
    %4596 = vmatprep.subr.bf16.mxu0 0
    %4597 = vmatpush1.bf16.msra.mxu0 0
    %4598 = vmatprep.subr.bf16.mxu0 0
    %4599 = vmatpush1.bf16.msra.mxu0 0
    %4600 = vmatprep.subr.bf16.mxu0 0
    %4601 = vmatpush1.bf16.msra.mxu0 0
    %4602 = vmatprep.subr.bf16.mxu0 0
    %4603 = vmatpush1.bf16.msra.mxu0 0
    %4604 = vmatprep.subr.bf16.mxu0 0
    %4605 = vmatpush1.bf16.msra.mxu0 0
    %4606 = vmatprep.subr.bf16.mxu0 0
    %4607 = vmatpush1.bf16.msra.mxu0 0
    %4608 = vmatprep.subr.bf16.mxu0 0
    %4609 = vmatpush1.bf16.msra.mxu0 0
    %4610 = vmatprep.subr.bf16.mxu0 0
    %4611 = vmatpush1.bf16.msra.mxu0 0
    %4612 = vmatprep.subr.bf16.mxu0 0
    %4613 = vmatpush1.bf16.msra.mxu0 0
    %4614 = vmatprep.subr.bf16.mxu0 0
    %4615 = vmatpush1.bf16.msra.mxu0 0
    %4616 = vmatprep.subr.bf16.mxu0 0
    %4617 = vmatpush1.bf16.msra.mxu0 0
    %4618 = vmatprep.mubr.bf16.mxu0 0
    %4619 = vmatmul.mubr.bf16.gmra.mrb[0].mxu0 %v4584
    %v4620 = vpop.f32.mrb[0].mxu0
    %v4621 = vadd.f32 0.0, %v4620
    %v4622 = vpop.f32.mrb[0].mxu0
    %v4623 = vpop.f32.mrb[0].mxu0
    %v4624 = vpop.f32.mrb[0].mxu0
    %4625 = vdwg.mxu0
    %v4626 = vmul.f32 %v4036, %v4621
    %v4627 = vadd.f32 %v4484, %v4626
    %v4628 = vadd.f32 %v4627, %v4041
    %v4629 = vtanh.pop %v4628
    %v4630 = vmul.f32 %v4533, 2.0
    %v4631 = vadd.f32 %v4485, %v4630
    %v4632 = vmul.f32 %v4581, 2.0
    %v4633 = vadd.f32 %v4631, %v4632
    %v4634 = vadd.f32 %v4633, %v4629
    %v4635 = vadd.f32 %v4437, %v4634
    %v4636 = vpack.c.bf16 %v4635, %v4635
    %v4638 = vsel %vm208, %v4636, 0
    %4640 = vmatprep.subr.bf16.mxu0 0
    %4641 = vmatpush1.bf16.msra.mxu0 %v927
    %4642 = vmatprep.subr.bf16.mxu0 0
    %4643 = vmatpush1.bf16.msra.mxu0 %v928
    %4644 = vmatprep.subr.bf16.mxu0 0
    %4645 = vmatpush1.bf16.msra.mxu0 0
    %4646 = vmatprep.subr.bf16.mxu0 0
    %4647 = vmatpush1.bf16.msra.mxu0 0
    %4648 = vmatprep.subr.bf16.mxu0 0
    %4649 = vmatpush1.bf16.msra.mxu0 0
    %4650 = vmatprep.subr.bf16.mxu0 0
    %4651 = vmatpush1.bf16.msra.mxu0 0
    %4652 = vmatprep.subr.bf16.mxu0 0
    %4653 = vmatpush1.bf16.msra.mxu0 0
    %4654 = vmatprep.subr.bf16.mxu0 0
    %4655 = vmatpush1.bf16.msra.mxu0 0
    %4656 = vmatprep.subr.bf16.mxu0 0
    %4657 = vmatpush1.bf16.msra.mxu0 0
    %4658 = vmatprep.subr.bf16.mxu0 0
    %4659 = vmatpush1.bf16.msra.mxu0 0
    %4660 = vmatprep.subr.bf16.mxu0 0
    %4661 = vmatpush1.bf16.msra.mxu0 0
    %4662 = vmatprep.subr.bf16.mxu0 0
    %4663 = vmatpush1.bf16.msra.mxu0 0
    %4664 = vmatprep.subr.bf16.mxu0 0
    %4665 = vmatpush1.bf16.msra.mxu0 0
    %4666 = vmatprep.subr.bf16.mxu0 0
    %4667 = vmatpush1.bf16.msra.mxu0 0
    %4668 = vmatprep.subr.bf16.mxu0 0
    %4669 = vmatpush1.bf16.msra.mxu0 0
    %4670 = vmatprep.subr.bf16.mxu0 0
    %4671 = vmatpush1.bf16.msra.mxu0 0
    %4672 = vmatprep.mubr.bf16.mxu0 0
    %4673 = vmatmul.mubr.bf16.gmra.mrb[0].mxu0 %v4638
    %v4674 = vpop.f32.mrb[0].mxu0
    %v4675 = vadd.f32 0.0, %v4674
    %v4676 = vpop.f32.mrb[0].mxu0
    %v4677 = vpop.f32.mrb[0].mxu0
    %v4678 = vpop.f32.mrb[0].mxu0
    %4679 = vdwg.mxu0
    %v4680 = vmul.f32 %v4039, %v4675
    %4682 = vrot.lane.b32.xlu0 %v4680, 64
    %v4683 = vpop.permute.xlu0 %4682
    %v4685 = vadd.f32 %v4029, %v4683
    %v4686 = vmul.f32 %v4036, %v984
    %4688 = vrot.lane.b32.xlu0 %v4686, 64
    %v4689 = vpop.permute.xlu0 %4688
    %v4691 = vadd.f32 %v4685, %v4689
    %4693 = vrot.lane.b32.xlu0 %v4691, 64
    %v4694 = vpop.permute.xlu0 %4693
    %4696 = vst.msk [vmem:[#allocation3 + $0x28] sm:$0xff] %vm208, %v4694
    %v4697 = vld [vmem:[#allocation2 + $0x30] sm:$0xff]
    %v4698 = vpack.c.bf16 %v4691, %v4691
    %4700 = vrot.lane.b32.xlu0 %v4698, 64
    %v4701 = vpop.permute.xlu0 %4700
    %v4703 = vsel %vm208, %v4701, 0
    %4705 = vmatprep.subr.bf16.mxu0 0
    %4706 = vmatpush1.bf16.msra.mxu0 %v204
    %4707 = vmatprep.subr.bf16.mxu0 0
    %4708 = vmatpush1.bf16.msra.mxu0 %v205
    %4709 = vmatprep.subr.bf16.mxu0 0
    %4710 = vmatpush1.bf16.msra.mxu0 0
    %4711 = vmatprep.subr.bf16.mxu0 0
    %4712 = vmatpush1.bf16.msra.mxu0 0
    %4713 = vmatprep.subr.bf16.mxu0 0
    %4714 = vmatpush1.bf16.msra.mxu0 0
    %4715 = vmatprep.subr.bf16.mxu0 0
    %4716 = vmatpush1.bf16.msra.mxu0 0
    %4717 = vmatprep.subr.bf16.mxu0 0
    %4718 = vmatpush1.bf16.msra.mxu0 0
    %4719 = vmatprep.subr.bf16.mxu0 0
    %4720 = vmatpush1.bf16.msra.mxu0 0
    %4721 = vmatprep.subr.bf16.mxu0 0
    %4722 = vmatpush1.bf16.msra.mxu0 0
    %4723 = vmatprep.subr.bf16.mxu0 0
    %4724 = vmatpush1.bf16.msra.mxu0 0
    %4725 = vmatprep.subr.bf16.mxu0 0
    %4726 = vmatpush1.bf16.msra.mxu0 0
    %4727 = vmatprep.subr.bf16.mxu0 0
    %4728 = vmatpush1.bf16.msra.mxu0 0
    %4729 = vmatprep.subr.bf16.mxu0 0
    %4730 = vmatpush1.bf16.msra.mxu0 0
    %4731 = vmatprep.subr.bf16.mxu0 0
    %4732 = vmatpush1.bf16.msra.mxu0 0
    %4733 = vmatprep.subr.bf16.mxu0 0
    %4734 = vmatpush1.bf16.msra.mxu0 0
    %4735 = vmatprep.subr.bf16.mxu0 0
    %4736 = vmatpush1.bf16.msra.mxu0 0
    %4737 = vmatprep.mubr.bf16.mxu0 0
    %4738 = vmatmul.mubr.bf16.gmra.mrb[0].mxu0 %v4703
    %v4739 = vpop.f32.mrb[0].mxu0
    %v4740 = vadd.f32 0.0, %v4739
    %v4741 = vpop.f32.mrb[0].mxu0
    %v4742 = vpop.f32.mrb[0].mxu0
    %v4743 = vpop.f32.mrb[0].mxu0
    %4744 = vdwg.mxu0
    %v4745 = vadd.f32 %v4697, %v4740
    %v4746 = vxor.u32 %v4745, 2147483648
    %v4747 = vmul.f32 %v4746, 1.442695
    %v4748 = vpow.pop %v4747
    %v4749 = vadd.f32 %v4748, 1.0
    %v4750 = vrcp.pop %v4749
    %v4751 = vmul.f32 1.0, %v4750
    %v4752 = vtanh.pop %v4745
    %v4753 = vmul.f32 %v4751, %v4023
    %4755 = vrot.lane.b32.xlu0 %v4752, 32
    %v4756 = vpop.permute.xlu0 %4755
    %v4758 = vmul.f32 %v4751, %v4756
    %4760 = vrot.lane.b32.xlu0 %v4758, 32
    %v4761 = vpop.permute.xlu0 %4760
    %v4763 = vadd.f32 %v4753, %v4761
    %v4764 = vtanh.pop %v4763
    %4766 = vrot.lane.b32.xlu0 %v4764, 32
    %v4767 = vpop.permute.xlu0 %4766
    %v4769 = vmul.f32 %v4751, %v4767
    %s4770 = scalar_lea.vmem %s1, 48
    %v4771 = vld [vmem:[%s4770] sm:$0xff]
    %v4772 = vmul.f32 %v4771, 0.33333334
    %4774 = vset.pattern.permute.xlu0 0
    %4775 = vperm.xlu0 %4774, %v4772
    %v4776 = vpop.permute.xlu0 %4775
    %v4778 = vmul.f32 %v4776, 0.5
    %v4779 = vmul.f32 %v4776, 0.16666667
    %v4780 = vmul.f32 %v4778, %v290
    %v4781 = vmul.f32 %v4776, %v290
    %v4782 = vpack.c.bf16 %v4769, %v4769
    %4784 = vrot.lane.b32.xlu0 %v4782, 64
    %v4785 = vpop.permute.xlu0 %4784
    %v4787 = vsel %vm208, %v4785, 0
    %4789 = vmatprep.subr.bf16.mxu0 0
    %4790 = vmatpush1.bf16.msra.mxu0 %v312
    %4791 = vmatprep.subr.bf16.mxu0 0
    %4792 = vmatpush1.bf16.msra.mxu0 %v313
    %4793 = vmatprep.subr.bf16.mxu0 0
    %4794 = vmatpush1.bf16.msra.mxu0 0
    %4795 = vmatprep.subr.bf16.mxu0 0
    %4796 = vmatpush1.bf16.msra.mxu0 0
    %4797 = vmatprep.subr.bf16.mxu0 0
    %4798 = vmatpush1.bf16.msra.mxu0 0
    %4799 = vmatprep.subr.bf16.mxu0 0
    %4800 = vmatpush1.bf16.msra.mxu0 0
    %4801 = vmatprep.subr.bf16.mxu0 0
    %4802 = vmatpush1.bf16.msra.mxu0 0
    %4803 = vmatprep.subr.bf16.mxu0 0
    %4804 = vmatpush1.bf16.msra.mxu0 0
    %4805 = vmatprep.subr.bf16.mxu0 0
    %4806 = vmatpush1.bf16.msra.mxu0 0
    %4807 = vmatprep.subr.bf16.mxu0 0
    %4808 = vmatpush1.bf16.msra.mxu0 0
    %4809 = vmatprep.subr.bf16.mxu0 0
    %4810 = vmatpush1.bf16.msra.mxu0 0
    %4811 = vmatprep.subr.bf16.mxu0 0
    %4812 = vmatpush1.bf16.msra.mxu0 0
    %4813 = vmatprep.subr.bf16.mxu0 0
    %4814 = vmatpush1.bf16.msra.mxu0 0
    %4815 = vmatprep.subr.bf16.mxu0 0
    %4816 = vmatpush1.bf16.msra.mxu0 0
    %4817 = vmatprep.subr.bf16.mxu0 0
    %4818 = vmatpush1.bf16.msra.mxu0 0
    %4819 = vmatprep.subr.bf16.mxu0 0
    %4820 = vmatpush1.bf16.msra.mxu0 0
    %4821 = vmatprep.mubr.bf16.mxu0 0
    %4822 = vmatmul.mubr.bf16.gmra.mrb[0].mxu0 %v4787
    %v4823 = vpop.f32.mrb[0].mxu0
    %v4824 = vadd.f32 %v299, %v4823
    %v4825 = vpop.f32.mrb[0].mxu0
    %v4826 = vpop.f32.mrb[0].mxu0
    %v4827 = vpop.f32.mrb[0].mxu0
    %4828 = vdwg.mxu0
    %v4829 = vtanh.pop %v4824
    %v4830 = vpack.c.bf16 %v4829, %v4829
    %v4832 = vsel %vm208, %v4830, 0
    %4834 = vmatprep.subr.bf16.mxu0 0
    %4835 = vmatpush1.bf16.msra.mxu0 %v369
    %4836 = vmatprep.subr.bf16.mxu0 0
    %4837 = vmatpush1.bf16.msra.mxu0 %v370
    %4838 = vmatprep.subr.bf16.mxu0 0
    %4839 = vmatpush1.bf16.msra.mxu0 0
    %4840 = vmatprep.subr.bf16.mxu0 0
    %4841 = vmatpush1.bf16.msra.mxu0 0
    %4842 = vmatprep.subr.bf16.mxu0 0
    %4843 = vmatpush1.bf16.msra.mxu0 0
    %4844 = vmatprep.subr.bf16.mxu0 0
    %4845 = vmatpush1.bf16.msra.mxu0 0
    %4846 = vmatprep.subr.bf16.mxu0 0
    %4847 = vmatpush1.bf16.msra.mxu0 0
    %4848 = vmatprep.subr.bf16.mxu0 0
    %4849 = vmatpush1.bf16.msra.mxu0 0
    %4850 = vmatprep.subr.bf16.mxu0 0
    %4851 = vmatpush1.bf16.msra.mxu0 0
    %4852 = vmatprep.subr.bf16.mxu0 0
    %4853 = vmatpush1.bf16.msra.mxu0 0
    %4854 = vmatprep.subr.bf16.mxu0 0
    %4855 = vmatpush1.bf16.msra.mxu0 0
    %4856 = vmatprep.subr.bf16.mxu0 0
    %4857 = vmatpush1.bf16.msra.mxu0 0
    %4858 = vmatprep.subr.bf16.mxu0 0
    %4859 = vmatpush1.bf16.msra.mxu0 0
    %4860 = vmatprep.subr.bf16.mxu0 0
    %4861 = vmatpush1.bf16.msra.mxu0 0
    %4862 = vmatprep.subr.bf16.mxu0 0
    %4863 = vmatpush1.bf16.msra.mxu0 0
    %4864 = vmatprep.subr.bf16.mxu0 0
    %4865 = vmatpush1.bf16.msra.mxu0 0
    %4866 = vmatprep.mubr.bf16.mxu0 0
    %4867 = vmatmul.mubr.bf16.gmra.mrb[0].mxu0 %v4832
    %v4868 = vpop.f32.mrb[0].mxu0
    %v4869 = vadd.f32 0.0, %v4868
    %v4870 = vpop.f32.mrb[0].mxu0
    %v4871 = vpop.f32.mrb[0].mxu0
    %v4872 = vpop.f32.mrb[0].mxu0
    %4873 = vdwg.mxu0
    %v4874 = vmul.f32 %v4778, %v4869
    %v4875 = vadd.f32 %v4824, %v4874
    %v4876 = vadd.f32 %v4875, %v4780
    %v4877 = vtanh.pop %v4876
    %v4878 = vpack.c.bf16 %v4877, %v4877
    %v4880 = vsel %vm208, %v4878, 0
    %4882 = vmatprep.subr.bf16.mxu0 0
    %4883 = vmatpush1.bf16.msra.mxu0 %v369
    %4884 = vmatprep.subr.bf16.mxu0 0
    %4885 = vmatpush1.bf16.msra.mxu0 %v370
    %4886 = vmatprep.subr.bf16.mxu0 0
    %4887 = vmatpush1.bf16.msra.mxu0 0
    %4888 = vmatprep.subr.bf16.mxu0 0
    %4889 = vmatpush1.bf16.msra.mxu0 0
    %4890 = vmatprep.subr.bf16.mxu0 0
    %4891 = vmatpush1.bf16.msra.mxu0 0
    %4892 = vmatprep.subr.bf16.mxu0 0
    %4893 = vmatpush1.bf16.msra.mxu0 0
    %4894 = vmatprep.subr.bf16.mxu0 0
    %4895 = vmatpush1.bf16.msra.mxu0 0
    %4896 = vmatprep.subr.bf16.mxu0 0
    %4897 = vmatpush1.bf16.msra.mxu0 0
    %4898 = vmatprep.subr.bf16.mxu0 0
    %4899 = vmatpush1.bf16.msra.mxu0 0
    %4900 = vmatprep.subr.bf16.mxu0 0
    %4901 = vmatpush1.bf16.msra.mxu0 0
    %4902 = vmatprep.subr.bf16.mxu0 0
    %4903 = vmatpush1.bf16.msra.mxu0 0
    %4904 = vmatprep.subr.bf16.mxu0 0
    %4905 = vmatpush1.bf16.msra.mxu0 0
    %4906 = vmatprep.subr.bf16.mxu0 0
    %4907 = vmatpush1.bf16.msra.mxu0 0
    %4908 = vmatprep.subr.bf16.mxu0 0
    %4909 = vmatpush1.bf16.msra.mxu0 0
    %4910 = vmatprep.subr.bf16.mxu0 0
    %4911 = vmatpush1.bf16.msra.mxu0 0
    %4912 = vmatprep.subr.bf16.mxu0 0
    %4913 = vmatpush1.bf16.msra.mxu0 0
    %4914 = vmatprep.mubr.bf16.mxu0 0
    %4915 = vmatmul.mubr.bf16.gmra.mrb[0].mxu0 %v4880
    %v4916 = vpop.f32.mrb[0].mxu0
    %v4917 = vadd.f32 0.0, %v4916
    %v4918 = vpop.f32.mrb[0].mxu0
    %v4919 = vpop.f32.mrb[0].mxu0
    %v4920 = vpop.f32.mrb[0].mxu0
    %4921 = vdwg.mxu0
    %v4922 = vmul.f32 %v4778, %v4917
    %v4923 = vadd.f32 %v4824, %v4922
    %v4924 = vadd.f32 %v4923, %v4780
    %v4925 = vtanh.pop %v4924
    %v4926 = vpack.c.bf16 %v4925, %v4925
    %v4928 = vsel %vm208, %v4926, 0
    %4930 = vmatprep.subr.bf16.mxu0 0
    %4931 = vmatpush1.bf16.msra.mxu0 %v369
    %4932 = vmatprep.subr.bf16.mxu0 0
    %4933 = vmatpush1.bf16.msra.mxu0 %v370
    %4934 = vmatprep.subr.bf16.mxu0 0
    %4935 = vmatpush1.bf16.msra.mxu0 0
    %4936 = vmatprep.subr.bf16.mxu0 0
    %4937 = vmatpush1.bf16.msra.mxu0 0
    %4938 = vmatprep.subr.bf16.mxu0 0
    %4939 = vmatpush1.bf16.msra.mxu0 0
    %4940 = vmatprep.subr.bf16.mxu0 0
    %4941 = vmatpush1.bf16.msra.mxu0 0
    %4942 = vmatprep.subr.bf16.mxu0 0
    %4943 = vmatpush1.bf16.msra.mxu0 0
    %4944 = vmatprep.subr.bf16.mxu0 0
    %4945 = vmatpush1.bf16.msra.mxu0 0
    %4946 = vmatprep.subr.bf16.mxu0 0
    %4947 = vmatpush1.bf16.msra.mxu0 0
    %4948 = vmatprep.subr.bf16.mxu0 0
    %4949 = vmatpush1.bf16.msra.mxu0 0
    %4950 = vmatprep.subr.bf16.mxu0 0
    %4951 = vmatpush1.bf16.msra.mxu0 0
    %4952 = vmatprep.subr.bf16.mxu0 0
    %4953 = vmatpush1.bf16.msra.mxu0 0
    %4954 = vmatprep.subr.bf16.mxu0 0
    %4955 = vmatpush1.bf16.msra.mxu0 0
    %4956 = vmatprep.subr.bf16.mxu0 0
    %4957 = vmatpush1.bf16.msra.mxu0 0
    %4958 = vmatprep.subr.bf16.mxu0 0
    %4959 = vmatpush1.bf16.msra.mxu0 0
    %4960 = vmatprep.subr.bf16.mxu0 0
    %4961 = vmatpush1.bf16.msra.mxu0 0
    %4962 = vmatprep.mubr.bf16.mxu0 0
    %4963 = vmatmul.mubr.bf16.gmra.mrb[0].mxu0 %v4928
    %v4964 = vpop.f32.mrb[0].mxu0
    %v4965 = vadd.f32 0.0, %v4964
    %v4966 = vpop.f32.mrb[0].mxu0
    %v4967 = vpop.f32.mrb[0].mxu0
    %v4968 = vpop.f32.mrb[0].mxu0
    %4969 = vdwg.mxu0
    %v4970 = vmul.f32 %v4776, %v4965
    %v4971 = vadd.f32 %v4824, %v4970
    %v4972 = vadd.f32 %v4971, %v4781
    %v4973 = vtanh.pop %v4972
    %v4974 = vmul.f32 %v4877, 2.0
    %v4975 = vadd.f32 %v4829, %v4974
    %v4976 = vmul.f32 %v4925, 2.0
    %v4977 = vadd.f32 %v4975, %v4976
    %v4978 = vadd.f32 %v4977, %v4973
    %v4979 = vadd.f32 %v4978, 0.0
    %v4980 = vpack.c.bf16 %v4978, %v4978
    %v4982 = vsel %vm208, %v4980, 0
    %4984 = vmatprep.subr.bf16.mxu0 0
    %4985 = vmatpush1.bf16.msra.mxu0 %v369
    %4986 = vmatprep.subr.bf16.mxu0 0
    %4987 = vmatpush1.bf16.msra.mxu0 %v370
    %4988 = vmatprep.subr.bf16.mxu0 0
    %4989 = vmatpush1.bf16.msra.mxu0 0
    %4990 = vmatprep.subr.bf16.mxu0 0
    %4991 = vmatpush1.bf16.msra.mxu0 0
    %4992 = vmatprep.subr.bf16.mxu0 0
    %4993 = vmatpush1.bf16.msra.mxu0 0
    %4994 = vmatprep.subr.bf16.mxu0 0
    %4995 = vmatpush1.bf16.msra.mxu0 0
    %4996 = vmatprep.subr.bf16.mxu0 0
    %4997 = vmatpush1.bf16.msra.mxu0 0
    %4998 = vmatprep.subr.bf16.mxu0 0
    %4999 = vmatpush1.bf16.msra.mxu0 0
    %5000 = vmatprep.subr.bf16.mxu0 0
    %5001 = vmatpush1.bf16.msra.mxu0 0
    %5002 = vmatprep.subr.bf16.mxu0 0
    %5003 = vmatpush1.bf16.msra.mxu0 0
    %5004 = vmatprep.subr.bf16.mxu0 0
    %5005 = vmatpush1.bf16.msra.mxu0 0
    %5006 = vmatprep.subr.bf16.mxu0 0
    %5007 = vmatpush1.bf16.msra.mxu0 0
    %5008 = vmatprep.subr.bf16.mxu0 0
    %5009 = vmatpush1.bf16.msra.mxu0 0
    %5010 = vmatprep.subr.bf16.mxu0 0
    %5011 = vmatpush1.bf16.msra.mxu0 0
    %5012 = vmatprep.subr.bf16.mxu0 0
    %5013 = vmatpush1.bf16.msra.mxu0 0
    %5014 = vmatprep.subr.bf16.mxu0 0
    %5015 = vmatpush1.bf16.msra.mxu0 0
    %5016 = vmatprep.mubr.bf16.mxu0 0
    %5017 = vmatmul.mubr.bf16.gmra.mrb[0].mxu0 %v4982
    %v5018 = vpop.f32.mrb[0].mxu0
    %v5019 = vadd.f32 0.0, %v5018
    %v5020 = vpop.f32.mrb[0].mxu0
    %v5021 = vpop.f32.mrb[0].mxu0
    %v5022 = vpop.f32.mrb[0].mxu0
    %5023 = vdwg.mxu0
    %v5024 = vmul.f32 %v4779, %v5019
    %v5025 = vadd.f32 %v4824, %v5024
    %v5026 = vadd.f32 %v5025, %v4781
    %v5027 = vtanh.pop %v5026
    %v5028 = vpack.c.bf16 %v5027, %v5027
    %v5030 = vsel %vm208, %v5028, 0
    %5032 = vmatprep.subr.bf16.mxu0 0
    %5033 = vmatpush1.bf16.msra.mxu0 %v369
    %5034 = vmatprep.subr.bf16.mxu0 0
    %5035 = vmatpush1.bf16.msra.mxu0 %v370
    %5036 = vmatprep.subr.bf16.mxu0 0
    %5037 = vmatpush1.bf16.msra.mxu0 0
    %5038 = vmatprep.subr.bf16.mxu0 0
    %5039 = vmatpush1.bf16.msra.mxu0 0
    %5040 = vmatprep.subr.bf16.mxu0 0
    %5041 = vmatpush1.bf16.msra.mxu0 0
    %5042 = vmatprep.subr.bf16.mxu0 0
    %5043 = vmatpush1.bf16.msra.mxu0 0
    %5044 = vmatprep.subr.bf16.mxu0 0
    %5045 = vmatpush1.bf16.msra.mxu0 0
    %5046 = vmatprep.subr.bf16.mxu0 0
    %5047 = vmatpush1.bf16.msra.mxu0 0
    %5048 = vmatprep.subr.bf16.mxu0 0
    %5049 = vmatpush1.bf16.msra.mxu0 0
    %5050 = vmatprep.subr.bf16.mxu0 0
    %5051 = vmatpush1.bf16.msra.mxu0 0
    %5052 = vmatprep.subr.bf16.mxu0 0
    %5053 = vmatpush1.bf16.msra.mxu0 0
    %5054 = vmatprep.subr.bf16.mxu0 0
    %5055 = vmatpush1.bf16.msra.mxu0 0
    %5056 = vmatprep.subr.bf16.mxu0 0
    %5057 = vmatpush1.bf16.msra.mxu0 0
    %5058 = vmatprep.subr.bf16.mxu0 0
    %5059 = vmatpush1.bf16.msra.mxu0 0
    %5060 = vmatprep.subr.bf16.mxu0 0
    %5061 = vmatpush1.bf16.msra.mxu0 0
    %5062 = vmatprep.subr.bf16.mxu0 0
    %5063 = vmatpush1.bf16.msra.mxu0 0
    %5064 = vmatprep.mubr.bf16.mxu0 0
    %5065 = vmatmul.mubr.bf16.gmra.mrb[0].mxu0 %v5030
    %v5066 = vpop.f32.mrb[0].mxu0
    %v5067 = vadd.f32 0.0, %v5066
    %v5068 = vpop.f32.mrb[0].mxu0
    %v5069 = vpop.f32.mrb[0].mxu0
    %v5070 = vpop.f32.mrb[0].mxu0
    %5071 = vdwg.mxu0
    %v5072 = vmul.f32 %v4778, %v5067
    %v5073 = vadd.f32 %v5026, %v5072
    %v5074 = vadd.f32 %v5073, %v4780
    %v5075 = vtanh.pop %v5074
    %v5076 = vpack.c.bf16 %v5075, %v5075
    %v5078 = vsel %vm208, %v5076, 0
    %5080 = vmatprep.subr.bf16.mxu0 0
    %5081 = vmatpush1.bf16.msra.mxu0 %v369
    %5082 = vmatprep.subr.bf16.mxu0 0
    %5083 = vmatpush1.bf16.msra.mxu0 %v370
    %5084 = vmatprep.subr.bf16.mxu0 0
    %5085 = vmatpush1.bf16.msra.mxu0 0
    %5086 = vmatprep.subr.bf16.mxu0 0
    %5087 = vmatpush1.bf16.msra.mxu0 0
    %5088 = vmatprep.subr.bf16.mxu0 0
    %5089 = vmatpush1.bf16.msra.mxu0 0
    %5090 = vmatprep.subr.bf16.mxu0 0
    %5091 = vmatpush1.bf16.msra.mxu0 0
    %5092 = vmatprep.subr.bf16.mxu0 0
    %5093 = vmatpush1.bf16.msra.mxu0 0
    %5094 = vmatprep.subr.bf16.mxu0 0
    %5095 = vmatpush1.bf16.msra.mxu0 0
    %5096 = vmatprep.subr.bf16.mxu0 0
    %5097 = vmatpush1.bf16.msra.mxu0 0
    %5098 = vmatprep.subr.bf16.mxu0 0
    %5099 = vmatpush1.bf16.msra.mxu0 0
    %5100 = vmatprep.subr.bf16.mxu0 0
    %5101 = vmatpush1.bf16.msra.mxu0 0
    %5102 = vmatprep.subr.bf16.mxu0 0
    %5103 = vmatpush1.bf16.msra.mxu0 0
    %5104 = vmatprep.subr.bf16.mxu0 0
    %5105 = vmatpush1.bf16.msra.mxu0 0
    %5106 = vmatprep.subr.bf16.mxu0 0
    %5107 = vmatpush1.bf16.msra.mxu0 0
    %5108 = vmatprep.subr.bf16.mxu0 0
    %5109 = vmatpush1.bf16.msra.mxu0 0
    %5110 = vmatprep.subr.bf16.mxu0 0
    %5111 = vmatpush1.bf16.msra.mxu0 0
    %5112 = vmatprep.mubr.bf16.mxu0 0
    %5113 = vmatmul.mubr.bf16.gmra.mrb[0].mxu0 %v5078
    %v5114 = vpop.f32.mrb[0].mxu0
    %v5115 = vadd.f32 0.0, %v5114
    %v5116 = vpop.f32.mrb[0].mxu0
    %v5117 = vpop.f32.mrb[0].mxu0
    %v5118 = vpop.f32.mrb[0].mxu0
    %5119 = vdwg.mxu0
    %v5120 = vmul.f32 %v4778, %v5115
    %v5121 = vadd.f32 %v5026, %v5120
    %v5122 = vadd.f32 %v5121, %v4780
    %v5123 = vtanh.pop %v5122
    %v5124 = vpack.c.bf16 %v5123, %v5123
    %v5126 = vsel %vm208, %v5124, 0
    %5128 = vmatprep.subr.bf16.mxu0 0
    %5129 = vmatpush1.bf16.msra.mxu0 %v369
    %5130 = vmatprep.subr.bf16.mxu0 0
    %5131 = vmatpush1.bf16.msra.mxu0 %v370
    %5132 = vmatprep.subr.bf16.mxu0 0
    %5133 = vmatpush1.bf16.msra.mxu0 0
    %5134 = vmatprep.subr.bf16.mxu0 0
    %5135 = vmatpush1.bf16.msra.mxu0 0
    %5136 = vmatprep.subr.bf16.mxu0 0
    %5137 = vmatpush1.bf16.msra.mxu0 0
    %5138 = vmatprep.subr.bf16.mxu0 0
    %5139 = vmatpush1.bf16.msra.mxu0 0
    %5140 = vmatprep.subr.bf16.mxu0 0
    %5141 = vmatpush1.bf16.msra.mxu0 0
    %5142 = vmatprep.subr.bf16.mxu0 0
    %5143 = vmatpush1.bf16.msra.mxu0 0
    %5144 = vmatprep.subr.bf16.mxu0 0
    %5145 = vmatpush1.bf16.msra.mxu0 0
    %5146 = vmatprep.subr.bf16.mxu0 0
    %5147 = vmatpush1.bf16.msra.mxu0 0
    %5148 = vmatprep.subr.bf16.mxu0 0
    %5149 = vmatpush1.bf16.msra.mxu0 0
    %5150 = vmatprep.subr.bf16.mxu0 0
    %5151 = vmatpush1.bf16.msra.mxu0 0
    %5152 = vmatprep.subr.bf16.mxu0 0
    %5153 = vmatpush1.bf16.msra.mxu0 0
    %5154 = vmatprep.subr.bf16.mxu0 0
    %5155 = vmatpush1.bf16.msra.mxu0 0
    %5156 = vmatprep.subr.bf16.mxu0 0
    %5157 = vmatpush1.bf16.msra.mxu0 0
    %5158 = vmatprep.subr.bf16.mxu0 0
    %5159 = vmatpush1.bf16.msra.mxu0 0
    %5160 = vmatprep.mubr.bf16.mxu0 0
    %5161 = vmatmul.mubr.bf16.gmra.mrb[0].mxu0 %v5126
    %v5162 = vpop.f32.mrb[0].mxu0
    %v5163 = vadd.f32 0.0, %v5162
    %v5164 = vpop.f32.mrb[0].mxu0
    %v5165 = vpop.f32.mrb[0].mxu0
    %v5166 = vpop.f32.mrb[0].mxu0
    %5167 = vdwg.mxu0
    %v5168 = vmul.f32 %v4776, %v5163
    %v5169 = vadd.f32 %v5026, %v5168
    %v5170 = vadd.f32 %v5169, %v4781
    %v5171 = vtanh.pop %v5170
    %v5172 = vmul.f32 %v5075, 2.0
    %v5173 = vadd.f32 %v5027, %v5172
    %v5174 = vmul.f32 %v5123, 2.0
    %v5175 = vadd.f32 %v5173, %v5174
    %v5176 = vadd.f32 %v5175, %v5171
    %v5177 = vadd.f32 %v4979, %v5176
    %v5178 = vpack.c.bf16 %v5176, %v5176
    %v5180 = vsel %vm208, %v5178, 0
    %5182 = vmatprep.subr.bf16.mxu0 0
    %5183 = vmatpush1.bf16.msra.mxu0 %v369
    %5184 = vmatprep.subr.bf16.mxu0 0
    %5185 = vmatpush1.bf16.msra.mxu0 %v370
    %5186 = vmatprep.subr.bf16.mxu0 0
    %5187 = vmatpush1.bf16.msra.mxu0 0
    %5188 = vmatprep.subr.bf16.mxu0 0
    %5189 = vmatpush1.bf16.msra.mxu0 0
    %5190 = vmatprep.subr.bf16.mxu0 0
    %5191 = vmatpush1.bf16.msra.mxu0 0
    %5192 = vmatprep.subr.bf16.mxu0 0
    %5193 = vmatpush1.bf16.msra.mxu0 0
    %5194 = vmatprep.subr.bf16.mxu0 0
    %5195 = vmatpush1.bf16.msra.mxu0 0
    %5196 = vmatprep.subr.bf16.mxu0 0
    %5197 = vmatpush1.bf16.msra.mxu0 0
    %5198 = vmatprep.subr.bf16.mxu0 0
    %5199 = vmatpush1.bf16.msra.mxu0 0
    %5200 = vmatprep.subr.bf16.mxu0 0
    %5201 = vmatpush1.bf16.msra.mxu0 0
    %5202 = vmatprep.subr.bf16.mxu0 0
    %5203 = vmatpush1.bf16.msra.mxu0 0
    %5204 = vmatprep.subr.bf16.mxu0 0
    %5205 = vmatpush1.bf16.msra.mxu0 0
    %5206 = vmatprep.subr.bf16.mxu0 0
    %5207 = vmatpush1.bf16.msra.mxu0 0
    %5208 = vmatprep.subr.bf16.mxu0 0
    %5209 = vmatpush1.bf16.msra.mxu0 0
    %5210 = vmatprep.subr.bf16.mxu0 0
    %5211 = vmatpush1.bf16.msra.mxu0 0
    %5212 = vmatprep.subr.bf16.mxu0 0
    %5213 = vmatpush1.bf16.msra.mxu0 0
    %5214 = vmatprep.mubr.bf16.mxu0 0
    %5215 = vmatmul.mubr.bf16.gmra.mrb[0].mxu0 %v5180
    %v5216 = vpop.f32.mrb[0].mxu0
    %v5217 = vadd.f32 0.0, %v5216
    %v5218 = vpop.f32.mrb[0].mxu0
    %v5219 = vpop.f32.mrb[0].mxu0
    %v5220 = vpop.f32.mrb[0].mxu0
    %5221 = vdwg.mxu0
    %v5222 = vmul.f32 %v4779, %v5217
    %v5223 = vadd.f32 %v5026, %v5222
    %v5224 = vadd.f32 %v5223, %v4781
    %v5225 = vtanh.pop %v5224
    %v5226 = vpack.c.bf16 %v5225, %v5225
    %v5228 = vsel %vm208, %v5226, 0
    %5230 = vmatprep.subr.bf16.mxu0 0
    %5231 = vmatpush1.bf16.msra.mxu0 %v369
    %5232 = vmatprep.subr.bf16.mxu0 0
    %5233 = vmatpush1.bf16.msra.mxu0 %v370
    %5234 = vmatprep.subr.bf16.mxu0 0
    %5235 = vmatpush1.bf16.msra.mxu0 0
    %5236 = vmatprep.subr.bf16.mxu0 0
    %5237 = vmatpush1.bf16.msra.mxu0 0
    %5238 = vmatprep.subr.bf16.mxu0 0
    %5239 = vmatpush1.bf16.msra.mxu0 0
    %5240 = vmatprep.subr.bf16.mxu0 0
    %5241 = vmatpush1.bf16.msra.mxu0 0
    %5242 = vmatprep.subr.bf16.mxu0 0
    %5243 = vmatpush1.bf16.msra.mxu0 0
    %5244 = vmatprep.subr.bf16.mxu0 0
    %5245 = vmatpush1.bf16.msra.mxu0 0
    %5246 = vmatprep.subr.bf16.mxu0 0
    %5247 = vmatpush1.bf16.msra.mxu0 0
    %5248 = vmatprep.subr.bf16.mxu0 0
    %5249 = vmatpush1.bf16.msra.mxu0 0
    %5250 = vmatprep.subr.bf16.mxu0 0
    %5251 = vmatpush1.bf16.msra.mxu0 0
    %5252 = vmatprep.subr.bf16.mxu0 0
    %5253 = vmatpush1.bf16.msra.mxu0 0
    %5254 = vmatprep.subr.bf16.mxu0 0
    %5255 = vmatpush1.bf16.msra.mxu0 0
    %5256 = vmatprep.subr.bf16.mxu0 0
    %5257 = vmatpush1.bf16.msra.mxu0 0
    %5258 = vmatprep.subr.bf16.mxu0 0
    %5259 = vmatpush1.bf16.msra.mxu0 0
    %5260 = vmatprep.subr.bf16.mxu0 0
    %5261 = vmatpush1.bf16.msra.mxu0 0
    %5262 = vmatprep.mubr.bf16.mxu0 0
    %5263 = vmatmul.mubr.bf16.gmra.mrb[0].mxu0 %v5228
    %v5264 = vpop.f32.mrb[0].mxu0
    %v5265 = vadd.f32 0.0, %v5264
    %v5266 = vpop.f32.mrb[0].mxu0
    %v5267 = vpop.f32.mrb[0].mxu0
    %v5268 = vpop.f32.mrb[0].mxu0
    %5269 = vdwg.mxu0
    %v5270 = vmul.f32 %v4778, %v5265
    %v5271 = vadd.f32 %v5224, %v5270
    %v5272 = vadd.f32 %v5271, %v4780
    %v5273 = vtanh.pop %v5272
    %v5274 = vpack.c.bf16 %v5273, %v5273
    %v5276 = vsel %vm208, %v5274, 0
    %5278 = vmatprep.subr.bf16.mxu0 0
    %5279 = vmatpush1.bf16.msra.mxu0 %v369
    %5280 = vmatprep.subr.bf16.mxu0 0
    %5281 = vmatpush1.bf16.msra.mxu0 %v370
    %5282 = vmatprep.subr.bf16.mxu0 0
    %5283 = vmatpush1.bf16.msra.mxu0 0
    %5284 = vmatprep.subr.bf16.mxu0 0
    %5285 = vmatpush1.bf16.msra.mxu0 0
    %5286 = vmatprep.subr.bf16.mxu0 0
    %5287 = vmatpush1.bf16.msra.mxu0 0
    %5288 = vmatprep.subr.bf16.mxu0 0
    %5289 = vmatpush1.bf16.msra.mxu0 0
    %5290 = vmatprep.subr.bf16.mxu0 0
    %5291 = vmatpush1.bf16.msra.mxu0 0
    %5292 = vmatprep.subr.bf16.mxu0 0
    %5293 = vmatpush1.bf16.msra.mxu0 0
    %5294 = vmatprep.subr.bf16.mxu0 0
    %5295 = vmatpush1.bf16.msra.mxu0 0
    %5296 = vmatprep.subr.bf16.mxu0 0
    %5297 = vmatpush1.bf16.msra.mxu0 0
    %5298 = vmatprep.subr.bf16.mxu0 0
    %5299 = vmatpush1.bf16.msra.mxu0 0
    %5300 = vmatprep.subr.bf16.mxu0 0
    %5301 = vmatpush1.bf16.msra.mxu0 0
    %5302 = vmatprep.subr.bf16.mxu0 0
    %5303 = vmatpush1.bf16.msra.mxu0 0
    %5304 = vmatprep.subr.bf16.mxu0 0
    %5305 = vmatpush1.bf16.msra.mxu0 0
    %5306 = vmatprep.subr.bf16.mxu0 0
    %5307 = vmatpush1.bf16.msra.mxu0 0
    %5308 = vmatprep.subr.bf16.mxu0 0
    %5309 = vmatpush1.bf16.msra.mxu0 0
    %5310 = vmatprep.mubr.bf16.mxu0 0
    %5311 = vmatmul.mubr.bf16.gmra.mrb[0].mxu0 %v5276
    %v5312 = vpop.f32.mrb[0].mxu0
    %v5313 = vadd.f32 0.0, %v5312
    %v5314 = vpop.f32.mrb[0].mxu0
    %v5315 = vpop.f32.mrb[0].mxu0
    %v5316 = vpop.f32.mrb[0].mxu0
    %5317 = vdwg.mxu0
    %v5318 = vmul.f32 %v4778, %v5313
    %v5319 = vadd.f32 %v5224, %v5318
    %v5320 = vadd.f32 %v5319, %v4780
    %v5321 = vtanh.pop %v5320
    %v5322 = vpack.c.bf16 %v5321, %v5321
    %v5324 = vsel %vm208, %v5322, 0
    %5326 = vmatprep.subr.bf16.mxu0 0
    %5327 = vmatpush1.bf16.msra.mxu0 %v369
    %5328 = vmatprep.subr.bf16.mxu0 0
    %5329 = vmatpush1.bf16.msra.mxu0 %v370
    %5330 = vmatprep.subr.bf16.mxu0 0
    %5331 = vmatpush1.bf16.msra.mxu0 0
    %5332 = vmatprep.subr.bf16.mxu0 0
    %5333 = vmatpush1.bf16.msra.mxu0 0
    %5334 = vmatprep.subr.bf16.mxu0 0
    %5335 = vmatpush1.bf16.msra.mxu0 0
    %5336 = vmatprep.subr.bf16.mxu0 0
    %5337 = vmatpush1.bf16.msra.mxu0 0
    %5338 = vmatprep.subr.bf16.mxu0 0
    %5339 = vmatpush1.bf16.msra.mxu0 0
    %5340 = vmatprep.subr.bf16.mxu0 0
    %5341 = vmatpush1.bf16.msra.mxu0 0
    %5342 = vmatprep.subr.bf16.mxu0 0
    %5343 = vmatpush1.bf16.msra.mxu0 0
    %5344 = vmatprep.subr.bf16.mxu0 0
    %5345 = vmatpush1.bf16.msra.mxu0 0
    %5346 = vmatprep.subr.bf16.mxu0 0
    %5347 = vmatpush1.bf16.msra.mxu0 0
    %5348 = vmatprep.subr.bf16.mxu0 0
    %5349 = vmatpush1.bf16.msra.mxu0 0
    %5350 = vmatprep.subr.bf16.mxu0 0
    %5351 = vmatpush1.bf16.msra.mxu0 0
    %5352 = vmatprep.subr.bf16.mxu0 0
    %5353 = vmatpush1.bf16.msra.mxu0 0
    %5354 = vmatprep.subr.bf16.mxu0 0
    %5355 = vmatpush1.bf16.msra.mxu0 0
    %5356 = vmatprep.subr.bf16.mxu0 0
    %5357 = vmatpush1.bf16.msra.mxu0 0
    %5358 = vmatprep.mubr.bf16.mxu0 0
    %5359 = vmatmul.mubr.bf16.gmra.mrb[0].mxu0 %v5324
    %v5360 = vpop.f32.mrb[0].mxu0
    %v5361 = vadd.f32 0.0, %v5360
    %v5362 = vpop.f32.mrb[0].mxu0
    %v5363 = vpop.f32.mrb[0].mxu0
    %v5364 = vpop.f32.mrb[0].mxu0
    %5365 = vdwg.mxu0
    %v5366 = vmul.f32 %v4776, %v5361
    %v5367 = vadd.f32 %v5224, %v5366
    %v5368 = vadd.f32 %v5367, %v4781
    %v5369 = vtanh.pop %v5368
    %v5370 = vmul.f32 %v5273, 2.0
    %v5371 = vadd.f32 %v5225, %v5370
    %v5372 = vmul.f32 %v5321, 2.0
    %v5373 = vadd.f32 %v5371, %v5372
    %v5374 = vadd.f32 %v5373, %v5369
    %v5375 = vadd.f32 %v5177, %v5374
    %v5376 = vpack.c.bf16 %v5375, %v5375
    %v5378 = vsel %vm208, %v5376, 0
    %5380 = vmatprep.subr.bf16.mxu0 0
    %5381 = vmatpush1.bf16.msra.mxu0 %v927
    %5382 = vmatprep.subr.bf16.mxu0 0
    %5383 = vmatpush1.bf16.msra.mxu0 %v928
    %5384 = vmatprep.subr.bf16.mxu0 0
    %5385 = vmatpush1.bf16.msra.mxu0 0
    %5386 = vmatprep.subr.bf16.mxu0 0
    %5387 = vmatpush1.bf16.msra.mxu0 0
    %5388 = vmatprep.subr.bf16.mxu0 0
    %5389 = vmatpush1.bf16.msra.mxu0 0
    %5390 = vmatprep.subr.bf16.mxu0 0
    %5391 = vmatpush1.bf16.msra.mxu0 0
    %5392 = vmatprep.subr.bf16.mxu0 0
    %5393 = vmatpush1.bf16.msra.mxu0 0
    %5394 = vmatprep.subr.bf16.mxu0 0
    %5395 = vmatpush1.bf16.msra.mxu0 0
    %5396 = vmatprep.subr.bf16.mxu0 0
    %5397 = vmatpush1.bf16.msra.mxu0 0
    %5398 = vmatprep.subr.bf16.mxu0 0
    %5399 = vmatpush1.bf16.msra.mxu0 0
    %5400 = vmatprep.subr.bf16.mxu0 0
    %5401 = vmatpush1.bf16.msra.mxu0 0
    %5402 = vmatprep.subr.bf16.mxu0 0
    %5403 = vmatpush1.bf16.msra.mxu0 0
    %5404 = vmatprep.subr.bf16.mxu0 0
    %5405 = vmatpush1.bf16.msra.mxu0 0
    %5406 = vmatprep.subr.bf16.mxu0 0
    %5407 = vmatpush1.bf16.msra.mxu0 0
    %5408 = vmatprep.subr.bf16.mxu0 0
    %5409 = vmatpush1.bf16.msra.mxu0 0
    %5410 = vmatprep.subr.bf16.mxu0 0
    %5411 = vmatpush1.bf16.msra.mxu0 0
    %5412 = vmatprep.mubr.bf16.mxu0 0
    %5413 = vmatmul.mubr.bf16.gmra.mrb[0].mxu0 %v5378
    %v5414 = vpop.f32.mrb[0].mxu0
    %v5415 = vadd.f32 0.0, %v5414
    %v5416 = vpop.f32.mrb[0].mxu0
    %v5417 = vpop.f32.mrb[0].mxu0
    %v5418 = vpop.f32.mrb[0].mxu0
    %5419 = vdwg.mxu0
    %v5420 = vmul.f32 %v4779, %v5415
    %5422 = vrot.lane.b32.xlu0 %v5420, 64
    %v5423 = vpop.permute.xlu0 %5422
    %v5425 = vadd.f32 %v4769, %v5423
    %v5426 = vmul.f32 %v4776, %v984
    %5428 = vrot.lane.b32.xlu0 %v5426, 64
    %v5429 = vpop.permute.xlu0 %5428
    %v5431 = vadd.f32 %v5425, %v5429
    %5433 = vrot.lane.b32.xlu0 %v5431, 64
    %v5434 = vpop.permute.xlu0 %5433
    %5436 = vst.msk [vmem:[#allocation3 + $0x30] sm:$0xff] %vm208, %v5434
    %v5437 = vld [vmem:[#allocation2 + $0x38] sm:$0xff]
    %v5438 = vpack.c.bf16 %v5431, %v5431
    %5440 = vrot.lane.b32.xlu0 %v5438, 64
    %v5441 = vpop.permute.xlu0 %5440
    %v5443 = vsel %vm208, %v5441, 0
    %5445 = vmatprep.subr.bf16.mxu0 0
    %5446 = vmatpush1.bf16.msra.mxu0 %v204
    %5447 = vmatprep.subr.bf16.mxu0 0
    %5448 = vmatpush1.bf16.msra.mxu0 %v205
    %5449 = vmatprep.subr.bf16.mxu0 0
    %5450 = vmatpush1.bf16.msra.mxu0 0
    %5451 = vmatprep.subr.bf16.mxu0 0
    %5452 = vmatpush1.bf16.msra.mxu0 0
    %5453 = vmatprep.subr.bf16.mxu0 0
    %5454 = vmatpush1.bf16.msra.mxu0 0
    %5455 = vmatprep.subr.bf16.mxu0 0
    %5456 = vmatpush1.bf16.msra.mxu0 0
    %5457 = vmatprep.subr.bf16.mxu0 0
    %5458 = vmatpush1.bf16.msra.mxu0 0
    %5459 = vmatprep.subr.bf16.mxu0 0
    %5460 = vmatpush1.bf16.msra.mxu0 0
    %5461 = vmatprep.subr.bf16.mxu0 0
    %5462 = vmatpush1.bf16.msra.mxu0 0
    %5463 = vmatprep.subr.bf16.mxu0 0
    %5464 = vmatpush1.bf16.msra.mxu0 0
    %5465 = vmatprep.subr.bf16.mxu0 0
    %5466 = vmatpush1.bf16.msra.mxu0 0
    %5467 = vmatprep.subr.bf16.mxu0 0
    %5468 = vmatpush1.bf16.msra.mxu0 0
    %5469 = vmatprep.subr.bf16.mxu0 0
    %5470 = vmatpush1.bf16.msra.mxu0 0
    %5471 = vmatprep.subr.bf16.mxu0 0
    %5472 = vmatpush1.bf16.msra.mxu0 0
    %5473 = vmatprep.subr.bf16.mxu0 0
    %5474 = vmatpush1.bf16.msra.mxu0 0
    %5475 = vmatprep.subr.bf16.mxu0 0
    %5476 = vmatpush1.bf16.msra.mxu0 0
    %5477 = vmatprep.mubr.bf16.mxu0 0
    %5478 = vmatmul.mubr.bf16.gmra.mrb[0].mxu0 %v5443
    %v5479 = vpop.f32.mrb[0].mxu0
    %v5480 = vadd.f32 0.0, %v5479
    %v5481 = vpop.f32.mrb[0].mxu0
    %v5482 = vpop.f32.mrb[0].mxu0
    %v5483 = vpop.f32.mrb[0].mxu0
    %5484 = vdwg.mxu0
    %v5485 = vadd.f32 %v5437, %v5480
    %v5486 = vxor.u32 %v5485, 2147483648
    %v5487 = vmul.f32 %v5486, 1.442695
    %v5488 = vpow.pop %v5487
    %v5489 = vadd.f32 %v5488, 1.0
    %v5490 = vrcp.pop %v5489
    %v5491 = vmul.f32 1.0, %v5490
    %v5492 = vtanh.pop %v5485
    %v5493 = vmul.f32 %v5491, %v4763
    %5495 = vrot.lane.b32.xlu0 %v5492, 32
    %v5496 = vpop.permute.xlu0 %5495
    %v5498 = vmul.f32 %v5491, %v5496
    %5500 = vrot.lane.b32.xlu0 %v5498, 32
    %v5501 = vpop.permute.xlu0 %5500
    %v5503 = vadd.f32 %v5493, %v5501
    %v5504 = vtanh.pop %v5503
    %5506 = vrot.lane.b32.xlu0 %v5504, 32
    %v5507 = vpop.permute.xlu0 %5506
    %v5509 = vmul.f32 %v5491, %v5507
    %s5510 = scalar_lea.vmem %s1, 56
    %v5511 = vld [vmem:[%s5510] sm:$0xff]
    %v5512 = vmul.f32 %v5511, 0.33333334
    %5514 = vset.pattern.permute.xlu0 0
    %5515 = vperm.xlu0 %5514, %v5512
    %v5516 = vpop.permute.xlu0 %5515
    %v5518 = vmul.f32 %v5516, 0.5
    %v5519 = vmul.f32 %v5516, 0.16666667
    %v5520 = vmul.f32 %v5518, %v290
    %v5521 = vmul.f32 %v5516, %v290
    %v5522 = vpack.c.bf16 %v5509, %v5509
    %5524 = vrot.lane.b32.xlu0 %v5522, 64
    %v5525 = vpop.permute.xlu0 %5524
    %v5527 = vsel %vm208, %v5525, 0
    %5529 = vmatprep.subr.bf16.mxu0 0
    %5530 = vmatpush1.bf16.msra.mxu0 %v312
    %5531 = vmatprep.subr.bf16.mxu0 0
    %5532 = vmatpush1.bf16.msra.mxu0 %v313
    %5533 = vmatprep.subr.bf16.mxu0 0
    %5534 = vmatpush1.bf16.msra.mxu0 0
    %5535 = vmatprep.subr.bf16.mxu0 0
    %5536 = vmatpush1.bf16.msra.mxu0 0
    %5537 = vmatprep.subr.bf16.mxu0 0
    %5538 = vmatpush1.bf16.msra.mxu0 0
    %5539 = vmatprep.subr.bf16.mxu0 0
    %5540 = vmatpush1.bf16.msra.mxu0 0
    %5541 = vmatprep.subr.bf16.mxu0 0
    %5542 = vmatpush1.bf16.msra.mxu0 0
    %5543 = vmatprep.subr.bf16.mxu0 0
    %5544 = vmatpush1.bf16.msra.mxu0 0
    %5545 = vmatprep.subr.bf16.mxu0 0
    %5546 = vmatpush1.bf16.msra.mxu0 0
    %5547 = vmatprep.subr.bf16.mxu0 0
    %5548 = vmatpush1.bf16.msra.mxu0 0
    %5549 = vmatprep.subr.bf16.mxu0 0
    %5550 = vmatpush1.bf16.msra.mxu0 0
    %5551 = vmatprep.subr.bf16.mxu0 0
    %5552 = vmatpush1.bf16.msra.mxu0 0
    %5553 = vmatprep.subr.bf16.mxu0 0
    %5554 = vmatpush1.bf16.msra.mxu0 0
    %5555 = vmatprep.subr.bf16.mxu0 0
    %5556 = vmatpush1.bf16.msra.mxu0 0
    %5557 = vmatprep.subr.bf16.mxu0 0
    %5558 = vmatpush1.bf16.msra.mxu0 0
    %5559 = vmatprep.subr.bf16.mxu0 0
    %5560 = vmatpush1.bf16.msra.mxu0 0
    %5561 = vmatprep.mubr.bf16.mxu0 0
    %5562 = vmatmul.mubr.bf16.gmra.mrb[0].mxu0 %v5527
    %v5563 = vpop.f32.mrb[0].mxu0
    %v5564 = vadd.f32 %v299, %v5563
    %v5565 = vpop.f32.mrb[0].mxu0
    %v5566 = vpop.f32.mrb[0].mxu0
    %v5567 = vpop.f32.mrb[0].mxu0
    %5568 = vdwg.mxu0
    %v5569 = vtanh.pop %v5564
    %v5570 = vpack.c.bf16 %v5569, %v5569
    %v5572 = vsel %vm208, %v5570, 0
    %5574 = vmatprep.subr.bf16.mxu0 0
    %5575 = vmatpush1.bf16.msra.mxu0 %v369
    %5576 = vmatprep.subr.bf16.mxu0 0
    %5577 = vmatpush1.bf16.msra.mxu0 %v370
    %5578 = vmatprep.subr.bf16.mxu0 0
    %5579 = vmatpush1.bf16.msra.mxu0 0
    %5580 = vmatprep.subr.bf16.mxu0 0
    %5581 = vmatpush1.bf16.msra.mxu0 0
    %5582 = vmatprep.subr.bf16.mxu0 0
    %5583 = vmatpush1.bf16.msra.mxu0 0
    %5584 = vmatprep.subr.bf16.mxu0 0
    %5585 = vmatpush1.bf16.msra.mxu0 0
    %5586 = vmatprep.subr.bf16.mxu0 0
    %5587 = vmatpush1.bf16.msra.mxu0 0
    %5588 = vmatprep.subr.bf16.mxu0 0
    %5589 = vmatpush1.bf16.msra.mxu0 0
    %5590 = vmatprep.subr.bf16.mxu0 0
    %5591 = vmatpush1.bf16.msra.mxu0 0
    %5592 = vmatprep.subr.bf16.mxu0 0
    %5593 = vmatpush1.bf16.msra.mxu0 0
    %5594 = vmatprep.subr.bf16.mxu0 0
    %5595 = vmatpush1.bf16.msra.mxu0 0
    %5596 = vmatprep.subr.bf16.mxu0 0
    %5597 = vmatpush1.bf16.msra.mxu0 0
    %5598 = vmatprep.subr.bf16.mxu0 0
    %5599 = vmatpush1.bf16.msra.mxu0 0
    %5600 = vmatprep.subr.bf16.mxu0 0
    %5601 = vmatpush1.bf16.msra.mxu0 0
    %5602 = vmatprep.subr.bf16.mxu0 0
    %5603 = vmatpush1.bf16.msra.mxu0 0
    %5604 = vmatprep.subr.bf16.mxu0 0
    %5605 = vmatpush1.bf16.msra.mxu0 0
    %5606 = vmatprep.mubr.bf16.mxu0 0
    %5607 = vmatmul.mubr.bf16.gmra.mrb[0].mxu0 %v5572
    %v5608 = vpop.f32.mrb[0].mxu0
    %v5609 = vadd.f32 0.0, %v5608
    %v5610 = vpop.f32.mrb[0].mxu0
    %v5611 = vpop.f32.mrb[0].mxu0
    %v5612 = vpop.f32.mrb[0].mxu0
    %5613 = vdwg.mxu0
    %v5614 = vmul.f32 %v5518, %v5609
    %v5615 = vadd.f32 %v5564, %v5614
    %v5616 = vadd.f32 %v5615, %v5520
    %v5617 = vtanh.pop %v5616
    %v5618 = vpack.c.bf16 %v5617, %v5617
    %v5620 = vsel %vm208, %v5618, 0
    %5622 = vmatprep.subr.bf16.mxu0 0
    %5623 = vmatpush1.bf16.msra.mxu0 %v369
    %5624 = vmatprep.subr.bf16.mxu0 0
    %5625 = vmatpush1.bf16.msra.mxu0 %v370
    %5626 = vmatprep.subr.bf16.mxu0 0
    %5627 = vmatpush1.bf16.msra.mxu0 0
    %5628 = vmatprep.subr.bf16.mxu0 0
    %5629 = vmatpush1.bf16.msra.mxu0 0
    %5630 = vmatprep.subr.bf16.mxu0 0
    %5631 = vmatpush1.bf16.msra.mxu0 0
    %5632 = vmatprep.subr.bf16.mxu0 0
    %5633 = vmatpush1.bf16.msra.mxu0 0
    %5634 = vmatprep.subr.bf16.mxu0 0
    %5635 = vmatpush1.bf16.msra.mxu0 0
    %5636 = vmatprep.subr.bf16.mxu0 0
    %5637 = vmatpush1.bf16.msra.mxu0 0
    %5638 = vmatprep.subr.bf16.mxu0 0
    %5639 = vmatpush1.bf16.msra.mxu0 0
    %5640 = vmatprep.subr.bf16.mxu0 0
    %5641 = vmatpush1.bf16.msra.mxu0 0
    %5642 = vmatprep.subr.bf16.mxu0 0
    %5643 = vmatpush1.bf16.msra.mxu0 0
    %5644 = vmatprep.subr.bf16.mxu0 0
    %5645 = vmatpush1.bf16.msra.mxu0 0
    %5646 = vmatprep.subr.bf16.mxu0 0
    %5647 = vmatpush1.bf16.msra.mxu0 0
    %5648 = vmatprep.subr.bf16.mxu0 0
    %5649 = vmatpush1.bf16.msra.mxu0 0
    %5650 = vmatprep.subr.bf16.mxu0 0
    %5651 = vmatpush1.bf16.msra.mxu0 0
    %5652 = vmatprep.subr.bf16.mxu0 0
    %5653 = vmatpush1.bf16.msra.mxu0 0
    %5654 = vmatprep.mubr.bf16.mxu0 0
    %5655 = vmatmul.mubr.bf16.gmra.mrb[0].mxu0 %v5620
    %v5656 = vpop.f32.mrb[0].mxu0
    %v5657 = vadd.f32 0.0, %v5656
    %v5658 = vpop.f32.mrb[0].mxu0
    %v5659 = vpop.f32.mrb[0].mxu0
    %v5660 = vpop.f32.mrb[0].mxu0
    %5661 = vdwg.mxu0
    %v5662 = vmul.f32 %v5518, %v5657
    %v5663 = vadd.f32 %v5564, %v5662
    %v5664 = vadd.f32 %v5663, %v5520
    %v5665 = vtanh.pop %v5664
    %v5666 = vpack.c.bf16 %v5665, %v5665
    %v5668 = vsel %vm208, %v5666, 0
    %5670 = vmatprep.subr.bf16.mxu0 0
    %5671 = vmatpush1.bf16.msra.mxu0 %v369
    %5672 = vmatprep.subr.bf16.mxu0 0
    %5673 = vmatpush1.bf16.msra.mxu0 %v370
    %5674 = vmatprep.subr.bf16.mxu0 0
    %5675 = vmatpush1.bf16.msra.mxu0 0
    %5676 = vmatprep.subr.bf16.mxu0 0
    %5677 = vmatpush1.bf16.msra.mxu0 0
    %5678 = vmatprep.subr.bf16.mxu0 0
    %5679 = vmatpush1.bf16.msra.mxu0 0
    %5680 = vmatprep.subr.bf16.mxu0 0
    %5681 = vmatpush1.bf16.msra.mxu0 0
    %5682 = vmatprep.subr.bf16.mxu0 0
    %5683 = vmatpush1.bf16.msra.mxu0 0
    %5684 = vmatprep.subr.bf16.mxu0 0
    %5685 = vmatpush1.bf16.msra.mxu0 0
    %5686 = vmatprep.subr.bf16.mxu0 0
    %5687 = vmatpush1.bf16.msra.mxu0 0
    %5688 = vmatprep.subr.bf16.mxu0 0
    %5689 = vmatpush1.bf16.msra.mxu0 0
    %5690 = vmatprep.subr.bf16.mxu0 0
    %5691 = vmatpush1.bf16.msra.mxu0 0
    %5692 = vmatprep.subr.bf16.mxu0 0
    %5693 = vmatpush1.bf16.msra.mxu0 0
    %5694 = vmatprep.subr.bf16.mxu0 0
    %5695 = vmatpush1.bf16.msra.mxu0 0
    %5696 = vmatprep.subr.bf16.mxu0 0
    %5697 = vmatpush1.bf16.msra.mxu0 0
    %5698 = vmatprep.subr.bf16.mxu0 0
    %5699 = vmatpush1.bf16.msra.mxu0 0
    %5700 = vmatprep.subr.bf16.mxu0 0
    %5701 = vmatpush1.bf16.msra.mxu0 0
    %5702 = vmatprep.mubr.bf16.mxu0 0
    %5703 = vmatmul.mubr.bf16.gmra.mrb[0].mxu0 %v5668
    %v5704 = vpop.f32.mrb[0].mxu0
    %v5705 = vadd.f32 0.0, %v5704
    %v5706 = vpop.f32.mrb[0].mxu0
    %v5707 = vpop.f32.mrb[0].mxu0
    %v5708 = vpop.f32.mrb[0].mxu0
    %5709 = vdwg.mxu0
    %v5710 = vmul.f32 %v5516, %v5705
    %v5711 = vadd.f32 %v5564, %v5710
    %v5712 = vadd.f32 %v5711, %v5521
    %v5713 = vtanh.pop %v5712
    %v5714 = vmul.f32 %v5617, 2.0
    %v5715 = vadd.f32 %v5569, %v5714
    %v5716 = vmul.f32 %v5665, 2.0
    %v5717 = vadd.f32 %v5715, %v5716
    %v5718 = vadd.f32 %v5717, %v5713
    %v5719 = vadd.f32 %v5718, 0.0
    %v5720 = vpack.c.bf16 %v5718, %v5718
    %v5722 = vsel %vm208, %v5720, 0
    %5724 = vmatprep.subr.bf16.mxu0 0
    %5725 = vmatpush1.bf16.msra.mxu0 %v369
    %5726 = vmatprep.subr.bf16.mxu0 0
    %5727 = vmatpush1.bf16.msra.mxu0 %v370
    %5728 = vmatprep.subr.bf16.mxu0 0
    %5729 = vmatpush1.bf16.msra.mxu0 0
    %5730 = vmatprep.subr.bf16.mxu0 0
    %5731 = vmatpush1.bf16.msra.mxu0 0
    %5732 = vmatprep.subr.bf16.mxu0 0
    %5733 = vmatpush1.bf16.msra.mxu0 0
    %5734 = vmatprep.subr.bf16.mxu0 0
    %5735 = vmatpush1.bf16.msra.mxu0 0
    %5736 = vmatprep.subr.bf16.mxu0 0
    %5737 = vmatpush1.bf16.msra.mxu0 0
    %5738 = vmatprep.subr.bf16.mxu0 0
    %5739 = vmatpush1.bf16.msra.mxu0 0
    %5740 = vmatprep.subr.bf16.mxu0 0
    %5741 = vmatpush1.bf16.msra.mxu0 0
    %5742 = vmatprep.subr.bf16.mxu0 0
    %5743 = vmatpush1.bf16.msra.mxu0 0
    %5744 = vmatprep.subr.bf16.mxu0 0
    %5745 = vmatpush1.bf16.msra.mxu0 0
    %5746 = vmatprep.subr.bf16.mxu0 0
    %5747 = vmatpush1.bf16.msra.mxu0 0
    %5748 = vmatprep.subr.bf16.mxu0 0
    %5749 = vmatpush1.bf16.msra.mxu0 0
    %5750 = vmatprep.subr.bf16.mxu0 0
    %5751 = vmatpush1.bf16.msra.mxu0 0
    %5752 = vmatprep.subr.bf16.mxu0 0
    %5753 = vmatpush1.bf16.msra.mxu0 0
    %5754 = vmatprep.subr.bf16.mxu0 0
    %5755 = vmatpush1.bf16.msra.mxu0 0
    %5756 = vmatprep.mubr.bf16.mxu0 0
    %5757 = vmatmul.mubr.bf16.gmra.mrb[0].mxu0 %v5722
    %v5758 = vpop.f32.mrb[0].mxu0
    %v5759 = vadd.f32 0.0, %v5758
    %v5760 = vpop.f32.mrb[0].mxu0
    %v5761 = vpop.f32.mrb[0].mxu0
    %v5762 = vpop.f32.mrb[0].mxu0
    %5763 = vdwg.mxu0
    %v5764 = vmul.f32 %v5519, %v5759
    %v5765 = vadd.f32 %v5564, %v5764
    %v5766 = vadd.f32 %v5765, %v5521
    %v5767 = vtanh.pop %v5766
    %v5768 = vpack.c.bf16 %v5767, %v5767
    %v5770 = vsel %vm208, %v5768, 0
    %5772 = vmatprep.subr.bf16.mxu0 0
    %5773 = vmatpush1.bf16.msra.mxu0 %v369
    %5774 = vmatprep.subr.bf16.mxu0 0
    %5775 = vmatpush1.bf16.msra.mxu0 %v370
    %5776 = vmatprep.subr.bf16.mxu0 0
    %5777 = vmatpush1.bf16.msra.mxu0 0
    %5778 = vmatprep.subr.bf16.mxu0 0
    %5779 = vmatpush1.bf16.msra.mxu0 0
    %5780 = vmatprep.subr.bf16.mxu0 0
    %5781 = vmatpush1.bf16.msra.mxu0 0
    %5782 = vmatprep.subr.bf16.mxu0 0
    %5783 = vmatpush1.bf16.msra.mxu0 0
    %5784 = vmatprep.subr.bf16.mxu0 0
    %5785 = vmatpush1.bf16.msra.mxu0 0
    %5786 = vmatprep.subr.bf16.mxu0 0
    %5787 = vmatpush1.bf16.msra.mxu0 0
    %5788 = vmatprep.subr.bf16.mxu0 0
    %5789 = vmatpush1.bf16.msra.mxu0 0
    %5790 = vmatprep.subr.bf16.mxu0 0
    %5791 = vmatpush1.bf16.msra.mxu0 0
    %5792 = vmatprep.subr.bf16.mxu0 0
    %5793 = vmatpush1.bf16.msra.mxu0 0
    %5794 = vmatprep.subr.bf16.mxu0 0
    %5795 = vmatpush1.bf16.msra.mxu0 0
    %5796 = vmatprep.subr.bf16.mxu0 0
    %5797 = vmatpush1.bf16.msra.mxu0 0
    %5798 = vmatprep.subr.bf16.mxu0 0
    %5799 = vmatpush1.bf16.msra.mxu0 0
    %5800 = vmatprep.subr.bf16.mxu0 0
    %5801 = vmatpush1.bf16.msra.mxu0 0
    %5802 = vmatprep.subr.bf16.mxu0 0
    %5803 = vmatpush1.bf16.msra.mxu0 0
    %5804 = vmatprep.mubr.bf16.mxu0 0
    %5805 = vmatmul.mubr.bf16.gmra.mrb[0].mxu0 %v5770
    %v5806 = vpop.f32.mrb[0].mxu0
    %v5807 = vadd.f32 0.0, %v5806
    %v5808 = vpop.f32.mrb[0].mxu0
    %v5809 = vpop.f32.mrb[0].mxu0
    %v5810 = vpop.f32.mrb[0].mxu0
    %5811 = vdwg.mxu0
    %v5812 = vmul.f32 %v5518, %v5807
    %v5813 = vadd.f32 %v5766, %v5812
    %v5814 = vadd.f32 %v5813, %v5520
    %v5815 = vtanh.pop %v5814
    %v5816 = vpack.c.bf16 %v5815, %v5815
    %v5818 = vsel %vm208, %v5816, 0
    %5820 = vmatprep.subr.bf16.mxu0 0
    %5821 = vmatpush1.bf16.msra.mxu0 %v369
    %5822 = vmatprep.subr.bf16.mxu0 0
    %5823 = vmatpush1.bf16.msra.mxu0 %v370
    %5824 = vmatprep.subr.bf16.mxu0 0
    %5825 = vmatpush1.bf16.msra.mxu0 0
    %5826 = vmatprep.subr.bf16.mxu0 0
    %5827 = vmatpush1.bf16.msra.mxu0 0
    %5828 = vmatprep.subr.bf16.mxu0 0
    %5829 = vmatpush1.bf16.msra.mxu0 0
    %5830 = vmatprep.subr.bf16.mxu0 0
    %5831 = vmatpush1.bf16.msra.mxu0 0
    %5832 = vmatprep.subr.bf16.mxu0 0
    %5833 = vmatpush1.bf16.msra.mxu0 0
    %5834 = vmatprep.subr.bf16.mxu0 0
    %5835 = vmatpush1.bf16.msra.mxu0 0
    %5836 = vmatprep.subr.bf16.mxu0 0
    %5837 = vmatpush1.bf16.msra.mxu0 0
    %5838 = vmatprep.subr.bf16.mxu0 0
    %5839 = vmatpush1.bf16.msra.mxu0 0
    %5840 = vmatprep.subr.bf16.mxu0 0
    %5841 = vmatpush1.bf16.msra.mxu0 0
    %5842 = vmatprep.subr.bf16.mxu0 0
    %5843 = vmatpush1.bf16.msra.mxu0 0
    %5844 = vmatprep.subr.bf16.mxu0 0
    %5845 = vmatpush1.bf16.msra.mxu0 0
    %5846 = vmatprep.subr.bf16.mxu0 0
    %5847 = vmatpush1.bf16.msra.mxu0 0
    %5848 = vmatprep.subr.bf16.mxu0 0
    %5849 = vmatpush1.bf16.msra.mxu0 0
    %5850 = vmatprep.subr.bf16.mxu0 0
    %5851 = vmatpush1.bf16.msra.mxu0 0
    %5852 = vmatprep.mubr.bf16.mxu0 0
    %5853 = vmatmul.mubr.bf16.gmra.mrb[0].mxu0 %v5818
    %v5854 = vpop.f32.mrb[0].mxu0
    %v5855 = vadd.f32 0.0, %v5854
    %v5856 = vpop.f32.mrb[0].mxu0
    %v5857 = vpop.f32.mrb[0].mxu0
    %v5858 = vpop.f32.mrb[0].mxu0
    %5859 = vdwg.mxu0
    %v5860 = vmul.f32 %v5518, %v5855
    %v5861 = vadd.f32 %v5766, %v5860
    %v5862 = vadd.f32 %v5861, %v5520
    %v5863 = vtanh.pop %v5862
    %v5864 = vpack.c.bf16 %v5863, %v5863
    %v5866 = vsel %vm208, %v5864, 0
    %5868 = vmatprep.subr.bf16.mxu0 0
    %5869 = vmatpush1.bf16.msra.mxu0 %v369
    %5870 = vmatprep.subr.bf16.mxu0 0
    %5871 = vmatpush1.bf16.msra.mxu0 %v370
    %5872 = vmatprep.subr.bf16.mxu0 0
    %5873 = vmatpush1.bf16.msra.mxu0 0
    %5874 = vmatprep.subr.bf16.mxu0 0
    %5875 = vmatpush1.bf16.msra.mxu0 0
    %5876 = vmatprep.subr.bf16.mxu0 0
    %5877 = vmatpush1.bf16.msra.mxu0 0
    %5878 = vmatprep.subr.bf16.mxu0 0
    %5879 = vmatpush1.bf16.msra.mxu0 0
    %5880 = vmatprep.subr.bf16.mxu0 0
    %5881 = vmatpush1.bf16.msra.mxu0 0
    %5882 = vmatprep.subr.bf16.mxu0 0
    %5883 = vmatpush1.bf16.msra.mxu0 0
    %5884 = vmatprep.subr.bf16.mxu0 0
    %5885 = vmatpush1.bf16.msra.mxu0 0
    %5886 = vmatprep.subr.bf16.mxu0 0
    %5887 = vmatpush1.bf16.msra.mxu0 0
    %5888 = vmatprep.subr.bf16.mxu0 0
    %5889 = vmatpush1.bf16.msra.mxu0 0
    %5890 = vmatprep.subr.bf16.mxu0 0
    %5891 = vmatpush1.bf16.msra.mxu0 0
    %5892 = vmatprep.subr.bf16.mxu0 0
    %5893 = vmatpush1.bf16.msra.mxu0 0
    %5894 = vmatprep.subr.bf16.mxu0 0
    %5895 = vmatpush1.bf16.msra.mxu0 0
    %5896 = vmatprep.subr.bf16.mxu0 0
    %5897 = vmatpush1.bf16.msra.mxu0 0
    %5898 = vmatprep.subr.bf16.mxu0 0
    %5899 = vmatpush1.bf16.msra.mxu0 0
    %5900 = vmatprep.mubr.bf16.mxu0 0
    %5901 = vmatmul.mubr.bf16.gmra.mrb[0].mxu0 %v5866
    %v5902 = vpop.f32.mrb[0].mxu0
    %v5903 = vadd.f32 0.0, %v5902
    %v5904 = vpop.f32.mrb[0].mxu0
    %v5905 = vpop.f32.mrb[0].mxu0
    %v5906 = vpop.f32.mrb[0].mxu0
    %5907 = vdwg.mxu0
    %v5908 = vmul.f32 %v5516, %v5903
    %v5909 = vadd.f32 %v5766, %v5908
    %v5910 = vadd.f32 %v5909, %v5521
    %v5911 = vtanh.pop %v5910
    %v5912 = vmul.f32 %v5815, 2.0
    %v5913 = vadd.f32 %v5767, %v5912
    %v5914 = vmul.f32 %v5863, 2.0
    %v5915 = vadd.f32 %v5913, %v5914
    %v5916 = vadd.f32 %v5915, %v5911
    %v5917 = vadd.f32 %v5719, %v5916
    %v5918 = vpack.c.bf16 %v5916, %v5916
    %v5920 = vsel %vm208, %v5918, 0
    %5922 = vmatprep.subr.bf16.mxu0 0
    %5923 = vmatpush1.bf16.msra.mxu0 %v369
    %5924 = vmatprep.subr.bf16.mxu0 0
    %5925 = vmatpush1.bf16.msra.mxu0 %v370
    %5926 = vmatprep.subr.bf16.mxu0 0
    %5927 = vmatpush1.bf16.msra.mxu0 0
    %5928 = vmatprep.subr.bf16.mxu0 0
    %5929 = vmatpush1.bf16.msra.mxu0 0
    %5930 = vmatprep.subr.bf16.mxu0 0
    %5931 = vmatpush1.bf16.msra.mxu0 0
    %5932 = vmatprep.subr.bf16.mxu0 0
    %5933 = vmatpush1.bf16.msra.mxu0 0
    %5934 = vmatprep.subr.bf16.mxu0 0
    %5935 = vmatpush1.bf16.msra.mxu0 0
    %5936 = vmatprep.subr.bf16.mxu0 0
    %5937 = vmatpush1.bf16.msra.mxu0 0
    %5938 = vmatprep.subr.bf16.mxu0 0
    %5939 = vmatpush1.bf16.msra.mxu0 0
    %5940 = vmatprep.subr.bf16.mxu0 0
    %5941 = vmatpush1.bf16.msra.mxu0 0
    %5942 = vmatprep.subr.bf16.mxu0 0
    %5943 = vmatpush1.bf16.msra.mxu0 0
    %5944 = vmatprep.subr.bf16.mxu0 0
    %5945 = vmatpush1.bf16.msra.mxu0 0
    %5946 = vmatprep.subr.bf16.mxu0 0
    %5947 = vmatpush1.bf16.msra.mxu0 0
    %5948 = vmatprep.subr.bf16.mxu0 0
    %5949 = vmatpush1.bf16.msra.mxu0 0
    %5950 = vmatprep.subr.bf16.mxu0 0
    %5951 = vmatpush1.bf16.msra.mxu0 0
    %5952 = vmatprep.subr.bf16.mxu0 0
    %5953 = vmatpush1.bf16.msra.mxu0 0
    %5954 = vmatprep.mubr.bf16.mxu0 0
    %5955 = vmatmul.mubr.bf16.gmra.mrb[0].mxu0 %v5920
    %v5956 = vpop.f32.mrb[0].mxu0
    %v5957 = vadd.f32 0.0, %v5956
    %v5958 = vpop.f32.mrb[0].mxu0
    %v5959 = vpop.f32.mrb[0].mxu0
    %v5960 = vpop.f32.mrb[0].mxu0
    %5961 = vdwg.mxu0
    %v5962 = vmul.f32 %v5519, %v5957
    %v5963 = vadd.f32 %v5766, %v5962
    %v5964 = vadd.f32 %v5963, %v5521
    %v5965 = vtanh.pop %v5964
    %v5966 = vpack.c.bf16 %v5965, %v5965
    %v5968 = vsel %vm208, %v5966, 0
    %5970 = vmatprep.subr.bf16.mxu0 0
    %5971 = vmatpush1.bf16.msra.mxu0 %v369
    %5972 = vmatprep.subr.bf16.mxu0 0
    %5973 = vmatpush1.bf16.msra.mxu0 %v370
    %5974 = vmatprep.subr.bf16.mxu0 0
    %5975 = vmatpush1.bf16.msra.mxu0 0
    %5976 = vmatprep.subr.bf16.mxu0 0
    %5977 = vmatpush1.bf16.msra.mxu0 0
    %5978 = vmatprep.subr.bf16.mxu0 0
    %5979 = vmatpush1.bf16.msra.mxu0 0
    %5980 = vmatprep.subr.bf16.mxu0 0
    %5981 = vmatpush1.bf16.msra.mxu0 0
    %5982 = vmatprep.subr.bf16.mxu0 0
    %5983 = vmatpush1.bf16.msra.mxu0 0
    %5984 = vmatprep.subr.bf16.mxu0 0
    %5985 = vmatpush1.bf16.msra.mxu0 0
    %5986 = vmatprep.subr.bf16.mxu0 0
    %5987 = vmatpush1.bf16.msra.mxu0 0
    %5988 = vmatprep.subr.bf16.mxu0 0
    %5989 = vmatpush1.bf16.msra.mxu0 0
    %5990 = vmatprep.subr.bf16.mxu0 0
    %5991 = vmatpush1.bf16.msra.mxu0 0
    %5992 = vmatprep.subr.bf16.mxu0 0
    %5993 = vmatpush1.bf16.msra.mxu0 0
    %5994 = vmatprep.subr.bf16.mxu0 0
    %5995 = vmatpush1.bf16.msra.mxu0 0
    %5996 = vmatprep.subr.bf16.mxu0 0
    %5997 = vmatpush1.bf16.msra.mxu0 0
    %5998 = vmatprep.subr.bf16.mxu0 0
    %5999 = vmatpush1.bf16.msra.mxu0 0
    %6000 = vmatprep.subr.bf16.mxu0 0
    %6001 = vmatpush1.bf16.msra.mxu0 0
    %6002 = vmatprep.mubr.bf16.mxu0 0
    %6003 = vmatmul.mubr.bf16.gmra.mrb[0].mxu0 %v5968
    %v6004 = vpop.f32.mrb[0].mxu0
    %v6005 = vadd.f32 0.0, %v6004
    %v6006 = vpop.f32.mrb[0].mxu0
    %v6007 = vpop.f32.mrb[0].mxu0
    %v6008 = vpop.f32.mrb[0].mxu0
    %6009 = vdwg.mxu0
    %v6010 = vmul.f32 %v5518, %v6005
    %v6011 = vadd.f32 %v5964, %v6010
    %v6012 = vadd.f32 %v6011, %v5520
    %v6013 = vtanh.pop %v6012
    %v6014 = vpack.c.bf16 %v6013, %v6013
    %v6016 = vsel %vm208, %v6014, 0
    %6018 = vmatprep.subr.bf16.mxu0 0
    %6019 = vmatpush1.bf16.msra.mxu0 %v369
    %6020 = vmatprep.subr.bf16.mxu0 0
    %6021 = vmatpush1.bf16.msra.mxu0 %v370
    %6022 = vmatprep.subr.bf16.mxu0 0
    %6023 = vmatpush1.bf16.msra.mxu0 0
    %6024 = vmatprep.subr.bf16.mxu0 0
    %6025 = vmatpush1.bf16.msra.mxu0 0
    %6026 = vmatprep.subr.bf16.mxu0 0
    %6027 = vmatpush1.bf16.msra.mxu0 0
    %6028 = vmatprep.subr.bf16.mxu0 0
    %6029 = vmatpush1.bf16.msra.mxu0 0
    %6030 = vmatprep.subr.bf16.mxu0 0
    %6031 = vmatpush1.bf16.msra.mxu0 0
    %6032 = vmatprep.subr.bf16.mxu0 0
    %6033 = vmatpush1.bf16.msra.mxu0 0
    %6034 = vmatprep.subr.bf16.mxu0 0
    %6035 = vmatpush1.bf16.msra.mxu0 0
    %6036 = vmatprep.subr.bf16.mxu0 0
    %6037 = vmatpush1.bf16.msra.mxu0 0
    %6038 = vmatprep.subr.bf16.mxu0 0
    %6039 = vmatpush1.bf16.msra.mxu0 0
    %6040 = vmatprep.subr.bf16.mxu0 0
    %6041 = vmatpush1.bf16.msra.mxu0 0
    %6042 = vmatprep.subr.bf16.mxu0 0
    %6043 = vmatpush1.bf16.msra.mxu0 0
    %6044 = vmatprep.subr.bf16.mxu0 0
    %6045 = vmatpush1.bf16.msra.mxu0 0
    %6046 = vmatprep.subr.bf16.mxu0 0
    %6047 = vmatpush1.bf16.msra.mxu0 0
    %6048 = vmatprep.subr.bf16.mxu0 0
    %6049 = vmatpush1.bf16.msra.mxu0 0
    %6050 = vmatprep.mubr.bf16.mxu0 0
    %6051 = vmatmul.mubr.bf16.gmra.mrb[0].mxu0 %v6016
    %v6052 = vpop.f32.mrb[0].mxu0
    %v6053 = vadd.f32 0.0, %v6052
    %v6054 = vpop.f32.mrb[0].mxu0
    %v6055 = vpop.f32.mrb[0].mxu0
    %v6056 = vpop.f32.mrb[0].mxu0
    %6057 = vdwg.mxu0
    %v6058 = vmul.f32 %v5518, %v6053
    %v6059 = vadd.f32 %v5964, %v6058
    %v6060 = vadd.f32 %v6059, %v5520
    %v6061 = vtanh.pop %v6060
    %v6062 = vpack.c.bf16 %v6061, %v6061
    %v6064 = vsel %vm208, %v6062, 0
    %6066 = vmatprep.subr.bf16.mxu0 0
    %6067 = vmatpush1.bf16.msra.mxu0 %v369
    %6068 = vmatprep.subr.bf16.mxu0 0
    %6069 = vmatpush1.bf16.msra.mxu0 %v370
    %6070 = vmatprep.subr.bf16.mxu0 0
    %6071 = vmatpush1.bf16.msra.mxu0 0
    %6072 = vmatprep.subr.bf16.mxu0 0
    %6073 = vmatpush1.bf16.msra.mxu0 0
    %6074 = vmatprep.subr.bf16.mxu0 0
    %6075 = vmatpush1.bf16.msra.mxu0 0
    %6076 = vmatprep.subr.bf16.mxu0 0
    %6077 = vmatpush1.bf16.msra.mxu0 0
    %6078 = vmatprep.subr.bf16.mxu0 0
    %6079 = vmatpush1.bf16.msra.mxu0 0
    %6080 = vmatprep.subr.bf16.mxu0 0
    %6081 = vmatpush1.bf16.msra.mxu0 0
    %6082 = vmatprep.subr.bf16.mxu0 0
    %6083 = vmatpush1.bf16.msra.mxu0 0
    %6084 = vmatprep.subr.bf16.mxu0 0
    %6085 = vmatpush1.bf16.msra.mxu0 0
    %6086 = vmatprep.subr.bf16.mxu0 0
    %6087 = vmatpush1.bf16.msra.mxu0 0
    %6088 = vmatprep.subr.bf16.mxu0 0
    %6089 = vmatpush1.bf16.msra.mxu0 0
    %6090 = vmatprep.subr.bf16.mxu0 0
    %6091 = vmatpush1.bf16.msra.mxu0 0
    %6092 = vmatprep.subr.bf16.mxu0 0
    %6093 = vmatpush1.bf16.msra.mxu0 0
    %6094 = vmatprep.subr.bf16.mxu0 0
    %6095 = vmatpush1.bf16.msra.mxu0 0
    %6096 = vmatprep.subr.bf16.mxu0 0
    %6097 = vmatpush1.bf16.msra.mxu0 0
    %6098 = vmatprep.mubr.bf16.mxu0 0
    %6099 = vmatmul.mubr.bf16.gmra.mrb[0].mxu0 %v6064
    %v6100 = vpop.f32.mrb[0].mxu0
    %v6101 = vadd.f32 0.0, %v6100
    %v6102 = vpop.f32.mrb[0].mxu0
    %v6103 = vpop.f32.mrb[0].mxu0
    %v6104 = vpop.f32.mrb[0].mxu0
    %6105 = vdwg.mxu0
    %v6106 = vmul.f32 %v5516, %v6101
    %v6107 = vadd.f32 %v5964, %v6106
    %v6108 = vadd.f32 %v6107, %v5521
    %v6109 = vtanh.pop %v6108
    %v6110 = vmul.f32 %v6013, 2.0
    %v6111 = vadd.f32 %v5965, %v6110
    %v6112 = vmul.f32 %v6061, 2.0
    %v6113 = vadd.f32 %v6111, %v6112
    %v6114 = vadd.f32 %v6113, %v6109
    %v6115 = vadd.f32 %v5917, %v6114
    %v6116 = vpack.c.bf16 %v6115, %v6115
    %v6118 = vsel %vm208, %v6116, 0
    %6120 = vmatprep.subr.bf16.mxu0 0
    %6121 = vmatpush1.bf16.msra.mxu0 %v927
    %6122 = vmatprep.subr.bf16.mxu0 0
    %6123 = vmatpush1.bf16.msra.mxu0 %v928
    %6124 = vmatprep.subr.bf16.mxu0 0
    %6125 = vmatpush1.bf16.msra.mxu0 0
    %6126 = vmatprep.subr.bf16.mxu0 0
    %6127 = vmatpush1.bf16.msra.mxu0 0
    %6128 = vmatprep.subr.bf16.mxu0 0
    %6129 = vmatpush1.bf16.msra.mxu0 0
    %6130 = vmatprep.subr.bf16.mxu0 0
    %6131 = vmatpush1.bf16.msra.mxu0 0
    %6132 = vmatprep.subr.bf16.mxu0 0
    %6133 = vmatpush1.bf16.msra.mxu0 0
    %6134 = vmatprep.subr.bf16.mxu0 0
    %6135 = vmatpush1.bf16.msra.mxu0 0
    %6136 = vmatprep.subr.bf16.mxu0 0
    %6137 = vmatpush1.bf16.msra.mxu0 0
    %6138 = vmatprep.subr.bf16.mxu0 0
    %6139 = vmatpush1.bf16.msra.mxu0 0
    %6140 = vmatprep.subr.bf16.mxu0 0
    %6141 = vmatpush1.bf16.msra.mxu0 0
    %6142 = vmatprep.subr.bf16.mxu0 0
    %6143 = vmatpush1.bf16.msra.mxu0 0
    %6144 = vmatprep.subr.bf16.mxu0 0
    %6145 = vmatpush1.bf16.msra.mxu0 0
    %6146 = vmatprep.subr.bf16.mxu0 0
    %6147 = vmatpush1.bf16.msra.mxu0 0
    %6148 = vmatprep.subr.bf16.mxu0 0
    %6149 = vmatpush1.bf16.msra.mxu0 0
    %6150 = vmatprep.subr.bf16.mxu0 0
    %6151 = vmatpush1.bf16.msra.mxu0 0
    %6152 = vmatprep.mubr.bf16.mxu0 0
    %6153 = vmatmul.mubr.bf16.gmra.mrb[0].mxu0 %v6118
    %v6154 = vpop.f32.mrb[0].mxu0
    %v6155 = vadd.f32 0.0, %v6154
    %v6156 = vpop.f32.mrb[0].mxu0
    %v6157 = vpop.f32.mrb[0].mxu0
    %v6158 = vpop.f32.mrb[0].mxu0
    %6159 = vdwg.mxu0
    %v6160 = vmul.f32 %v5519, %v6155
    %6162 = vrot.lane.b32.xlu0 %v6160, 64
    %v6163 = vpop.permute.xlu0 %6162
    %v6165 = vadd.f32 %v5509, %v6163
    %v6166 = vmul.f32 %v5516, %v984
    %6168 = vrot.lane.b32.xlu0 %v6166, 64
    %v6169 = vpop.permute.xlu0 %6168
    %v6171 = vadd.f32 %v6165, %v6169
    %6173 = vrot.lane.b32.xlu0 %v6171, 64
    %v6174 = vpop.permute.xlu0 %6173
    %6176 = vst.msk [vmem:[#allocation3 + $0x38] sm:$0xff] %vm208, %v6174
    %v6177 = vld [vmem:[#allocation3] sm:$0xff]
    %v6178 = vld [vmem:[#allocation3 + $0x8] sm:$0xff]
    %v6179 = vld [vmem:[#allocation3 + $0x10] sm:$0xff]
    %v6180 = vld [vmem:[#allocation3 + $0x18] sm:$0xff]
    %v6181 = vld [vmem:[#allocation3 + $0x20] sm:$0xff]
    %v6182 = vld [vmem:[#allocation3 + $0x28] sm:$0xff]
    %v6183 = vld [vmem:[#allocation3 + $0x30] sm:$0xff]
    %v6184 = vld [vmem:[#allocation3 + $0x38] sm:$0xff]
    %v6185 = vpack.c.bf16 %v6178, %v6177
    %v6186 = vpack.c.bf16 %v6180, %v6179
    %v6187 = vpack.c.bf16 %v6182, %v6181
    %v6188 = vpack.c.bf16 %v6184, %v6183
    %v6189 = vld [vmem:[%s11] sm:$0xf]
    %v6190 = vld [vmem:[%s11 + $0x4] sm:$0xf]
    %v6191 = vld [vmem:[%s11 + $0x8] sm:$0xf]
    %v6192 = vld [vmem:[%s11 + $0xc] sm:$0xf]
    %v6193 = vld [vmem:[%s12] sm:$0x1]
    %v6195 = vlaneseq
    %v6196 = vshrl.u32 %v6195, 7
    %v6197 = vsub.s32 0, %v6196
    %v6198 = vrot.slane %v6193, %v6197
    %v6204 = vunpack.c.l.b16 %v6189
    %v6205 = vunpack.c.l.b16 %v6190
    %v6206 = vunpack.c.l.b16 %v6191
    %v6207 = vunpack.c.l.b16 %v6192
    %v6208 = vpack.c.b16 %v6205, %v6204
    %v6209 = vpack.c.b16 %v6207, %v6206
    %v6213 = vsel %vm208, %v6185, 0
    %v6216 = vsel %vm208, %v6186, 0
    %v6219 = vsel %vm208, %v6187, 0
    %v6222 = vsel %vm208, %v6188, 0
    %6224 = vmatprep.subr.bf16.mxu0 0
    %6225 = vmatpush1.bf16.msra.mxu0 %v6208
    %6226 = vmatprep.subr.bf16.mxu0 0
    %6227 = vmatpush1.bf16.msra.mxu0 %v6209
    %6228 = vmatprep.subr.bf16.mxu0 0
    %6229 = vmatpush1.bf16.msra.mxu0 0
    %6230 = vmatprep.subr.bf16.mxu0 0
    %6231 = vmatpush1.bf16.msra.mxu0 0
    %6232 = vmatprep.subr.bf16.mxu0 0
    %6233 = vmatpush1.bf16.msra.mxu0 0
    %6234 = vmatprep.subr.bf16.mxu0 0
    %6235 = vmatpush1.bf16.msra.mxu0 0
    %6236 = vmatprep.subr.bf16.mxu0 0
    %6237 = vmatpush1.bf16.msra.mxu0 0
    %6238 = vmatprep.subr.bf16.mxu0 0
    %6239 = vmatpush1.bf16.msra.mxu0 0
    %6240 = vmatprep.subr.bf16.mxu0 0
    %6241 = vmatpush1.bf16.msra.mxu0 0
    %6242 = vmatprep.subr.bf16.mxu0 0
    %6243 = vmatpush1.bf16.msra.mxu0 0
    %6244 = vmatprep.subr.bf16.mxu0 0
    %6245 = vmatpush1.bf16.msra.mxu0 0
    %6246 = vmatprep.subr.bf16.mxu0 0
    %6247 = vmatpush1.bf16.msra.mxu0 0
    %6248 = vmatprep.subr.bf16.mxu0 0
    %6249 = vmatpush1.bf16.msra.mxu0 0
    %6250 = vmatprep.subr.bf16.mxu0 0
    %6251 = vmatpush1.bf16.msra.mxu0 0
    %6252 = vmatprep.subr.bf16.mxu0 0
    %6253 = vmatpush1.bf16.msra.mxu0 0
    %6254 = vmatprep.subr.bf16.mxu0 0
    %6255 = vmatpush1.bf16.msra.mxu0 0
    %6256 = vmatprep.mubr.bf16.mxu0 0
    %6257 = vmatmul.mubr.bf16.gmra.mrb[0].mxu0 %v6213
    %v6258 = vpop.f32.mrb[0].mxu0
    %v6259 = vadd.f32 %v6198, %v6258
    %v6260 = vpop.f32.mrb[0].mxu0
    %v6261 = vpop.f32.mrb[0].mxu0
    %v6262 = vadd.f32 %v6198, %v6261
    %v6263 = vpop.f32.mrb[0].mxu0
    %6264 = vmatprep.mubr.bf16.mxu0 0
    %6265 = vmatmul.mubr.bf16.gmra.mrb[0].mxu0 %v6216
    %v6266 = vpop.f32.mrb[0].mxu0
    %v6267 = vadd.f32 %v6198, %v6266
    %v6268 = vpop.f32.mrb[0].mxu0
    %v6269 = vpop.f32.mrb[0].mxu0
    %v6270 = vadd.f32 %v6198, %v6269
    %v6271 = vpop.f32.mrb[0].mxu0
    %6272 = vmatprep.mubr.bf16.mxu0 0
    %6273 = vmatmul.mubr.bf16.gmra.mrb[0].mxu0 %v6219
    %v6274 = vpop.f32.mrb[0].mxu0
    %v6275 = vadd.f32 %v6198, %v6274
    %v6276 = vpop.f32.mrb[0].mxu0
    %v6277 = vpop.f32.mrb[0].mxu0
    %v6278 = vadd.f32 %v6198, %v6277
    %v6279 = vpop.f32.mrb[0].mxu0
    %6280 = vmatprep.mubr.bf16.mxu0 0
    %6281 = vmatmul.mubr.bf16.gmra.mrb[0].mxu0 %v6222
    %v6282 = vpop.f32.mrb[0].mxu0
    %v6283 = vadd.f32 %v6198, %v6282
    %v6284 = vpop.f32.mrb[0].mxu0
    %v6285 = vpop.f32.mrb[0].mxu0
    %v6286 = vadd.f32 %v6198, %v6285
    %v6287 = vpop.f32.mrb[0].mxu0
    %6288 = vdwg.mxu0
    %6289 = vst [vmem:[#allocation4] sm:$0xff] %v6259
    %6290 = vst [vmem:[#allocation4 + $0x8] sm:$0xff] %v6262
    %6291 = vst [vmem:[#allocation4 + $0x10] sm:$0xff] %v6267
    %6292 = vst [vmem:[#allocation4 + $0x18] sm:$0xff] %v6270
    %6293 = vst [vmem:[#allocation4 + $0x20] sm:$0xff] %v6275
    %6294 = vst [vmem:[#allocation4 + $0x28] sm:$0xff] %v6278
    %6295 = vst [vmem:[#allocation4 + $0x30] sm:$0xff] %v6283
    %6296 = vst [vmem:[#allocation4 + $0x38] sm:$0xff] %v6286
    // Predicated region
    $region54: #{tpu_custom_call.1} parent=1 // pred_check
      _
    $region55: #{tpu_custom_call.1} parent=1 // pred_check_branch
      %6298 = sbr.rel (0) target = $region57
    $region56: #{tpu_custom_call.1} parent=1 // pred_region
      %s6300 = ssub.s32 1024, 1024
      %6301 = vsyncadd [#allocation5], %s6300
      %s6302 = sshll.u32 [#allocation4], 4
      %s6303 = int_to_ptr.vmem [resolvable:$true] %s6302
      %6308 = dma.vmem_to_hbm [thread:$0]  %s6303, 1024, %s13, [#allocation5], 128, 128, 8
    $region57: #{tpu_custom_call.1} parent=1 // pred_fallthru
      _
    // Predicated region
    $region58: #{tpu_custom_call.1} parent=1 // pred_check
      _
    $region59: #{tpu_custom_call.1} parent=1 // pred_check_branch
      %6310 = sbr.rel (0) target = $region61
    $region60: #{tpu_custom_call.1} parent=1 // pred_region
      %6311 = dma.done [#allocation5], 1024
    $region61: #{tpu_custom_call.1} parent=1 // pred_fallthru
      _
    %6312 = vsyncpa [#allocation5], 1

</llo_original>
